<compile_context>
chip_gen: v6e
topology: v6e:2x2x1
jax: 0.10.0
libtpu: 0.0.40
codegen_flags: <defaults>
</compile_context>

<pallas_src>
import functools

import jax
import jax.numpy as jnp
from jax.experimental import pallas as pl
from jax.experimental.pallas import tpu as pltpu


def _ru8(v):
    return ((v + 7) // 8) * 8


# ---------------------------------------------------------------------------
# Fused decoder kernel (one batch element per grid step)
# ---------------------------------------------------------------------------
def _fc_decoder_kernel(H, W, z_ref, w1_ref, b1_ref, w2a_ref, w2b_ref, b2_ref,
                       w3_ref, b3_ref, out_ref, x2e_ref, x2o_ref, x3_ref):
    f32 = jnp.float32
    bf16 = jnp.bfloat16
    Wp2 = x2e_ref.shape[1]          # padded W+1 (x2 planes)
    Wp3 = x3_ref.shape[2]           # padded W+2 (x3 planes)

    # ---- zero borders -------------------------------------------------------
    # The zero borders implement the deconv output_padding and conv3's "same"
    # padding.  Interiors are fully rewritten below; borders never are, so we
    # only touch the thin strips (cheap) and do it every step so it stays
    # correct when the parallel batch axis is sharded across TensorCores.
    for ref2 in (x2e_ref, x2o_ref):
        ref2[H:H + 1, :, :] = jnp.zeros((1, Wp2, 256), bf16)
        ref2[0:H, W:Wp2, :] = jnp.zeros((H, Wp2 - W, 256), bf16)
    for r in range(4):
        x3_ref[r, 0:1, :, :] = jnp.zeros((1, Wp3, 256), bf16)
        x3_ref[r, H + 1:H + 2, :, :] = jnp.zeros((1, Wp3, 256), bf16)
        x3_ref[r, 1:H + 1, 0:1, :] = jnp.zeros((H, 1, 256), bf16)
        x3_ref[r, 1:H + 1, W + 1:Wp3, :] = jnp.zeros((H, Wp3 - (W + 1), 256), bf16)

    # ---- layer 1: ConvTranspose2d(C0 -> 128, k3, s2, p1, op1) + ReLU --------
    # z_ref is the wrapper-built im2col slab (H*W, 4*C0): the 4 z windows
    # z[i,j], z[i,j+1], z[i+1,j], z[i+1,j+1] concatenated along K.  The 512
    # output lanes are the 4 phases [x2(2i,2j) | x2(2i,2j+1) | x2(2i+1,2j) |
    # x2(2i+1,2j+1)], 128 channels each.
    acc1 = jnp.dot(z_ref[...], w1_ref[...], preferred_element_type=f32)
    x2 = jnp.maximum(acc1 + b1_ref[...], 0.0)                    # (H*W,512) f32
    # even x2 rows -> x2e, odd rows -> x2o; column phases packed as 2x128 ch.
    x2e_ref[0:H, 0:W, :] = x2[:, 0:256].astype(bf16).reshape(H, W, 256)
    x2o_ref[0:H, 0:W, :] = x2[:, 256:512].astype(bf16).reshape(H, W, 256)

    # ---- layer 2: ConvTranspose2d(128 -> 64, k3, s2, p1, op1) + ReLU --------
    # Output rows fall into 4 classes r (row 4i+r); output columns into 4
    # classes m (col 4j+m) packed as 4*64 = 256 lanes.  For each kernel row ky
    # the two column taps that share the spatial window (x2 cols 2j and 2j+1,
    # i.e. channel halves of the same plane slice) are merged into one K=256
    # matmul (w2a); the remaining tap (x2 col 2j+2) is K=128 (w2b).
    for r in range(4):
        ipar, qy = r >> 1, r & 1
        ytaps = [(1, 0)] if qy == 0 else [(2, 0), (0, 1)]        # (ky, row shift)
        acc2 = jnp.zeros((H * W, 256), f32)
        for ky, di in ytaps:
            rp = ipar + di          # 0: x2 row 2i, 1: row 2i+1, 2: row 2i+2
            src = x2o_ref if rp == 1 else x2e_ref
            i0 = 1 if rp == 2 else 0
            lhs_a = src[i0:i0 + H, 0:W, :].reshape(H * W, 256)
            acc2 = acc2 + jnp.dot(lhs_a, w2a_ref[ky],
                                  preferred_element_type=f32)
            lhs_b = src[i0:i0 + H, 1:W + 1, 0:128].reshape(H * W, 128)
            acc2 = acc2 + jnp.dot(lhs_b, w2b_ref[ky],
                                  preferred_element_type=f32)
        x3r = jnp.maximum(acc2 + b2_ref[...], 0.0)               # (H*W,256) f32
        x3_ref[r, 1:H + 1, 1:W + 1, :] = x3r.astype(bf16).reshape(H, W, 256)

    # ---- layer 3 (fused epilogue): Conv2d(64 -> 1, k3, s1, p1) + sigmoid ----
    # x3 rows needed for output row 4i+r are 4i+rr with rr = r+ky-1 in
    # [-1, 4].  For each (rr, pos) window the RHS w3_ref[idx*3+pos] is a
    # (256, 16) block whose 4x4 output lanes are (row class r, col class m);
    # all 4 row classes accumulate into a single (H*W, 16) accumulator.
    acc3 = jnp.zeros((H * W, 16), f32)
    # (plane p, row offset rs) for rr = -1, 0, 1, 2, 3, 4
    RRS = ((3, 0), (0, 1), (1, 1), (2, 1), (3, 1), (0, 2))
    for idx, (p, rs) in enumerate(RRS):
        for pos in range(3):        # x3 column window: block j-1 / j / j+1
            win = x3_ref[p, rs:rs + H, pos:pos + W, :].reshape(H * W, 256)
            acc3 = acc3 + jnp.dot(win, w3_ref[idx * 3 + pos],
                                  preferred_element_type=f32)
    o = acc3 + b3_ref[...]
    o = 1.0 / (1.0 + jnp.exp(-o))                                # sigmoid (EUP)
    out_ref[...] = o                                             # (H*W, 16)


# ---------------------------------------------------------------------------
# Weight packing (plain JAX, done once) for the phase/sub-pixel formulation
# ---------------------------------------------------------------------------
def _pack_params(wt1, b1, wt2, b2, wc3, b3):
    f32 = jnp.float32
    bf16 = jnp.bfloat16
    C0 = wt1.shape[0]

    # ---- layer 1: (4*C0, 512); K blocks ordered like the im2col windows ----
    def a(ky, kx):
        return wt1[:, :, ky, kx]                                 # (C0, 128)
    z1 = jnp.zeros((C0, 128), f32)
    w1p = jnp.concatenate([
        jnp.concatenate([a(1, 1), a(1, 2), a(2, 1), a(2, 2)], axis=1),  # z[i,j]
        jnp.concatenate([z1,      a(1, 0), z1,      a(2, 0)], axis=1),  # z[i,j+1]
        jnp.concatenate([z1,      z1,      a(0, 1), a(0, 2)], axis=1),  # z[i+1,j]
        jnp.concatenate([z1,      z1,      z1,      a(0, 0)], axis=1),  # z[i+1,j+1]
    ], axis=0)                                                   # (4*C0, 512)

    # ---- layer 2: merged cp0+cp1 (K=256) and cp2 (K=128) blocks ------------
    def c(ky, kx):
        return wt2[:, :, ky, kx]                                 # (128, 64)
    z2 = jnp.zeros((128, 64), f32)
    w2a = jnp.stack([
        jnp.concatenate([
            jnp.concatenate([c(ky, 1), c(ky, 2), z2, z2], axis=1),        # x2 col 2j
            jnp.concatenate([z2, c(ky, 0), c(ky, 1), c(ky, 2)], axis=1),  # x2 col 2j+1
        ], axis=0) for ky in range(3)])                          # (3, 256, 256)
    w2b = jnp.stack([
        jnp.concatenate([z2, z2, z2, c(ky, 0)], axis=1)          # x2 col 2j+2
        for ky in range(3)])                                     # (3, 128, 256)

    # ---- layer 3: per x3-row-class (rr) packed (256, 16) blocks ------------
    u = wc3[0]                                                   # (64, 3, 3)

    def blk3(ky, pos):                                           # original (256,4)
        if pos == 0:
            return jnp.zeros((256, 4), f32).at[192:256, 0].set(u[:, ky, 0])
        if pos == 2:
            return jnp.zeros((256, 4), f32).at[0:64, 3].set(u[:, ky, 2])
        wc = jnp.zeros((256, 4), f32)
        for bb in range(4):
            wc = wc.at[bb * 64:(bb + 1) * 64, bb].set(u[:, ky, 1])
            if bb >= 1:
                wc = wc.at[bb * 64:(bb + 1) * 64, bb - 1].set(u[:, ky, 2])
            if bb <= 2:
                wc = wc.at[bb * 64:(bb + 1) * 64, bb + 1].set(u[:, ky, 0])
        return wc

    w3_blocks = []
    for rr in (-1, 0, 1, 2, 3, 4):
        for pos in range(3):
            blk = jnp.zeros((256, 16), f32)
            for r in range(4):
                ky = rr - r + 1
                if 0 <= ky <= 2:
                    blk = blk.at[:, r * 4:(r + 1) * 4].set(blk3(ky, pos))
            w3_blocks.append(blk)
    w3p = jnp.stack(w3_blocks)                                   # (18, 256, 16)

    return {
        "w1p": w1p.astype(bf16), "b1p": jnp.tile(b1, 4)[None, :],
        "w2ap": w2a.astype(bf16), "w2bp": w2b.astype(bf16),
        "b2p": jnp.tile(b2, 4)[None, :],
        "w3p": w3p.astype(bf16), "b3p": jnp.tile(b3, 16)[None, :],
    }


# ---------------------------------------------------------------------------
# FCDecoder forward (PyTorch NCHW in / NCHW out)
# ---------------------------------------------------------------------------
def fc_decoder_forward(z_nchw, params):
    N, C0, H, W = z_nchw.shape
    x = jnp.transpose(z_nchw, (0, 2, 3, 1))                      # NHWC (tiny)
    xp = jnp.pad(x, ((0, 0), (0, 1), (0, 1), (0, 0)))            # +1 zero row/col
    # im2col slab for layer 1: 4 shifted z windows concatenated along K.
    wins = [xp[:, di:di + H, dj:dj + W, :]
            for di, dj in ((0, 0), (0, 1), (1, 0), (1, 1))]
    zcat = jnp.concatenate(wins, axis=-1).reshape(N, H * W, 4 * C0)
    zcat = zcat.astype(jnp.bfloat16)

    out = pl.pallas_call(
        functools.partial(_fc_decoder_kernel, H, W),
        out_shape=jax.ShapeDtypeStruct((N, H * W, 16), jnp.float32),
        grid=(N,),
        in_specs=[
            pl.BlockSpec((None, H * W, 4 * C0), lambda n: (n, 0, 0)),
            pl.BlockSpec((4 * C0, 512), lambda n: (0, 0)),
            pl.BlockSpec((1, 512), lambda n: (0, 0)),
            pl.BlockSpec((3, 256, 256), lambda n: (0, 0, 0)),
            pl.BlockSpec((3, 128, 256), lambda n: (0, 0, 0)),
            pl.BlockSpec((1, 256), lambda n: (0, 0)),
            pl.BlockSpec((18, 256, 16), lambda n: (0, 0, 0)),
            pl.BlockSpec((1, 16), lambda n: (0, 0)),
        ],
        out_specs=pl.BlockSpec((None, H * W, 16), lambda n: (n, 0, 0)),
        scratch_shapes=[
            pltpu.VMEM((H + 1, _ru8(W + 1), 256), jnp.bfloat16),   # x2 even rows
            pltpu.VMEM((H + 1, _ru8(W + 1), 256), jnp.bfloat16),   # x2 odd rows
            pltpu.VMEM((4, H + 2, _ru8(W + 2), 256), jnp.bfloat16),  # x3 row planes
        ],
        compiler_params=pltpu.CompilerParams(
            dimension_semantics=("parallel",),
            vmem_limit_bytes=64 * 1024 * 1024),
    )(zcat, params["w1p"], params["b1p"], params["w2ap"], params["w2bp"],
      params["b2p"], params["w3p"], params["b3p"])

    # out[n, i*W+j, r*4+m] = decoder output pixel (n, 0, 4i+r, 4j+m).
    o = out.reshape(N, H, W, 4, 4).transpose(0, 1, 3, 2, 4)
    o = o.reshape(N, 4 * H, 4 * W)
    return o[:, None, :, :]                                      # NCHW


def init_params(key, latent_dim):
    k1, k2, k3, k4, k5, k6 = jax.random.split(key, 6)
    wt1 = jax.random.normal(k1, (latent_dim, 128, 3, 3), jnp.float32) * 0.10
    b1 = jax.random.normal(k2, (128,), jnp.float32) * 0.10
    wt2 = jax.random.normal(k3, (128, 64, 3, 3), jnp.float32) * 0.05
    b2 = jax.random.normal(k4, (64,), jnp.float32) * 0.05
    wc3 = jax.random.normal(k5, (1, 64, 3, 3), jnp.float32) * 0.05
    b3 = jax.random.normal(k6, (1,), jnp.float32) * 0.05
    params = {"wt1": wt1, "b1": b1, "wt2": wt2, "b2": b2, "wc3": wc3, "b3": b3}
    params.update(_pack_params(wt1, b1, wt2, b2, wc3, b3))
    return params


# ---------------------------------------------------------------------------
# Pure-JAX reference (XLA convs, f32, NCHW) for correctness checking
# ---------------------------------------------------------------------------
def ref_decoder(z_nchw, params):
    dn = ("NCHW", "OIHW", "NCHW")

    def deconv(x, wt, b):
        wc = jnp.flip(wt, axis=(2, 3)).transpose(1, 0, 2, 3)
        y = jax.lax.conv_general_dilated(
            x, wc, window_strides=(1, 1), padding=[(1, 2), (1, 2)],
            lhs_dilation=(2, 2), dimension_numbers=dn)
        return y + b[None, :, None, None]

    def conv(x, w, b):
        y = jax.lax.conv_general_dilated(
            x, w, window_strides=(1, 1), padding=[(1, 1), (1, 1)],
            dimension_numbers=dn)
        return y + b[None, :, None, None]

    x = jax.nn.relu(deconv(z_nchw, params["wt1"], params["b1"]))
    x = jax.nn.relu(deconv(x, params["wt2"], params["b2"]))
    return jax.nn.sigmoid(conv(x, params["wc3"], params["b3"]))


if __name__ == "__main__":
    key = jax.random.PRNGKey(0)
    latent_dim = 4
    N, H, W = 2, 8, 8

    kz, kp = jax.random.split(key)
    z = jax.random.normal(kz, (N, latent_dim, H, W), jnp.float32)
    params = init_params(kp, latent_dim)

    fwd = jax.jit(fc_decoder_forward)
    out = jax.block_until_ready(fwd(z, params))
    assert out.shape == (N, 1, 4 * H, 4 * W), out.shape

    ref = ref_decoder(z, params)
    # bf16 MXU operands + bf16 VMEM feature maps, f32 accumulation -> relaxed
    # tolerance vs the f32 XLA reference (output passes through a sigmoid).
    err = float(jnp.max(jnp.abs(out - ref)))
    if err > 2e-2:
        raise SystemExit(f"mismatch vs reference: max abs err = {err}")
    print("KERNEL_OK")
</pallas_src>

<mosaic_0001>
module attributes {stable_mosaic.version = 11 : i64} {
  func.func @_fc_decoder_kernel(%arg0: i32, %arg1: memref<1x64x16xbf16, #tpu.memory_space<vmem>>, %arg2: memref<16x512xbf16, #tpu.memory_space<vmem>>, %arg3: memref<1x512xf32, #tpu.memory_space<vmem>>, %arg4: memref<3x256x256xbf16, #tpu.memory_space<vmem>>, %arg5: memref<3x128x256xbf16, #tpu.memory_space<vmem>>, %arg6: memref<1x256xf32, #tpu.memory_space<vmem>>, %arg7: memref<18x256x16xbf16, #tpu.memory_space<vmem>>, %arg8: memref<1x16xf32, #tpu.memory_space<vmem>>, %arg9: memref<1x64x16xf32, #tpu.memory_space<vmem>>, %arg10: memref<9x16x256xbf16, #tpu.memory_space<vmem>>, %arg11: memref<9x16x256xbf16, #tpu.memory_space<vmem>>, %arg12: memref<4x10x16x256xbf16, #tpu.memory_space<vmem>>) attributes {dimension_semantics = [#tpu.dimension_semantics<parallel>], iteration_bounds = array<i64: 2>, scalar_prefetch = 0 : i64, scratch_operands = 3 : i64, tpu.core_type = #tpu.core_type<tc>, window_params = [{transform_indices = @transform_0, window_bounds = array<i64: 1, 64, 16>}, {pipeline_mode = #tpu.pipeline_mode<synchronous>, transform_indices = @transform_1, window_bounds = array<i64: 16, 512>}, {pipeline_mode = #tpu.pipeline_mode<synchronous>, transform_indices = @transform_2, window_bounds = array<i64: 1, 512>}, {pipeline_mode = #tpu.pipeline_mode<synchronous>, transform_indices = @transform_3, window_bounds = array<i64: 3, 256, 256>}, {pipeline_mode = #tpu.pipeline_mode<synchronous>, transform_indices = @transform_4, window_bounds = array<i64: 3, 128, 256>}, {pipeline_mode = #tpu.pipeline_mode<synchronous>, transform_indices = @transform_5, window_bounds = array<i64: 1, 256>}, {pipeline_mode = #tpu.pipeline_mode<synchronous>, transform_indices = @transform_6, window_bounds = array<i64: 18, 256, 16>}, {pipeline_mode = #tpu.pipeline_mode<synchronous>, transform_indices = @transform_7, window_bounds = array<i64: 1, 16>}, {transform_indices = @transform_8, window_bounds = array<i64: 1, 64, 16>}]} {
    %cst = arith.constant 0.000000e+00 : bf16
    %0 = vector.broadcast %cst : bf16 to vector<1x16x256xbf16>
    %c8 = arith.constant 8 : index
    %c0 = arith.constant 0 : index
    %c0_0 = arith.constant 0 : index
    %1 = vector.load %arg10[%c8, %c0, %c0_0] : memref<9x16x256xbf16, #tpu.memory_space<vmem>>, vector<1x16x256xbf16>
    tpu.vector_store %arg10[%c8, %c0, %c0_0], %0 {strides = array<i32>} : memref<9x16x256xbf16, #tpu.memory_space<vmem>>, vector<1x16x256xbf16>,
    %cst_1 = arith.constant 0.000000e+00 : bf16
    %2 = vector.broadcast %cst_1 : bf16 to vector<8x8x256xbf16>
    %c0_2 = arith.constant 0 : index
    %c8_3 = arith.constant 8 : index
    %c0_4 = arith.constant 0 : index
    %3 = vector.load %arg10[%c0_2, %c8_3, %c0_4] : memref<9x16x256xbf16, #tpu.memory_space<vmem>>, vector<8x8x256xbf16>
    tpu.vector_store %arg10[%c0_2, %c8_3, %c0_4], %2 {strides = array<i32>} : memref<9x16x256xbf16, #tpu.memory_space<vmem>>, vector<8x8x256xbf16>,
    %cst_5 = arith.constant 0.000000e+00 : bf16
    %4 = vector.broadcast %cst_5 : bf16 to vector<1x16x256xbf16>
    %c8_6 = arith.constant 8 : index
    %c0_7 = arith.constant 0 : index
    %c0_8 = arith.constant 0 : index
    %5 = vector.load %arg11[%c8_6, %c0_7, %c0_8] : memref<9x16x256xbf16, #tpu.memory_space<vmem>>, vector<1x16x256xbf16>
    tpu.vector_store %arg11[%c8_6, %c0_7, %c0_8], %4 {strides = array<i32>} : memref<9x16x256xbf16, #tpu.memory_space<vmem>>, vector<1x16x256xbf16>,
    %cst_9 = arith.constant 0.000000e+00 : bf16
    %6 = vector.broadcast %cst_9 : bf16 to vector<8x8x256xbf16>
    %c0_10 = arith.constant 0 : index
    %c8_11 = arith.constant 8 : index
    %c0_12 = arith.constant 0 : index
    %7 = vector.load %arg11[%c0_10, %c8_11, %c0_12] : memref<9x16x256xbf16, #tpu.memory_space<vmem>>, vector<8x8x256xbf16>
    tpu.vector_store %arg11[%c0_10, %c8_11, %c0_12], %6 {strides = array<i32>} : memref<9x16x256xbf16, #tpu.memory_space<vmem>>, vector<8x8x256xbf16>,
    %cst_13 = arith.constant 0.000000e+00 : bf16
    %8 = vector.broadcast %cst_13 : bf16 to vector<1x16x256xbf16>
    %c0_14 = arith.constant 0 : index
    %c0_15 = arith.constant 0 : index
    %c0_16 = arith.constant 0 : index
    %c0_17 = arith.constant 0 : index
    %9 = vector.load %arg12[%c0_14, %c0_15, %c0_16, %c0_17] : memref<4x10x16x256xbf16, #tpu.memory_space<vmem>>, vector<1x1x16x256xbf16>
    %10 = vector.shape_cast %9 : vector<1x1x16x256xbf16> to vector<1x16x256xbf16>
    %11 = vector.shape_cast %8 : vector<1x16x256xbf16> to vector<1x1x16x256xbf16>
    tpu.vector_store %arg12[%c0_14, %c0_15, %c0_16, %c0_17], %11 {strides = array<i32>} : memref<4x10x16x256xbf16, #tpu.memory_space<vmem>>, vector<1x1x16x256xbf16>,
    %cst_18 = arith.constant 0.000000e+00 : bf16
    %12 = vector.broadcast %cst_18 : bf16 to vector<1x16x256xbf16>
    %c0_19 = arith.constant 0 : index
    %c9 = arith.constant 9 : index
    %c0_20 = arith.constant 0 : index
    %c0_21 = arith.constant 0 : index
    %13 = vector.load %arg12[%c0_19, %c9, %c0_20, %c0_21] : memref<4x10x16x256xbf16, #tpu.memory_space<vmem>>, vector<1x1x16x256xbf16>
    %14 = vector.shape_cast %13 : vector<1x1x16x256xbf16> to vector<1x16x256xbf16>
    %15 = vector.shape_cast %12 : vector<1x16x256xbf16> to vector<1x1x16x256xbf16>
    tpu.vector_store %arg12[%c0_19, %c9, %c0_20, %c0_21], %15 {strides = array<i32>} : memref<4x10x16x256xbf16, #tpu.memory_space<vmem>>, vector<1x1x16x256xbf16>,
    %cst_22 = arith.constant 0.000000e+00 : bf16
    %16 = vector.broadcast %cst_22 : bf16 to vector<8x1x256xbf16>
    %c0_23 = arith.constant 0 : index
    %c1 = arith.constant 1 : index
    %c0_24 = arith.constant 0 : index
    %c0_25 = arith.constant 0 : index
    %17 = vector.load %arg12[%c0_23, %c1, %c0_24, %c0_25] : memref<4x10x16x256xbf16, #tpu.memory_space<vmem>>, vector<1x8x1x256xbf16>
    %18 = vector.shape_cast %17 : vector<1x8x1x256xbf16> to vector<8x1x256xbf16>
    %19 = vector.shape_cast %16 : vector<8x1x256xbf16> to vector<1x8x1x256xbf16>
    tpu.vector_store %arg12[%c0_23, %c1, %c0_24, %c0_25], %19 {strides = array<i32>} : memref<4x10x16x256xbf16, #tpu.memory_space<vmem>>, vector<1x8x1x256xbf16>,
    %cst_26 = arith.constant 0.000000e+00 : bf16
    %20 = vector.broadcast %cst_26 : bf16 to vector<8x7x256xbf16>
    %c0_27 = arith.constant 0 : index
    %c1_28 = arith.constant 1 : index
    %c9_29 = arith.constant 9 : index
    %c0_30 = arith.constant 0 : index
    %21 = vector.load %arg12[%c0_27, %c1_28, %c9_29, %c0_30] : memref<4x10x16x256xbf16, #tpu.memory_space<vmem>>, vector<1x8x7x256xbf16>
    %22 = vector.shape_cast %21 : vector<1x8x7x256xbf16> to vector<8x7x256xbf16>
    %23 = vector.shape_cast %20 : vector<8x7x256xbf16> to vector<1x8x7x256xbf16>
    tpu.vector_store %arg12[%c0_27, %c1_28, %c9_29, %c0_30], %23 {strides = array<i32>} : memref<4x10x16x256xbf16, #tpu.memory_space<vmem>>, vector<1x8x7x256xbf16>,
    %cst_31 = arith.constant 0.000000e+00 : bf16
    %24 = vector.broadcast %cst_31 : bf16 to vector<1x16x256xbf16>
    %c1_32 = arith.constant 1 : index
    %c0_33 = arith.constant 0 : index
    %c0_34 = arith.constant 0 : index
    %c0_35 = arith.constant 0 : index
    %25 = vector.load %arg12[%c1_32, %c0_33, %c0_34, %c0_35] : memref<4x10x16x256xbf16, #tpu.memory_space<vmem>>, vector<1x1x16x256xbf16>
    %26 = vector.shape_cast %25 : vector<1x1x16x256xbf16> to vector<1x16x256xbf16>
    %27 = vector.shape_cast %24 : vector<1x16x256xbf16> to vector<1x1x16x256xbf16>
    tpu.vector_store %arg12[%c1_32, %c0_33, %c0_34, %c0_35], %27 {strides = array<i32>} : memref<4x10x16x256xbf16, #tpu.memory_space<vmem>>, vector<1x1x16x256xbf16>,
    %cst_36 = arith.constant 0.000000e+00 : bf16
    %28 = vector.broadcast %cst_36 : bf16 to vector<1x16x256xbf16>
    %c1_37 = arith.constant 1 : index
    %c9_38 = arith.constant 9 : index
    %c0_39 = arith.constant 0 : index
    %c0_40 = arith.constant 0 : index
    %29 = vector.load %arg12[%c1_37, %c9_38, %c0_39, %c0_40] : memref<4x10x16x256xbf16, #tpu.memory_space<vmem>>, vector<1x1x16x256xbf16>
    %30 = vector.shape_cast %29 : vector<1x1x16x256xbf16> to vector<1x16x256xbf16>
    %31 = vector.shape_cast %28 : vector<1x16x256xbf16> to vector<1x1x16x256xbf16>
    tpu.vector_store %arg12[%c1_37, %c9_38, %c0_39, %c0_40], %31 {strides = array<i32>} : memref<4x10x16x256xbf16, #tpu.memory_space<vmem>>, vector<1x1x16x256xbf16>,
    %cst_41 = arith.constant 0.000000e+00 : bf16
    %32 = vector.broadcast %cst_41 : bf16 to vector<8x1x256xbf16>
    %c1_42 = arith.constant 1 : index
    %c1_43 = arith.constant 1 : index
    %c0_44 = arith.constant 0 : index
    %c0_45 = arith.constant 0 : index
    %33 = vector.load %arg12[%c1_42, %c1_43, %c0_44, %c0_45] : memref<4x10x16x256xbf16, #tpu.memory_space<vmem>>, vector<1x8x1x256xbf16>
    %34 = vector.shape_cast %33 : vector<1x8x1x256xbf16> to vector<8x1x256xbf16>
    %35 = vector.shape_cast %32 : vector<8x1x256xbf16> to vector<1x8x1x256xbf16>
    tpu.vector_store %arg12[%c1_42, %c1_43, %c0_44, %c0_45], %35 {strides = array<i32>} : memref<4x10x16x256xbf16, #tpu.memory_space<vmem>>, vector<1x8x1x256xbf16>,
    %cst_46 = arith.constant 0.000000e+00 : bf16
    %36 = vector.broadcast %cst_46 : bf16 to vector<8x7x256xbf16>
    %c1_47 = arith.constant 1 : index
    %c1_48 = arith.constant 1 : index
    %c9_49 = arith.constant 9 : index
    %c0_50 = arith.constant 0 : index
    %37 = vector.load %arg12[%c1_47, %c1_48, %c9_49, %c0_50] : memref<4x10x16x256xbf16, #tpu.memory_space<vmem>>, vector<1x8x7x256xbf16>
    %38 = vector.shape_cast %37 : vector<1x8x7x256xbf16> to vector<8x7x256xbf16>
    %39 = vector.shape_cast %36 : vector<8x7x256xbf16> to vector<1x8x7x256xbf16>
    tpu.vector_store %arg12[%c1_47, %c1_48, %c9_49, %c0_50], %39 {strides = array<i32>} : memref<4x10x16x256xbf16, #tpu.memory_space<vmem>>, vector<1x8x7x256xbf16>,
    %cst_51 = arith.constant 0.000000e+00 : bf16
    %40 = vector.broadcast %cst_51 : bf16 to vector<1x16x256xbf16>
    %c2 = arith.constant 2 : index
    %c0_52 = arith.constant 0 : index
    %c0_53 = arith.constant 0 : index
    %c0_54 = arith.constant 0 : index
    %41 = vector.load %arg12[%c2, %c0_52, %c0_53, %c0_54] : memref<4x10x16x256xbf16, #tpu.memory_space<vmem>>, vector<1x1x16x256xbf16>
    %42 = vector.shape_cast %41 : vector<1x1x16x256xbf16> to vector<1x16x256xbf16>
    %43 = vector.shape_cast %40 : vector<1x16x256xbf16> to vector<1x1x16x256xbf16>
    tpu.vector_store %arg12[%c2, %c0_52, %c0_53, %c0_54], %43 {strides = array<i32>} : memref<4x10x16x256xbf16, #tpu.memory_space<vmem>>, vector<1x1x16x256xbf16>,
    %cst_55 = arith.constant 0.000000e+00 : bf16
    %44 = vector.broadcast %cst_55 : bf16 to vector<1x16x256xbf16>
    %c2_56 = arith.constant 2 : index
    %c9_57 = arith.constant 9 : index
    %c0_58 = arith.constant 0 : index
    %c0_59 = arith.constant 0 : index
    %45 = vector.load %arg12[%c2_56, %c9_57, %c0_58, %c0_59] : memref<4x10x16x256xbf16, #tpu.memory_space<vmem>>, vector<1x1x16x256xbf16>
    %46 = vector.shape_cast %45 : vector<1x1x16x256xbf16> to vector<1x16x256xbf16>
    %47 = vector.shape_cast %44 : vector<1x16x256xbf16> to vector<1x1x16x256xbf16>
    tpu.vector_store %arg12[%c2_56, %c9_57, %c0_58, %c0_59], %47 {strides = array<i32>} : memref<4x10x16x256xbf16, #tpu.memory_space<vmem>>, vector<1x1x16x256xbf16>,
    %cst_60 = arith.constant 0.000000e+00 : bf16
    %48 = vector.broadcast %cst_60 : bf16 to vector<8x1x256xbf16>
    %c2_61 = arith.constant 2 : index
    %c1_62 = arith.constant 1 : index
    %c0_63 = arith.constant 0 : index
    %c0_64 = arith.constant 0 : index
    %49 = vector.load %arg12[%c2_61, %c1_62, %c0_63, %c0_64] : memref<4x10x16x256xbf16, #tpu.memory_space<vmem>>, vector<1x8x1x256xbf16>
    %50 = vector.shape_cast %49 : vector<1x8x1x256xbf16> to vector<8x1x256xbf16>
    %51 = vector.shape_cast %48 : vector<8x1x256xbf16> to vector<1x8x1x256xbf16>
    tpu.vector_store %arg12[%c2_61, %c1_62, %c0_63, %c0_64], %51 {strides = array<i32>} : memref<4x10x16x256xbf16, #tpu.memory_space<vmem>>, vector<1x8x1x256xbf16>,
    %cst_65 = arith.constant 0.000000e+00 : bf16
    %52 = vector.broadcast %cst_65 : bf16 to vector<8x7x256xbf16>
    %c2_66 = arith.constant 2 : index
    %c1_67 = arith.constant 1 : index
    %c9_68 = arith.constant 9 : index
    %c0_69 = arith.constant 0 : index
    %53 = vector.load %arg12[%c2_66, %c1_67, %c9_68, %c0_69] : memref<4x10x16x256xbf16, #tpu.memory_space<vmem>>, vector<1x8x7x256xbf16>
    %54 = vector.shape_cast %53 : vector<1x8x7x256xbf16> to vector<8x7x256xbf16>
    %55 = vector.shape_cast %52 : vector<8x7x256xbf16> to vector<1x8x7x256xbf16>
    tpu.vector_store %arg12[%c2_66, %c1_67, %c9_68, %c0_69], %55 {strides = array<i32>} : memref<4x10x16x256xbf16, #tpu.memory_space<vmem>>, vector<1x8x7x256xbf16>,
    %cst_70 = arith.constant 0.000000e+00 : bf16
    %56 = vector.broadcast %cst_70 : bf16 to vector<1x16x256xbf16>
    %c3 = arith.constant 3 : index
    %c0_71 = arith.constant 0 : index
    %c0_72 = arith.constant 0 : index
    %c0_73 = arith.constant 0 : index
    %57 = vector.load %arg12[%c3, %c0_71, %c0_72, %c0_73] : memref<4x10x16x256xbf16, #tpu.memory_space<vmem>>, vector<1x1x16x256xbf16>
    %58 = vector.shape_cast %57 : vector<1x1x16x256xbf16> to vector<1x16x256xbf16>
    %59 = vector.shape_cast %56 : vector<1x16x256xbf16> to vector<1x1x16x256xbf16>
    tpu.vector_store %arg12[%c3, %c0_71, %c0_72, %c0_73], %59 {strides = array<i32>} : memref<4x10x16x256xbf16, #tpu.memory_space<vmem>>, vector<1x1x16x256xbf16>,
    %cst_74 = arith.constant 0.000000e+00 : bf16
    %60 = vector.broadcast %cst_74 : bf16 to vector<1x16x256xbf16>
    %c3_75 = arith.constant 3 : index
    %c9_76 = arith.constant 9 : index
    %c0_77 = arith.constant 0 : index
    %c0_78 = arith.constant 0 : index
    %61 = vector.load %arg12[%c3_75, %c9_76, %c0_77, %c0_78] : memref<4x10x16x256xbf16, #tpu.memory_space<vmem>>, vector<1x1x16x256xbf16>
    %62 = vector.shape_cast %61 : vector<1x1x16x256xbf16> to vector<1x16x256xbf16>
    %63 = vector.shape_cast %60 : vector<1x16x256xbf16> to vector<1x1x16x256xbf16>
    tpu.vector_store %arg12[%c3_75, %c9_76, %c0_77, %c0_78], %63 {strides = array<i32>} : memref<4x10x16x256xbf16, #tpu.memory_space<vmem>>, vector<1x1x16x256xbf16>,
    %cst_79 = arith.constant 0.000000e+00 : bf16
    %64 = vector.broadcast %cst_79 : bf16 to vector<8x1x256xbf16>
    %c3_80 = arith.constant 3 : index
    %c1_81 = arith.constant 1 : index
    %c0_82 = arith.constant 0 : index
    %c0_83 = arith.constant 0 : index
    %65 = vector.load %arg12[%c3_80, %c1_81, %c0_82, %c0_83] : memref<4x10x16x256xbf16, #tpu.memory_space<vmem>>, vector<1x8x1x256xbf16>
    %66 = vector.shape_cast %65 : vector<1x8x1x256xbf16> to vector<8x1x256xbf16>
    %67 = vector.shape_cast %64 : vector<8x1x256xbf16> to vector<1x8x1x256xbf16>
    tpu.vector_store %arg12[%c3_80, %c1_81, %c0_82, %c0_83], %67 {strides = array<i32>} : memref<4x10x16x256xbf16, #tpu.memory_space<vmem>>, vector<1x8x1x256xbf16>,
    %cst_84 = arith.constant 0.000000e+00 : bf16
    %68 = vector.broadcast %cst_84 : bf16 to vector<8x7x256xbf16>
    %c3_85 = arith.constant 3 : index
    %c1_86 = arith.constant 1 : index
    %c9_87 = arith.constant 9 : index
    %c0_88 = arith.constant 0 : index
    %69 = vector.load %arg12[%c3_85, %c1_86, %c9_87, %c0_88] : memref<4x10x16x256xbf16, #tpu.memory_space<vmem>>, vector<1x8x7x256xbf16>
    %70 = vector.shape_cast %69 : vector<1x8x7x256xbf16> to vector<8x7x256xbf16>
    %71 = vector.shape_cast %68 : vector<8x7x256xbf16> to vector<1x8x7x256xbf16>
    tpu.vector_store %arg12[%c3_85, %c1_86, %c9_87, %c0_88], %71 {strides = array<i32>} : memref<4x10x16x256xbf16, #tpu.memory_space<vmem>>, vector<1x8x7x256xbf16>,
    %c0_89 = arith.constant 0 : index
    %c0_90 = arith.constant 0 : index
    %c0_91 = arith.constant 0 : index
    %72 = vector.load %arg1[%c0_89, %c0_90, %c0_91] : memref<1x64x16xbf16, #tpu.memory_space<vmem>>, vector<1x64x16xbf16>
    %73 = vector.shape_cast %72 : vector<1x64x16xbf16> to vector<64x16xbf16>
    %c0_92 = arith.constant 0 : index
    %c0_93 = arith.constant 0 : index
    %74 = vector.load %arg2[%c0_92, %c0_93] : memref<16x512xbf16, #tpu.memory_space<vmem>>, vector<16x512xbf16>
    %cst_94 = arith.constant dense<0.000000e+00> : vector<64x512xf32>
    %75 = tpu.matmul %73, %74, %cst_94 {dimension_numbers = #tpu.dot_dimension_numbers<[1], [0], [0], [1], [0, 0, 1, 1], [], []>} : vector<64x16xbf16>, vector<16x512xbf16>, vector<64x512xf32> -> vector<64x512xf32>
    %c0_95 = arith.constant 0 : index
    %c0_96 = arith.constant 0 : index
    %76 = vector.load %arg3[%c0_95, %c0_96] : memref<1x512xf32, #tpu.memory_space<vmem>>, vector<1x512xf32>
    %77 = vector.broadcast %76 : vector<1x512xf32> to vector<64x512xf32>
    %78 = arith.addf %75, %77 : vector<64x512xf32>
    %cst_97 = arith.constant 0.000000e+00 : f32
    %79 = vector.broadcast %cst_97 : f32 to vector<64x512xf32>
    %80 = arith.maximumf %78, %79 : vector<64x512xf32>
    %81 = vector.extract_strided_slice %80 {offsets = [0, 0], sizes = [64, 256], strides = [1, 1]} : vector<64x512xf32> to vector<64x256xf32>
    %82 = arith.truncf %81 : vector<64x256xf32> to vector<64x256xbf16>
    %83 = vector.shape_cast %82 : vector<64x256xbf16> to vector<8x8x256xbf16>
    %c0_98 = arith.constant 0 : index
    %c0_99 = arith.constant 0 : index
    %c0_100 = arith.constant 0 : index
    %84 = vector.load %arg10[%c0_98, %c0_99, %c0_100] : memref<9x16x256xbf16, #tpu.memory_space<vmem>>, vector<8x8x256xbf16>
    tpu.vector_store %arg10[%c0_98, %c0_99, %c0_100], %83 {strides = array<i32>} : memref<9x16x256xbf16, #tpu.memory_space<vmem>>, vector<8x8x256xbf16>,
    %85 = vector.extract_strided_slice %80 {offsets = [0, 256], sizes = [64, 256], strides = [1, 1]} : vector<64x512xf32> to vector<64x256xf32>
    %86 = arith.truncf %85 : vector<64x256xf32> to vector<64x256xbf16>
    %87 = vector.shape_cast %86 : vector<64x256xbf16> to vector<8x8x256xbf16>
    %c0_101 = arith.constant 0 : index
    %c0_102 = arith.constant 0 : index
    %c0_103 = arith.constant 0 : index
    %88 = vector.load %arg11[%c0_101, %c0_102, %c0_103] : memref<9x16x256xbf16, #tpu.memory_space<vmem>>, vector<8x8x256xbf16>
    tpu.vector_store %arg11[%c0_101, %c0_102, %c0_103], %87 {strides = array<i32>} : memref<9x16x256xbf16, #tpu.memory_space<vmem>>, vector<8x8x256xbf16>,
    %cst_104 = arith.constant 0.000000e+00 : f32
    %89 = vector.broadcast %cst_104 : f32 to vector<64x256xf32>
    %c0_105 = arith.constant 0 : index
    %c0_106 = arith.constant 0 : index
    %c0_107 = arith.constant 0 : index
    %90 = vector.load %arg10[%c0_105, %c0_106, %c0_107] : memref<9x16x256xbf16, #tpu.memory_space<vmem>>, vector<8x8x256xbf16>
    %91 = vector.shape_cast %90 : vector<8x8x256xbf16> to vector<64x256xbf16>
    %c1_108 = arith.constant 1 : index
    %c0_109 = arith.constant 0 : index
    %c0_110 = arith.constant 0 : index
    %92 = vector.load %arg4[%c1_108, %c0_109, %c0_110] : memref<3x256x256xbf16, #tpu.memory_space<vmem>>, vector<1x256x256xbf16>
    %93 = vector.shape_cast %92 : vector<1x256x256xbf16> to vector<256x256xbf16>
    %cst_111 = arith.constant dense<0.000000e+00> : vector<64x256xf32>
    %94 = tpu.matmul %91, %93, %cst_111 {dimension_numbers = #tpu.dot_dimension_numbers<[1], [0], [0], [1], [0, 0, 1, 1], [], []>} : vector<64x256xbf16>, vector<256x256xbf16>, vector<64x256xf32> -> vector<64x256xf32>
    %95 = arith.addf %89, %94 : vector<64x256xf32>
    %c0_112 = arith.constant 0 : index
    %c1_113 = arith.constant 1 : index
    %c0_114 = arith.constant 0 : index
    %96 = vector.load %arg10[%c0_112, %c1_113, %c0_114] : memref<9x16x256xbf16, #tpu.memory_space<vmem>>, vector<8x8x128xbf16>
    %97 = vector.shape_cast %96 : vector<8x8x128xbf16> to vector<64x128xbf16>
    %c1_115 = arith.constant 1 : index
    %c0_116 = arith.constant 0 : index
    %c0_117 = arith.constant 0 : index
    %98 = vector.load %arg5[%c1_115, %c0_116, %c0_117] : memref<3x128x256xbf16, #tpu.memory_space<vmem>>, vector<1x128x256xbf16>
    %99 = vector.shape_cast %98 : vector<1x128x256xbf16> to vector<128x256xbf16>
    %cst_118 = arith.constant dense<0.000000e+00> : vector<64x256xf32>
    %100 = tpu.matmul %97, %99, %cst_118 {dimension_numbers = #tpu.dot_dimension_numbers<[1], [0], [0], [1], [0, 0, 1, 1], [], []>} : vector<64x128xbf16>, vector<128x256xbf16>, vector<64x256xf32> -> vector<64x256xf32>
    %101 = arith.addf %95, %100 : vector<64x256xf32>
    %c0_119 = arith.constant 0 : index
    %c0_120 = arith.constant 0 : index
    %102 = vector.load %arg6[%c0_119, %c0_120] : memref<1x256xf32, #tpu.memory_space<vmem>>, vector<1x256xf32>
    %103 = vector.broadcast %102 : vector<1x256xf32> to vector<64x256xf32>
    %104 = arith.addf %101, %103 : vector<64x256xf32>
    %cst_121 = arith.constant 0.000000e+00 : f32
    %105 = vector.broadcast %cst_121 : f32 to vector<64x256xf32>
    %106 = arith.maximumf %104, %105 : vector<64x256xf32>
    %107 = arith.truncf %106 : vector<64x256xf32> to vector<64x256xbf16>
    %108 = vector.shape_cast %107 : vector<64x256xbf16> to vector<8x8x256xbf16>
    %c0_122 = arith.constant 0 : index
    %c1_123 = arith.constant 1 : index
    %c1_124 = arith.constant 1 : index
    %c0_125 = arith.constant 0 : index
    %109 = vector.load %arg12[%c0_122, %c1_123, %c1_124, %c0_125] : memref<4x10x16x256xbf16, #tpu.memory_space<vmem>>, vector<1x8x8x256xbf16>
    %110 = vector.shape_cast %109 : vector<1x8x8x256xbf16> to vector<8x8x256xbf16>
    %111 = vector.shape_cast %108 : vector<8x8x256xbf16> to vector<1x8x8x256xbf16>
    tpu.vector_store %arg12[%c0_122, %c1_123, %c1_124, %c0_125], %111 {strides = array<i32>} : memref<4x10x16x256xbf16, #tpu.memory_space<vmem>>, vector<1x8x8x256xbf16>,
    %cst_126 = arith.constant 0.000000e+00 : f32
    %112 = vector.broadcast %cst_126 : f32 to vector<64x256xf32>
    %c0_127 = arith.constant 0 : index
    %c0_128 = arith.constant 0 : index
    %c0_129 = arith.constant 0 : index
    %113 = vector.load %arg10[%c0_127, %c0_128, %c0_129] : memref<9x16x256xbf16, #tpu.memory_space<vmem>>, vector<8x8x256xbf16>
    %114 = vector.shape_cast %113 : vector<8x8x256xbf16> to vector<64x256xbf16>
    %c2_130 = arith.constant 2 : index
    %c0_131 = arith.constant 0 : index
    %c0_132 = arith.constant 0 : index
    %115 = vector.load %arg4[%c2_130, %c0_131, %c0_132] : memref<3x256x256xbf16, #tpu.memory_space<vmem>>, vector<1x256x256xbf16>
    %116 = vector.shape_cast %115 : vector<1x256x256xbf16> to vector<256x256xbf16>
    %cst_133 = arith.constant dense<0.000000e+00> : vector<64x256xf32>
    %117 = tpu.matmul %114, %116, %cst_133 {dimension_numbers = #tpu.dot_dimension_numbers<[1], [0], [0], [1], [0, 0, 1, 1], [], []>} : vector<64x256xbf16>, vector<256x256xbf16>, vector<64x256xf32> -> vector<64x256xf32>
    %118 = arith.addf %112, %117 : vector<64x256xf32>
    %c0_134 = arith.constant 0 : index
    %c1_135 = arith.constant 1 : index
    %c0_136 = arith.constant 0 : index
    %119 = vector.load %arg10[%c0_134, %c1_135, %c0_136] : memref<9x16x256xbf16, #tpu.memory_space<vmem>>, vector<8x8x128xbf16>
    %120 = vector.shape_cast %119 : vector<8x8x128xbf16> to vector<64x128xbf16>
    %c2_137 = arith.constant 2 : index
    %c0_138 = arith.constant 0 : index
    %c0_139 = arith.constant 0 : index
    %121 = vector.load %arg5[%c2_137, %c0_138, %c0_139] : memref<3x128x256xbf16, #tpu.memory_space<vmem>>, vector<1x128x256xbf16>
    %122 = vector.shape_cast %121 : vector<1x128x256xbf16> to vector<128x256xbf16>
    %cst_140 = arith.constant dense<0.000000e+00> : vector<64x256xf32>
    %123 = tpu.matmul %120, %122, %cst_140 {dimension_numbers = #tpu.dot_dimension_numbers<[1], [0], [0], [1], [0, 0, 1, 1], [], []>} : vector<64x128xbf16>, vector<128x256xbf16>, vector<64x256xf32> -> vector<64x256xf32>
    %124 = arith.addf %118, %123 : vector<64x256xf32>
    %c0_141 = arith.constant 0 : index
    %c0_142 = arith.constant 0 : index
    %c0_143 = arith.constant 0 : index
    %125 = vector.load %arg11[%c0_141, %c0_142, %c0_143] : memref<9x16x256xbf16, #tpu.memory_space<vmem>>, vector<8x8x256xbf16>
    %126 = vector.shape_cast %125 : vector<8x8x256xbf16> to vector<64x256xbf16>
    %c0_144 = arith.constant 0 : index
    %c0_145 = arith.constant 0 : index
    %c0_146 = arith.constant 0 : index
    %127 = vector.load %arg4[%c0_144, %c0_145, %c0_146] : memref<3x256x256xbf16, #tpu.memory_space<vmem>>, vector<1x256x256xbf16>
    %128 = vector.shape_cast %127 : vector<1x256x256xbf16> to vector<256x256xbf16>
    %cst_147 = arith.constant dense<0.000000e+00> : vector<64x256xf32>
    %129 = tpu.matmul %126, %128, %cst_147 {dimension_numbers = #tpu.dot_dimension_numbers<[1], [0], [0], [1], [0, 0, 1, 1], [], []>} : vector<64x256xbf16>, vector<256x256xbf16>, vector<64x256xf32> -> vector<64x256xf32>
    %130 = arith.addf %124, %129 : vector<64x256xf32>
    %c0_148 = arith.constant 0 : index
    %c1_149 = arith.constant 1 : index
    %c0_150 = arith.constant 0 : index
    %131 = vector.load %arg11[%c0_148, %c1_149, %c0_150] : memref<9x16x256xbf16, #tpu.memory_space<vmem>>, vector<8x8x128xbf16>
    %132 = vector.shape_cast %131 : vector<8x8x128xbf16> to vector<64x128xbf16>
    %c0_151 = arith.constant 0 : index
    %c0_152 = arith.constant 0 : index
    %c0_153 = arith.constant 0 : index
    %133 = vector.load %arg5[%c0_151, %c0_152, %c0_153] : memref<3x128x256xbf16, #tpu.memory_space<vmem>>, vector<1x128x256xbf16>
    %134 = vector.shape_cast %133 : vector<1x128x256xbf16> to vector<128x256xbf16>
    %cst_154 = arith.constant dense<0.000000e+00> : vector<64x256xf32>
    %135 = tpu.matmul %132, %134, %cst_154 {dimension_numbers = #tpu.dot_dimension_numbers<[1], [0], [0], [1], [0, 0, 1, 1], [], []>} : vector<64x128xbf16>, vector<128x256xbf16>, vector<64x256xf32> -> vector<64x256xf32>
    %136 = arith.addf %130, %135 : vector<64x256xf32>
    %c0_155 = arith.constant 0 : index
    %c0_156 = arith.constant 0 : index
    %137 = vector.load %arg6[%c0_155, %c0_156] : memref<1x256xf32, #tpu.memory_space<vmem>>, vector<1x256xf32>
    %138 = vector.broadcast %137 : vector<1x256xf32> to vector<64x256xf32>
    %139 = arith.addf %136, %138 : vector<64x256xf32>
    %cst_157 = arith.constant 0.000000e+00 : f32
    %140 = vector.broadcast %cst_157 : f32 to vector<64x256xf32>
    %141 = arith.maximumf %139, %140 : vector<64x256xf32>
    %142 = arith.truncf %141 : vector<64x256xf32> to vector<64x256xbf16>
    %143 = vector.shape_cast %142 : vector<64x256xbf16> to vector<8x8x256xbf16>
    %c1_158 = arith.constant 1 : index
    %c1_159 = arith.constant 1 : index
    %c1_160 = arith.constant 1 : index
    %c0_161 = arith.constant 0 : index
    %144 = vector.load %arg12[%c1_158, %c1_159, %c1_160, %c0_161] : memref<4x10x16x256xbf16, #tpu.memory_space<vmem>>, vector<1x8x8x256xbf16>
    %145 = vector.shape_cast %144 : vector<1x8x8x256xbf16> to vector<8x8x256xbf16>
    %146 = vector.shape_cast %143 : vector<8x8x256xbf16> to vector<1x8x8x256xbf16>
    tpu.vector_store %arg12[%c1_158, %c1_159, %c1_160, %c0_161], %146 {strides = array<i32>} : memref<4x10x16x256xbf16, #tpu.memory_space<vmem>>, vector<1x8x8x256xbf16>,
    %cst_162 = arith.constant 0.000000e+00 : f32
    %147 = vector.broadcast %cst_162 : f32 to vector<64x256xf32>
    %c0_163 = arith.constant 0 : index
    %c0_164 = arith.constant 0 : index
    %c0_165 = arith.constant 0 : index
    %148 = vector.load %arg11[%c0_163, %c0_164, %c0_165] : memref<9x16x256xbf16, #tpu.memory_space<vmem>>, vector<8x8x256xbf16>
    %149 = vector.shape_cast %148 : vector<8x8x256xbf16> to vector<64x256xbf16>
    %c1_166 = arith.constant 1 : index
    %c0_167 = arith.constant 0 : index
    %c0_168 = arith.constant 0 : index
    %150 = vector.load %arg4[%c1_166, %c0_167, %c0_168] : memref<3x256x256xbf16, #tpu.memory_space<vmem>>, vector<1x256x256xbf16>
    %151 = vector.shape_cast %150 : vector<1x256x256xbf16> to vector<256x256xbf16>
    %cst_169 = arith.constant dense<0.000000e+00> : vector<64x256xf32>
    %152 = tpu.matmul %149, %151, %cst_169 {dimension_numbers = #tpu.dot_dimension_numbers<[1], [0], [0], [1], [0, 0, 1, 1], [], []>} : vector<64x256xbf16>, vector<256x256xbf16>, vector<64x256xf32> -> vector<64x256xf32>
    %153 = arith.addf %147, %152 : vector<64x256xf32>
    %c0_170 = arith.constant 0 : index
    %c1_171 = arith.constant 1 : index
    %c0_172 = arith.constant 0 : index
    %154 = vector.load %arg11[%c0_170, %c1_171, %c0_172] : memref<9x16x256xbf16, #tpu.memory_space<vmem>>, vector<8x8x128xbf16>
    %155 = vector.shape_cast %154 : vector<8x8x128xbf16> to vector<64x128xbf16>
    %c1_173 = arith.constant 1 : index
    %c0_174 = arith.constant 0 : index
    %c0_175 = arith.constant 0 : index
    %156 = vector.load %arg5[%c1_173, %c0_174, %c0_175] : memref<3x128x256xbf16, #tpu.memory_space<vmem>>, vector<1x128x256xbf16>
    %157 = vector.shape_cast %156 : vector<1x128x256xbf16> to vector<128x256xbf16>
    %cst_176 = arith.constant dense<0.000000e+00> : vector<64x256xf32>
    %158 = tpu.matmul %155, %157, %cst_176 {dimension_numbers = #tpu.dot_dimension_numbers<[1], [0], [0], [1], [0, 0, 1, 1], [], []>} : vector<64x128xbf16>, vector<128x256xbf16>, vector<64x256xf32> -> vector<64x256xf32>
    %159 = arith.addf %153, %158 : vector<64x256xf32>
    %c0_177 = arith.constant 0 : index
    %c0_178 = arith.constant 0 : index
    %160 = vector.load %arg6[%c0_177, %c0_178] : memref<1x256xf32, #tpu.memory_space<vmem>>, vector<1x256xf32>
    %161 = vector.broadcast %160 : vector<1x256xf32> to vector<64x256xf32>
    %162 = arith.addf %159, %161 : vector<64x256xf32>
    %cst_179 = arith.constant 0.000000e+00 : f32
    %163 = vector.broadcast %cst_179 : f32 to vector<64x256xf32>
    %164 = arith.maximumf %162, %163 : vector<64x256xf32>
    %165 = arith.truncf %164 : vector<64x256xf32> to vector<64x256xbf16>
    %166 = vector.shape_cast %165 : vector<64x256xbf16> to vector<8x8x256xbf16>
    %c2_180 = arith.constant 2 : index
    %c1_181 = arith.constant 1 : index
    %c1_182 = arith.constant 1 : index
    %c0_183 = arith.constant 0 : index
    %167 = vector.load %arg12[%c2_180, %c1_181, %c1_182, %c0_183] : memref<4x10x16x256xbf16, #tpu.memory_space<vmem>>, vector<1x8x8x256xbf16>
    %168 = vector.shape_cast %167 : vector<1x8x8x256xbf16> to vector<8x8x256xbf16>
    %169 = vector.shape_cast %166 : vector<8x8x256xbf16> to vector<1x8x8x256xbf16>
    tpu.vector_store %arg12[%c2_180, %c1_181, %c1_182, %c0_183], %169 {strides = array<i32>} : memref<4x10x16x256xbf16, #tpu.memory_space<vmem>>, vector<1x8x8x256xbf16>,
    %cst_184 = arith.constant 0.000000e+00 : f32
    %170 = vector.broadcast %cst_184 : f32 to vector<64x256xf32>
    %c0_185 = arith.constant 0 : index
    %c0_186 = arith.constant 0 : index
    %c0_187 = arith.constant 0 : index
    %171 = vector.load %arg11[%c0_185, %c0_186, %c0_187] : memref<9x16x256xbf16, #tpu.memory_space<vmem>>, vector<8x8x256xbf16>
    %172 = vector.shape_cast %171 : vector<8x8x256xbf16> to vector<64x256xbf16>
    %c2_188 = arith.constant 2 : index
    %c0_189 = arith.constant 0 : index
    %c0_190 = arith.constant 0 : index
    %173 = vector.load %arg4[%c2_188, %c0_189, %c0_190] : memref<3x256x256xbf16, #tpu.memory_space<vmem>>, vector<1x256x256xbf16>
    %174 = vector.shape_cast %173 : vector<1x256x256xbf16> to vector<256x256xbf16>
    %cst_191 = arith.constant dense<0.000000e+00> : vector<64x256xf32>
    %175 = tpu.matmul %172, %174, %cst_191 {dimension_numbers = #tpu.dot_dimension_numbers<[1], [0], [0], [1], [0, 0, 1, 1], [], []>} : vector<64x256xbf16>, vector<256x256xbf16>, vector<64x256xf32> -> vector<64x256xf32>
    %176 = arith.addf %170, %175 : vector<64x256xf32>
    %c0_192 = arith.constant 0 : index
    %c1_193 = arith.constant 1 : index
    %c0_194 = arith.constant 0 : index
    %177 = vector.load %arg11[%c0_192, %c1_193, %c0_194] : memref<9x16x256xbf16, #tpu.memory_space<vmem>>, vector<8x8x128xbf16>
    %178 = vector.shape_cast %177 : vector<8x8x128xbf16> to vector<64x128xbf16>
    %c2_195 = arith.constant 2 : index
    %c0_196 = arith.constant 0 : index
    %c0_197 = arith.constant 0 : index
    %179 = vector.load %arg5[%c2_195, %c0_196, %c0_197] : memref<3x128x256xbf16, #tpu.memory_space<vmem>>, vector<1x128x256xbf16>
    %180 = vector.shape_cast %179 : vector<1x128x256xbf16> to vector<128x256xbf16>
    %cst_198 = arith.constant dense<0.000000e+00> : vector<64x256xf32>
    %181 = tpu.matmul %178, %180, %cst_198 {dimension_numbers = #tpu.dot_dimension_numbers<[1], [0], [0], [1], [0, 0, 1, 1], [], []>} : vector<64x128xbf16>, vector<128x256xbf16>, vector<64x256xf32> -> vector<64x256xf32>
    %182 = arith.addf %176, %181 : vector<64x256xf32>
    %c1_199 = arith.constant 1 : index
    %c0_200 = arith.constant 0 : index
    %c0_201 = arith.constant 0 : index
    %183 = vector.load %arg10[%c1_199, %c0_200, %c0_201] : memref<9x16x256xbf16, #tpu.memory_space<vmem>>, vector<8x8x256xbf16>
    %184 = vector.shape_cast %183 : vector<8x8x256xbf16> to vector<64x256xbf16>
    %c0_202 = arith.constant 0 : index
    %c0_203 = arith.constant 0 : index
    %c0_204 = arith.constant 0 : index
    %185 = vector.load %arg4[%c0_202, %c0_203, %c0_204] : memref<3x256x256xbf16, #tpu.memory_space<vmem>>, vector<1x256x256xbf16>
    %186 = vector.shape_cast %185 : vector<1x256x256xbf16> to vector<256x256xbf16>
    %cst_205 = arith.constant dense<0.000000e+00> : vector<64x256xf32>
    %187 = tpu.matmul %184, %186, %cst_205 {dimension_numbers = #tpu.dot_dimension_numbers<[1], [0], [0], [1], [0, 0, 1, 1], [], []>} : vector<64x256xbf16>, vector<256x256xbf16>, vector<64x256xf32> -> vector<64x256xf32>
    %188 = arith.addf %182, %187 : vector<64x256xf32>
    %c1_206 = arith.constant 1 : index
    %c1_207 = arith.constant 1 : index
    %c0_208 = arith.constant 0 : index
    %189 = vector.load %arg10[%c1_206, %c1_207, %c0_208] : memref<9x16x256xbf16, #tpu.memory_space<vmem>>, vector<8x8x128xbf16>
    %190 = vector.shape_cast %189 : vector<8x8x128xbf16> to vector<64x128xbf16>
    %c0_209 = arith.constant 0 : index
    %c0_210 = arith.constant 0 : index
    %c0_211 = arith.constant 0 : index
    %191 = vector.load %arg5[%c0_209, %c0_210, %c0_211] : memref<3x128x256xbf16, #tpu.memory_space<vmem>>, vector<1x128x256xbf16>
    %192 = vector.shape_cast %191 : vector<1x128x256xbf16> to vector<128x256xbf16>
    %cst_212 = arith.constant dense<0.000000e+00> : vector<64x256xf32>
    %193 = tpu.matmul %190, %192, %cst_212 {dimension_numbers = #tpu.dot_dimension_numbers<[1], [0], [0], [1], [0, 0, 1, 1], [], []>} : vector<64x128xbf16>, vector<128x256xbf16>, vector<64x256xf32> -> vector<64x256xf32>
    %194 = arith.addf %188, %193 : vector<64x256xf32>
    %c0_213 = arith.constant 0 : index
    %c0_214 = arith.constant 0 : index
    %195 = vector.load %arg6[%c0_213, %c0_214] : memref<1x256xf32, #tpu.memory_space<vmem>>, vector<1x256xf32>
    %196 = vector.broadcast %195 : vector<1x256xf32> to vector<64x256xf32>
    %197 = arith.addf %194, %196 : vector<64x256xf32>
    %cst_215 = arith.constant 0.000000e+00 : f32
    %198 = vector.broadcast %cst_215 : f32 to vector<64x256xf32>
    %199 = arith.maximumf %197, %198 : vector<64x256xf32>
    %200 = arith.truncf %199 : vector<64x256xf32> to vector<64x256xbf16>
    %201 = vector.shape_cast %200 : vector<64x256xbf16> to vector<8x8x256xbf16>
    %c3_216 = arith.constant 3 : index
    %c1_217 = arith.constant 1 : index
    %c1_218 = arith.constant 1 : index
    %c0_219 = arith.constant 0 : index
    %202 = vector.load %arg12[%c3_216, %c1_217, %c1_218, %c0_219] : memref<4x10x16x256xbf16, #tpu.memory_space<vmem>>, vector<1x8x8x256xbf16>
    %203 = vector.shape_cast %202 : vector<1x8x8x256xbf16> to vector<8x8x256xbf16>
    %204 = vector.shape_cast %201 : vector<8x8x256xbf16> to vector<1x8x8x256xbf16>
    tpu.vector_store %arg12[%c3_216, %c1_217, %c1_218, %c0_219], %204 {strides = array<i32>} : memref<4x10x16x256xbf16, #tpu.memory_space<vmem>>, vector<1x8x8x256xbf16>,
    %cst_220 = arith.constant 0.000000e+00 : f32
    %205 = vector.broadcast %cst_220 : f32 to vector<64x16xf32>
    %c3_221 = arith.constant 3 : index
    %c0_222 = arith.constant 0 : index
    %c0_223 = arith.constant 0 : index
    %c0_224 = arith.constant 0 : index
    %206 = vector.load %arg12[%c3_221, %c0_222, %c0_223, %c0_224] : memref<4x10x16x256xbf16, #tpu.memory_space<vmem>>, vector<1x8x8x256xbf16>
    %207 = vector.shape_cast %206 : vector<1x8x8x256xbf16> to vector<8x8x256xbf16>
    %208 = vector.shape_cast %207 : vector<8x8x256xbf16> to vector<64x256xbf16>
    %c0_225 = arith.constant 0 : index
    %c0_226 = arith.constant 0 : index
    %c0_227 = arith.constant 0 : index
    %209 = vector.load %arg7[%c0_225, %c0_226, %c0_227] : memref<18x256x16xbf16, #tpu.memory_space<vmem>>, vector<1x256x16xbf16>
    %210 = vector.shape_cast %209 : vector<1x256x16xbf16> to vector<256x16xbf16>
    %cst_228 = arith.constant dense<0.000000e+00> : vector<64x16xf32>
    %211 = tpu.matmul %208, %210, %cst_228 {dimension_numbers = #tpu.dot_dimension_numbers<[1], [0], [0], [1], [0, 0, 1, 1], [], []>} : vector<64x256xbf16>, vector<256x16xbf16>, vector<64x16xf32> -> vector<64x16xf32>
    %212 = arith.addf %205, %211 : vector<64x16xf32>
    %c3_229 = arith.constant 3 : index
    %c0_230 = arith.constant 0 : index
    %c1_231 = arith.constant 1 : index
    %c0_232 = arith.constant 0 : index
    %213 = vector.load %arg12[%c3_229, %c0_230, %c1_231, %c0_232] : memref<4x10x16x256xbf16, #tpu.memory_space<vmem>>, vector<1x8x8x256xbf16>
    %214 = vector.shape_cast %213 : vector<1x8x8x256xbf16> to vector<8x8x256xbf16>
    %215 = vector.shape_cast %214 : vector<8x8x256xbf16> to vector<64x256xbf16>
    %c1_233 = arith.constant 1 : index
    %c0_234 = arith.constant 0 : index
    %c0_235 = arith.constant 0 : index
    %216 = vector.load %arg7[%c1_233, %c0_234, %c0_235] : memref<18x256x16xbf16, #tpu.memory_space<vmem>>, vector<1x256x16xbf16>
    %217 = vector.shape_cast %216 : vector<1x256x16xbf16> to vector<256x16xbf16>
    %cst_236 = arith.constant dense<0.000000e+00> : vector<64x16xf32>
    %218 = tpu.matmul %215, %217, %cst_236 {dimension_numbers = #tpu.dot_dimension_numbers<[1], [0], [0], [1], [0, 0, 1, 1], [], []>} : vector<64x256xbf16>, vector<256x16xbf16>, vector<64x16xf32> -> vector<64x16xf32>
    %219 = arith.addf %212, %218 : vector<64x16xf32>
    %c3_237 = arith.constant 3 : index
    %c0_238 = arith.constant 0 : index
    %c2_239 = arith.constant 2 : index
    %c0_240 = arith.constant 0 : index
    %220 = vector.load %arg12[%c3_237, %c0_238, %c2_239, %c0_240] : memref<4x10x16x256xbf16, #tpu.memory_space<vmem>>, vector<1x8x8x256xbf16>
    %221 = vector.shape_cast %220 : vector<1x8x8x256xbf16> to vector<8x8x256xbf16>
    %222 = vector.shape_cast %221 : vector<8x8x256xbf16> to vector<64x256xbf16>
    %c2_241 = arith.constant 2 : index
    %c0_242 = arith.constant 0 : index
    %c0_243 = arith.constant 0 : index
    %223 = vector.load %arg7[%c2_241, %c0_242, %c0_243] : memref<18x256x16xbf16, #tpu.memory_space<vmem>>, vector<1x256x16xbf16>
    %224 = vector.shape_cast %223 : vector<1x256x16xbf16> to vector<256x16xbf16>
    %cst_244 = arith.constant dense<0.000000e+00> : vector<64x16xf32>
    %225 = tpu.matmul %222, %224, %cst_244 {dimension_numbers = #tpu.dot_dimension_numbers<[1], [0], [0], [1], [0, 0, 1, 1], [], []>} : vector<64x256xbf16>, vector<256x16xbf16>, vector<64x16xf32> -> vector<64x16xf32>
    %226 = arith.addf %219, %225 : vector<64x16xf32>
    %c0_245 = arith.constant 0 : index
    %c1_246 = arith.constant 1 : index
    %c0_247 = arith.constant 0 : index
    %c0_248 = arith.constant 0 : index
    %227 = vector.load %arg12[%c0_245, %c1_246, %c0_247, %c0_248] : memref<4x10x16x256xbf16, #tpu.memory_space<vmem>>, vector<1x8x8x256xbf16>
    %228 = vector.shape_cast %227 : vector<1x8x8x256xbf16> to vector<8x8x256xbf16>
    %229 = vector.shape_cast %228 : vector<8x8x256xbf16> to vector<64x256xbf16>
    %c3_249 = arith.constant 3 : index
    %c0_250 = arith.constant 0 : index
    %c0_251 = arith.constant 0 : index
    %230 = vector.load %arg7[%c3_249, %c0_250, %c0_251] : memref<18x256x16xbf16, #tpu.memory_space<vmem>>, vector<1x256x16xbf16>
    %231 = vector.shape_cast %230 : vector<1x256x16xbf16> to vector<256x16xbf16>
    %cst_252 = arith.constant dense<0.000000e+00> : vector<64x16xf32>
    %232 = tpu.matmul %229, %231, %cst_252 {dimension_numbers = #tpu.dot_dimension_numbers<[1], [0], [0], [1], [0, 0, 1, 1], [], []>} : vector<64x256xbf16>, vector<256x16xbf16>, vector<64x16xf32> -> vector<64x16xf32>
    %233 = arith.addf %226, %232 : vector<64x16xf32>
    %c0_253 = arith.constant 0 : index
    %c1_254 = arith.constant 1 : index
    %c1_255 = arith.constant 1 : index
    %c0_256 = arith.constant 0 : index
    %234 = vector.load %arg12[%c0_253, %c1_254, %c1_255, %c0_256] : memref<4x10x16x256xbf16, #tpu.memory_space<vmem>>, vector<1x8x8x256xbf16>
    %235 = vector.shape_cast %234 : vector<1x8x8x256xbf16> to vector<8x8x256xbf16>
    %236 = vector.shape_cast %235 : vector<8x8x256xbf16> to vector<64x256xbf16>
    %c4 = arith.constant 4 : index
    %c0_257 = arith.constant 0 : index
    %c0_258 = arith.constant 0 : index
    %237 = vector.load %arg7[%c4, %c0_257, %c0_258] : memref<18x256x16xbf16, #tpu.memory_space<vmem>>, vector<1x256x16xbf16>
    %238 = vector.shape_cast %237 : vector<1x256x16xbf16> to vector<256x16xbf16>
    %cst_259 = arith.constant dense<0.000000e+00> : vector<64x16xf32>
    %239 = tpu.matmul %236, %238, %cst_259 {dimension_numbers = #tpu.dot_dimension_numbers<[1], [0], [0], [1], [0, 0, 1, 1], [], []>} : vector<64x256xbf16>, vector<256x16xbf16>, vector<64x16xf32> -> vector<64x16xf32>
    %240 = arith.addf %233, %239 : vector<64x16xf32>
    %c0_260 = arith.constant 0 : index
    %c1_261 = arith.constant 1 : index
    %c2_262 = arith.constant 2 : index
    %c0_263 = arith.constant 0 : index
    %241 = vector.load %arg12[%c0_260, %c1_261, %c2_262, %c0_263] : memref<4x10x16x256xbf16, #tpu.memory_space<vmem>>, vector<1x8x8x256xbf16>
    %242 = vector.shape_cast %241 : vector<1x8x8x256xbf16> to vector<8x8x256xbf16>
    %243 = vector.shape_cast %242 : vector<8x8x256xbf16> to vector<64x256xbf16>
    %c5 = arith.constant 5 : index
    %c0_264 = arith.constant 0 : index
    %c0_265 = arith.constant 0 : index
    %244 = vector.load %arg7[%c5, %c0_264, %c0_265] : memref<18x256x16xbf16, #tpu.memory_space<vmem>>, vector<1x256x16xbf16>
    %245 = vector.shape_cast %244 : vector<1x256x16xbf16> to vector<256x16xbf16>
    %cst_266 = arith.constant dense<0.000000e+00> : vector<64x16xf32>
    %246 = tpu.matmul %243, %245, %cst_266 {dimension_numbers = #tpu.dot_dimension_numbers<[1], [0], [0], [1], [0, 0, 1, 1], [], []>} : vector<64x256xbf16>, vector<256x16xbf16>, vector<64x16xf32> -> vector<64x16xf32>
    %247 = arith.addf %240, %246 : vector<64x16xf32>
    %c1_267 = arith.constant 1 : index
    %c1_268 = arith.constant 1 : index
    %c0_269 = arith.constant 0 : index
    %c0_270 = arith.constant 0 : index
    %248 = vector.load %arg12[%c1_267, %c1_268, %c0_269, %c0_270] : memref<4x10x16x256xbf16, #tpu.memory_space<vmem>>, vector<1x8x8x256xbf16>
    %249 = vector.shape_cast %248 : vector<1x8x8x256xbf16> to vector<8x8x256xbf16>
    %250 = vector.shape_cast %249 : vector<8x8x256xbf16> to vector<64x256xbf16>
    %c6 = arith.constant 6 : index
    %c0_271 = arith.constant 0 : index
    %c0_272 = arith.constant 0 : index
    %251 = vector.load %arg7[%c6, %c0_271, %c0_272] : memref<18x256x16xbf16, #tpu.memory_space<vmem>>, vector<1x256x16xbf16>
    %252 = vector.shape_cast %251 : vector<1x256x16xbf16> to vector<256x16xbf16>
    %cst_273 = arith.constant dense<0.000000e+00> : vector<64x16xf32>
    %253 = tpu.matmul %250, %252, %cst_273 {dimension_numbers = #tpu.dot_dimension_numbers<[1], [0], [0], [1], [0, 0, 1, 1], [], []>} : vector<64x256xbf16>, vector<256x16xbf16>, vector<64x16xf32> -> vector<64x16xf32>
    %254 = arith.addf %247, %253 : vector<64x16xf32>
    %c1_274 = arith.constant 1 : index
    %c1_275 = arith.constant 1 : index
    %c1_276 = arith.constant 1 : index
    %c0_277 = arith.constant 0 : index
    %255 = vector.load %arg12[%c1_274, %c1_275, %c1_276, %c0_277] : memref<4x10x16x256xbf16, #tpu.memory_space<vmem>>, vector<1x8x8x256xbf16>
    %256 = vector.shape_cast %255 : vector<1x8x8x256xbf16> to vector<8x8x256xbf16>
    %257 = vector.shape_cast %256 : vector<8x8x256xbf16> to vector<64x256xbf16>
    %c7 = arith.constant 7 : index
    %c0_278 = arith.constant 0 : index
    %c0_279 = arith.constant 0 : index
    %258 = vector.load %arg7[%c7, %c0_278, %c0_279] : memref<18x256x16xbf16, #tpu.memory_space<vmem>>, vector<1x256x16xbf16>
    %259 = vector.shape_cast %258 : vector<1x256x16xbf16> to vector<256x16xbf16>
    %cst_280 = arith.constant dense<0.000000e+00> : vector<64x16xf32>
    %260 = tpu.matmul %257, %259, %cst_280 {dimension_numbers = #tpu.dot_dimension_numbers<[1], [0], [0], [1], [0, 0, 1, 1], [], []>} : vector<64x256xbf16>, vector<256x16xbf16>, vector<64x16xf32> -> vector<64x16xf32>
    %261 = arith.addf %254, %260 : vector<64x16xf32>
    %c1_281 = arith.constant 1 : index
    %c1_282 = arith.constant 1 : index
    %c2_283 = arith.constant 2 : index
    %c0_284 = arith.constant 0 : index
    %262 = vector.load %arg12[%c1_281, %c1_282, %c2_283, %c0_284] : memref<4x10x16x256xbf16, #tpu.memory_space<vmem>>, vector<1x8x8x256xbf16>
    %263 = vector.shape_cast %262 : vector<1x8x8x256xbf16> to vector<8x8x256xbf16>
    %264 = vector.shape_cast %263 : vector<8x8x256xbf16> to vector<64x256xbf16>
    %c8_285 = arith.constant 8 : index
    %c0_286 = arith.constant 0 : index
    %c0_287 = arith.constant 0 : index
    %265 = vector.load %arg7[%c8_285, %c0_286, %c0_287] : memref<18x256x16xbf16, #tpu.memory_space<vmem>>, vector<1x256x16xbf16>
    %266 = vector.shape_cast %265 : vector<1x256x16xbf16> to vector<256x16xbf16>
    %cst_288 = arith.constant dense<0.000000e+00> : vector<64x16xf32>
    %267 = tpu.matmul %264, %266, %cst_288 {dimension_numbers = #tpu.dot_dimension_numbers<[1], [0], [0], [1], [0, 0, 1, 1], [], []>} : vector<64x256xbf16>, vector<256x16xbf16>, vector<64x16xf32> -> vector<64x16xf32>
    %268 = arith.addf %261, %267 : vector<64x16xf32>
    %c2_289 = arith.constant 2 : index
    %c1_290 = arith.constant 1 : index
    %c0_291 = arith.constant 0 : index
    %c0_292 = arith.constant 0 : index
    %269 = vector.load %arg12[%c2_289, %c1_290, %c0_291, %c0_292] : memref<4x10x16x256xbf16, #tpu.memory_space<vmem>>, vector<1x8x8x256xbf16>
    %270 = vector.shape_cast %269 : vector<1x8x8x256xbf16> to vector<8x8x256xbf16>
    %271 = vector.shape_cast %270 : vector<8x8x256xbf16> to vector<64x256xbf16>
    %c9_293 = arith.constant 9 : index
    %c0_294 = arith.constant 0 : index
    %c0_295 = arith.constant 0 : index
    %272 = vector.load %arg7[%c9_293, %c0_294, %c0_295] : memref<18x256x16xbf16, #tpu.memory_space<vmem>>, vector<1x256x16xbf16>
    %273 = vector.shape_cast %272 : vector<1x256x16xbf16> to vector<256x16xbf16>
    %cst_296 = arith.constant dense<0.000000e+00> : vector<64x16xf32>
    %274 = tpu.matmul %271, %273, %cst_296 {dimension_numbers = #tpu.dot_dimension_numbers<[1], [0], [0], [1], [0, 0, 1, 1], [], []>} : vector<64x256xbf16>, vector<256x16xbf16>, vector<64x16xf32> -> vector<64x16xf32>
    %275 = arith.addf %268, %274 : vector<64x16xf32>
    %c2_297 = arith.constant 2 : index
    %c1_298 = arith.constant 1 : index
    %c1_299 = arith.constant 1 : index
    %c0_300 = arith.constant 0 : index
    %276 = vector.load %arg12[%c2_297, %c1_298, %c1_299, %c0_300] : memref<4x10x16x256xbf16, #tpu.memory_space<vmem>>, vector<1x8x8x256xbf16>
    %277 = vector.shape_cast %276 : vector<1x8x8x256xbf16> to vector<8x8x256xbf16>
    %278 = vector.shape_cast %277 : vector<8x8x256xbf16> to vector<64x256xbf16>
    %c10 = arith.constant 10 : index
    %c0_301 = arith.constant 0 : index
    %c0_302 = arith.constant 0 : index
    %279 = vector.load %arg7[%c10, %c0_301, %c0_302] : memref<18x256x16xbf16, #tpu.memory_space<vmem>>, vector<1x256x16xbf16>
    %280 = vector.shape_cast %279 : vector<1x256x16xbf16> to vector<256x16xbf16>
    %cst_303 = arith.constant dense<0.000000e+00> : vector<64x16xf32>
    %281 = tpu.matmul %278, %280, %cst_303 {dimension_numbers = #tpu.dot_dimension_numbers<[1], [0], [0], [1], [0, 0, 1, 1], [], []>} : vector<64x256xbf16>, vector<256x16xbf16>, vector<64x16xf32> -> vector<64x16xf32>
    %282 = arith.addf %275, %281 : vector<64x16xf32>
    %c2_304 = arith.constant 2 : index
    %c1_305 = arith.constant 1 : index
    %c2_306 = arith.constant 2 : index
    %c0_307 = arith.constant 0 : index
    %283 = vector.load %arg12[%c2_304, %c1_305, %c2_306, %c0_307] : memref<4x10x16x256xbf16, #tpu.memory_space<vmem>>, vector<1x8x8x256xbf16>
    %284 = vector.shape_cast %283 : vector<1x8x8x256xbf16> to vector<8x8x256xbf16>
    %285 = vector.shape_cast %284 : vector<8x8x256xbf16> to vector<64x256xbf16>
    %c11 = arith.constant 11 : index
    %c0_308 = arith.constant 0 : index
    %c0_309 = arith.constant 0 : index
    %286 = vector.load %arg7[%c11, %c0_308, %c0_309] : memref<18x256x16xbf16, #tpu.memory_space<vmem>>, vector<1x256x16xbf16>
    %287 = vector.shape_cast %286 : vector<1x256x16xbf16> to vector<256x16xbf16>
    %cst_310 = arith.constant dense<0.000000e+00> : vector<64x16xf32>
    %288 = tpu.matmul %285, %287, %cst_310 {dimension_numbers = #tpu.dot_dimension_numbers<[1], [0], [0], [1], [0, 0, 1, 1], [], []>} : vector<64x256xbf16>, vector<256x16xbf16>, vector<64x16xf32> -> vector<64x16xf32>
    %289 = arith.addf %282, %288 : vector<64x16xf32>
    %c3_311 = arith.constant 3 : index
    %c1_312 = arith.constant 1 : index
    %c0_313 = arith.constant 0 : index
    %c0_314 = arith.constant 0 : index
    %290 = vector.load %arg12[%c3_311, %c1_312, %c0_313, %c0_314] : memref<4x10x16x256xbf16, #tpu.memory_space<vmem>>, vector<1x8x8x256xbf16>
    %291 = vector.shape_cast %290 : vector<1x8x8x256xbf16> to vector<8x8x256xbf16>
    %292 = vector.shape_cast %291 : vector<8x8x256xbf16> to vector<64x256xbf16>
    %c12 = arith.constant 12 : index
    %c0_315 = arith.constant 0 : index
    %c0_316 = arith.constant 0 : index
    %293 = vector.load %arg7[%c12, %c0_315, %c0_316] : memref<18x256x16xbf16, #tpu.memory_space<vmem>>, vector<1x256x16xbf16>
    %294 = vector.shape_cast %293 : vector<1x256x16xbf16> to vector<256x16xbf16>
    %cst_317 = arith.constant dense<0.000000e+00> : vector<64x16xf32>
    %295 = tpu.matmul %292, %294, %cst_317 {dimension_numbers = #tpu.dot_dimension_numbers<[1], [0], [0], [1], [0, 0, 1, 1], [], []>} : vector<64x256xbf16>, vector<256x16xbf16>, vector<64x16xf32> -> vector<64x16xf32>
    %296 = arith.addf %289, %295 : vector<64x16xf32>
    %c3_318 = arith.constant 3 : index
    %c1_319 = arith.constant 1 : index
    %c1_320 = arith.constant 1 : index
    %c0_321 = arith.constant 0 : index
    %297 = vector.load %arg12[%c3_318, %c1_319, %c1_320, %c0_321] : memref<4x10x16x256xbf16, #tpu.memory_space<vmem>>, vector<1x8x8x256xbf16>
    %298 = vector.shape_cast %297 : vector<1x8x8x256xbf16> to vector<8x8x256xbf16>
    %299 = vector.shape_cast %298 : vector<8x8x256xbf16> to vector<64x256xbf16>
    %c13 = arith.constant 13 : index
    %c0_322 = arith.constant 0 : index
    %c0_323 = arith.constant 0 : index
    %300 = vector.load %arg7[%c13, %c0_322, %c0_323] : memref<18x256x16xbf16, #tpu.memory_space<vmem>>, vector<1x256x16xbf16>
    %301 = vector.shape_cast %300 : vector<1x256x16xbf16> to vector<256x16xbf16>
    %cst_324 = arith.constant dense<0.000000e+00> : vector<64x16xf32>
    %302 = tpu.matmul %299, %301, %cst_324 {dimension_numbers = #tpu.dot_dimension_numbers<[1], [0], [0], [1], [0, 0, 1, 1], [], []>} : vector<64x256xbf16>, vector<256x16xbf16>, vector<64x16xf32> -> vector<64x16xf32>
    %303 = arith.addf %296, %302 : vector<64x16xf32>
    %c3_325 = arith.constant 3 : index
    %c1_326 = arith.constant 1 : index
    %c2_327 = arith.constant 2 : index
    %c0_328 = arith.constant 0 : index
    %304 = vector.load %arg12[%c3_325, %c1_326, %c2_327, %c0_328] : memref<4x10x16x256xbf16, #tpu.memory_space<vmem>>, vector<1x8x8x256xbf16>
    %305 = vector.shape_cast %304 : vector<1x8x8x256xbf16> to vector<8x8x256xbf16>
    %306 = vector.shape_cast %305 : vector<8x8x256xbf16> to vector<64x256xbf16>
    %c14 = arith.constant 14 : index
    %c0_329 = arith.constant 0 : index
    %c0_330 = arith.constant 0 : index
    %307 = vector.load %arg7[%c14, %c0_329, %c0_330] : memref<18x256x16xbf16, #tpu.memory_space<vmem>>, vector<1x256x16xbf16>
    %308 = vector.shape_cast %307 : vector<1x256x16xbf16> to vector<256x16xbf16>
    %cst_331 = arith.constant dense<0.000000e+00> : vector<64x16xf32>
    %309 = tpu.matmul %306, %308, %cst_331 {dimension_numbers = #tpu.dot_dimension_numbers<[1], [0], [0], [1], [0, 0, 1, 1], [], []>} : vector<64x256xbf16>, vector<256x16xbf16>, vector<64x16xf32> -> vector<64x16xf32>
    %310 = arith.addf %303, %309 : vector<64x16xf32>
    %c0_332 = arith.constant 0 : index
    %c2_333 = arith.constant 2 : index
    %c0_334 = arith.constant 0 : index
    %c0_335 = arith.constant 0 : index
    %311 = vector.load %arg12[%c0_332, %c2_333, %c0_334, %c0_335] : memref<4x10x16x256xbf16, #tpu.memory_space<vmem>>, vector<1x8x8x256xbf16>
    %312 = vector.shape_cast %311 : vector<1x8x8x256xbf16> to vector<8x8x256xbf16>
    %313 = vector.shape_cast %312 : vector<8x8x256xbf16> to vector<64x256xbf16>
    %c15 = arith.constant 15 : index
    %c0_336 = arith.constant 0 : index
    %c0_337 = arith.constant 0 : index
    %314 = vector.load %arg7[%c15, %c0_336, %c0_337] : memref<18x256x16xbf16, #tpu.memory_space<vmem>>, vector<1x256x16xbf16>
    %315 = vector.shape_cast %314 : vector<1x256x16xbf16> to vector<256x16xbf16>
    %cst_338 = arith.constant dense<0.000000e+00> : vector<64x16xf32>
    %316 = tpu.matmul %313, %315, %cst_338 {dimension_numbers = #tpu.dot_dimension_numbers<[1], [0], [0], [1], [0, 0, 1, 1], [], []>} : vector<64x256xbf16>, vector<256x16xbf16>, vector<64x16xf32> -> vector<64x16xf32>
    %317 = arith.addf %310, %316 : vector<64x16xf32>
    %c0_339 = arith.constant 0 : index
    %c2_340 = arith.constant 2 : index
    %c1_341 = arith.constant 1 : index
    %c0_342 = arith.constant 0 : index
    %318 = vector.load %arg12[%c0_339, %c2_340, %c1_341, %c0_342] : memref<4x10x16x256xbf16, #tpu.memory_space<vmem>>, vector<1x8x8x256xbf16>
    %319 = vector.shape_cast %318 : vector<1x8x8x256xbf16> to vector<8x8x256xbf16>
    %320 = vector.shape_cast %319 : vector<8x8x256xbf16> to vector<64x256xbf16>
    %c16 = arith.constant 16 : index
    %c0_343 = arith.constant 0 : index
    %c0_344 = arith.constant 0 : index
    %321 = vector.load %arg7[%c16, %c0_343, %c0_344] : memref<18x256x16xbf16, #tpu.memory_space<vmem>>, vector<1x256x16xbf16>
    %322 = vector.shape_cast %321 : vector<1x256x16xbf16> to vector<256x16xbf16>
    %cst_345 = arith.constant dense<0.000000e+00> : vector<64x16xf32>
    %323 = tpu.matmul %320, %322, %cst_345 {dimension_numbers = #tpu.dot_dimension_numbers<[1], [0], [0], [1], [0, 0, 1, 1], [], []>} : vector<64x256xbf16>, vector<256x16xbf16>, vector<64x16xf32> -> vector<64x16xf32>
    %324 = arith.addf %317, %323 : vector<64x16xf32>
    %c0_346 = arith.constant 0 : index
    %c2_347 = arith.constant 2 : index
    %c2_348 = arith.constant 2 : index
    %c0_349 = arith.constant 0 : index
    %325 = vector.load %arg12[%c0_346, %c2_347, %c2_348, %c0_349] : memref<4x10x16x256xbf16, #tpu.memory_space<vmem>>, vector<1x8x8x256xbf16>
    %326 = vector.shape_cast %325 : vector<1x8x8x256xbf16> to vector<8x8x256xbf16>
    %327 = vector.shape_cast %326 : vector<8x8x256xbf16> to vector<64x256xbf16>
    %c17 = arith.constant 17 : index
    %c0_350 = arith.constant 0 : index
    %c0_351 = arith.constant 0 : index
    %328 = vector.load %arg7[%c17, %c0_350, %c0_351] : memref<18x256x16xbf16, #tpu.memory_space<vmem>>, vector<1x256x16xbf16>
    %329 = vector.shape_cast %328 : vector<1x256x16xbf16> to vector<256x16xbf16>
    %cst_352 = arith.constant dense<0.000000e+00> : vector<64x16xf32>
    %330 = tpu.matmul %327, %329, %cst_352 {dimension_numbers = #tpu.dot_dimension_numbers<[1], [0], [0], [1], [0, 0, 1, 1], [], []>} : vector<64x256xbf16>, vector<256x16xbf16>, vector<64x16xf32> -> vector<64x16xf32>
    %331 = arith.addf %324, %330 : vector<64x16xf32>
    %c0_353 = arith.constant 0 : index
    %c0_354 = arith.constant 0 : index
    %332 = vector.load %arg8[%c0_353, %c0_354] : memref<1x16xf32, #tpu.memory_space<vmem>>, vector<1x16xf32>
    %333 = vector.broadcast %332 : vector<1x16xf32> to vector<64x16xf32>
    %334 = arith.addf %331, %333 : vector<64x16xf32>
    %cst_355 = arith.constant 0.000000e+00 : f32
    %335 = vector.broadcast %cst_355 : f32 to vector<64x16xf32>
    %336 = arith.subf %335, %334 : vector<64x16xf32>
    %337 = math.exp %336 : vector<64x16xf32>
    %cst_356 = arith.constant 1.000000e+00 : f32
    %338 = vector.broadcast %cst_356 : f32 to vector<64x16xf32>
    %339 = arith.addf %338, %337 : vector<64x16xf32>
    %cst_357 = arith.constant 1.000000e+00 : f32
    %340 = vector.broadcast %cst_357 : f32 to vector<64x16xf32>
    %341 = arith.divf %340, %339 : vector<64x16xf32>
    %c0_358 = arith.constant 0 : index
    %c0_359 = arith.constant 0 : index
    %c0_360 = arith.constant 0 : index
    %342 = vector.load %arg9[%c0_358, %c0_359, %c0_360] : memref<1x64x16xf32, #tpu.memory_space<vmem>>, vector<1x64x16xf32>
    %343 = vector.shape_cast %342 : vector<1x64x16xf32> to vector<64x16xf32>
    %344 = vector.shape_cast %341 : vector<64x16xf32> to vector<1x64x16xf32>
    tpu.vector_store %arg9[%c0_358, %c0_359, %c0_360], %344 {strides = array<i32>} : memref<1x64x16xf32, #tpu.memory_space<vmem>>, vector<1x64x16xf32>,
    return
  }
  func.func @transform_0(%arg0: i32) -> (i32, i32, i32) {
    %c0_i32 = arith.constant 0 : i32
    %c0_i32_0 = arith.constant 0 : i32
    %c0_i32_1 = arith.constant 0 : i32
    return %arg0, %c0_i32, %c0_i32_0 : i32, i32, i32
  }
  func.func @transform_1(%arg0: i32) -> (i32, i32) {
    %c0_i32 = arith.constant 0 : i32
    %c0_i32_0 = arith.constant 0 : i32
    %c0_i32_1 = arith.constant 0 : i32
    return %c0_i32, %c0_i32_0 : i32, i32
  }
  func.func @transform_2(%arg0: i32) -> (i32, i32) {
    %c0_i32 = arith.constant 0 : i32
    %c0_i32_0 = arith.constant 0 : i32
    %c0_i32_1 = arith.constant 0 : i32
    return %c0_i32, %c0_i32_0 : i32, i32
  }
  func.func @transform_3(%arg0: i32) -> (i32, i32, i32) {
    %c0_i32 = arith.constant 0 : i32
    %c0_i32_0 = arith.constant 0 : i32
    %c0_i32_1 = arith.constant 0 : i32
    %c0_i32_2 = arith.constant 0 : i32
    return %c0_i32, %c0_i32_0, %c0_i32_1 : i32, i32, i32
  }
  func.func @transform_4(%arg0: i32) -> (i32, i32, i32) {
    %c0_i32 = arith.constant 0 : i32
    %c0_i32_0 = arith.constant 0 : i32
    %c0_i32_1 = arith.constant 0 : i32
    %c0_i32_2 = arith.constant 0 : i32
    return %c0_i32, %c0_i32_0, %c0_i32_1 : i32, i32, i32
  }
  func.func @transform_5(%arg0: i32) -> (i32, i32) {
    %c0_i32 = arith.constant 0 : i32
    %c0_i32_0 = arith.constant 0 : i32
    %c0_i32_1 = arith.constant 0 : i32
    return %c0_i32, %c0_i32_0 : i32, i32
  }
  func.func @transform_6(%arg0: i32) -> (i32, i32, i32) {
    %c0_i32 = arith.constant 0 : i32
    %c0_i32_0 = arith.constant 0 : i32
    %c0_i32_1 = arith.constant 0 : i32
    %c0_i32_2 = arith.constant 0 : i32
    return %c0_i32, %c0_i32_0, %c0_i32_1 : i32, i32, i32
  }
  func.func @transform_7(%arg0: i32) -> (i32, i32) {
    %c0_i32 = arith.constant 0 : i32
    %c0_i32_0 = arith.constant 0 : i32
    %c0_i32_1 = arith.constant 0 : i32
    return %c0_i32, %c0_i32_0 : i32, i32
  }
  func.func @transform_8(%arg0: i32) -> (i32, i32, i32) {
    %c0_i32 = arith.constant 0 : i32
    %c0_i32_0 = arith.constant 0 : i32
    %c0_i32_1 = arith.constant 0 : i32
    return %arg0, %c0_i32, %c0_i32_0 : i32, i32, i32
  }
}

</mosaic_0001>

<llo_original>
// kernel: fc_decoder_forward.1
$region0: #{fc_decoder_forward.1}
  #allocation0 [shape = 'u32[]', space=smem, size = 0x4, offset = 0x4, fixed_abs, tag = 'smem constant byte address 0x4 - core index']
  #allocation1 [shape = 'u32[144,128]{1,0:T(1,128)}', space=vmem, size = 0x12000, scoped, tag = 'internal scratch']
  #allocation2 [shape = 'bf16[9,16,256]{2,1,0:T(8,128)(2,1)}', space=vmem, size = 0x12000, scoped, tag = 'scratch operand']
  #allocation3 [shape = 'bf16[9,16,256]{2,1,0:T(8,128)(2,1)}', space=vmem, size = 0x12000, scoped, tag = 'scratch operand']
  #allocation4 [shape = 'bf16[4,10,16,256]{3,2,1,0:T(8,128)(2,1)}', space=vmem, size = 0x50000, scoped, tag = 'scratch operand']
  %s0 = inlined_call_operand.vmem [shape: bf16[2,64,16], index: 0, kind: input, shape index: {}]
  %s1 = inlined_call_operand.vmem [shape: bf16[16,512], index: 1, kind: input, shape index: {}]
  %s2 = inlined_call_operand.vmem [shape: f32[1,512], index: 2, kind: input, shape index: {}]
  %s3 = inlined_call_operand.vmem [shape: bf16[3,256,256], index: 3, kind: input, shape index: {}]
  %s4 = inlined_call_operand.vmem [shape: bf16[3,128,256], index: 4, kind: input, shape index: {}]
  %s5 = inlined_call_operand.vmem [shape: f32[1,256], index: 5, kind: input, shape index: {}]
  %s6 = inlined_call_operand.vmem [shape: bf16[18,256,16], index: 6, kind: input, shape index: {}]
  %s7 = inlined_call_operand.vmem [shape: f32[1,16], index: 7, kind: input, shape index: {}]
  %s8 = inlined_call_operand.vmem [shape: f32[2,64,16], index: 8, kind: output, shape index: {}]
  %s9 = sld [smem:[#allocation0]]
  $region65: #{fc_decoder_forward.1} parent=0
    _
  %s11 = ssub.s32 1, %s9
  %s12 = scalar_select 0, %s11, %s9
  loop: start=0, step=1, limit=4
  $region2: #{fc_decoder_forward.1} parent=0 // loop_pre_header
    _
  $region3: #{fc_decoder_forward.1} parent=0 // loop_header
    %s14 = sphi 0, %s18
    %p15 = scmp.ge.s32.totalorder %s14, 4
    %s24 = sphi 0, %s26
    %s27 = sphi 0, %s24
    %s28 = sphi 0, %s27
    %s44 = sphi 0, %s28
    %s48 = sphi 0, %s48
    %s50 = sphi 0, %s48
    %s51 = sphi 0, %s50
    %s65 = sphi 0, %s51
    %s69 = sphi 0, %s69
    %s71 = sphi 0, %s69
    %s72 = sphi 0, %s71
    %s86 = sphi 0, %s72
    %s90 = sphi 0, %s90
    %s92 = sphi 0, %s90
    %s93 = sphi 0, %s92
    %s107 = sphi 0, %s93
    %s111 = sphi 0, %s111
    %s113 = sphi 0, %s111
    %s114 = sphi 0, %s113
    %s128 = sphi 0, %s114
    %s132 = sphi 0, %s132
    %s134 = sphi 0, %s132
    %s135 = sphi 0, %s134
    %s149 = sphi 0, %s135
    %s153 = sphi 0, %s153
    %s155 = sphi 0, %s153
    %s156 = sphi 0, %s155
    %s170 = sphi 0, %s156
    %s174 = sphi 0, %s174
    %s176 = sphi 0, %s174
    %s177 = sphi 0, %s176
    %s191 = sphi 0, %s177
    %s197 = sphi 0, %s199
    %s200 = sphi 0, %s197
    %s201 = sphi 0, %s200
    %s217 = sphi 0, %s201
  $region4: #{fc_decoder_forward.1} parent=0 // loop_header_branch
    %17 = sbr.rel (%p15) target = $region8
  $region5: #{fc_decoder_forward.1} parent=0 // loop_body
    %s19 = ssub.s32 %s14, 1
    %s20 = ssub.s32 %s14, 2
    %s21 = sadd.s32 %s14, 1
    %s22 = ssub.s32 %s14, %s21
    %p23 = scmp.eq.s32.totalorder %s22, 0
    %s25 = sadd.s32 %s24, 1
    %s26 = scalar_select %p23, %s24, %s25
    %p29 = pneg %p23
    %p30 = scmp.eq.s32.totalorder %s14, 1
    %p31 = por %p29, %p30
    %p32 = scmp.ne.s32.totalorder %s24, %s27
    %p33 = scmp.eq.s32.totalorder %s14, 0
    %p34 = por %p32, %p33
    %p35 = scmp.ne.s32.totalorder %s24, %s27
    %p36 = scmp.eq.s32.totalorder %s19, 1
    %p37 = por %p35, %p36
    %p38 = scmp.ne.s32.totalorder %s27, %s28
    %p39 = scmp.eq.s32.totalorder %s19, 0
    %p40 = por %p38, %p39
    %p41 = scmp.ne.s32.totalorder %s27, %s28
    %p42 = scmp.eq.s32.totalorder %s20, 1
    %p43 = por %p41, %p42
    %p45 = scmp.ne.s32.totalorder %s28, %s44
    %p46 = scmp.eq.s32.totalorder %s20, 0
    %p47 = por %p45, %p46
    %s49 = sadd.s32 %s48, 1
    %p52 = scmp.eq.s32.totalorder %s14, 1
    %p53 = scmp.ne.s32.totalorder %s48, %s50
    %p54 = scmp.eq.s32.totalorder %s14, 0
    %p55 = por %p53, %p54
    %p56 = scmp.ne.s32.totalorder %s48, %s50
    %p57 = scmp.eq.s32.totalorder %s19, 1
    %p58 = por %p56, %p57
    %p59 = scmp.ne.s32.totalorder %s50, %s51
    %p60 = scmp.eq.s32.totalorder %s19, 0
    %p61 = por %p59, %p60
    %p62 = scmp.ne.s32.totalorder %s50, %s51
    %p63 = scmp.eq.s32.totalorder %s20, 1
    %p64 = por %p62, %p63
    %p66 = scmp.ne.s32.totalorder %s51, %s65
    %p67 = scmp.eq.s32.totalorder %s20, 0
    %p68 = por %p66, %p67
    %s70 = sadd.s32 %s69, 1
    %p73 = scmp.eq.s32.totalorder %s14, 1
    %p74 = scmp.ne.s32.totalorder %s69, %s71
    %p75 = scmp.eq.s32.totalorder %s14, 0
    %p76 = por %p74, %p75
    %p77 = scmp.ne.s32.totalorder %s69, %s71
    %p78 = scmp.eq.s32.totalorder %s19, 1
    %p79 = por %p77, %p78
    %p80 = scmp.ne.s32.totalorder %s71, %s72
    %p81 = scmp.eq.s32.totalorder %s19, 0
    %p82 = por %p80, %p81
    %p83 = scmp.ne.s32.totalorder %s71, %s72
    %p84 = scmp.eq.s32.totalorder %s20, 1
    %p85 = por %p83, %p84
    %p87 = scmp.ne.s32.totalorder %s72, %s86
    %p88 = scmp.eq.s32.totalorder %s20, 0
    %p89 = por %p87, %p88
    %s91 = sadd.s32 %s90, 1
    %p94 = scmp.eq.s32.totalorder %s14, 1
    %p95 = scmp.ne.s32.totalorder %s90, %s92
    %p96 = scmp.eq.s32.totalorder %s14, 0
    %p97 = por %p95, %p96
    %p98 = scmp.ne.s32.totalorder %s90, %s92
    %p99 = scmp.eq.s32.totalorder %s19, 1
    %p100 = por %p98, %p99
    %p101 = scmp.ne.s32.totalorder %s92, %s93
    %p102 = scmp.eq.s32.totalorder %s19, 0
    %p103 = por %p101, %p102
    %p104 = scmp.ne.s32.totalorder %s92, %s93
    %p105 = scmp.eq.s32.totalorder %s20, 1
    %p106 = por %p104, %p105
    %p108 = scmp.ne.s32.totalorder %s93, %s107
    %p109 = scmp.eq.s32.totalorder %s20, 0
    %p110 = por %p108, %p109
    %s112 = sadd.s32 %s111, 1
    %p115 = scmp.eq.s32.totalorder %s14, 1
    %p116 = scmp.ne.s32.totalorder %s111, %s113
    %p117 = scmp.eq.s32.totalorder %s14, 0
    %p118 = por %p116, %p117
    %p119 = scmp.ne.s32.totalorder %s111, %s113
    %p120 = scmp.eq.s32.totalorder %s19, 1
    %p121 = por %p119, %p120
    %p122 = scmp.ne.s32.totalorder %s113, %s114
    %p123 = scmp.eq.s32.totalorder %s19, 0
    %p124 = por %p122, %p123
    %p125 = scmp.ne.s32.totalorder %s113, %s114
    %p126 = scmp.eq.s32.totalorder %s20, 1
    %p127 = por %p125, %p126
    %p129 = scmp.ne.s32.totalorder %s114, %s128
    %p130 = scmp.eq.s32.totalorder %s20, 0
    %p131 = por %p129, %p130
    %s133 = sadd.s32 %s132, 1
    %p136 = scmp.eq.s32.totalorder %s14, 1
    %p137 = scmp.ne.s32.totalorder %s132, %s134
    %p138 = scmp.eq.s32.totalorder %s14, 0
    %p139 = por %p137, %p138
    %p140 = scmp.ne.s32.totalorder %s132, %s134
    %p141 = scmp.eq.s32.totalorder %s19, 1
    %p142 = por %p140, %p141
    %p143 = scmp.ne.s32.totalorder %s134, %s135
    %p144 = scmp.eq.s32.totalorder %s19, 0
    %p145 = por %p143, %p144
    %p146 = scmp.ne.s32.totalorder %s134, %s135
    %p147 = scmp.eq.s32.totalorder %s20, 1
    %p148 = por %p146, %p147
    %p150 = scmp.ne.s32.totalorder %s135, %s149
    %p151 = scmp.eq.s32.totalorder %s20, 0
    %p152 = por %p150, %p151
    %s154 = sadd.s32 %s153, 1
    %p157 = scmp.eq.s32.totalorder %s14, 1
    %p158 = scmp.ne.s32.totalorder %s153, %s155
    %p159 = scmp.eq.s32.totalorder %s14, 0
    %p160 = por %p158, %p159
    %p161 = scmp.ne.s32.totalorder %s153, %s155
    %p162 = scmp.eq.s32.totalorder %s19, 1
    %p163 = por %p161, %p162
    %p164 = scmp.ne.s32.totalorder %s155, %s156
    %p165 = scmp.eq.s32.totalorder %s19, 0
    %p166 = por %p164, %p165
    %p167 = scmp.ne.s32.totalorder %s155, %s156
    %p168 = scmp.eq.s32.totalorder %s20, 1
    %p169 = por %p167, %p168
    %p171 = scmp.ne.s32.totalorder %s156, %s170
    %p172 = scmp.eq.s32.totalorder %s20, 0
    %p173 = por %p171, %p172
    %s175 = sadd.s32 %s174, 1
    %p178 = scmp.eq.s32.totalorder %s14, 1
    %p179 = scmp.ne.s32.totalorder %s174, %s176
    %p180 = scmp.eq.s32.totalorder %s14, 0
    %p181 = por %p179, %p180
    %p182 = scmp.ne.s32.totalorder %s174, %s176
    %p183 = scmp.eq.s32.totalorder %s19, 1
    %p184 = por %p182, %p183
    %p185 = scmp.ne.s32.totalorder %s176, %s177
    %p186 = scmp.eq.s32.totalorder %s19, 0
    %p187 = por %p185, %p186
    %p188 = scmp.ne.s32.totalorder %s176, %s177
    %p189 = scmp.eq.s32.totalorder %s20, 1
    %p190 = por %p188, %p189
    %p192 = scmp.ne.s32.totalorder %s177, %s191
    %p193 = scmp.eq.s32.totalorder %s20, 0
    %p194 = por %p192, %p193
    %s195 = ssub.s32 %s14, %s21
    %p196 = scmp.eq.s32.totalorder %s195, 0
    %s198 = sadd.s32 %s197, 1
    %s199 = scalar_select %p196, %s197, %s198
    %p202 = pneg %p196
    %p203 = scmp.eq.s32.totalorder %s14, 1
    %p204 = por %p202, %p203
    %p205 = scmp.ne.s32.totalorder %s197, %s200
    %p206 = scmp.eq.s32.totalorder %s14, 0
    %p207 = por %p205, %p206
    %p208 = scmp.ne.s32.totalorder %s197, %s200
    %p209 = scmp.eq.s32.totalorder %s19, 1
    %p210 = por %p208, %p209
    %p211 = scmp.ne.s32.totalorder %s200, %s201
    %p212 = scmp.eq.s32.totalorder %s19, 0
    %p213 = por %p211, %p212
    %p214 = scmp.ne.s32.totalorder %s200, %s201
    %p215 = scmp.eq.s32.totalorder %s20, 1
    %p216 = por %p214, %p215
    %p218 = scmp.ne.s32.totalorder %s201, %s217
    %p219 = scmp.eq.s32.totalorder %s20, 0
    %p220 = por %p218, %p219
    %p221 = scmp.le.s32.totalorder 1, %s14
    %p222 = scmp.lt.s32.totalorder %s14, 3
    %p223 = pnand %p221, %p222
    %p224 = pneg %p223
    // Predicated region
    $region9: #{fc_decoder_forward.1} parent=5 // pred_check
      _
    $region10: #{fc_decoder_forward.1} parent=5 // pred_check_branch
      %226 = sbr.rel (%p223) target = $region12
    $region11: #{fc_decoder_forward.1} parent=5 // pred_region
      %s227 = ssub.s32 %s14, 1
      // Predicated region
      $region13: #{fc_decoder_forward.1} parent=11 // pred_check
        %p228 = pneg %p61
      $region14: #{fc_decoder_forward.1} parent=11 // pred_check_branch
        %230 = sbr.rel (%p228) target = $region16
      $region15: #{fc_decoder_forward.1} parent=11 // pred_region
        _
      $region16: #{fc_decoder_forward.1} parent=11 // pred_fallthru
        _
      // Predicated region
      $region17: #{fc_decoder_forward.1} parent=11 // pred_check
        %p231 = pneg %p82
      $region18: #{fc_decoder_forward.1} parent=11 // pred_check_branch
        %233 = sbr.rel (%p231) target = $region20
      $region19: #{fc_decoder_forward.1} parent=11 // pred_region
        _
      $region20: #{fc_decoder_forward.1} parent=11 // pred_fallthru
        _
      // Predicated region
      $region21: #{fc_decoder_forward.1} parent=11 // pred_check
        %p234 = pneg %p103
      $region22: #{fc_decoder_forward.1} parent=11 // pred_check_branch
        %236 = sbr.rel (%p234) target = $region24
      $region23: #{fc_decoder_forward.1} parent=11 // pred_region
        _
      $region24: #{fc_decoder_forward.1} parent=11 // pred_fallthru
        _
      // Predicated region
      $region25: #{fc_decoder_forward.1} parent=11 // pred_check
        %p237 = pneg %p124
      $region26: #{fc_decoder_forward.1} parent=11 // pred_check_branch
        %239 = sbr.rel (%p237) target = $region28
      $region27: #{fc_decoder_forward.1} parent=11 // pred_region
        _
      $region28: #{fc_decoder_forward.1} parent=11 // pred_fallthru
        _
      // Predicated region
      $region29: #{fc_decoder_forward.1} parent=11 // pred_check
        %p240 = pneg %p145
      $region30: #{fc_decoder_forward.1} parent=11 // pred_check_branch
        %242 = sbr.rel (%p240) target = $region32
      $region31: #{fc_decoder_forward.1} parent=11 // pred_region
        _
      $region32: #{fc_decoder_forward.1} parent=11 // pred_fallthru
        _
      // Predicated region
      $region33: #{fc_decoder_forward.1} parent=11 // pred_check
        %p243 = pneg %p166
      $region34: #{fc_decoder_forward.1} parent=11 // pred_check_branch
        %245 = sbr.rel (%p243) target = $region36
      $region35: #{fc_decoder_forward.1} parent=11 // pred_region
        _
      $region36: #{fc_decoder_forward.1} parent=11 // pred_fallthru
        _
      // Predicated region
      $region37: #{fc_decoder_forward.1} parent=11 // pred_check
        %p246 = pneg %p187
      $region38: #{fc_decoder_forward.1} parent=11 // pred_check_branch
        %248 = sbr.rel (%p246) target = $region40
      $region39: #{fc_decoder_forward.1} parent=11 // pred_region
        _
      $region40: #{fc_decoder_forward.1} parent=11 // pred_fallthru
        _
    $region12: #{fc_decoder_forward.1} parent=5 // pred_fallthru
      _
    %p249 = scmp.lt.s32.totalorder %s14, 2
    // Predicated region
    $region41: #{fc_decoder_forward.1} parent=5 // pred_check
      %p250 = pneg %p249
    $region42: #{fc_decoder_forward.1} parent=5 // pred_check_branch
      %252 = sbr.rel (%p250) target = $region44
    $region43: #{fc_decoder_forward.1} parent=5 // pred_region
      // Predicated region
      $region45: #{fc_decoder_forward.1} parent=43 // pred_check
        %p253 = pneg %p34
      $region46: #{fc_decoder_forward.1} parent=43 // pred_check_branch
        %255 = sbr.rel (%p253) target = $region48
      $region47: #{fc_decoder_forward.1} parent=43 // pred_region
        %p256 = scmp.lt.s32.totalorder %s14, 1
        %s257 = scalar_select %p256, %s14, 1
        %s258 = smul.addr %s257, 8
        %s259 = smul.addr %s258, 4
        %s260 = scalar_lea.vmem %s0, %s259
      $region48: #{fc_decoder_forward.1} parent=43 // pred_fallthru
        _
    $region44: #{fc_decoder_forward.1} parent=5 // pred_fallthru
      _
    %p261 = scmp.le.s32.totalorder 1, %s14
    %p262 = scmp.lt.s32.totalorder %s14, 3
    %p263 = pnand %p261, %p262
    %p264 = pneg %p263
    // Predicated region
    $region49: #{fc_decoder_forward.1} parent=5 // pred_check
      _
    $region50: #{fc_decoder_forward.1} parent=5 // pred_check_branch
      %266 = sbr.rel (%p263) target = $region52
    $region51: #{fc_decoder_forward.1} parent=5 // pred_region
      %s267 = ssub.s32 %s14, 1
      %p268 = scmp.lt.s32.totalorder %s19, 1
      %s269 = scalar_select %p268, %s19, 1
      %s270 = smul.addr %s269, 8
      %s271 = smul.addr %s270, 4
      %s272 = scalar_lea.vmem %s0, %s271
      %p273 = pneg %p40
      %p274 = pneg %p37
      %p275 = pneg %p61
      %p276 = pneg %p58
      %p277 = pneg %p82
      %p278 = pneg %p79
      %p279 = pneg %p103
      %p280 = pneg %p100
      %p281 = pneg %p124
      %p282 = pneg %p121
      %p283 = pneg %p145
      %p284 = pneg %p142
      %p285 = pneg %p166
      %p286 = pneg %p163
      %p287 = pneg %p187
      %p288 = pneg %p184
      %p289 = pneg %p213
      %p290 = pneg %p210
      %p291 = scmp.lt.s32.totalorder %s19, 1
      %s292 = scalar_select %p291, %s19, 1
      %s293 = smul.addr %s292, 8
      %s294 = smul.addr %s293, 8
      %s295 = scalar_lea.vmem %s8, %s294
      %p296 = scmp.lt.s32.totalorder %s19, 1
      %s297 = scalar_select %p296, %s19, 1
      %s298 = smul.addr %s297, 8
      %s299 = smul.addr %s298, 4
      %s300 = scalar_lea.vmem %s0, %s299
      %p301 = scmp.lt.s32.totalorder %s19, 1
      %s302 = scalar_select %p301, %s19, 1
      %s303 = smul.addr %s302, 8
      %s304 = smul.addr %s303, 8
      %s305 = scalar_lea.vmem %s8, %s304
      %s307 = scalar_lea.vmem [#allocation2], 128
      %308 = vst [vmem:[%s307] sm:$0xff] 0
      %309 = vst [vmem:[%s307 + $0x8] sm:$0xff] 0
      %310 = vst [vmem:[#allocation2 + $0x8] sm:$0xff] 0
      %311 = vst [vmem:[#allocation2 + $0x18] sm:$0xff] 0
      %312 = vst [vmem:[#allocation2 + $0x28] sm:$0xff] 0
      %313 = vst [vmem:[#allocation2 + $0x38] sm:$0xff] 0
      %314 = vst [vmem:[#allocation2 + $0x48] sm:$0xff] 0
      %315 = vst [vmem:[#allocation2 + $0x58] sm:$0xff] 0
      %316 = vst [vmem:[#allocation2 + $0x68] sm:$0xff] 0
      %317 = vst [vmem:[#allocation2 + $0x78] sm:$0xff] 0
      %s318 = scalar_lea.vmem [#allocation3], 128
      %319 = vst [vmem:[%s318] sm:$0xff] 0
      %320 = vst [vmem:[%s318 + $0x8] sm:$0xff] 0
      %321 = vst [vmem:[#allocation3 + $0x8] sm:$0xff] 0
      %322 = vst [vmem:[#allocation3 + $0x18] sm:$0xff] 0
      %323 = vst [vmem:[#allocation3 + $0x28] sm:$0xff] 0
      %324 = vst [vmem:[#allocation3 + $0x38] sm:$0xff] 0
      %325 = vst [vmem:[#allocation3 + $0x48] sm:$0xff] 0
      %326 = vst [vmem:[#allocation3 + $0x58] sm:$0xff] 0
      %327 = vst [vmem:[#allocation3 + $0x68] sm:$0xff] 0
      %328 = vst [vmem:[#allocation3 + $0x78] sm:$0xff] 0
      %329 = vst [vmem:[#allocation4] sm:$0xff] 0
      %330 = vst [vmem:[#allocation4 + $0x8] sm:$0xff] 0
      %s331 = scalar_lea.vmem [#allocation4], 144
      %332 = vst [vmem:[%s331] sm:$0xff] 0
      %333 = vst [vmem:[%s331 + $0x8] sm:$0xff] 0
      %s334 = scalar_lea.vmem [#allocation4], 16
      %vm335 = vcmask 1040384
      %vm336 = vsmask.f32 256
      %vm337 = vmand %vm335, %vm336
      %vm338 = vcmask 1044484
      %vm339 = vsmask.f32 4352
      %vm340 = vmand %vm338, %vm339
      %vm341 = vmor %vm340, %vm337
      %v342 = vld [vmem:[%s334] sm:$0x11]
      %v343 = vsel %vm341, 0, %v342
      %344 = vst [vmem:[%s334] sm:$0x11] %v343
      %v345 = vld [vmem:[%s334 + $0x10] sm:$0x11]
      %v346 = vsel %vm341, 0, %v345
      %347 = vst [vmem:[%s334 + $0x10] sm:$0x11] %v346
      %v348 = vld [vmem:[%s334 + $0x20] sm:$0x11]
      %v349 = vsel %vm341, 0, %v348
      %350 = vst [vmem:[%s334 + $0x20] sm:$0x11] %v349
      %v351 = vld [vmem:[%s334 + $0x30] sm:$0x11]
      %v352 = vsel %vm341, 0, %v351
      %353 = vst [vmem:[%s334 + $0x30] sm:$0x11] %v352
      %v354 = vld [vmem:[%s334 + $0x40] sm:$0x11]
      %v355 = vsel %vm341, 0, %v354
      %356 = vst [vmem:[%s334 + $0x40] sm:$0x11] %v355
      %v357 = vld [vmem:[%s334 + $0x50] sm:$0x11]
      %v358 = vsel %vm341, 0, %v357
      %359 = vst [vmem:[%s334 + $0x50] sm:$0x11] %v358
      %v360 = vld [vmem:[%s334 + $0x60] sm:$0x11]
      %v361 = vsel %vm341, 0, %v360
      %362 = vst [vmem:[%s334 + $0x60] sm:$0x11] %v361
      %v363 = vld [vmem:[%s334 + $0x70] sm:$0x11]
      %v364 = vsel %vm341, 0, %v363
      %365 = vst [vmem:[%s334 + $0x70] sm:$0x11] %v364
      %vm366 = vcmask 1043456
      %vm367 = vsmask.f32 7938
      %vm368 = vmand %vm366, %vm367
      %vm369 = vcmask 1047556
      %vm370 = vsmask.f32 7954
      %vm371 = vmand %vm369, %vm370
      %vm372 = vmor %vm371, %vm368
      %v373 = vld [vmem:[%s334 + $0x8] sm:$0xff]
      %v374 = vsel %vm372, 0, %v373
      %375 = vst [vmem:[%s334 + $0x8] sm:$0xff] %v374
      %v376 = vld [vmem:[%s334 + $0x18] sm:$0xff]
      %v377 = vsel %vm372, 0, %v376
      %378 = vst [vmem:[%s334 + $0x18] sm:$0xff] %v377
      %v379 = vld [vmem:[%s334 + $0x28] sm:$0xff]
      %v380 = vsel %vm372, 0, %v379
      %381 = vst [vmem:[%s334 + $0x28] sm:$0xff] %v380
      %v382 = vld [vmem:[%s334 + $0x38] sm:$0xff]
      %v383 = vsel %vm372, 0, %v382
      %384 = vst [vmem:[%s334 + $0x38] sm:$0xff] %v383
      %v385 = vld [vmem:[%s334 + $0x48] sm:$0xff]
      %v386 = vsel %vm372, 0, %v385
      %387 = vst [vmem:[%s334 + $0x48] sm:$0xff] %v386
      %v388 = vld [vmem:[%s334 + $0x58] sm:$0xff]
      %v389 = vsel %vm372, 0, %v388
      %390 = vst [vmem:[%s334 + $0x58] sm:$0xff] %v389
      %v391 = vld [vmem:[%s334 + $0x68] sm:$0xff]
      %v392 = vsel %vm372, 0, %v391
      %393 = vst [vmem:[%s334 + $0x68] sm:$0xff] %v392
      %v394 = vld [vmem:[%s334 + $0x78] sm:$0xff]
      %v395 = vsel %vm372, 0, %v394
      %396 = vst [vmem:[%s334 + $0x78] sm:$0xff] %v395
      %s397 = scalar_lea.vmem [#allocation4], 160
      %398 = vst [vmem:[%s397] sm:$0xff] 0
      %399 = vst [vmem:[%s397 + $0x8] sm:$0xff] 0
      %s400 = scalar_lea.vmem [#allocation4], 304
      %401 = vst [vmem:[%s400] sm:$0xff] 0
      %402 = vst [vmem:[%s400 + $0x8] sm:$0xff] 0
      %s403 = scalar_lea.vmem [#allocation4], 176
      %v404 = vld [vmem:[%s403] sm:$0x11]
      %v405 = vsel %vm341, 0, %v404
      %406 = vst [vmem:[%s403] sm:$0x11] %v405
      %v407 = vld [vmem:[%s403 + $0x10] sm:$0x11]
      %v408 = vsel %vm341, 0, %v407
      %409 = vst [vmem:[%s403 + $0x10] sm:$0x11] %v408
      %v410 = vld [vmem:[%s403 + $0x20] sm:$0x11]
      %v411 = vsel %vm341, 0, %v410
      %412 = vst [vmem:[%s403 + $0x20] sm:$0x11] %v411
      %v413 = vld [vmem:[%s403 + $0x30] sm:$0x11]
      %v414 = vsel %vm341, 0, %v413
      %415 = vst [vmem:[%s403 + $0x30] sm:$0x11] %v414
      %v416 = vld [vmem:[%s403 + $0x40] sm:$0x11]
      %v417 = vsel %vm341, 0, %v416
      %418 = vst [vmem:[%s403 + $0x40] sm:$0x11] %v417
      %v419 = vld [vmem:[%s403 + $0x50] sm:$0x11]
      %v420 = vsel %vm341, 0, %v419
      %421 = vst [vmem:[%s403 + $0x50] sm:$0x11] %v420
      %v422 = vld [vmem:[%s403 + $0x60] sm:$0x11]
      %v423 = vsel %vm341, 0, %v422
      %424 = vst [vmem:[%s403 + $0x60] sm:$0x11] %v423
      %v425 = vld [vmem:[%s403 + $0x70] sm:$0x11]
      %v426 = vsel %vm341, 0, %v425
      %427 = vst [vmem:[%s403 + $0x70] sm:$0x11] %v426
      %v428 = vld [vmem:[%s403 + $0x8] sm:$0xff]
      %v429 = vsel %vm372, 0, %v428
      %430 = vst [vmem:[%s403 + $0x8] sm:$0xff] %v429
      %v431 = vld [vmem:[%s403 + $0x18] sm:$0xff]
      %v432 = vsel %vm372, 0, %v431
      %433 = vst [vmem:[%s403 + $0x18] sm:$0xff] %v432
      %v434 = vld [vmem:[%s403 + $0x28] sm:$0xff]
      %v435 = vsel %vm372, 0, %v434
      %436 = vst [vmem:[%s403 + $0x28] sm:$0xff] %v435
      %v437 = vld [vmem:[%s403 + $0x38] sm:$0xff]
      %v438 = vsel %vm372, 0, %v437
      %439 = vst [vmem:[%s403 + $0x38] sm:$0xff] %v438
      %v440 = vld [vmem:[%s403 + $0x48] sm:$0xff]
      %v441 = vsel %vm372, 0, %v440
      %442 = vst [vmem:[%s403 + $0x48] sm:$0xff] %v441
      %v443 = vld [vmem:[%s403 + $0x58] sm:$0xff]
      %v444 = vsel %vm372, 0, %v443
      %445 = vst [vmem:[%s403 + $0x58] sm:$0xff] %v444
      %v446 = vld [vmem:[%s403 + $0x68] sm:$0xff]
      %v447 = vsel %vm372, 0, %v446
      %448 = vst [vmem:[%s403 + $0x68] sm:$0xff] %v447
      %v449 = vld [vmem:[%s403 + $0x78] sm:$0xff]
      %v450 = vsel %vm372, 0, %v449
      %451 = vst [vmem:[%s403 + $0x78] sm:$0xff] %v450
      %s452 = scalar_lea.vmem [#allocation4], 320
      %453 = vst [vmem:[%s452] sm:$0xff] 0
      %454 = vst [vmem:[%s452 + $0x8] sm:$0xff] 0
      %s455 = scalar_lea.vmem [#allocation4], 464
      %456 = vst [vmem:[%s455] sm:$0xff] 0
      %457 = vst [vmem:[%s455 + $0x8] sm:$0xff] 0
      %s458 = scalar_lea.vmem [#allocation4], 336
      %v459 = vld [vmem:[%s458] sm:$0x11]
      %v460 = vsel %vm341, 0, %v459
      %461 = vst [vmem:[%s458] sm:$0x11] %v460
      %v462 = vld [vmem:[%s458 + $0x10] sm:$0x11]
      %v463 = vsel %vm341, 0, %v462
      %464 = vst [vmem:[%s458 + $0x10] sm:$0x11] %v463
      %v465 = vld [vmem:[%s458 + $0x20] sm:$0x11]
      %v466 = vsel %vm341, 0, %v465
      %467 = vst [vmem:[%s458 + $0x20] sm:$0x11] %v466
      %v468 = vld [vmem:[%s458 + $0x30] sm:$0x11]
      %v469 = vsel %vm341, 0, %v468
      %470 = vst [vmem:[%s458 + $0x30] sm:$0x11] %v469
      %v471 = vld [vmem:[%s458 + $0x40] sm:$0x11]
      %v472 = vsel %vm341, 0, %v471
      %473 = vst [vmem:[%s458 + $0x40] sm:$0x11] %v472
      %v474 = vld [vmem:[%s458 + $0x50] sm:$0x11]
      %v475 = vsel %vm341, 0, %v474
      %476 = vst [vmem:[%s458 + $0x50] sm:$0x11] %v475
      %v477 = vld [vmem:[%s458 + $0x60] sm:$0x11]
      %v478 = vsel %vm341, 0, %v477
      %479 = vst [vmem:[%s458 + $0x60] sm:$0x11] %v478
      %v480 = vld [vmem:[%s458 + $0x70] sm:$0x11]
      %v481 = vsel %vm341, 0, %v480
      %482 = vst [vmem:[%s458 + $0x70] sm:$0x11] %v481
      %v483 = vld [vmem:[%s458 + $0x8] sm:$0xff]
      %v484 = vsel %vm372, 0, %v483
      %485 = vst [vmem:[%s458 + $0x8] sm:$0xff] %v484
      %v486 = vld [vmem:[%s458 + $0x18] sm:$0xff]
      %v487 = vsel %vm372, 0, %v486
      %488 = vst [vmem:[%s458 + $0x18] sm:$0xff] %v487
      %v489 = vld [vmem:[%s458 + $0x28] sm:$0xff]
      %v490 = vsel %vm372, 0, %v489
      %491 = vst [vmem:[%s458 + $0x28] sm:$0xff] %v490
      %v492 = vld [vmem:[%s458 + $0x38] sm:$0xff]
      %v493 = vsel %vm372, 0, %v492
      %494 = vst [vmem:[%s458 + $0x38] sm:$0xff] %v493
      %v495 = vld [vmem:[%s458 + $0x48] sm:$0xff]
      %v496 = vsel %vm372, 0, %v495
      %497 = vst [vmem:[%s458 + $0x48] sm:$0xff] %v496
      %v498 = vld [vmem:[%s458 + $0x58] sm:$0xff]
      %v499 = vsel %vm372, 0, %v498
      %500 = vst [vmem:[%s458 + $0x58] sm:$0xff] %v499
      %v501 = vld [vmem:[%s458 + $0x68] sm:$0xff]
      %v502 = vsel %vm372, 0, %v501
      %503 = vst [vmem:[%s458 + $0x68] sm:$0xff] %v502
      %v504 = vld [vmem:[%s458 + $0x78] sm:$0xff]
      %v505 = vsel %vm372, 0, %v504
      %506 = vst [vmem:[%s458 + $0x78] sm:$0xff] %v505
      %s507 = scalar_lea.vmem [#allocation4], 480
      %508 = vst [vmem:[%s507] sm:$0xff] 0
      %509 = vst [vmem:[%s507 + $0x8] sm:$0xff] 0
      %s510 = scalar_lea.vmem [#allocation4], 624
      %511 = vst [vmem:[%s510] sm:$0xff] 0
      %512 = vst [vmem:[%s510 + $0x8] sm:$0xff] 0
      %s513 = scalar_lea.vmem [#allocation4], 496
      %v514 = vld [vmem:[%s513] sm:$0x11]
      %v515 = vsel %vm341, 0, %v514
      %516 = vst [vmem:[%s513] sm:$0x11] %v515
      %v517 = vld [vmem:[%s513 + $0x10] sm:$0x11]
      %v518 = vsel %vm341, 0, %v517
      %519 = vst [vmem:[%s513 + $0x10] sm:$0x11] %v518
      %v520 = vld [vmem:[%s513 + $0x20] sm:$0x11]
      %v521 = vsel %vm341, 0, %v520
      %522 = vst [vmem:[%s513 + $0x20] sm:$0x11] %v521
      %v523 = vld [vmem:[%s513 + $0x30] sm:$0x11]
      %v524 = vsel %vm341, 0, %v523
      %525 = vst [vmem:[%s513 + $0x30] sm:$0x11] %v524
      %v526 = vld [vmem:[%s513 + $0x40] sm:$0x11]
      %v527 = vsel %vm341, 0, %v526
      %528 = vst [vmem:[%s513 + $0x40] sm:$0x11] %v527
      %v529 = vld [vmem:[%s513 + $0x50] sm:$0x11]
      %v530 = vsel %vm341, 0, %v529
      %531 = vst [vmem:[%s513 + $0x50] sm:$0x11] %v530
      %v532 = vld [vmem:[%s513 + $0x60] sm:$0x11]
      %v533 = vsel %vm341, 0, %v532
      %534 = vst [vmem:[%s513 + $0x60] sm:$0x11] %v533
      %v535 = vld [vmem:[%s513 + $0x70] sm:$0x11]
      %v536 = vsel %vm341, 0, %v535
      %537 = vst [vmem:[%s513 + $0x70] sm:$0x11] %v536
      %v538 = vld [vmem:[%s513 + $0x8] sm:$0xff]
      %v539 = vsel %vm372, 0, %v538
      %540 = vst [vmem:[%s513 + $0x8] sm:$0xff] %v539
      %v541 = vld [vmem:[%s513 + $0x18] sm:$0xff]
      %v542 = vsel %vm372, 0, %v541
      %543 = vst [vmem:[%s513 + $0x18] sm:$0xff] %v542
      %v544 = vld [vmem:[%s513 + $0x28] sm:$0xff]
      %v545 = vsel %vm372, 0, %v544
      %546 = vst [vmem:[%s513 + $0x28] sm:$0xff] %v545
      %v547 = vld [vmem:[%s513 + $0x38] sm:$0xff]
      %v548 = vsel %vm372, 0, %v547
      %549 = vst [vmem:[%s513 + $0x38] sm:$0xff] %v548
      %v550 = vld [vmem:[%s513 + $0x48] sm:$0xff]
      %v551 = vsel %vm372, 0, %v550
      %552 = vst [vmem:[%s513 + $0x48] sm:$0xff] %v551
      %v553 = vld [vmem:[%s513 + $0x58] sm:$0xff]
      %v554 = vsel %vm372, 0, %v553
      %555 = vst [vmem:[%s513 + $0x58] sm:$0xff] %v554
      %v556 = vld [vmem:[%s513 + $0x68] sm:$0xff]
      %v557 = vsel %vm372, 0, %v556
      %558 = vst [vmem:[%s513 + $0x68] sm:$0xff] %v557
      %v559 = vld [vmem:[%s513 + $0x78] sm:$0xff]
      %v560 = vsel %vm372, 0, %v559
      %561 = vst [vmem:[%s513 + $0x78] sm:$0xff] %v560
      %v562 = vld [vmem:[%s300] sm:$0xf]
      %v563 = vld [vmem:[%s300 + $0x4] sm:$0xf]
      %v564 = vld [vmem:[%s300 + $0x8] sm:$0xf]
      %v565 = vld [vmem:[%s300 + $0xc] sm:$0xf]
      %v566 = vld [vmem:[%s300 + $0x10] sm:$0xf]
      %v567 = vld [vmem:[%s300 + $0x14] sm:$0xf]
      %v568 = vld [vmem:[%s300 + $0x18] sm:$0xf]
      %v569 = vld [vmem:[%s300 + $0x1c] sm:$0xf]
      %v570 = vld [vmem:[%s1] sm:$0xff]
      %v571 = vld [vmem:[%s1 + $0x8] sm:$0xff]
      %v572 = vld [vmem:[%s1 + $0x10] sm:$0xff]
      %v573 = vld [vmem:[%s1 + $0x18] sm:$0xff]
      %v574 = vld [vmem:[%s2] sm:$0xf]
      %v576 = vlaneseq
      %v577 = vshrl.u32 %v576, 7
      %v578 = vsub.s32 0, %v577
      %v579 = vrot.slane %v574, %v578
      %v580 = vlaneseq
      %v581 = vshrl.u32 %v580, 7
      %v582 = vsub.s32 1, %v581
      %v583 = vrot.slane %v574, %v582
      %v584 = vlaneseq
      %v585 = vshrl.u32 %v584, 7
      %v586 = vsub.s32 2, %v585
      %v587 = vrot.slane %v574, %v586
      %v588 = vlaneseq
      %v589 = vshrl.u32 %v588, 7
      %v590 = vsub.s32 3, %v589
      %v591 = vrot.slane %v574, %v590
      %v604 = vunpack.c.l.b16 %v562
      %v605 = vunpack.c.l.b16 %v563
      %v606 = vunpack.c.l.b16 %v564
      %v607 = vunpack.c.l.b16 %v565
      %v608 = vunpack.c.l.b16 %v566
      %v609 = vunpack.c.l.b16 %v567
      %v610 = vunpack.c.l.b16 %v568
      %v611 = vunpack.c.l.b16 %v569
      %v612 = vpack.c.b16 %v605, %v604
      %v613 = vpack.c.b16 %v607, %v606
      %v614 = vpack.c.b16 %v609, %v608
      %v615 = vpack.c.b16 %v611, %v610
      %v620 = vunpack.c.l.b16 %v570
      %v621 = vunpack.c.h.b16 %v570
      %v622 = vunpack.c.l.b16 %v571
      %v623 = vunpack.c.h.b16 %v571
      %v624 = vunpack.c.l.b16 %v572
      %v625 = vunpack.c.h.b16 %v572
      %v626 = vunpack.c.l.b16 %v573
      %v627 = vunpack.c.h.b16 %v573
      %v628 = vpack.c.b16 %v624, %v620
      %v629 = vpack.c.b16 %v625, %v621
      %v630 = vpack.c.b16 %v626, %v622
      %v631 = vpack.c.b16 %v627, %v623
      %vm636 = vcmask 130048
      %v638 = vsel %vm636, %v612, 0
      %v641 = vsel %vm636, %v613, 0
      %v644 = vsel %vm636, %v614, 0
      %v647 = vsel %vm636, %v615, 0
      %649 = vmatprep.subr.bf16.mxu0 0
      %650 = vmatpush1.bf16.msra.mxu0 0
      %651 = vmatprep.subr.bf16.mxu0 0
      %652 = vmatpush1.bf16.msra.mxu0 0
      %653 = vmatprep.subr.bf16.mxu0 0
      %654 = vmatpush1.bf16.msra.mxu0 0
      %655 = vmatprep.subr.bf16.mxu0 0
      %656 = vmatpush1.bf16.msra.mxu0 0
      %657 = vmatprep.subr.bf16.mxu0 0
      %658 = vmatpush1.bf16.msra.mxu0 0
      %659 = vmatprep.subr.bf16.mxu0 0
      %660 = vmatpush1.bf16.msra.mxu0 0
      %661 = vmatprep.subr.bf16.mxu0 0
      %662 = vmatpush1.bf16.msra.mxu0 0
      %663 = vmatprep.subr.bf16.mxu0 %v629
      %664 = vmatpush1.bf16.msra.mxu0 %v628
      %665 = vmatprep.subr.bf16.mxu0 0
      %666 = vmatpush2.bf16.msra.mxu0 0
      %667 = vmatprep.subr.bf16.mxu0 0
      %668 = vmatpush2.bf16.msra.mxu0 0
      %669 = vmatprep.subr.bf16.mxu0 0
      %670 = vmatpush2.bf16.msra.mxu0 0
      %671 = vmatprep.subr.bf16.mxu0 0
      %672 = vmatpush2.bf16.msra.mxu0 0
      %673 = vmatprep.subr.bf16.mxu0 0
      %674 = vmatpush2.bf16.msra.mxu0 0
      %675 = vmatprep.subr.bf16.mxu0 0
      %676 = vmatpush2.bf16.msra.mxu0 0
      %677 = vmatprep.subr.bf16.mxu0 0
      %678 = vmatpush2.bf16.msra.mxu0 0
      %679 = vmatprep.subr.bf16.mxu0 0
      %680 = vmatpush2.bf16.msra.mxu0 0
      %681 = vmatprep.mubr.bf16.mxu0 0
      %682 = vmatmul.mubr.bf16.gmra.mxu0 %v638
      %v683 = vpop.f32.mrf.mxu0
      %v684 = vadd.f32 %v579, %v683
      %v685 = vpop.f32.mrf.mxu0
      %v686 = vadd.f32 %v583, %v685
      %v687 = vpop.f32.mrf.mxu0
      %v688 = vadd.f32 %v579, %v687
      %v689 = vpop.f32.mrf.mxu0
      %v690 = vadd.f32 %v583, %v689
      %691 = vmatprep.mubr.bf16.mxu0 0
      %692 = vmatmul.mubr.bf16.gmra.mxu0 %v641
      %v693 = vpop.f32.mrf.mxu0
      %v694 = vadd.f32 %v579, %v693
      %v695 = vpop.f32.mrf.mxu0
      %v696 = vadd.f32 %v583, %v695
      %v697 = vpop.f32.mrf.mxu0
      %v698 = vadd.f32 %v579, %v697
      %v699 = vpop.f32.mrf.mxu0
      %v700 = vadd.f32 %v583, %v699
      %701 = vmatprep.mubr.bf16.mxu0 0
      %702 = vmatmul.mubr.bf16.gmra.mxu0 %v644
      %v703 = vpop.f32.mrf.mxu0
      %v704 = vadd.f32 %v579, %v703
      %v705 = vpop.f32.mrf.mxu0
      %v706 = vadd.f32 %v583, %v705
      %v707 = vpop.f32.mrf.mxu0
      %v708 = vadd.f32 %v579, %v707
      %v709 = vpop.f32.mrf.mxu0
      %v710 = vadd.f32 %v583, %v709
      %711 = vmatprep.mubr.bf16.mxu0 0
      %712 = vmatmul.mubr.bf16.gmra.mxu0 %v647
      %v713 = vpop.f32.mrf.mxu0
      %v714 = vadd.f32 %v579, %v713
      %v715 = vpop.f32.mrf.mxu0
      %v716 = vadd.f32 %v583, %v715
      %v717 = vpop.f32.mrf.mxu0
      %v718 = vadd.f32 %v579, %v717
      %v719 = vpop.f32.mrf.mxu0
      %v720 = vadd.f32 %v583, %v719
      %721 = vdwg.mxu0
      %722 = vmatprep.subr.bf16.mxu0 0
      %723 = vmatpush1.bf16.msra.mxu0 0
      %724 = vmatprep.subr.bf16.mxu0 0
      %725 = vmatpush1.bf16.msra.mxu0 0
      %726 = vmatprep.subr.bf16.mxu0 0
      %727 = vmatpush1.bf16.msra.mxu0 0
      %728 = vmatprep.subr.bf16.mxu0 0
      %729 = vmatpush1.bf16.msra.mxu0 0
      %730 = vmatprep.subr.bf16.mxu0 0
      %731 = vmatpush1.bf16.msra.mxu0 0
      %732 = vmatprep.subr.bf16.mxu0 0
      %733 = vmatpush1.bf16.msra.mxu0 0
      %734 = vmatprep.subr.bf16.mxu0 0
      %735 = vmatpush1.bf16.msra.mxu0 0
      %736 = vmatprep.subr.bf16.mxu0 %v631
      %737 = vmatpush1.bf16.msra.mxu0 %v630
      %738 = vmatprep.subr.bf16.mxu0 0
      %739 = vmatpush2.bf16.msra.mxu0 0
      %740 = vmatprep.subr.bf16.mxu0 0
      %741 = vmatpush2.bf16.msra.mxu0 0
      %742 = vmatprep.subr.bf16.mxu0 0
      %743 = vmatpush2.bf16.msra.mxu0 0
      %744 = vmatprep.subr.bf16.mxu0 0
      %745 = vmatpush2.bf16.msra.mxu0 0
      %746 = vmatprep.subr.bf16.mxu0 0
      %747 = vmatpush2.bf16.msra.mxu0 0
      %748 = vmatprep.subr.bf16.mxu0 0
      %749 = vmatpush2.bf16.msra.mxu0 0
      %750 = vmatprep.subr.bf16.mxu0 0
      %751 = vmatpush2.bf16.msra.mxu0 0
      %752 = vmatprep.subr.bf16.mxu0 0
      %753 = vmatpush2.bf16.msra.mxu0 0
      %754 = vmatprep.mubr.bf16.mxu0 0
      %755 = vmatmul.mubr.bf16.gmra.mxu0 %v638
      %v756 = vpop.f32.mrf.mxu0
      %v757 = vadd.f32 %v587, %v756
      %v758 = vpop.f32.mrf.mxu0
      %v759 = vadd.f32 %v591, %v758
      %v760 = vpop.f32.mrf.mxu0
      %v761 = vadd.f32 %v587, %v760
      %v762 = vpop.f32.mrf.mxu0
      %v763 = vadd.f32 %v591, %v762
      %764 = vmatprep.mubr.bf16.mxu0 0
      %765 = vmatmul.mubr.bf16.gmra.mxu0 %v641
      %v766 = vpop.f32.mrf.mxu0
      %v767 = vadd.f32 %v587, %v766
      %v768 = vpop.f32.mrf.mxu0
      %v769 = vadd.f32 %v591, %v768
      %v770 = vpop.f32.mrf.mxu0
      %v771 = vadd.f32 %v587, %v770
      %v772 = vpop.f32.mrf.mxu0
      %v773 = vadd.f32 %v591, %v772
      %774 = vmatprep.mubr.bf16.mxu0 0
      %775 = vmatmul.mubr.bf16.gmra.mxu0 %v644
      %v776 = vpop.f32.mrf.mxu0
      %v777 = vadd.f32 %v587, %v776
      %v778 = vpop.f32.mrf.mxu0
      %v779 = vadd.f32 %v591, %v778
      %v780 = vpop.f32.mrf.mxu0
      %v781 = vadd.f32 %v587, %v780
      %v782 = vpop.f32.mrf.mxu0
      %v783 = vadd.f32 %v591, %v782
      %784 = vmatprep.mubr.bf16.mxu0 0
      %785 = vmatmul.mubr.bf16.gmra.mxu0 %v647
      %v786 = vpop.f32.mrf.mxu0
      %v787 = vadd.f32 %v587, %v786
      %v788 = vpop.f32.mrf.mxu0
      %v789 = vadd.f32 %v591, %v788
      %v790 = vpop.f32.mrf.mxu0
      %v791 = vadd.f32 %v587, %v790
      %v792 = vpop.f32.mrf.mxu0
      %v793 = vadd.f32 %v591, %v792
      %794 = vdwg.mxu0
      %v795 = vmax.f32 %v684, 0.0
      %v796 = vmax.f32 %v686, 0.0
      %v797 = vmax.f32 %v757, 0.0
      %v798 = vmax.f32 %v759, 0.0
      %v799 = vmax.f32 %v688, 0.0
      %v800 = vmax.f32 %v690, 0.0
      %v801 = vmax.f32 %v761, 0.0
      %v802 = vmax.f32 %v763, 0.0
      %v803 = vmax.f32 %v694, 0.0
      %v804 = vmax.f32 %v696, 0.0
      %v805 = vmax.f32 %v767, 0.0
      %v806 = vmax.f32 %v769, 0.0
      %v807 = vmax.f32 %v698, 0.0
      %v808 = vmax.f32 %v700, 0.0
      %v809 = vmax.f32 %v771, 0.0
      %v810 = vmax.f32 %v773, 0.0
      %v811 = vmax.f32 %v704, 0.0
      %v812 = vmax.f32 %v706, 0.0
      %v813 = vmax.f32 %v777, 0.0
      %v814 = vmax.f32 %v779, 0.0
      %v815 = vmax.f32 %v708, 0.0
      %v816 = vmax.f32 %v710, 0.0
      %v817 = vmax.f32 %v781, 0.0
      %v818 = vmax.f32 %v783, 0.0
      %v819 = vmax.f32 %v714, 0.0
      %v820 = vmax.f32 %v716, 0.0
      %v821 = vmax.f32 %v787, 0.0
      %v822 = vmax.f32 %v789, 0.0
      %v823 = vmax.f32 %v718, 0.0
      %v824 = vmax.f32 %v720, 0.0
      %v825 = vmax.f32 %v791, 0.0
      %v826 = vmax.f32 %v793, 0.0
      %v827 = vpack.c.bf16 %v799, %v795
      %v828 = vpack.c.bf16 %v800, %v796
      %v829 = vpack.c.bf16 %v807, %v803
      %v830 = vpack.c.bf16 %v808, %v804
      %v831 = vpack.c.bf16 %v815, %v811
      %v832 = vpack.c.bf16 %v816, %v812
      %v833 = vpack.c.bf16 %v823, %v819
      %v834 = vpack.c.bf16 %v824, %v820
      %v843 = vunpack.c.l.b16 %v827
      %v844 = vunpack.c.l.b16 %v828
      %v845 = vunpack.c.h.b16 %v827
      %v846 = vunpack.c.h.b16 %v828
      %v847 = vunpack.c.l.b16 %v829
      %v848 = vunpack.c.l.b16 %v830
      %v849 = vunpack.c.h.b16 %v829
      %v850 = vunpack.c.h.b16 %v830
      %v851 = vunpack.c.l.b16 %v831
      %v852 = vunpack.c.l.b16 %v832
      %v853 = vunpack.c.h.b16 %v831
      %v854 = vunpack.c.h.b16 %v832
      %v855 = vunpack.c.l.b16 %v833
      %v856 = vunpack.c.l.b16 %v834
      %v857 = vunpack.c.h.b16 %v833
      %v858 = vunpack.c.h.b16 %v834
      %v859 = vpack.c.b16 %v844, %v843
      %v860 = vpack.c.b16 %v846, %v845
      %v861 = vpack.c.b16 %v848, %v847
      %v862 = vpack.c.b16 %v850, %v849
      %v863 = vpack.c.b16 %v852, %v851
      %v864 = vpack.c.b16 %v854, %v853
      %v865 = vpack.c.b16 %v856, %v855
      %v866 = vpack.c.b16 %v858, %v857
      %875 = vst [vmem:[#allocation2] sm:$0xff] %v859
      %876 = vst [vmem:[#allocation2 + $0x10] sm:$0xff] %v860
      %877 = vst [vmem:[#allocation2 + $0x20] sm:$0xff] %v861
      %878 = vst [vmem:[#allocation2 + $0x30] sm:$0xff] %v862
      %879 = vst [vmem:[#allocation2 + $0x40] sm:$0xff] %v863
      %880 = vst [vmem:[#allocation2 + $0x50] sm:$0xff] %v864
      %881 = vst [vmem:[#allocation2 + $0x60] sm:$0xff] %v865
      %882 = vst [vmem:[#allocation2 + $0x70] sm:$0xff] %v866
      %v883 = vpack.c.bf16 %v801, %v797
      %v884 = vpack.c.bf16 %v802, %v798
      %v885 = vpack.c.bf16 %v809, %v805
      %v886 = vpack.c.bf16 %v810, %v806
      %v887 = vpack.c.bf16 %v817, %v813
      %v888 = vpack.c.bf16 %v818, %v814
      %v889 = vpack.c.bf16 %v825, %v821
      %v890 = vpack.c.bf16 %v826, %v822
      %v899 = vunpack.c.l.b16 %v883
      %v900 = vunpack.c.l.b16 %v884
      %v901 = vunpack.c.h.b16 %v883
      %v902 = vunpack.c.h.b16 %v884
      %v903 = vunpack.c.l.b16 %v885
      %v904 = vunpack.c.l.b16 %v886
      %v905 = vunpack.c.h.b16 %v885
      %v906 = vunpack.c.h.b16 %v886
      %v907 = vunpack.c.l.b16 %v887
      %v908 = vunpack.c.l.b16 %v888
      %v909 = vunpack.c.h.b16 %v887
      %v910 = vunpack.c.h.b16 %v888
      %v911 = vunpack.c.l.b16 %v889
      %v912 = vunpack.c.l.b16 %v890
      %v913 = vunpack.c.h.b16 %v889
      %v914 = vunpack.c.h.b16 %v890
      %v915 = vpack.c.b16 %v900, %v899
      %v916 = vpack.c.b16 %v902, %v901
      %v917 = vpack.c.b16 %v904, %v903
      %v918 = vpack.c.b16 %v906, %v905
      %v919 = vpack.c.b16 %v908, %v907
      %v920 = vpack.c.b16 %v910, %v909
      %v921 = vpack.c.b16 %v912, %v911
      %v922 = vpack.c.b16 %v914, %v913
      %931 = vst [vmem:[#allocation3] sm:$0xff] %v915
      %932 = vst [vmem:[#allocation3 + $0x10] sm:$0xff] %v916
      %933 = vst [vmem:[#allocation3 + $0x20] sm:$0xff] %v917
      %934 = vst [vmem:[#allocation3 + $0x30] sm:$0xff] %v918
      %935 = vst [vmem:[#allocation3 + $0x40] sm:$0xff] %v919
      %936 = vst [vmem:[#allocation3 + $0x50] sm:$0xff] %v920
      %937 = vst [vmem:[#allocation3 + $0x60] sm:$0xff] %v921
      %938 = vst [vmem:[#allocation3 + $0x70] sm:$0xff] %v922
      %v939 = vld [vmem:[#allocation2] sm:$0xff]
      %v940 = vld [vmem:[#allocation2 + $0x10] sm:$0xff]
      %v941 = vld [vmem:[#allocation2 + $0x20] sm:$0xff]
      %v942 = vld [vmem:[#allocation2 + $0x30] sm:$0xff]
      %v943 = vld [vmem:[#allocation2 + $0x40] sm:$0xff]
      %v944 = vld [vmem:[#allocation2 + $0x50] sm:$0xff]
      %v945 = vld [vmem:[#allocation2 + $0x60] sm:$0xff]
      %v946 = vld [vmem:[#allocation2 + $0x70] sm:$0xff]
      %s947 = scalar_lea.vmem %s3, 256
      %v948 = vld [vmem:[%s947] sm:$0xff]
      %v949 = vld [vmem:[%s947 + $0x8] sm:$0xff]
      %v950 = vld [vmem:[%s947 + $0x10] sm:$0xff]
      %v951 = vld [vmem:[%s947 + $0x18] sm:$0xff]
      %v952 = vld [vmem:[%s947 + $0x20] sm:$0xff]
      %v953 = vld [vmem:[%s947 + $0x28] sm:$0xff]
      %v954 = vld [vmem:[%s947 + $0x30] sm:$0xff]
      %v955 = vld [vmem:[%s947 + $0x38] sm:$0xff]
      %v956 = vld [vmem:[%s947 + $0x40] sm:$0xff]
      %v957 = vld [vmem:[%s947 + $0x48] sm:$0xff]
      %v958 = vld [vmem:[%s947 + $0x50] sm:$0xff]
      %v959 = vld [vmem:[%s947 + $0x58] sm:$0xff]
      %v960 = vld [vmem:[%s947 + $0x60] sm:$0xff]
      %v961 = vld [vmem:[%s947 + $0x68] sm:$0xff]
      %v962 = vld [vmem:[%s947 + $0x70] sm:$0xff]
      %v963 = vld [vmem:[%s947 + $0x78] sm:$0xff]
      %v964 = vld [vmem:[%s947 + $0x80] sm:$0xff]
      %v965 = vld [vmem:[%s947 + $0x88] sm:$0xff]
      %v966 = vld [vmem:[%s947 + $0x90] sm:$0xff]
      %v967 = vld [vmem:[%s947 + $0x98] sm:$0xff]
      %v968 = vld [vmem:[%s947 + $0xa0] sm:$0xff]
      %v969 = vld [vmem:[%s947 + $0xa8] sm:$0xff]
      %v970 = vld [vmem:[%s947 + $0xb0] sm:$0xff]
      %v971 = vld [vmem:[%s947 + $0xb8] sm:$0xff]
      %v972 = vld [vmem:[%s947 + $0xc0] sm:$0xff]
      %v973 = vld [vmem:[%s947 + $0xc8] sm:$0xff]
      %v974 = vld [vmem:[%s947 + $0xd0] sm:$0xff]
      %v975 = vld [vmem:[%s947 + $0xd8] sm:$0xff]
      %v976 = vld [vmem:[%s947 + $0xe0] sm:$0xff]
      %v977 = vld [vmem:[%s947 + $0xe8] sm:$0xff]
      %v978 = vld [vmem:[%s947 + $0xf0] sm:$0xff]
      %v979 = vld [vmem:[%s947 + $0xf8] sm:$0xff]
      %v980 = vld [vmem:[#allocation2] sm:$0xf]
      %v981 = vld [vmem:[#allocation2 + $0x8] sm:$0x1]
      %v982 = vld [vmem:[#allocation2 + $0x10] sm:$0xf]
      %v983 = vld [vmem:[#allocation2 + $0x18] sm:$0x1]
      %v984 = vld [vmem:[#allocation2 + $0x20] sm:$0xf]
      %v985 = vld [vmem:[#allocation2 + $0x28] sm:$0x1]
      %v986 = vld [vmem:[#allocation2 + $0x30] sm:$0xf]
      %v987 = vld [vmem:[#allocation2 + $0x38] sm:$0x1]
      %v988 = vld [vmem:[#allocation2 + $0x40] sm:$0xf]
      %v989 = vld [vmem:[#allocation2 + $0x48] sm:$0x1]
      %v990 = vld [vmem:[#allocation2 + $0x50] sm:$0xf]
      %v991 = vld [vmem:[#allocation2 + $0x58] sm:$0x1]
      %v992 = vld [vmem:[#allocation2 + $0x60] sm:$0xf]
      %v993 = vld [vmem:[#allocation2 + $0x68] sm:$0x1]
      %v994 = vld [vmem:[#allocation2 + $0x70] sm:$0xf]
      %v995 = vld [vmem:[#allocation2 + $0x78] sm:$0x1]
      %vm996 = vsmask.f32 3328
      %vm997 = vsmask.f32 7440
      %vm998 = vmor %vm996, %vm997
      %v1000 = vshrl.u32 %v980, 16
      %v1002 = vrot.slane %v1000, 4
      %v1003 = vshll.u32 %v980, 16
      %v1005 = vrot.slane %v1003, 5
      %v1006 = vor.u32 %v1002, %v1005
      %v1007 = vrot.slane %v1006, 4
      %v1009 = vshll.u32 %v981, 16
      %v1011 = vrot.slane %v1009, 5
      %v1012 = vsel %vm998, %v1007, %v1011
      %v1014 = vshrl.u32 %v982, 16
      %v1016 = vrot.slane %v1014, 4
      %v1017 = vshll.u32 %v982, 16
      %v1019 = vrot.slane %v1017, 5
      %v1020 = vor.u32 %v1016, %v1019
      %v1021 = vrot.slane %v1020, 4
      %v1023 = vshll.u32 %v983, 16
      %v1025 = vrot.slane %v1023, 5
      %v1026 = vsel %vm998, %v1021, %v1025
      %v1028 = vshrl.u32 %v984, 16
      %v1030 = vrot.slane %v1028, 4
      %v1031 = vshll.u32 %v984, 16
      %v1033 = vrot.slane %v1031, 5
      %v1034 = vor.u32 %v1030, %v1033
      %v1035 = vrot.slane %v1034, 4
      %v1037 = vshll.u32 %v985, 16
      %v1039 = vrot.slane %v1037, 5
      %v1040 = vsel %vm998, %v1035, %v1039
      %v1042 = vshrl.u32 %v986, 16
      %v1044 = vrot.slane %v1042, 4
      %v1045 = vshll.u32 %v986, 16
      %v1047 = vrot.slane %v1045, 5
      %v1048 = vor.u32 %v1044, %v1047
      %v1049 = vrot.slane %v1048, 4
      %v1051 = vshll.u32 %v987, 16
      %v1053 = vrot.slane %v1051, 5
      %v1054 = vsel %vm998, %v1049, %v1053
      %v1056 = vshrl.u32 %v988, 16
      %v1058 = vrot.slane %v1056, 4
      %v1059 = vshll.u32 %v988, 16
      %v1061 = vrot.slane %v1059, 5
      %v1062 = vor.u32 %v1058, %v1061
      %v1063 = vrot.slane %v1062, 4
      %v1065 = vshll.u32 %v989, 16
      %v1067 = vrot.slane %v1065, 5
      %v1068 = vsel %vm998, %v1063, %v1067
      %v1070 = vshrl.u32 %v990, 16
      %v1072 = vrot.slane %v1070, 4
      %v1073 = vshll.u32 %v990, 16
      %v1075 = vrot.slane %v1073, 5
      %v1076 = vor.u32 %v1072, %v1075
      %v1077 = vrot.slane %v1076, 4
      %v1079 = vshll.u32 %v991, 16
      %v1081 = vrot.slane %v1079, 5
      %v1082 = vsel %vm998, %v1077, %v1081
      %v1084 = vshrl.u32 %v992, 16
      %v1086 = vrot.slane %v1084, 4
      %v1087 = vshll.u32 %v992, 16
      %v1089 = vrot.slane %v1087, 5
      %v1090 = vor.u32 %v1086, %v1089
      %v1091 = vrot.slane %v1090, 4
      %v1093 = vshll.u32 %v993, 16
      %v1095 = vrot.slane %v1093, 5
      %v1096 = vsel %vm998, %v1091, %v1095
      %v1098 = vshrl.u32 %v994, 16
      %v1100 = vrot.slane %v1098, 4
      %v1101 = vshll.u32 %v994, 16
      %v1103 = vrot.slane %v1101, 5
      %v1104 = vor.u32 %v1100, %v1103
      %v1105 = vrot.slane %v1104, 4
      %v1107 = vshll.u32 %v995, 16
      %v1109 = vrot.slane %v1107, 5
      %v1110 = vsel %vm998, %v1105, %v1109
      %s1111 = scalar_lea.vmem %s4, 128
      %v1112 = vld [vmem:[%s1111] sm:$0xff]
      %v1113 = vld [vmem:[%s1111 + $0x8] sm:$0xff]
      %v1114 = vld [vmem:[%s1111 + $0x10] sm:$0xff]
      %v1115 = vld [vmem:[%s1111 + $0x18] sm:$0xff]
      %v1116 = vld [vmem:[%s1111 + $0x20] sm:$0xff]
      %v1117 = vld [vmem:[%s1111 + $0x28] sm:$0xff]
      %v1118 = vld [vmem:[%s1111 + $0x30] sm:$0xff]
      %v1119 = vld [vmem:[%s1111 + $0x38] sm:$0xff]
      %v1120 = vld [vmem:[%s1111 + $0x40] sm:$0xff]
      %v1121 = vld [vmem:[%s1111 + $0x48] sm:$0xff]
      %v1122 = vld [vmem:[%s1111 + $0x50] sm:$0xff]
      %v1123 = vld [vmem:[%s1111 + $0x58] sm:$0xff]
      %v1124 = vld [vmem:[%s1111 + $0x60] sm:$0xff]
      %v1125 = vld [vmem:[%s1111 + $0x68] sm:$0xff]
      %v1126 = vld [vmem:[%s1111 + $0x70] sm:$0xff]
      %v1127 = vld [vmem:[%s1111 + $0x78] sm:$0xff]
      %v1128 = vunpack.c.l.b16 %v1012
      %v1129 = vunpack.c.l.b16 %v1026
      %v1130 = vunpack.c.l.b16 %v1040
      %v1131 = vunpack.c.l.b16 %v1054
      %v1132 = vunpack.c.l.b16 %v1068
      %v1133 = vunpack.c.l.b16 %v1082
      %v1134 = vunpack.c.l.b16 %v1096
      %v1135 = vunpack.c.l.b16 %v1110
      %v1136 = vpack.c.b16 %v1129, %v1128
      %v1137 = vpack.c.b16 %v1131, %v1130
      %v1138 = vpack.c.b16 %v1133, %v1132
      %v1139 = vpack.c.b16 %v1135, %v1134
      %v1160 = vunpack.c.l.b16 %v1112
      %v1161 = vunpack.c.h.b16 %v1112
      %v1162 = vunpack.c.l.b16 %v1113
      %v1163 = vunpack.c.h.b16 %v1113
      %v1164 = vunpack.c.l.b16 %v1114
      %v1165 = vunpack.c.h.b16 %v1114
      %v1166 = vunpack.c.l.b16 %v1115
      %v1167 = vunpack.c.h.b16 %v1115
      %v1168 = vunpack.c.l.b16 %v1116
      %v1169 = vunpack.c.h.b16 %v1116
      %v1170 = vunpack.c.l.b16 %v1117
      %v1171 = vunpack.c.h.b16 %v1117
      %v1172 = vunpack.c.l.b16 %v1118
      %v1173 = vunpack.c.h.b16 %v1118
      %v1174 = vunpack.c.l.b16 %v1119
      %v1175 = vunpack.c.h.b16 %v1119
      %v1176 = vunpack.c.l.b16 %v1120
      %v1177 = vunpack.c.h.b16 %v1120
      %v1178 = vunpack.c.l.b16 %v1121
      %v1179 = vunpack.c.h.b16 %v1121
      %v1180 = vunpack.c.l.b16 %v1122
      %v1181 = vunpack.c.h.b16 %v1122
      %v1182 = vunpack.c.l.b16 %v1123
      %v1183 = vunpack.c.h.b16 %v1123
      %v1184 = vunpack.c.l.b16 %v1124
      %v1185 = vunpack.c.h.b16 %v1124
      %v1186 = vunpack.c.l.b16 %v1125
      %v1187 = vunpack.c.h.b16 %v1125
      %v1188 = vunpack.c.l.b16 %v1126
      %v1189 = vunpack.c.h.b16 %v1126
      %v1190 = vunpack.c.l.b16 %v1127
      %v1191 = vunpack.c.h.b16 %v1127
      %v1192 = vpack.c.b16 %v1162, %v1160
      %v1193 = vpack.c.b16 %v1163, %v1161
      %v1194 = vpack.c.b16 %v1166, %v1164
      %v1195 = vpack.c.b16 %v1167, %v1165
      %v1196 = vpack.c.b16 %v1170, %v1168
      %v1197 = vpack.c.b16 %v1171, %v1169
      %v1198 = vpack.c.b16 %v1174, %v1172
      %v1199 = vpack.c.b16 %v1175, %v1173
      %v1200 = vpack.c.b16 %v1178, %v1176
      %v1201 = vpack.c.b16 %v1179, %v1177
      %v1202 = vpack.c.b16 %v1182, %v1180
      %v1203 = vpack.c.b16 %v1183, %v1181
      %v1204 = vpack.c.b16 %v1186, %v1184
      %v1205 = vpack.c.b16 %v1187, %v1185
      %v1206 = vpack.c.b16 %v1190, %v1188
      %v1207 = vpack.c.b16 %v1191, %v1189
      %1224 = vmatprep.subr.bf16.mxu0 %v1207
      %1225 = vmatpush1.bf16.msra.mxu0 %v1206
      %1226 = vmatprep.subr.bf16.mxu0 %v1205
      %1227 = vmatpush1.bf16.msra.mxu0 %v1204
      %1228 = vmatprep.subr.bf16.mxu0 %v1203
      %1229 = vmatpush1.bf16.msra.mxu0 %v1202
      %1230 = vmatprep.subr.bf16.mxu0 %v1201
      %1231 = vmatpush1.bf16.msra.mxu0 %v1200
      %1232 = vmatprep.subr.bf16.mxu0 %v1199
      %1233 = vmatpush1.bf16.msra.mxu0 %v1198
      %1234 = vmatprep.subr.bf16.mxu0 %v1197
      %1235 = vmatpush1.bf16.msra.mxu0 %v1196
      %1236 = vmatprep.subr.bf16.mxu0 %v1195
      %1237 = vmatpush1.bf16.msra.mxu0 %v1194
      %1238 = vmatprep.subr.bf16.mxu0 %v1193
      %1239 = vmatpush1.bf16.msra.mxu0 %v1192
      %1240 = vmatprep.subr.bf16.mxu0 0
      %1241 = vmatpush2.bf16.msra.mxu0 0
      %1242 = vmatprep.subr.bf16.mxu0 0
      %1243 = vmatpush2.bf16.msra.mxu0 0
      %1244 = vmatprep.subr.bf16.mxu0 0
      %1245 = vmatpush2.bf16.msra.mxu0 0
      %1246 = vmatprep.subr.bf16.mxu0 0
      %1247 = vmatpush2.bf16.msra.mxu0 0
      %1248 = vmatprep.subr.bf16.mxu0 0
      %1249 = vmatpush2.bf16.msra.mxu0 0
      %1250 = vmatprep.subr.bf16.mxu0 0
      %1251 = vmatpush2.bf16.msra.mxu0 0
      %1252 = vmatprep.subr.bf16.mxu0 0
      %1253 = vmatpush2.bf16.msra.mxu0 0
      %1254 = vmatprep.subr.bf16.mxu0 0
      %1255 = vmatpush2.bf16.msra.mxu0 0
      %1256 = vmatprep.mubr.bf16.mxu0 0
      %1257 = vmatmul.mubr.bf16.gmra.mxu0 %v1136
      %v1258 = vpop.f32.mrf.mxu0
      %v1259 = vadd.f32 0.0, %v1258
      %v1260 = vpop.f32.mrf.mxu0
      %v1261 = vadd.f32 0.0, %v1260
      %v1262 = vpop.f32.mrf.mxu0
      %v1263 = vadd.f32 0.0, %v1262
      %v1264 = vpop.f32.mrf.mxu0
      %v1265 = vadd.f32 0.0, %v1264
      %1266 = vmatprep.mubr.bf16.mxu0 0
      %1267 = vmatmul.mubr.bf16.gmra.mxu0 %v1137
      %v1268 = vpop.f32.mrf.mxu0
      %v1269 = vadd.f32 0.0, %v1268
      %v1270 = vpop.f32.mrf.mxu0
      %v1271 = vadd.f32 0.0, %v1270
      %v1272 = vpop.f32.mrf.mxu0
      %v1273 = vadd.f32 0.0, %v1272
      %v1274 = vpop.f32.mrf.mxu0
      %v1275 = vadd.f32 0.0, %v1274
      %1276 = vmatprep.mubr.bf16.mxu0 0
      %1277 = vmatmul.mubr.bf16.gmra.mxu0 %v1138
      %v1278 = vpop.f32.mrf.mxu0
      %v1279 = vadd.f32 0.0, %v1278
      %v1280 = vpop.f32.mrf.mxu0
      %v1281 = vadd.f32 0.0, %v1280
      %v1282 = vpop.f32.mrf.mxu0
      %v1283 = vadd.f32 0.0, %v1282
      %v1284 = vpop.f32.mrf.mxu0
      %v1285 = vadd.f32 0.0, %v1284
      %1286 = vmatprep.mubr.bf16.mxu0 0
      %1287 = vmatmul.mubr.bf16.gmra.mxu0 %v1139
      %v1288 = vpop.f32.mrf.mxu0
      %v1289 = vadd.f32 0.0, %v1288
      %v1290 = vpop.f32.mrf.mxu0
      %v1291 = vadd.f32 0.0, %v1290
      %v1292 = vpop.f32.mrf.mxu0
      %v1293 = vadd.f32 0.0, %v1292
      %v1294 = vpop.f32.mrf.mxu0
      %v1295 = vadd.f32 0.0, %v1294
      %1296 = vdwg.mxu0
      %v1305 = vunpack.c.l.b16 %v939
      %v1306 = vunpack.c.h.b16 %v939
      %v1307 = vunpack.c.l.b16 %v940
      %v1308 = vunpack.c.h.b16 %v940
      %v1309 = vunpack.c.l.b16 %v941
      %v1310 = vunpack.c.h.b16 %v941
      %v1311 = vunpack.c.l.b16 %v942
      %v1312 = vunpack.c.h.b16 %v942
      %v1313 = vunpack.c.l.b16 %v943
      %v1314 = vunpack.c.h.b16 %v943
      %v1315 = vunpack.c.l.b16 %v944
      %v1316 = vunpack.c.h.b16 %v944
      %v1317 = vunpack.c.l.b16 %v945
      %v1318 = vunpack.c.h.b16 %v945
      %v1319 = vunpack.c.l.b16 %v946
      %v1320 = vunpack.c.h.b16 %v946
      %v1321 = vpack.c.b16 %v1307, %v1305
      %v1322 = vpack.c.b16 %v1308, %v1306
      %v1323 = vpack.c.b16 %v1311, %v1309
      %v1324 = vpack.c.b16 %v1312, %v1310
      %v1325 = vpack.c.b16 %v1315, %v1313
      %v1326 = vpack.c.b16 %v1316, %v1314
      %v1327 = vpack.c.b16 %v1319, %v1317
      %v1328 = vpack.c.b16 %v1320, %v1318
      %v1369 = vunpack.c.l.b16 %v948
      %v1370 = vunpack.c.h.b16 %v948
      %v1371 = vunpack.c.l.b16 %v949
      %v1372 = vunpack.c.h.b16 %v949
      %v1373 = vunpack.c.l.b16 %v950
      %v1374 = vunpack.c.h.b16 %v950
      %v1375 = vunpack.c.l.b16 %v951
      %v1376 = vunpack.c.h.b16 %v951
      %v1377 = vunpack.c.l.b16 %v952
      %v1378 = vunpack.c.h.b16 %v952
      %v1379 = vunpack.c.l.b16 %v953
      %v1380 = vunpack.c.h.b16 %v953
      %v1381 = vunpack.c.l.b16 %v954
      %v1382 = vunpack.c.h.b16 %v954
      %v1383 = vunpack.c.l.b16 %v955
      %v1384 = vunpack.c.h.b16 %v955
      %v1385 = vunpack.c.l.b16 %v956
      %v1386 = vunpack.c.h.b16 %v956
      %v1387 = vunpack.c.l.b16 %v957
      %v1388 = vunpack.c.h.b16 %v957
      %v1389 = vunpack.c.l.b16 %v958
      %v1390 = vunpack.c.h.b16 %v958
      %v1391 = vunpack.c.l.b16 %v959
      %v1392 = vunpack.c.h.b16 %v959
      %v1393 = vunpack.c.l.b16 %v960
      %v1394 = vunpack.c.h.b16 %v960
      %v1395 = vunpack.c.l.b16 %v961
      %v1396 = vunpack.c.h.b16 %v961
      %v1397 = vunpack.c.l.b16 %v962
      %v1398 = vunpack.c.h.b16 %v962
      %v1399 = vunpack.c.l.b16 %v963
      %v1400 = vunpack.c.h.b16 %v963
      %v1401 = vunpack.c.l.b16 %v964
      %v1402 = vunpack.c.h.b16 %v964
      %v1403 = vunpack.c.l.b16 %v965
      %v1404 = vunpack.c.h.b16 %v965
      %v1405 = vunpack.c.l.b16 %v966
      %v1406 = vunpack.c.h.b16 %v966
      %v1407 = vunpack.c.l.b16 %v967
      %v1408 = vunpack.c.h.b16 %v967
      %v1409 = vunpack.c.l.b16 %v968
      %v1410 = vunpack.c.h.b16 %v968
      %v1411 = vunpack.c.l.b16 %v969
      %v1412 = vunpack.c.h.b16 %v969
      %v1413 = vunpack.c.l.b16 %v970
      %v1414 = vunpack.c.h.b16 %v970
      %v1415 = vunpack.c.l.b16 %v971
      %v1416 = vunpack.c.h.b16 %v971
      %v1417 = vunpack.c.l.b16 %v972
      %v1418 = vunpack.c.h.b16 %v972
      %v1419 = vunpack.c.l.b16 %v973
      %v1420 = vunpack.c.h.b16 %v973
      %v1421 = vunpack.c.l.b16 %v974
      %v1422 = vunpack.c.h.b16 %v974
      %v1423 = vunpack.c.l.b16 %v975
      %v1424 = vunpack.c.h.b16 %v975
      %v1425 = vunpack.c.l.b16 %v976
      %v1426 = vunpack.c.h.b16 %v976
      %v1427 = vunpack.c.l.b16 %v977
      %v1428 = vunpack.c.h.b16 %v977
      %v1429 = vunpack.c.l.b16 %v978
      %v1430 = vunpack.c.h.b16 %v978
      %v1431 = vunpack.c.l.b16 %v979
      %v1432 = vunpack.c.h.b16 %v979
      %v1433 = vpack.c.b16 %v1371, %v1369
      %v1434 = vpack.c.b16 %v1372, %v1370
      %v1435 = vpack.c.b16 %v1375, %v1373
      %v1436 = vpack.c.b16 %v1376, %v1374
      %v1437 = vpack.c.b16 %v1379, %v1377
      %v1438 = vpack.c.b16 %v1380, %v1378
      %v1439 = vpack.c.b16 %v1383, %v1381
      %v1440 = vpack.c.b16 %v1384, %v1382
      %v1441 = vpack.c.b16 %v1387, %v1385
      %v1442 = vpack.c.b16 %v1388, %v1386
      %v1443 = vpack.c.b16 %v1391, %v1389
      %v1444 = vpack.c.b16 %v1392, %v1390
      %v1445 = vpack.c.b16 %v1395, %v1393
      %v1446 = vpack.c.b16 %v1396, %v1394
      %v1447 = vpack.c.b16 %v1399, %v1397
      %v1448 = vpack.c.b16 %v1400, %v1398
      %v1449 = vpack.c.b16 %v1403, %v1401
      %v1450 = vpack.c.b16 %v1404, %v1402
      %v1451 = vpack.c.b16 %v1407, %v1405
      %v1452 = vpack.c.b16 %v1408, %v1406
      %v1453 = vpack.c.b16 %v1411, %v1409
      %v1454 = vpack.c.b16 %v1412, %v1410
      %v1455 = vpack.c.b16 %v1415, %v1413
      %v1456 = vpack.c.b16 %v1416, %v1414
      %v1457 = vpack.c.b16 %v1419, %v1417
      %v1458 = vpack.c.b16 %v1420, %v1418
      %v1459 = vpack.c.b16 %v1423, %v1421
      %v1460 = vpack.c.b16 %v1424, %v1422
      %v1461 = vpack.c.b16 %v1427, %v1425
      %v1462 = vpack.c.b16 %v1428, %v1426
      %v1463 = vpack.c.b16 %v1431, %v1429
      %v1464 = vpack.c.b16 %v1432, %v1430
      %1497 = vmatprep.subr.bf16.mxu0 %v1448
      %1498 = vmatpush1.bf16.msra.mxu0 %v1447
      %1499 = vmatprep.subr.bf16.mxu0 %v1446
      %1500 = vmatpush1.bf16.msra.mxu0 %v1445
      %1501 = vmatprep.subr.bf16.mxu0 %v1444
      %1502 = vmatpush1.bf16.msra.mxu0 %v1443
      %1503 = vmatprep.subr.bf16.mxu0 %v1442
      %1504 = vmatpush1.bf16.msra.mxu0 %v1441
      %1505 = vmatprep.subr.bf16.mxu0 %v1440
      %1506 = vmatpush1.bf16.msra.mxu0 %v1439
      %1507 = vmatprep.subr.bf16.mxu0 %v1438
      %1508 = vmatpush1.bf16.msra.mxu0 %v1437
      %1509 = vmatprep.subr.bf16.mxu0 %v1436
      %1510 = vmatpush1.bf16.msra.mxu0 %v1435
      %1511 = vmatprep.subr.bf16.mxu0 %v1434
      %1512 = vmatpush1.bf16.msra.mxu0 %v1433
      %1513 = vmatprep.subr.bf16.mxu0 %v1464
      %1514 = vmatpush2.bf16.msra.mxu0 %v1463
      %1515 = vmatprep.subr.bf16.mxu0 %v1462
      %1516 = vmatpush2.bf16.msra.mxu0 %v1461
      %1517 = vmatprep.subr.bf16.mxu0 %v1460
      %1518 = vmatpush2.bf16.msra.mxu0 %v1459
      %1519 = vmatprep.subr.bf16.mxu0 %v1458
      %1520 = vmatpush2.bf16.msra.mxu0 %v1457
      %1521 = vmatprep.subr.bf16.mxu0 %v1456
      %1522 = vmatpush2.bf16.msra.mxu0 %v1455
      %1523 = vmatprep.subr.bf16.mxu0 %v1454
      %1524 = vmatpush2.bf16.msra.mxu0 %v1453
      %1525 = vmatprep.subr.bf16.mxu0 %v1452
      %1526 = vmatpush2.bf16.msra.mxu0 %v1451
      %1527 = vmatprep.subr.bf16.mxu0 %v1450
      %1528 = vmatpush2.bf16.msra.mxu0 %v1449
      %1529 = vmatprep.mubr.bf16.mxu0 %v1322
      %1530 = vmatmul.mubr.bf16.gmra.mxu0 %v1321
      %v1531 = vpop.f32.mrf.mxu0
      %v1532 = vadd.f32 %v1259, %v1531
      %v1533 = vpop.f32.mrf.mxu0
      %v1534 = vadd.f32 %v1261, %v1533
      %v1535 = vpop.f32.mrf.mxu0
      %v1536 = vadd.f32 %v1263, %v1535
      %v1537 = vpop.f32.mrf.mxu0
      %v1538 = vadd.f32 %v1265, %v1537
      %1539 = vmatprep.mubr.bf16.mxu0 %v1324
      %1540 = vmatmul.mubr.bf16.gmra.mxu0 %v1323
      %v1541 = vpop.f32.mrf.mxu0
      %v1542 = vadd.f32 %v1269, %v1541
      %v1543 = vpop.f32.mrf.mxu0
      %v1544 = vadd.f32 %v1271, %v1543
      %v1545 = vpop.f32.mrf.mxu0
      %v1546 = vadd.f32 %v1273, %v1545
      %v1547 = vpop.f32.mrf.mxu0
      %v1548 = vadd.f32 %v1275, %v1547
      %1549 = vmatprep.mubr.bf16.mxu0 %v1326
      %1550 = vmatmul.mubr.bf16.gmra.mxu0 %v1325
      %v1551 = vpop.f32.mrf.mxu0
      %v1552 = vadd.f32 %v1279, %v1551
      %v1553 = vpop.f32.mrf.mxu0
      %v1554 = vadd.f32 %v1281, %v1553
      %v1555 = vpop.f32.mrf.mxu0
      %v1556 = vadd.f32 %v1283, %v1555
      %v1557 = vpop.f32.mrf.mxu0
      %v1558 = vadd.f32 %v1285, %v1557
      %1559 = vmatprep.mubr.bf16.mxu0 %v1328
      %1560 = vmatmul.mubr.bf16.gmra.mxu0 %v1327
      %v1561 = vpop.f32.mrf.mxu0
      %v1562 = vadd.f32 %v1289, %v1561
      %v1563 = vpop.f32.mrf.mxu0
      %v1564 = vadd.f32 %v1291, %v1563
      %v1565 = vpop.f32.mrf.mxu0
      %v1566 = vadd.f32 %v1293, %v1565
      %v1567 = vpop.f32.mrf.mxu0
      %v1568 = vadd.f32 %v1295, %v1567
      %1569 = vdwg.mxu0
      %v1570 = vld [vmem:[%s5] sm:$0x3]
      %v1572 = vlaneseq
      %v1573 = vshrl.u32 %v1572, 7
      %v1574 = vsub.s32 0, %v1573
      %v1575 = vrot.slane %v1570, %v1574
      %v1576 = vlaneseq
      %v1577 = vshrl.u32 %v1576, 7
      %v1578 = vsub.s32 1, %v1577
      %v1579 = vrot.slane %v1570, %v1578
      %v1582 = vadd.f32 %v1532, %v1575
      %v1583 = vadd.f32 %v1534, %v1579
      %v1584 = vadd.f32 %v1536, %v1575
      %v1585 = vadd.f32 %v1538, %v1579
      %v1586 = vadd.f32 %v1542, %v1575
      %v1587 = vadd.f32 %v1544, %v1579
      %v1588 = vadd.f32 %v1546, %v1575
      %v1589 = vadd.f32 %v1548, %v1579
      %v1590 = vadd.f32 %v1552, %v1575
      %v1591 = vadd.f32 %v1554, %v1579
      %v1592 = vadd.f32 %v1556, %v1575
      %v1593 = vadd.f32 %v1558, %v1579
      %v1594 = vadd.f32 %v1562, %v1575
      %v1595 = vadd.f32 %v1564, %v1579
      %v1596 = vadd.f32 %v1566, %v1575
      %v1597 = vadd.f32 %v1568, %v1579
      %v1598 = vmax.f32 %v1582, 0.0
      %v1599 = vmax.f32 %v1583, 0.0
      %v1600 = vmax.f32 %v1584, 0.0
      %v1601 = vmax.f32 %v1585, 0.0
      %v1602 = vmax.f32 %v1586, 0.0
      %v1603 = vmax.f32 %v1587, 0.0
      %v1604 = vmax.f32 %v1588, 0.0
      %v1605 = vmax.f32 %v1589, 0.0
      %v1606 = vmax.f32 %v1590, 0.0
      %v1607 = vmax.f32 %v1591, 0.0
      %v1608 = vmax.f32 %v1592, 0.0
      %v1609 = vmax.f32 %v1593, 0.0
      %v1610 = vmax.f32 %v1594, 0.0
      %v1611 = vmax.f32 %v1595, 0.0
      %v1612 = vmax.f32 %v1596, 0.0
      %v1613 = vmax.f32 %v1597, 0.0
      %v1614 = vpack.c.bf16 %v1600, %v1598
      %v1615 = vpack.c.bf16 %v1601, %v1599
      %v1616 = vpack.c.bf16 %v1604, %v1602
      %v1617 = vpack.c.bf16 %v1605, %v1603
      %v1618 = vpack.c.bf16 %v1608, %v1606
      %v1619 = vpack.c.bf16 %v1609, %v1607
      %v1620 = vpack.c.bf16 %v1612, %v1610
      %v1621 = vpack.c.bf16 %v1613, %v1611
      %v1630 = vunpack.c.l.b16 %v1614
      %v1631 = vunpack.c.l.b16 %v1615
      %v1632 = vunpack.c.h.b16 %v1614
      %v1633 = vunpack.c.h.b16 %v1615
      %v1634 = vunpack.c.l.b16 %v1616
      %v1635 = vunpack.c.l.b16 %v1617
      %v1636 = vunpack.c.h.b16 %v1616
      %v1637 = vunpack.c.h.b16 %v1617
      %v1638 = vunpack.c.l.b16 %v1618
      %v1639 = vunpack.c.l.b16 %v1619
      %v1640 = vunpack.c.h.b16 %v1618
      %v1641 = vunpack.c.h.b16 %v1619
      %v1642 = vunpack.c.l.b16 %v1620
      %v1643 = vunpack.c.l.b16 %v1621
      %v1644 = vunpack.c.h.b16 %v1620
      %v1645 = vunpack.c.h.b16 %v1621
      %v1646 = vpack.c.b16 %v1631, %v1630
      %v1647 = vpack.c.b16 %v1633, %v1632
      %v1648 = vpack.c.b16 %v1635, %v1634
      %v1649 = vpack.c.b16 %v1637, %v1636
      %v1650 = vpack.c.b16 %v1639, %v1638
      %v1651 = vpack.c.b16 %v1641, %v1640
      %v1652 = vpack.c.b16 %v1643, %v1642
      %v1653 = vpack.c.b16 %v1645, %v1644
      %v1655 = vshrl.u32 %v1646, 16
      %v1657 = vrot.slane %v1655, 7
      %v1658 = vshll.u32 %v1646, 16
      %v1660 = vor.u32 %v1657, %v1658
      %v1661 = vrot.slane %v1657, 4
      %v1663 = vshrl.u32 %v1647, 16
      %v1665 = vrot.slane %v1663, 7
      %v1666 = vshll.u32 %v1647, 16
      %v1668 = vor.u32 %v1665, %v1666
      %v1669 = vrot.slane %v1665, 4
      %v1671 = vshrl.u32 %v1648, 16
      %v1673 = vrot.slane %v1671, 7
      %v1674 = vshll.u32 %v1648, 16
      %v1676 = vor.u32 %v1673, %v1674
      %v1677 = vrot.slane %v1673, 4
      %v1679 = vshrl.u32 %v1649, 16
      %v1681 = vrot.slane %v1679, 7
      %v1682 = vshll.u32 %v1649, 16
      %v1684 = vor.u32 %v1681, %v1682
      %v1685 = vrot.slane %v1681, 4
      %v1687 = vshrl.u32 %v1650, 16
      %v1689 = vrot.slane %v1687, 7
      %v1690 = vshll.u32 %v1650, 16
      %v1692 = vor.u32 %v1689, %v1690
      %v1693 = vrot.slane %v1689, 4
      %v1695 = vshrl.u32 %v1651, 16
      %v1697 = vrot.slane %v1695, 7
      %v1698 = vshll.u32 %v1651, 16
      %v1700 = vor.u32 %v1697, %v1698
      %v1701 = vrot.slane %v1697, 4
      %v1703 = vshrl.u32 %v1652, 16
      %v1705 = vrot.slane %v1703, 7
      %v1706 = vshll.u32 %v1652, 16
      %v1708 = vor.u32 %v1705, %v1706
      %v1709 = vrot.slane %v1705, 4
      %v1711 = vshrl.u32 %v1653, 16
      %v1713 = vrot.slane %v1711, 7
      %v1714 = vshll.u32 %v1653, 16
      %v1716 = vor.u32 %v1713, %v1714
      %v1717 = vrot.slane %v1713, 4
      %v1734 = vld [vmem:[%s334] sm:$0xff]
      %v1735 = vsel %vm372, %v1660, %v1734
      %1736 = vst [vmem:[%s334] sm:$0xff] %v1735
      %v1737 = vld [vmem:[%s334 + $0x8] sm:$0x11]
      %v1738 = vsel %vm341, %v1661, %v1737
      %1739 = vst [vmem:[%s334 + $0x8] sm:$0x11] %v1738
      %v1740 = vld [vmem:[%s334 + $0x10] sm:$0xff]
      %v1741 = vsel %vm372, %v1668, %v1740
      %1742 = vst [vmem:[%s334 + $0x10] sm:$0xff] %v1741
      %v1743 = vld [vmem:[%s334 + $0x18] sm:$0x11]
      %v1744 = vsel %vm341, %v1669, %v1743
      %1745 = vst [vmem:[%s334 + $0x18] sm:$0x11] %v1744
      %v1746 = vld [vmem:[%s334 + $0x20] sm:$0xff]
      %v1747 = vsel %vm372, %v1676, %v1746
      %1748 = vst [vmem:[%s334 + $0x20] sm:$0xff] %v1747
      %v1749 = vld [vmem:[%s334 + $0x28] sm:$0x11]
      %v1750 = vsel %vm341, %v1677, %v1749
      %1751 = vst [vmem:[%s334 + $0x28] sm:$0x11] %v1750
      %v1752 = vld [vmem:[%s334 + $0x30] sm:$0xff]
      %v1753 = vsel %vm372, %v1684, %v1752
      %1754 = vst [vmem:[%s334 + $0x30] sm:$0xff] %v1753
      %v1755 = vld [vmem:[%s334 + $0x38] sm:$0x11]
      %v1756 = vsel %vm341, %v1685, %v1755
      %1757 = vst [vmem:[%s334 + $0x38] sm:$0x11] %v1756
      %v1758 = vld [vmem:[%s334 + $0x40] sm:$0xff]
      %v1759 = vsel %vm372, %v1692, %v1758
      %1760 = vst [vmem:[%s334 + $0x40] sm:$0xff] %v1759
      %v1761 = vld [vmem:[%s334 + $0x48] sm:$0x11]
      %v1762 = vsel %vm341, %v1693, %v1761
      %1763 = vst [vmem:[%s334 + $0x48] sm:$0x11] %v1762
      %v1764 = vld [vmem:[%s334 + $0x50] sm:$0xff]
      %v1765 = vsel %vm372, %v1700, %v1764
      %1766 = vst [vmem:[%s334 + $0x50] sm:$0xff] %v1765
      %v1767 = vld [vmem:[%s334 + $0x58] sm:$0x11]
      %v1768 = vsel %vm341, %v1701, %v1767
      %1769 = vst [vmem:[%s334 + $0x58] sm:$0x11] %v1768
      %v1770 = vld [vmem:[%s334 + $0x60] sm:$0xff]
      %v1771 = vsel %vm372, %v1708, %v1770
      %1772 = vst [vmem:[%s334 + $0x60] sm:$0xff] %v1771
      %v1773 = vld [vmem:[%s334 + $0x68] sm:$0x11]
      %v1774 = vsel %vm341, %v1709, %v1773
      %1775 = vst [vmem:[%s334 + $0x68] sm:$0x11] %v1774
      %v1776 = vld [vmem:[%s334 + $0x70] sm:$0xff]
      %v1777 = vsel %vm372, %v1716, %v1776
      %1778 = vst [vmem:[%s334 + $0x70] sm:$0xff] %v1777
      %v1779 = vld [vmem:[%s334 + $0x78] sm:$0x11]
      %v1780 = vsel %vm341, %v1717, %v1779
      %1781 = vst [vmem:[%s334 + $0x78] sm:$0x11] %v1780
      %v1782 = vld [vmem:[#allocation2] sm:$0xff]
      %v1783 = vld [vmem:[#allocation2 + $0x10] sm:$0xff]
      %v1784 = vld [vmem:[#allocation2 + $0x20] sm:$0xff]
      %v1785 = vld [vmem:[#allocation2 + $0x30] sm:$0xff]
      %v1786 = vld [vmem:[#allocation2 + $0x40] sm:$0xff]
      %v1787 = vld [vmem:[#allocation2 + $0x50] sm:$0xff]
      %v1788 = vld [vmem:[#allocation2 + $0x60] sm:$0xff]
      %v1789 = vld [vmem:[#allocation2 + $0x70] sm:$0xff]
      %s1790 = scalar_lea.vmem %s3, 512
      %v1791 = vld [vmem:[%s1790] sm:$0xff]
      %v1792 = vld [vmem:[%s1790 + $0x8] sm:$0xff]
      %v1793 = vld [vmem:[%s1790 + $0x10] sm:$0xff]
      %v1794 = vld [vmem:[%s1790 + $0x18] sm:$0xff]
      %v1795 = vld [vmem:[%s1790 + $0x20] sm:$0xff]
      %v1796 = vld [vmem:[%s1790 + $0x28] sm:$0xff]
      %v1797 = vld [vmem:[%s1790 + $0x30] sm:$0xff]
      %v1798 = vld [vmem:[%s1790 + $0x38] sm:$0xff]
      %v1799 = vld [vmem:[%s1790 + $0x40] sm:$0xff]
      %v1800 = vld [vmem:[%s1790 + $0x48] sm:$0xff]
      %v1801 = vld [vmem:[%s1790 + $0x50] sm:$0xff]
      %v1802 = vld [vmem:[%s1790 + $0x58] sm:$0xff]
      %v1803 = vld [vmem:[%s1790 + $0x60] sm:$0xff]
      %v1804 = vld [vmem:[%s1790 + $0x68] sm:$0xff]
      %v1805 = vld [vmem:[%s1790 + $0x70] sm:$0xff]
      %v1806 = vld [vmem:[%s1790 + $0x78] sm:$0xff]
      %v1807 = vld [vmem:[%s1790 + $0x80] sm:$0xff]
      %v1808 = vld [vmem:[%s1790 + $0x88] sm:$0xff]
      %v1809 = vld [vmem:[%s1790 + $0x90] sm:$0xff]
      %v1810 = vld [vmem:[%s1790 + $0x98] sm:$0xff]
      %v1811 = vld [vmem:[%s1790 + $0xa0] sm:$0xff]
      %v1812 = vld [vmem:[%s1790 + $0xa8] sm:$0xff]
      %v1813 = vld [vmem:[%s1790 + $0xb0] sm:$0xff]
      %v1814 = vld [vmem:[%s1790 + $0xb8] sm:$0xff]
      %v1815 = vld [vmem:[%s1790 + $0xc0] sm:$0xff]
      %v1816 = vld [vmem:[%s1790 + $0xc8] sm:$0xff]
      %v1817 = vld [vmem:[%s1790 + $0xd0] sm:$0xff]
      %v1818 = vld [vmem:[%s1790 + $0xd8] sm:$0xff]
      %v1819 = vld [vmem:[%s1790 + $0xe0] sm:$0xff]
      %v1820 = vld [vmem:[%s1790 + $0xe8] sm:$0xff]
      %v1821 = vld [vmem:[%s1790 + $0xf0] sm:$0xff]
      %v1822 = vld [vmem:[%s1790 + $0xf8] sm:$0xff]
      %v1823 = vld [vmem:[#allocation2] sm:$0xf]
      %v1824 = vld [vmem:[#allocation2 + $0x8] sm:$0x1]
      %v1825 = vld [vmem:[#allocation2 + $0x10] sm:$0xf]
      %v1826 = vld [vmem:[#allocation2 + $0x18] sm:$0x1]
      %v1827 = vld [vmem:[#allocation2 + $0x20] sm:$0xf]
      %v1828 = vld [vmem:[#allocation2 + $0x28] sm:$0x1]
      %v1829 = vld [vmem:[#allocation2 + $0x30] sm:$0xf]
      %v1830 = vld [vmem:[#allocation2 + $0x38] sm:$0x1]
      %v1831 = vld [vmem:[#allocation2 + $0x40] sm:$0xf]
      %v1832 = vld [vmem:[#allocation2 + $0x48] sm:$0x1]
      %v1833 = vld [vmem:[#allocation2 + $0x50] sm:$0xf]
      %v1834 = vld [vmem:[#allocation2 + $0x58] sm:$0x1]
      %v1835 = vld [vmem:[#allocation2 + $0x60] sm:$0xf]
      %v1836 = vld [vmem:[#allocation2 + $0x68] sm:$0x1]
      %v1837 = vld [vmem:[#allocation2 + $0x70] sm:$0xf]
      %v1838 = vld [vmem:[#allocation2 + $0x78] sm:$0x1]
      %v1840 = vshrl.u32 %v1823, 16
      %v1842 = vrot.slane %v1840, 4
      %v1843 = vshll.u32 %v1823, 16
      %v1845 = vrot.slane %v1843, 5
      %v1846 = vor.u32 %v1842, %v1845
      %v1847 = vrot.slane %v1846, 4
      %v1849 = vshll.u32 %v1824, 16
      %v1851 = vrot.slane %v1849, 5
      %v1852 = vsel %vm998, %v1847, %v1851
      %v1854 = vshrl.u32 %v1825, 16
      %v1856 = vrot.slane %v1854, 4
      %v1857 = vshll.u32 %v1825, 16
      %v1859 = vrot.slane %v1857, 5
      %v1860 = vor.u32 %v1856, %v1859
      %v1861 = vrot.slane %v1860, 4
      %v1863 = vshll.u32 %v1826, 16
      %v1865 = vrot.slane %v1863, 5
      %v1866 = vsel %vm998, %v1861, %v1865
      %v1868 = vshrl.u32 %v1827, 16
      %v1870 = vrot.slane %v1868, 4
      %v1871 = vshll.u32 %v1827, 16
      %v1873 = vrot.slane %v1871, 5
      %v1874 = vor.u32 %v1870, %v1873
      %v1875 = vrot.slane %v1874, 4
      %v1877 = vshll.u32 %v1828, 16
      %v1879 = vrot.slane %v1877, 5
      %v1880 = vsel %vm998, %v1875, %v1879
      %v1882 = vshrl.u32 %v1829, 16
      %v1884 = vrot.slane %v1882, 4
      %v1885 = vshll.u32 %v1829, 16
      %v1887 = vrot.slane %v1885, 5
      %v1888 = vor.u32 %v1884, %v1887
      %v1889 = vrot.slane %v1888, 4
      %v1891 = vshll.u32 %v1830, 16
      %v1893 = vrot.slane %v1891, 5
      %v1894 = vsel %vm998, %v1889, %v1893
      %v1896 = vshrl.u32 %v1831, 16
      %v1898 = vrot.slane %v1896, 4
      %v1899 = vshll.u32 %v1831, 16
      %v1901 = vrot.slane %v1899, 5
      %v1902 = vor.u32 %v1898, %v1901
      %v1903 = vrot.slane %v1902, 4
      %v1905 = vshll.u32 %v1832, 16
      %v1907 = vrot.slane %v1905, 5
      %v1908 = vsel %vm998, %v1903, %v1907
      %v1910 = vshrl.u32 %v1833, 16
      %v1912 = vrot.slane %v1910, 4
      %v1913 = vshll.u32 %v1833, 16
      %v1915 = vrot.slane %v1913, 5
      %v1916 = vor.u32 %v1912, %v1915
      %v1917 = vrot.slane %v1916, 4
      %v1919 = vshll.u32 %v1834, 16
      %v1921 = vrot.slane %v1919, 5
      %v1922 = vsel %vm998, %v1917, %v1921
      %v1924 = vshrl.u32 %v1835, 16
      %v1926 = vrot.slane %v1924, 4
      %v1927 = vshll.u32 %v1835, 16
      %v1929 = vrot.slane %v1927, 5
      %v1930 = vor.u32 %v1926, %v1929
      %v1931 = vrot.slane %v1930, 4
      %v1933 = vshll.u32 %v1836, 16
      %v1935 = vrot.slane %v1933, 5
      %v1936 = vsel %vm998, %v1931, %v1935
      %v1938 = vshrl.u32 %v1837, 16
      %v1940 = vrot.slane %v1938, 4
      %v1941 = vshll.u32 %v1837, 16
      %v1943 = vrot.slane %v1941, 5
      %v1944 = vor.u32 %v1940, %v1943
      %v1945 = vrot.slane %v1944, 4
      %v1947 = vshll.u32 %v1838, 16
      %v1949 = vrot.slane %v1947, 5
      %v1950 = vsel %vm998, %v1945, %v1949
      %s1951 = scalar_lea.vmem %s4, 256
      %v1952 = vld [vmem:[%s1951] sm:$0xff]
      %v1953 = vld [vmem:[%s1951 + $0x8] sm:$0xff]
      %v1954 = vld [vmem:[%s1951 + $0x10] sm:$0xff]
      %v1955 = vld [vmem:[%s1951 + $0x18] sm:$0xff]
      %v1956 = vld [vmem:[%s1951 + $0x20] sm:$0xff]
      %v1957 = vld [vmem:[%s1951 + $0x28] sm:$0xff]
      %v1958 = vld [vmem:[%s1951 + $0x30] sm:$0xff]
      %v1959 = vld [vmem:[%s1951 + $0x38] sm:$0xff]
      %v1960 = vld [vmem:[%s1951 + $0x40] sm:$0xff]
      %v1961 = vld [vmem:[%s1951 + $0x48] sm:$0xff]
      %v1962 = vld [vmem:[%s1951 + $0x50] sm:$0xff]
      %v1963 = vld [vmem:[%s1951 + $0x58] sm:$0xff]
      %v1964 = vld [vmem:[%s1951 + $0x60] sm:$0xff]
      %v1965 = vld [vmem:[%s1951 + $0x68] sm:$0xff]
      %v1966 = vld [vmem:[%s1951 + $0x70] sm:$0xff]
      %v1967 = vld [vmem:[%s1951 + $0x78] sm:$0xff]
      %v1968 = vunpack.c.l.b16 %v1852
      %v1969 = vunpack.c.l.b16 %v1866
      %v1970 = vunpack.c.l.b16 %v1880
      %v1971 = vunpack.c.l.b16 %v1894
      %v1972 = vunpack.c.l.b16 %v1908
      %v1973 = vunpack.c.l.b16 %v1922
      %v1974 = vunpack.c.l.b16 %v1936
      %v1975 = vunpack.c.l.b16 %v1950
      %v1976 = vpack.c.b16 %v1969, %v1968
      %v1977 = vpack.c.b16 %v1971, %v1970
      %v1978 = vpack.c.b16 %v1973, %v1972
      %v1979 = vpack.c.b16 %v1975, %v1974
      %v2000 = vunpack.c.l.b16 %v1952
      %v2001 = vunpack.c.h.b16 %v1952
      %v2002 = vunpack.c.l.b16 %v1953
      %v2003 = vunpack.c.h.b16 %v1953
      %v2004 = vunpack.c.l.b16 %v1954
      %v2005 = vunpack.c.h.b16 %v1954
      %v2006 = vunpack.c.l.b16 %v1955
      %v2007 = vunpack.c.h.b16 %v1955
      %v2008 = vunpack.c.l.b16 %v1956
      %v2009 = vunpack.c.h.b16 %v1956
      %v2010 = vunpack.c.l.b16 %v1957
      %v2011 = vunpack.c.h.b16 %v1957
      %v2012 = vunpack.c.l.b16 %v1958
      %v2013 = vunpack.c.h.b16 %v1958
      %v2014 = vunpack.c.l.b16 %v1959
      %v2015 = vunpack.c.h.b16 %v1959
      %v2016 = vunpack.c.l.b16 %v1960
      %v2017 = vunpack.c.h.b16 %v1960
      %v2018 = vunpack.c.l.b16 %v1961
      %v2019 = vunpack.c.h.b16 %v1961
      %v2020 = vunpack.c.l.b16 %v1962
      %v2021 = vunpack.c.h.b16 %v1962
      %v2022 = vunpack.c.l.b16 %v1963
      %v2023 = vunpack.c.h.b16 %v1963
      %v2024 = vunpack.c.l.b16 %v1964
      %v2025 = vunpack.c.h.b16 %v1964
      %v2026 = vunpack.c.l.b16 %v1965
      %v2027 = vunpack.c.h.b16 %v1965
      %v2028 = vunpack.c.l.b16 %v1966
      %v2029 = vunpack.c.h.b16 %v1966
      %v2030 = vunpack.c.l.b16 %v1967
      %v2031 = vunpack.c.h.b16 %v1967
      %v2032 = vpack.c.b16 %v2002, %v2000
      %v2033 = vpack.c.b16 %v2003, %v2001
      %v2034 = vpack.c.b16 %v2006, %v2004
      %v2035 = vpack.c.b16 %v2007, %v2005
      %v2036 = vpack.c.b16 %v2010, %v2008
      %v2037 = vpack.c.b16 %v2011, %v2009
      %v2038 = vpack.c.b16 %v2014, %v2012
      %v2039 = vpack.c.b16 %v2015, %v2013
      %v2040 = vpack.c.b16 %v2018, %v2016
      %v2041 = vpack.c.b16 %v2019, %v2017
      %v2042 = vpack.c.b16 %v2022, %v2020
      %v2043 = vpack.c.b16 %v2023, %v2021
      %v2044 = vpack.c.b16 %v2026, %v2024
      %v2045 = vpack.c.b16 %v2027, %v2025
      %v2046 = vpack.c.b16 %v2030, %v2028
      %v2047 = vpack.c.b16 %v2031, %v2029
      %2064 = vmatprep.subr.bf16.mxu0 %v2047
      %2065 = vmatpush1.bf16.msra.mxu0 %v2046
      %2066 = vmatprep.subr.bf16.mxu0 %v2045
      %2067 = vmatpush1.bf16.msra.mxu0 %v2044
      %2068 = vmatprep.subr.bf16.mxu0 %v2043
      %2069 = vmatpush1.bf16.msra.mxu0 %v2042
      %2070 = vmatprep.subr.bf16.mxu0 %v2041
      %2071 = vmatpush1.bf16.msra.mxu0 %v2040
      %2072 = vmatprep.subr.bf16.mxu0 %v2039
      %2073 = vmatpush1.bf16.msra.mxu0 %v2038
      %2074 = vmatprep.subr.bf16.mxu0 %v2037
      %2075 = vmatpush1.bf16.msra.mxu0 %v2036
      %2076 = vmatprep.subr.bf16.mxu0 %v2035
      %2077 = vmatpush1.bf16.msra.mxu0 %v2034
      %2078 = vmatprep.subr.bf16.mxu0 %v2033
      %2079 = vmatpush1.bf16.msra.mxu0 %v2032
      %2080 = vmatprep.subr.bf16.mxu0 0
      %2081 = vmatpush2.bf16.msra.mxu0 0
      %2082 = vmatprep.subr.bf16.mxu0 0
      %2083 = vmatpush2.bf16.msra.mxu0 0
      %2084 = vmatprep.subr.bf16.mxu0 0
      %2085 = vmatpush2.bf16.msra.mxu0 0
      %2086 = vmatprep.subr.bf16.mxu0 0
      %2087 = vmatpush2.bf16.msra.mxu0 0
      %2088 = vmatprep.subr.bf16.mxu0 0
      %2089 = vmatpush2.bf16.msra.mxu0 0
      %2090 = vmatprep.subr.bf16.mxu0 0
      %2091 = vmatpush2.bf16.msra.mxu0 0
      %2092 = vmatprep.subr.bf16.mxu0 0
      %2093 = vmatpush2.bf16.msra.mxu0 0
      %2094 = vmatprep.subr.bf16.mxu0 0
      %2095 = vmatpush2.bf16.msra.mxu0 0
      %2096 = vmatprep.mubr.bf16.mxu0 0
      %2097 = vmatmul.mubr.bf16.gmra.mxu0 %v1976
      %v2098 = vpop.f32.mrf.mxu0
      %v2099 = vadd.f32 0.0, %v2098
      %v2100 = vpop.f32.mrf.mxu0
      %v2101 = vadd.f32 0.0, %v2100
      %v2102 = vpop.f32.mrf.mxu0
      %v2103 = vadd.f32 0.0, %v2102
      %v2104 = vpop.f32.mrf.mxu0
      %v2105 = vadd.f32 0.0, %v2104
      %2106 = vmatprep.mubr.bf16.mxu0 0
      %2107 = vmatmul.mubr.bf16.gmra.mxu0 %v1977
      %v2108 = vpop.f32.mrf.mxu0
      %v2109 = vadd.f32 0.0, %v2108
      %v2110 = vpop.f32.mrf.mxu0
      %v2111 = vadd.f32 0.0, %v2110
      %v2112 = vpop.f32.mrf.mxu0
      %v2113 = vadd.f32 0.0, %v2112
      %v2114 = vpop.f32.mrf.mxu0
      %v2115 = vadd.f32 0.0, %v2114
      %2116 = vmatprep.mubr.bf16.mxu0 0
      %2117 = vmatmul.mubr.bf16.gmra.mxu0 %v1978
      %v2118 = vpop.f32.mrf.mxu0
      %v2119 = vadd.f32 0.0, %v2118
      %v2120 = vpop.f32.mrf.mxu0
      %v2121 = vadd.f32 0.0, %v2120
      %v2122 = vpop.f32.mrf.mxu0
      %v2123 = vadd.f32 0.0, %v2122
      %v2124 = vpop.f32.mrf.mxu0
      %v2125 = vadd.f32 0.0, %v2124
      %2126 = vmatprep.mubr.bf16.mxu0 0
      %2127 = vmatmul.mubr.bf16.gmra.mxu0 %v1979
      %v2128 = vpop.f32.mrf.mxu0
      %v2129 = vadd.f32 0.0, %v2128
      %v2130 = vpop.f32.mrf.mxu0
      %v2131 = vadd.f32 0.0, %v2130
      %v2132 = vpop.f32.mrf.mxu0
      %v2133 = vadd.f32 0.0, %v2132
      %v2134 = vpop.f32.mrf.mxu0
      %v2135 = vadd.f32 0.0, %v2134
      %2136 = vdwg.mxu0
      %v2145 = vunpack.c.l.b16 %v1782
      %v2146 = vunpack.c.h.b16 %v1782
      %v2147 = vunpack.c.l.b16 %v1783
      %v2148 = vunpack.c.h.b16 %v1783
      %v2149 = vunpack.c.l.b16 %v1784
      %v2150 = vunpack.c.h.b16 %v1784
      %v2151 = vunpack.c.l.b16 %v1785
      %v2152 = vunpack.c.h.b16 %v1785
      %v2153 = vunpack.c.l.b16 %v1786
      %v2154 = vunpack.c.h.b16 %v1786
      %v2155 = vunpack.c.l.b16 %v1787
      %v2156 = vunpack.c.h.b16 %v1787
      %v2157 = vunpack.c.l.b16 %v1788
      %v2158 = vunpack.c.h.b16 %v1788
      %v2159 = vunpack.c.l.b16 %v1789
      %v2160 = vunpack.c.h.b16 %v1789
      %v2161 = vpack.c.b16 %v2147, %v2145
      %v2162 = vpack.c.b16 %v2148, %v2146
      %v2163 = vpack.c.b16 %v2151, %v2149
      %v2164 = vpack.c.b16 %v2152, %v2150
      %v2165 = vpack.c.b16 %v2155, %v2153
      %v2166 = vpack.c.b16 %v2156, %v2154
      %v2167 = vpack.c.b16 %v2159, %v2157
      %v2168 = vpack.c.b16 %v2160, %v2158
      %v2209 = vunpack.c.l.b16 %v1791
      %v2210 = vunpack.c.h.b16 %v1791
      %v2211 = vunpack.c.l.b16 %v1792
      %v2212 = vunpack.c.h.b16 %v1792
      %v2213 = vunpack.c.l.b16 %v1793
      %v2214 = vunpack.c.h.b16 %v1793
      %v2215 = vunpack.c.l.b16 %v1794
      %v2216 = vunpack.c.h.b16 %v1794
      %v2217 = vunpack.c.l.b16 %v1795
      %v2218 = vunpack.c.h.b16 %v1795
      %v2219 = vunpack.c.l.b16 %v1796
      %v2220 = vunpack.c.h.b16 %v1796
      %v2221 = vunpack.c.l.b16 %v1797
      %v2222 = vunpack.c.h.b16 %v1797
      %v2223 = vunpack.c.l.b16 %v1798
      %v2224 = vunpack.c.h.b16 %v1798
      %v2225 = vunpack.c.l.b16 %v1799
      %v2226 = vunpack.c.h.b16 %v1799
      %v2227 = vunpack.c.l.b16 %v1800
      %v2228 = vunpack.c.h.b16 %v1800
      %v2229 = vunpack.c.l.b16 %v1801
      %v2230 = vunpack.c.h.b16 %v1801
      %v2231 = vunpack.c.l.b16 %v1802
      %v2232 = vunpack.c.h.b16 %v1802
      %v2233 = vunpack.c.l.b16 %v1803
      %v2234 = vunpack.c.h.b16 %v1803
      %v2235 = vunpack.c.l.b16 %v1804
      %v2236 = vunpack.c.h.b16 %v1804
      %v2237 = vunpack.c.l.b16 %v1805
      %v2238 = vunpack.c.h.b16 %v1805
      %v2239 = vunpack.c.l.b16 %v1806
      %v2240 = vunpack.c.h.b16 %v1806
      %v2241 = vunpack.c.l.b16 %v1807
      %v2242 = vunpack.c.h.b16 %v1807
      %v2243 = vunpack.c.l.b16 %v1808
      %v2244 = vunpack.c.h.b16 %v1808
      %v2245 = vunpack.c.l.b16 %v1809
      %v2246 = vunpack.c.h.b16 %v1809
      %v2247 = vunpack.c.l.b16 %v1810
      %v2248 = vunpack.c.h.b16 %v1810
      %v2249 = vunpack.c.l.b16 %v1811
      %v2250 = vunpack.c.h.b16 %v1811
      %v2251 = vunpack.c.l.b16 %v1812
      %v2252 = vunpack.c.h.b16 %v1812
      %v2253 = vunpack.c.l.b16 %v1813
      %v2254 = vunpack.c.h.b16 %v1813
      %v2255 = vunpack.c.l.b16 %v1814
      %v2256 = vunpack.c.h.b16 %v1814
      %v2257 = vunpack.c.l.b16 %v1815
      %v2258 = vunpack.c.h.b16 %v1815
      %v2259 = vunpack.c.l.b16 %v1816
      %v2260 = vunpack.c.h.b16 %v1816
      %v2261 = vunpack.c.l.b16 %v1817
      %v2262 = vunpack.c.h.b16 %v1817
      %v2263 = vunpack.c.l.b16 %v1818
      %v2264 = vunpack.c.h.b16 %v1818
      %v2265 = vunpack.c.l.b16 %v1819
      %v2266 = vunpack.c.h.b16 %v1819
      %v2267 = vunpack.c.l.b16 %v1820
      %v2268 = vunpack.c.h.b16 %v1820
      %v2269 = vunpack.c.l.b16 %v1821
      %v2270 = vunpack.c.h.b16 %v1821
      %v2271 = vunpack.c.l.b16 %v1822
      %v2272 = vunpack.c.h.b16 %v1822
      %v2273 = vpack.c.b16 %v2211, %v2209
      %v2274 = vpack.c.b16 %v2212, %v2210
      %v2275 = vpack.c.b16 %v2215, %v2213
      %v2276 = vpack.c.b16 %v2216, %v2214
      %v2277 = vpack.c.b16 %v2219, %v2217
      %v2278 = vpack.c.b16 %v2220, %v2218
      %v2279 = vpack.c.b16 %v2223, %v2221
      %v2280 = vpack.c.b16 %v2224, %v2222
      %v2281 = vpack.c.b16 %v2227, %v2225
      %v2282 = vpack.c.b16 %v2228, %v2226
      %v2283 = vpack.c.b16 %v2231, %v2229
      %v2284 = vpack.c.b16 %v2232, %v2230
      %v2285 = vpack.c.b16 %v2235, %v2233
      %v2286 = vpack.c.b16 %v2236, %v2234
      %v2287 = vpack.c.b16 %v2239, %v2237
      %v2288 = vpack.c.b16 %v2240, %v2238
      %v2289 = vpack.c.b16 %v2243, %v2241
      %v2290 = vpack.c.b16 %v2244, %v2242
      %v2291 = vpack.c.b16 %v2247, %v2245
      %v2292 = vpack.c.b16 %v2248, %v2246
      %v2293 = vpack.c.b16 %v2251, %v2249
      %v2294 = vpack.c.b16 %v2252, %v2250
      %v2295 = vpack.c.b16 %v2255, %v2253
      %v2296 = vpack.c.b16 %v2256, %v2254
      %v2297 = vpack.c.b16 %v2259, %v2257
      %v2298 = vpack.c.b16 %v2260, %v2258
      %v2299 = vpack.c.b16 %v2263, %v2261
      %v2300 = vpack.c.b16 %v2264, %v2262
      %v2301 = vpack.c.b16 %v2267, %v2265
      %v2302 = vpack.c.b16 %v2268, %v2266
      %v2303 = vpack.c.b16 %v2271, %v2269
      %v2304 = vpack.c.b16 %v2272, %v2270
      %2337 = vmatprep.subr.bf16.mxu0 %v2288
      %2338 = vmatpush1.bf16.msra.mxu0 %v2287
      %2339 = vmatprep.subr.bf16.mxu0 %v2286
      %2340 = vmatpush1.bf16.msra.mxu0 %v2285
      %2341 = vmatprep.subr.bf16.mxu0 %v2284
      %2342 = vmatpush1.bf16.msra.mxu0 %v2283
      %2343 = vmatprep.subr.bf16.mxu0 %v2282
      %2344 = vmatpush1.bf16.msra.mxu0 %v2281
      %2345 = vmatprep.subr.bf16.mxu0 %v2280
      %2346 = vmatpush1.bf16.msra.mxu0 %v2279
      %2347 = vmatprep.subr.bf16.mxu0 %v2278
      %2348 = vmatpush1.bf16.msra.mxu0 %v2277
      %2349 = vmatprep.subr.bf16.mxu0 %v2276
      %2350 = vmatpush1.bf16.msra.mxu0 %v2275
      %2351 = vmatprep.subr.bf16.mxu0 %v2274
      %2352 = vmatpush1.bf16.msra.mxu0 %v2273
      %2353 = vmatprep.subr.bf16.mxu0 %v2304
      %2354 = vmatpush2.bf16.msra.mxu0 %v2303
      %2355 = vmatprep.subr.bf16.mxu0 %v2302
      %2356 = vmatpush2.bf16.msra.mxu0 %v2301
      %2357 = vmatprep.subr.bf16.mxu0 %v2300
      %2358 = vmatpush2.bf16.msra.mxu0 %v2299
      %2359 = vmatprep.subr.bf16.mxu0 %v2298
      %2360 = vmatpush2.bf16.msra.mxu0 %v2297
      %2361 = vmatprep.subr.bf16.mxu0 %v2296
      %2362 = vmatpush2.bf16.msra.mxu0 %v2295
      %2363 = vmatprep.subr.bf16.mxu0 %v2294
      %2364 = vmatpush2.bf16.msra.mxu0 %v2293
      %2365 = vmatprep.subr.bf16.mxu0 %v2292
      %2366 = vmatpush2.bf16.msra.mxu0 %v2291
      %2367 = vmatprep.subr.bf16.mxu0 %v2290
      %2368 = vmatpush2.bf16.msra.mxu0 %v2289
      %2369 = vmatprep.mubr.bf16.mxu0 %v2162
      %2370 = vmatmul.mubr.bf16.gmra.mxu0 %v2161
      %v2371 = vpop.f32.mrf.mxu0
      %v2372 = vadd.f32 %v2099, %v2371
      %v2373 = vpop.f32.mrf.mxu0
      %v2374 = vadd.f32 %v2101, %v2373
      %v2375 = vpop.f32.mrf.mxu0
      %v2376 = vadd.f32 %v2103, %v2375
      %v2377 = vpop.f32.mrf.mxu0
      %v2378 = vadd.f32 %v2105, %v2377
      %2379 = vmatprep.mubr.bf16.mxu0 %v2164
      %2380 = vmatmul.mubr.bf16.gmra.mxu0 %v2163
      %v2381 = vpop.f32.mrf.mxu0
      %v2382 = vadd.f32 %v2109, %v2381
      %v2383 = vpop.f32.mrf.mxu0
      %v2384 = vadd.f32 %v2111, %v2383
      %v2385 = vpop.f32.mrf.mxu0
      %v2386 = vadd.f32 %v2113, %v2385
      %v2387 = vpop.f32.mrf.mxu0
      %v2388 = vadd.f32 %v2115, %v2387
      %2389 = vmatprep.mubr.bf16.mxu0 %v2166
      %2390 = vmatmul.mubr.bf16.gmra.mxu0 %v2165
      %v2391 = vpop.f32.mrf.mxu0
      %v2392 = vadd.f32 %v2119, %v2391
      %v2393 = vpop.f32.mrf.mxu0
      %v2394 = vadd.f32 %v2121, %v2393
      %v2395 = vpop.f32.mrf.mxu0
      %v2396 = vadd.f32 %v2123, %v2395
      %v2397 = vpop.f32.mrf.mxu0
      %v2398 = vadd.f32 %v2125, %v2397
      %2399 = vmatprep.mubr.bf16.mxu0 %v2168
      %2400 = vmatmul.mubr.bf16.gmra.mxu0 %v2167
      %v2401 = vpop.f32.mrf.mxu0
      %v2402 = vadd.f32 %v2129, %v2401
      %v2403 = vpop.f32.mrf.mxu0
      %v2404 = vadd.f32 %v2131, %v2403
      %v2405 = vpop.f32.mrf.mxu0
      %v2406 = vadd.f32 %v2133, %v2405
      %v2407 = vpop.f32.mrf.mxu0
      %v2408 = vadd.f32 %v2135, %v2407
      %2409 = vdwg.mxu0
      %v2410 = vld [vmem:[#allocation3] sm:$0xff]
      %v2411 = vld [vmem:[#allocation3 + $0x10] sm:$0xff]
      %v2412 = vld [vmem:[#allocation3 + $0x20] sm:$0xff]
      %v2413 = vld [vmem:[#allocation3 + $0x30] sm:$0xff]
      %v2414 = vld [vmem:[#allocation3 + $0x40] sm:$0xff]
      %v2415 = vld [vmem:[#allocation3 + $0x50] sm:$0xff]
      %v2416 = vld [vmem:[#allocation3 + $0x60] sm:$0xff]
      %v2417 = vld [vmem:[#allocation3 + $0x70] sm:$0xff]
      %v2418 = vld [vmem:[%s3] sm:$0xff]
      %v2419 = vld [vmem:[%s3 + $0x8] sm:$0xff]
      %v2420 = vld [vmem:[%s3 + $0x10] sm:$0xff]
      %v2421 = vld [vmem:[%s3 + $0x18] sm:$0xff]
      %v2422 = vld [vmem:[%s3 + $0x20] sm:$0xff]
      %v2423 = vld [vmem:[%s3 + $0x28] sm:$0xff]
      %v2424 = vld [vmem:[%s3 + $0x30] sm:$0xff]
      %v2425 = vld [vmem:[%s3 + $0x38] sm:$0xff]
      %v2426 = vld [vmem:[%s3 + $0x40] sm:$0xff]
      %v2427 = vld [vmem:[%s3 + $0x48] sm:$0xff]
      %v2428 = vld [vmem:[%s3 + $0x50] sm:$0xff]
      %v2429 = vld [vmem:[%s3 + $0x58] sm:$0xff]
      %v2430 = vld [vmem:[%s3 + $0x60] sm:$0xff]
      %v2431 = vld [vmem:[%s3 + $0x68] sm:$0xff]
      %v2432 = vld [vmem:[%s3 + $0x70] sm:$0xff]
      %v2433 = vld [vmem:[%s3 + $0x78] sm:$0xff]
      %v2434 = vld [vmem:[%s3 + $0x80] sm:$0xff]
      %v2435 = vld [vmem:[%s3 + $0x88] sm:$0xff]
      %v2436 = vld [vmem:[%s3 + $0x90] sm:$0xff]
      %v2437 = vld [vmem:[%s3 + $0x98] sm:$0xff]
      %v2438 = vld [vmem:[%s3 + $0xa0] sm:$0xff]
      %v2439 = vld [vmem:[%s3 + $0xa8] sm:$0xff]
      %v2440 = vld [vmem:[%s3 + $0xb0] sm:$0xff]
      %v2441 = vld [vmem:[%s3 + $0xb8] sm:$0xff]
      %v2442 = vld [vmem:[%s3 + $0xc0] sm:$0xff]
      %v2443 = vld [vmem:[%s3 + $0xc8] sm:$0xff]
      %v2444 = vld [vmem:[%s3 + $0xd0] sm:$0xff]
      %v2445 = vld [vmem:[%s3 + $0xd8] sm:$0xff]
      %v2446 = vld [vmem:[%s3 + $0xe0] sm:$0xff]
      %v2447 = vld [vmem:[%s3 + $0xe8] sm:$0xff]
      %v2448 = vld [vmem:[%s3 + $0xf0] sm:$0xff]
      %v2449 = vld [vmem:[%s3 + $0xf8] sm:$0xff]
      %v2458 = vunpack.c.l.b16 %v2410
      %v2459 = vunpack.c.h.b16 %v2410
      %v2460 = vunpack.c.l.b16 %v2411
      %v2461 = vunpack.c.h.b16 %v2411
      %v2462 = vunpack.c.l.b16 %v2412
      %v2463 = vunpack.c.h.b16 %v2412
      %v2464 = vunpack.c.l.b16 %v2413
      %v2465 = vunpack.c.h.b16 %v2413
      %v2466 = vunpack.c.l.b16 %v2414
      %v2467 = vunpack.c.h.b16 %v2414
      %v2468 = vunpack.c.l.b16 %v2415
      %v2469 = vunpack.c.h.b16 %v2415
      %v2470 = vunpack.c.l.b16 %v2416
      %v2471 = vunpack.c.h.b16 %v2416
      %v2472 = vunpack.c.l.b16 %v2417
      %v2473 = vunpack.c.h.b16 %v2417
      %v2474 = vpack.c.b16 %v2460, %v2458
      %v2475 = vpack.c.b16 %v2461, %v2459
      %v2476 = vpack.c.b16 %v2464, %v2462
      %v2477 = vpack.c.b16 %v2465, %v2463
      %v2478 = vpack.c.b16 %v2468, %v2466
      %v2479 = vpack.c.b16 %v2469, %v2467
      %v2480 = vpack.c.b16 %v2472, %v2470
      %v2481 = vpack.c.b16 %v2473, %v2471
      %v2522 = vunpack.c.l.b16 %v2418
      %v2523 = vunpack.c.h.b16 %v2418
      %v2524 = vunpack.c.l.b16 %v2419
      %v2525 = vunpack.c.h.b16 %v2419
      %v2526 = vunpack.c.l.b16 %v2420
      %v2527 = vunpack.c.h.b16 %v2420
      %v2528 = vunpack.c.l.b16 %v2421
      %v2529 = vunpack.c.h.b16 %v2421
      %v2530 = vunpack.c.l.b16 %v2422
      %v2531 = vunpack.c.h.b16 %v2422
      %v2532 = vunpack.c.l.b16 %v2423
      %v2533 = vunpack.c.h.b16 %v2423
      %v2534 = vunpack.c.l.b16 %v2424
      %v2535 = vunpack.c.h.b16 %v2424
      %v2536 = vunpack.c.l.b16 %v2425
      %v2537 = vunpack.c.h.b16 %v2425
      %v2538 = vunpack.c.l.b16 %v2426
      %v2539 = vunpack.c.h.b16 %v2426
      %v2540 = vunpack.c.l.b16 %v2427
      %v2541 = vunpack.c.h.b16 %v2427
      %v2542 = vunpack.c.l.b16 %v2428
      %v2543 = vunpack.c.h.b16 %v2428
      %v2544 = vunpack.c.l.b16 %v2429
      %v2545 = vunpack.c.h.b16 %v2429
      %v2546 = vunpack.c.l.b16 %v2430
      %v2547 = vunpack.c.h.b16 %v2430
      %v2548 = vunpack.c.l.b16 %v2431
      %v2549 = vunpack.c.h.b16 %v2431
      %v2550 = vunpack.c.l.b16 %v2432
      %v2551 = vunpack.c.h.b16 %v2432
      %v2552 = vunpack.c.l.b16 %v2433
      %v2553 = vunpack.c.h.b16 %v2433
      %v2554 = vunpack.c.l.b16 %v2434
      %v2555 = vunpack.c.h.b16 %v2434
      %v2556 = vunpack.c.l.b16 %v2435
      %v2557 = vunpack.c.h.b16 %v2435
      %v2558 = vunpack.c.l.b16 %v2436
      %v2559 = vunpack.c.h.b16 %v2436
      %v2560 = vunpack.c.l.b16 %v2437
      %v2561 = vunpack.c.h.b16 %v2437
      %v2562 = vunpack.c.l.b16 %v2438
      %v2563 = vunpack.c.h.b16 %v2438
      %v2564 = vunpack.c.l.b16 %v2439
      %v2565 = vunpack.c.h.b16 %v2439
      %v2566 = vunpack.c.l.b16 %v2440
      %v2567 = vunpack.c.h.b16 %v2440
      %v2568 = vunpack.c.l.b16 %v2441
      %v2569 = vunpack.c.h.b16 %v2441
      %v2570 = vunpack.c.l.b16 %v2442
      %v2571 = vunpack.c.h.b16 %v2442
      %v2572 = vunpack.c.l.b16 %v2443
      %v2573 = vunpack.c.h.b16 %v2443
      %v2574 = vunpack.c.l.b16 %v2444
      %v2575 = vunpack.c.h.b16 %v2444
      %v2576 = vunpack.c.l.b16 %v2445
      %v2577 = vunpack.c.h.b16 %v2445
      %v2578 = vunpack.c.l.b16 %v2446
      %v2579 = vunpack.c.h.b16 %v2446
      %v2580 = vunpack.c.l.b16 %v2447
      %v2581 = vunpack.c.h.b16 %v2447
      %v2582 = vunpack.c.l.b16 %v2448
      %v2583 = vunpack.c.h.b16 %v2448
      %v2584 = vunpack.c.l.b16 %v2449
      %v2585 = vunpack.c.h.b16 %v2449
      %v2586 = vpack.c.b16 %v2524, %v2522
      %v2587 = vpack.c.b16 %v2525, %v2523
      %v2588 = vpack.c.b16 %v2528, %v2526
      %v2589 = vpack.c.b16 %v2529, %v2527
      %v2590 = vpack.c.b16 %v2532, %v2530
      %v2591 = vpack.c.b16 %v2533, %v2531
      %v2592 = vpack.c.b16 %v2536, %v2534
      %v2593 = vpack.c.b16 %v2537, %v2535
      %v2594 = vpack.c.b16 %v2540, %v2538
      %v2595 = vpack.c.b16 %v2541, %v2539
      %v2596 = vpack.c.b16 %v2544, %v2542
      %v2597 = vpack.c.b16 %v2545, %v2543
      %v2598 = vpack.c.b16 %v2548, %v2546
      %v2599 = vpack.c.b16 %v2549, %v2547
      %v2600 = vpack.c.b16 %v2552, %v2550
      %v2601 = vpack.c.b16 %v2553, %v2551
      %v2602 = vpack.c.b16 %v2556, %v2554
      %v2603 = vpack.c.b16 %v2557, %v2555
      %v2604 = vpack.c.b16 %v2560, %v2558
      %v2605 = vpack.c.b16 %v2561, %v2559
      %v2606 = vpack.c.b16 %v2564, %v2562
      %v2607 = vpack.c.b16 %v2565, %v2563
      %v2608 = vpack.c.b16 %v2568, %v2566
      %v2609 = vpack.c.b16 %v2569, %v2567
      %v2610 = vpack.c.b16 %v2572, %v2570
      %v2611 = vpack.c.b16 %v2573, %v2571
      %v2612 = vpack.c.b16 %v2576, %v2574
      %v2613 = vpack.c.b16 %v2577, %v2575
      %v2614 = vpack.c.b16 %v2580, %v2578
      %v2615 = vpack.c.b16 %v2581, %v2579
      %v2616 = vpack.c.b16 %v2584, %v2582
      %v2617 = vpack.c.b16 %v2585, %v2583
      %2650 = vmatprep.subr.bf16.mxu0 %v2601
      %2651 = vmatpush1.bf16.msra.mxu0 %v2600
      %2652 = vmatprep.subr.bf16.mxu0 %v2599
      %2653 = vmatpush1.bf16.msra.mxu0 %v2598
      %2654 = vmatprep.subr.bf16.mxu0 %v2597
      %2655 = vmatpush1.bf16.msra.mxu0 %v2596
      %2656 = vmatprep.subr.bf16.mxu0 %v2595
      %2657 = vmatpush1.bf16.msra.mxu0 %v2594
      %2658 = vmatprep.subr.bf16.mxu0 %v2593
      %2659 = vmatpush1.bf16.msra.mxu0 %v2592
      %2660 = vmatprep.subr.bf16.mxu0 %v2591
      %2661 = vmatpush1.bf16.msra.mxu0 %v2590
      %2662 = vmatprep.subr.bf16.mxu0 %v2589
      %2663 = vmatpush1.bf16.msra.mxu0 %v2588
      %2664 = vmatprep.subr.bf16.mxu0 %v2587
      %2665 = vmatpush1.bf16.msra.mxu0 %v2586
      %2666 = vmatprep.subr.bf16.mxu0 %v2617
      %2667 = vmatpush2.bf16.msra.mxu0 %v2616
      %2668 = vmatprep.subr.bf16.mxu0 %v2615
      %2669 = vmatpush2.bf16.msra.mxu0 %v2614
      %2670 = vmatprep.subr.bf16.mxu0 %v2613
      %2671 = vmatpush2.bf16.msra.mxu0 %v2612
      %2672 = vmatprep.subr.bf16.mxu0 %v2611
      %2673 = vmatpush2.bf16.msra.mxu0 %v2610
      %2674 = vmatprep.subr.bf16.mxu0 %v2609
      %2675 = vmatpush2.bf16.msra.mxu0 %v2608
      %2676 = vmatprep.subr.bf16.mxu0 %v2607
      %2677 = vmatpush2.bf16.msra.mxu0 %v2606
      %2678 = vmatprep.subr.bf16.mxu0 %v2605
      %2679 = vmatpush2.bf16.msra.mxu0 %v2604
      %2680 = vmatprep.subr.bf16.mxu0 %v2603
      %2681 = vmatpush2.bf16.msra.mxu0 %v2602
      %2682 = vmatprep.mubr.bf16.mxu0 %v2475
      %2683 = vmatmul.mubr.bf16.gmra.mxu0 %v2474
      %v2684 = vpop.f32.mrf.mxu0
      %v2685 = vadd.f32 0.0, %v2684
      %v2686 = vpop.f32.mrf.mxu0
      %v2687 = vadd.f32 0.0, %v2686
      %v2688 = vpop.f32.mrf.mxu0
      %v2689 = vadd.f32 0.0, %v2688
      %v2690 = vpop.f32.mrf.mxu0
      %v2691 = vadd.f32 0.0, %v2690
      %2692 = vmatprep.mubr.bf16.mxu0 %v2477
      %2693 = vmatmul.mubr.bf16.gmra.mxu0 %v2476
      %v2694 = vpop.f32.mrf.mxu0
      %v2695 = vadd.f32 0.0, %v2694
      %v2696 = vpop.f32.mrf.mxu0
      %v2697 = vadd.f32 0.0, %v2696
      %v2698 = vpop.f32.mrf.mxu0
      %v2699 = vadd.f32 0.0, %v2698
      %v2700 = vpop.f32.mrf.mxu0
      %v2701 = vadd.f32 0.0, %v2700
      %2702 = vmatprep.mubr.bf16.mxu0 %v2479
      %2703 = vmatmul.mubr.bf16.gmra.mxu0 %v2478
      %v2704 = vpop.f32.mrf.mxu0
      %v2705 = vadd.f32 0.0, %v2704
      %v2706 = vpop.f32.mrf.mxu0
      %v2707 = vadd.f32 0.0, %v2706
      %v2708 = vpop.f32.mrf.mxu0
      %v2709 = vadd.f32 0.0, %v2708
      %v2710 = vpop.f32.mrf.mxu0
      %v2711 = vadd.f32 0.0, %v2710
      %2712 = vmatprep.mubr.bf16.mxu0 %v2481
      %2713 = vmatmul.mubr.bf16.gmra.mxu0 %v2480
      %v2714 = vpop.f32.mrf.mxu0
      %v2715 = vadd.f32 0.0, %v2714
      %v2716 = vpop.f32.mrf.mxu0
      %v2717 = vadd.f32 0.0, %v2716
      %v2718 = vpop.f32.mrf.mxu0
      %v2719 = vadd.f32 0.0, %v2718
      %v2720 = vpop.f32.mrf.mxu0
      %v2721 = vadd.f32 0.0, %v2720
      %2722 = vdwg.mxu0
      %v2723 = vadd.f32 %v2372, %v2685
      %v2724 = vadd.f32 %v2374, %v2687
      %v2725 = vadd.f32 %v2376, %v2689
      %v2726 = vadd.f32 %v2378, %v2691
      %v2727 = vadd.f32 %v2382, %v2695
      %v2728 = vadd.f32 %v2384, %v2697
      %v2729 = vadd.f32 %v2386, %v2699
      %v2730 = vadd.f32 %v2388, %v2701
      %v2731 = vadd.f32 %v2392, %v2705
      %v2732 = vadd.f32 %v2394, %v2707
      %v2733 = vadd.f32 %v2396, %v2709
      %v2734 = vadd.f32 %v2398, %v2711
      %v2735 = vadd.f32 %v2402, %v2715
      %v2736 = vadd.f32 %v2404, %v2717
      %v2737 = vadd.f32 %v2406, %v2719
      %v2738 = vadd.f32 %v2408, %v2721
      %v2739 = vld [vmem:[#allocation3] sm:$0xf]
      %v2740 = vld [vmem:[#allocation3 + $0x8] sm:$0x1]
      %v2741 = vld [vmem:[#allocation3 + $0x10] sm:$0xf]
      %v2742 = vld [vmem:[#allocation3 + $0x18] sm:$0x1]
      %v2743 = vld [vmem:[#allocation3 + $0x20] sm:$0xf]
      %v2744 = vld [vmem:[#allocation3 + $0x28] sm:$0x1]
      %v2745 = vld [vmem:[#allocation3 + $0x30] sm:$0xf]
      %v2746 = vld [vmem:[#allocation3 + $0x38] sm:$0x1]
      %v2747 = vld [vmem:[#allocation3 + $0x40] sm:$0xf]
      %v2748 = vld [vmem:[#allocation3 + $0x48] sm:$0x1]
      %v2749 = vld [vmem:[#allocation3 + $0x50] sm:$0xf]
      %v2750 = vld [vmem:[#allocation3 + $0x58] sm:$0x1]
      %v2751 = vld [vmem:[#allocation3 + $0x60] sm:$0xf]
      %v2752 = vld [vmem:[#allocation3 + $0x68] sm:$0x1]
      %v2753 = vld [vmem:[#allocation3 + $0x70] sm:$0xf]
      %v2754 = vld [vmem:[#allocation3 + $0x78] sm:$0x1]
      %v2756 = vshrl.u32 %v2739, 16
      %v2758 = vrot.slane %v2756, 4
      %v2759 = vshll.u32 %v2739, 16
      %v2761 = vrot.slane %v2759, 5
      %v2762 = vor.u32 %v2758, %v2761
      %v2763 = vrot.slane %v2762, 4
      %v2765 = vshll.u32 %v2740, 16
      %v2767 = vrot.slane %v2765, 5
      %v2768 = vsel %vm998, %v2763, %v2767
      %v2770 = vshrl.u32 %v2741, 16
      %v2772 = vrot.slane %v2770, 4
      %v2773 = vshll.u32 %v2741, 16
      %v2775 = vrot.slane %v2773, 5
      %v2776 = vor.u32 %v2772, %v2775
      %v2777 = vrot.slane %v2776, 4
      %v2779 = vshll.u32 %v2742, 16
      %v2781 = vrot.slane %v2779, 5
      %v2782 = vsel %vm998, %v2777, %v2781
      %v2784 = vshrl.u32 %v2743, 16
      %v2786 = vrot.slane %v2784, 4
      %v2787 = vshll.u32 %v2743, 16
      %v2789 = vrot.slane %v2787, 5
      %v2790 = vor.u32 %v2786, %v2789
      %v2791 = vrot.slane %v2790, 4
      %v2793 = vshll.u32 %v2744, 16
      %v2795 = vrot.slane %v2793, 5
      %v2796 = vsel %vm998, %v2791, %v2795
      %v2798 = vshrl.u32 %v2745, 16
      %v2800 = vrot.slane %v2798, 4
      %v2801 = vshll.u32 %v2745, 16
      %v2803 = vrot.slane %v2801, 5
      %v2804 = vor.u32 %v2800, %v2803
      %v2805 = vrot.slane %v2804, 4
      %v2807 = vshll.u32 %v2746, 16
      %v2809 = vrot.slane %v2807, 5
      %v2810 = vsel %vm998, %v2805, %v2809
      %v2812 = vshrl.u32 %v2747, 16
      %v2814 = vrot.slane %v2812, 4
      %v2815 = vshll.u32 %v2747, 16
      %v2817 = vrot.slane %v2815, 5
      %v2818 = vor.u32 %v2814, %v2817
      %v2819 = vrot.slane %v2818, 4
      %v2821 = vshll.u32 %v2748, 16
      %v2823 = vrot.slane %v2821, 5
      %v2824 = vsel %vm998, %v2819, %v2823
      %v2826 = vshrl.u32 %v2749, 16
      %v2828 = vrot.slane %v2826, 4
      %v2829 = vshll.u32 %v2749, 16
      %v2831 = vrot.slane %v2829, 5
      %v2832 = vor.u32 %v2828, %v2831
      %v2833 = vrot.slane %v2832, 4
      %v2835 = vshll.u32 %v2750, 16
      %v2837 = vrot.slane %v2835, 5
      %v2838 = vsel %vm998, %v2833, %v2837
      %v2840 = vshrl.u32 %v2751, 16
      %v2842 = vrot.slane %v2840, 4
      %v2843 = vshll.u32 %v2751, 16
      %v2845 = vrot.slane %v2843, 5
      %v2846 = vor.u32 %v2842, %v2845
      %v2847 = vrot.slane %v2846, 4
      %v2849 = vshll.u32 %v2752, 16
      %v2851 = vrot.slane %v2849, 5
      %v2852 = vsel %vm998, %v2847, %v2851
      %v2854 = vshrl.u32 %v2753, 16
      %v2856 = vrot.slane %v2854, 4
      %v2857 = vshll.u32 %v2753, 16
      %v2859 = vrot.slane %v2857, 5
      %v2860 = vor.u32 %v2856, %v2859
      %v2861 = vrot.slane %v2860, 4
      %v2863 = vshll.u32 %v2754, 16
      %v2865 = vrot.slane %v2863, 5
      %v2866 = vsel %vm998, %v2861, %v2865
      %v2867 = vld [vmem:[%s4] sm:$0xff]
      %v2868 = vld [vmem:[%s4 + $0x8] sm:$0xff]
      %v2869 = vld [vmem:[%s4 + $0x10] sm:$0xff]
      %v2870 = vld [vmem:[%s4 + $0x18] sm:$0xff]
      %v2871 = vld [vmem:[%s4 + $0x20] sm:$0xff]
      %v2872 = vld [vmem:[%s4 + $0x28] sm:$0xff]
      %v2873 = vld [vmem:[%s4 + $0x30] sm:$0xff]
      %v2874 = vld [vmem:[%s4 + $0x38] sm:$0xff]
      %v2875 = vld [vmem:[%s4 + $0x40] sm:$0xff]
      %v2876 = vld [vmem:[%s4 + $0x48] sm:$0xff]
      %v2877 = vld [vmem:[%s4 + $0x50] sm:$0xff]
      %v2878 = vld [vmem:[%s4 + $0x58] sm:$0xff]
      %v2879 = vld [vmem:[%s4 + $0x60] sm:$0xff]
      %v2880 = vld [vmem:[%s4 + $0x68] sm:$0xff]
      %v2881 = vld [vmem:[%s4 + $0x70] sm:$0xff]
      %v2882 = vld [vmem:[%s4 + $0x78] sm:$0xff]
      %v2883 = vunpack.c.l.b16 %v2768
      %v2884 = vunpack.c.l.b16 %v2782
      %v2885 = vunpack.c.l.b16 %v2796
      %v2886 = vunpack.c.l.b16 %v2810
      %v2887 = vunpack.c.l.b16 %v2824
      %v2888 = vunpack.c.l.b16 %v2838
      %v2889 = vunpack.c.l.b16 %v2852
      %v2890 = vunpack.c.l.b16 %v2866
      %v2891 = vpack.c.b16 %v2884, %v2883
      %v2892 = vpack.c.b16 %v2886, %v2885
      %v2893 = vpack.c.b16 %v2888, %v2887
      %v2894 = vpack.c.b16 %v2890, %v2889
      %v2915 = vunpack.c.l.b16 %v2867
      %v2916 = vunpack.c.h.b16 %v2867
      %v2917 = vunpack.c.l.b16 %v2868
      %v2918 = vunpack.c.h.b16 %v2868
      %v2919 = vunpack.c.l.b16 %v2869
      %v2920 = vunpack.c.h.b16 %v2869
      %v2921 = vunpack.c.l.b16 %v2870
      %v2922 = vunpack.c.h.b16 %v2870
      %v2923 = vunpack.c.l.b16 %v2871
      %v2924 = vunpack.c.h.b16 %v2871
      %v2925 = vunpack.c.l.b16 %v2872
      %v2926 = vunpack.c.h.b16 %v2872
      %v2927 = vunpack.c.l.b16 %v2873
      %v2928 = vunpack.c.h.b16 %v2873
      %v2929 = vunpack.c.l.b16 %v2874
      %v2930 = vunpack.c.h.b16 %v2874
      %v2931 = vunpack.c.l.b16 %v2875
      %v2932 = vunpack.c.h.b16 %v2875
      %v2933 = vunpack.c.l.b16 %v2876
      %v2934 = vunpack.c.h.b16 %v2876
      %v2935 = vunpack.c.l.b16 %v2877
      %v2936 = vunpack.c.h.b16 %v2877
      %v2937 = vunpack.c.l.b16 %v2878
      %v2938 = vunpack.c.h.b16 %v2878
      %v2939 = vunpack.c.l.b16 %v2879
      %v2940 = vunpack.c.h.b16 %v2879
      %v2941 = vunpack.c.l.b16 %v2880
      %v2942 = vunpack.c.h.b16 %v2880
      %v2943 = vunpack.c.l.b16 %v2881
      %v2944 = vunpack.c.h.b16 %v2881
      %v2945 = vunpack.c.l.b16 %v2882
      %v2946 = vunpack.c.h.b16 %v2882
      %v2947 = vpack.c.b16 %v2917, %v2915
      %v2948 = vpack.c.b16 %v2918, %v2916
      %v2949 = vpack.c.b16 %v2921, %v2919
      %v2950 = vpack.c.b16 %v2922, %v2920
      %v2951 = vpack.c.b16 %v2925, %v2923
      %v2952 = vpack.c.b16 %v2926, %v2924
      %v2953 = vpack.c.b16 %v2929, %v2927
      %v2954 = vpack.c.b16 %v2930, %v2928
      %v2955 = vpack.c.b16 %v2933, %v2931
      %v2956 = vpack.c.b16 %v2934, %v2932
      %v2957 = vpack.c.b16 %v2937, %v2935
      %v2958 = vpack.c.b16 %v2938, %v2936
      %v2959 = vpack.c.b16 %v2941, %v2939
      %v2960 = vpack.c.b16 %v2942, %v2940
      %v2961 = vpack.c.b16 %v2945, %v2943
      %v2962 = vpack.c.b16 %v2946, %v2944
      %2979 = vmatprep.subr.bf16.mxu0 %v2962
      %2980 = vmatpush1.bf16.msra.mxu0 %v2961
      %2981 = vmatprep.subr.bf16.mxu0 %v2960
      %2982 = vmatpush1.bf16.msra.mxu0 %v2959
      %2983 = vmatprep.subr.bf16.mxu0 %v2958
      %2984 = vmatpush1.bf16.msra.mxu0 %v2957
      %2985 = vmatprep.subr.bf16.mxu0 %v2956
      %2986 = vmatpush1.bf16.msra.mxu0 %v2955
      %2987 = vmatprep.subr.bf16.mxu0 %v2954
      %2988 = vmatpush1.bf16.msra.mxu0 %v2953
      %2989 = vmatprep.subr.bf16.mxu0 %v2952
      %2990 = vmatpush1.bf16.msra.mxu0 %v2951
      %2991 = vmatprep.subr.bf16.mxu0 %v2950
      %2992 = vmatpush1.bf16.msra.mxu0 %v2949
      %2993 = vmatprep.subr.bf16.mxu0 %v2948
      %2994 = vmatpush1.bf16.msra.mxu0 %v2947
      %2995 = vmatprep.subr.bf16.mxu0 0
      %2996 = vmatpush2.bf16.msra.mxu0 0
      %2997 = vmatprep.subr.bf16.mxu0 0
      %2998 = vmatpush2.bf16.msra.mxu0 0
      %2999 = vmatprep.subr.bf16.mxu0 0
      %3000 = vmatpush2.bf16.msra.mxu0 0
      %3001 = vmatprep.subr.bf16.mxu0 0
      %3002 = vmatpush2.bf16.msra.mxu0 0
      %3003 = vmatprep.subr.bf16.mxu0 0
      %3004 = vmatpush2.bf16.msra.mxu0 0
      %3005 = vmatprep.subr.bf16.mxu0 0
      %3006 = vmatpush2.bf16.msra.mxu0 0
      %3007 = vmatprep.subr.bf16.mxu0 0
      %3008 = vmatpush2.bf16.msra.mxu0 0
      %3009 = vmatprep.subr.bf16.mxu0 0
      %3010 = vmatpush2.bf16.msra.mxu0 0
      %3011 = vmatprep.mubr.bf16.mxu0 0
      %3012 = vmatmul.mubr.bf16.gmra.mxu0 %v2891
      %v3013 = vpop.f32.mrf.mxu0
      %v3014 = vadd.f32 0.0, %v3013
      %v3015 = vpop.f32.mrf.mxu0
      %v3016 = vadd.f32 0.0, %v3015
      %v3017 = vpop.f32.mrf.mxu0
      %v3018 = vadd.f32 0.0, %v3017
      %v3019 = vpop.f32.mrf.mxu0
      %v3020 = vadd.f32 0.0, %v3019
      %3021 = vmatprep.mubr.bf16.mxu0 0
      %3022 = vmatmul.mubr.bf16.gmra.mxu0 %v2892
      %v3023 = vpop.f32.mrf.mxu0
      %v3024 = vadd.f32 0.0, %v3023
      %v3025 = vpop.f32.mrf.mxu0
      %v3026 = vadd.f32 0.0, %v3025
      %v3027 = vpop.f32.mrf.mxu0
      %v3028 = vadd.f32 0.0, %v3027
      %v3029 = vpop.f32.mrf.mxu0
      %v3030 = vadd.f32 0.0, %v3029
      %3031 = vmatprep.mubr.bf16.mxu0 0
      %3032 = vmatmul.mubr.bf16.gmra.mxu0 %v2893
      %v3033 = vpop.f32.mrf.mxu0
      %v3034 = vadd.f32 0.0, %v3033
      %v3035 = vpop.f32.mrf.mxu0
      %v3036 = vadd.f32 0.0, %v3035
      %v3037 = vpop.f32.mrf.mxu0
      %v3038 = vadd.f32 0.0, %v3037
      %v3039 = vpop.f32.mrf.mxu0
      %v3040 = vadd.f32 0.0, %v3039
      %3041 = vmatprep.mubr.bf16.mxu0 0
      %3042 = vmatmul.mubr.bf16.gmra.mxu0 %v2894
      %v3043 = vpop.f32.mrf.mxu0
      %v3044 = vadd.f32 0.0, %v3043
      %v3045 = vpop.f32.mrf.mxu0
      %v3046 = vadd.f32 0.0, %v3045
      %v3047 = vpop.f32.mrf.mxu0
      %v3048 = vadd.f32 0.0, %v3047
      %v3049 = vpop.f32.mrf.mxu0
      %v3050 = vadd.f32 0.0, %v3049
      %3051 = vdwg.mxu0
      %v3052 = vadd.f32 %v2723, %v3014
      %v3053 = vadd.f32 %v2724, %v3016
      %v3054 = vadd.f32 %v2725, %v3018
      %v3055 = vadd.f32 %v2726, %v3020
      %v3056 = vadd.f32 %v2727, %v3024
      %v3057 = vadd.f32 %v2728, %v3026
      %v3058 = vadd.f32 %v2729, %v3028
      %v3059 = vadd.f32 %v2730, %v3030
      %v3060 = vadd.f32 %v2731, %v3034
      %v3061 = vadd.f32 %v2732, %v3036
      %v3062 = vadd.f32 %v2733, %v3038
      %v3063 = vadd.f32 %v2734, %v3040
      %v3064 = vadd.f32 %v2735, %v3044
      %v3065 = vadd.f32 %v2736, %v3046
      %v3066 = vadd.f32 %v2737, %v3048
      %v3067 = vadd.f32 %v2738, %v3050
      %v3068 = vld [vmem:[%s5] sm:$0x3]
      %v3070 = vlaneseq
      %v3071 = vshrl.u32 %v3070, 7
      %v3072 = vsub.s32 0, %v3071
      %v3073 = vrot.slane %v3068, %v3072
      %v3074 = vlaneseq
      %v3075 = vshrl.u32 %v3074, 7
      %v3076 = vsub.s32 1, %v3075
      %v3077 = vrot.slane %v3068, %v3076
      %v3080 = vadd.f32 %v3052, %v3073
      %v3081 = vadd.f32 %v3053, %v3077
      %v3082 = vadd.f32 %v3054, %v3073
      %v3083 = vadd.f32 %v3055, %v3077
      %v3084 = vadd.f32 %v3056, %v3073
      %v3085 = vadd.f32 %v3057, %v3077
      %v3086 = vadd.f32 %v3058, %v3073
      %v3087 = vadd.f32 %v3059, %v3077
      %v3088 = vadd.f32 %v3060, %v3073
      %v3089 = vadd.f32 %v3061, %v3077
      %v3090 = vadd.f32 %v3062, %v3073
      %v3091 = vadd.f32 %v3063, %v3077
      %v3092 = vadd.f32 %v3064, %v3073
      %v3093 = vadd.f32 %v3065, %v3077
      %v3094 = vadd.f32 %v3066, %v3073
      %v3095 = vadd.f32 %v3067, %v3077
      %v3096 = vmax.f32 %v3080, 0.0
      %v3097 = vmax.f32 %v3081, 0.0
      %v3098 = vmax.f32 %v3082, 0.0
      %v3099 = vmax.f32 %v3083, 0.0
      %v3100 = vmax.f32 %v3084, 0.0
      %v3101 = vmax.f32 %v3085, 0.0
      %v3102 = vmax.f32 %v3086, 0.0
      %v3103 = vmax.f32 %v3087, 0.0
      %v3104 = vmax.f32 %v3088, 0.0
      %v3105 = vmax.f32 %v3089, 0.0
      %v3106 = vmax.f32 %v3090, 0.0
      %v3107 = vmax.f32 %v3091, 0.0
      %v3108 = vmax.f32 %v3092, 0.0
      %v3109 = vmax.f32 %v3093, 0.0
      %v3110 = vmax.f32 %v3094, 0.0
      %v3111 = vmax.f32 %v3095, 0.0
      %v3112 = vpack.c.bf16 %v3098, %v3096
      %v3113 = vpack.c.bf16 %v3099, %v3097
      %v3114 = vpack.c.bf16 %v3102, %v3100
      %v3115 = vpack.c.bf16 %v3103, %v3101
      %v3116 = vpack.c.bf16 %v3106, %v3104
      %v3117 = vpack.c.bf16 %v3107, %v3105
      %v3118 = vpack.c.bf16 %v3110, %v3108
      %v3119 = vpack.c.bf16 %v3111, %v3109
      %v3128 = vunpack.c.l.b16 %v3112
      %v3129 = vunpack.c.l.b16 %v3113
      %v3130 = vunpack.c.h.b16 %v3112
      %v3131 = vunpack.c.h.b16 %v3113
      %v3132 = vunpack.c.l.b16 %v3114
      %v3133 = vunpack.c.l.b16 %v3115
      %v3134 = vunpack.c.h.b16 %v3114
      %v3135 = vunpack.c.h.b16 %v3115
      %v3136 = vunpack.c.l.b16 %v3116
      %v3137 = vunpack.c.l.b16 %v3117
      %v3138 = vunpack.c.h.b16 %v3116
      %v3139 = vunpack.c.h.b16 %v3117
      %v3140 = vunpack.c.l.b16 %v3118
      %v3141 = vunpack.c.l.b16 %v3119
      %v3142 = vunpack.c.h.b16 %v3118
      %v3143 = vunpack.c.h.b16 %v3119
      %v3144 = vpack.c.b16 %v3129, %v3128
      %v3145 = vpack.c.b16 %v3131, %v3130
      %v3146 = vpack.c.b16 %v3133, %v3132
      %v3147 = vpack.c.b16 %v3135, %v3134
      %v3148 = vpack.c.b16 %v3137, %v3136
      %v3149 = vpack.c.b16 %v3139, %v3138
      %v3150 = vpack.c.b16 %v3141, %v3140
      %v3151 = vpack.c.b16 %v3143, %v3142
      %v3153 = vshrl.u32 %v3144, 16
      %v3155 = vrot.slane %v3153, 7
      %v3156 = vshll.u32 %v3144, 16
      %v3158 = vor.u32 %v3155, %v3156
      %v3159 = vrot.slane %v3155, 4
      %v3161 = vshrl.u32 %v3145, 16
      %v3163 = vrot.slane %v3161, 7
      %v3164 = vshll.u32 %v3145, 16
      %v3166 = vor.u32 %v3163, %v3164
      %v3167 = vrot.slane %v3163, 4
      %v3169 = vshrl.u32 %v3146, 16
      %v3171 = vrot.slane %v3169, 7
      %v3172 = vshll.u32 %v3146, 16
      %v3174 = vor.u32 %v3171, %v3172
      %v3175 = vrot.slane %v3171, 4
      %v3177 = vshrl.u32 %v3147, 16
      %v3179 = vrot.slane %v3177, 7
      %v3180 = vshll.u32 %v3147, 16
      %v3182 = vor.u32 %v3179, %v3180
      %v3183 = vrot.slane %v3179, 4
      %v3185 = vshrl.u32 %v3148, 16
      %v3187 = vrot.slane %v3185, 7
      %v3188 = vshll.u32 %v3148, 16
      %v3190 = vor.u32 %v3187, %v3188
      %v3191 = vrot.slane %v3187, 4
      %v3193 = vshrl.u32 %v3149, 16
      %v3195 = vrot.slane %v3193, 7
      %v3196 = vshll.u32 %v3149, 16
      %v3198 = vor.u32 %v3195, %v3196
      %v3199 = vrot.slane %v3195, 4
      %v3201 = vshrl.u32 %v3150, 16
      %v3203 = vrot.slane %v3201, 7
      %v3204 = vshll.u32 %v3150, 16
      %v3206 = vor.u32 %v3203, %v3204
      %v3207 = vrot.slane %v3203, 4
      %v3209 = vshrl.u32 %v3151, 16
      %v3211 = vrot.slane %v3209, 7
      %v3212 = vshll.u32 %v3151, 16
      %v3214 = vor.u32 %v3211, %v3212
      %v3215 = vrot.slane %v3211, 4
      %v3232 = vld [vmem:[%s403] sm:$0xff]
      %v3233 = vsel %vm372, %v3158, %v3232
      %3234 = vst [vmem:[%s403] sm:$0xff] %v3233
      %v3235 = vld [vmem:[%s403 + $0x8] sm:$0x11]
      %v3236 = vsel %vm341, %v3159, %v3235
      %3237 = vst [vmem:[%s403 + $0x8] sm:$0x11] %v3236
      %v3238 = vld [vmem:[%s403 + $0x10] sm:$0xff]
      %v3239 = vsel %vm372, %v3166, %v3238
      %3240 = vst [vmem:[%s403 + $0x10] sm:$0xff] %v3239
      %v3241 = vld [vmem:[%s403 + $0x18] sm:$0x11]
      %v3242 = vsel %vm341, %v3167, %v3241
      %3243 = vst [vmem:[%s403 + $0x18] sm:$0x11] %v3242
      %v3244 = vld [vmem:[%s403 + $0x20] sm:$0xff]
      %v3245 = vsel %vm372, %v3174, %v3244
      %3246 = vst [vmem:[%s403 + $0x20] sm:$0xff] %v3245
      %v3247 = vld [vmem:[%s403 + $0x28] sm:$0x11]
      %v3248 = vsel %vm341, %v3175, %v3247
      %3249 = vst [vmem:[%s403 + $0x28] sm:$0x11] %v3248
      %v3250 = vld [vmem:[%s403 + $0x30] sm:$0xff]
      %v3251 = vsel %vm372, %v3182, %v3250
      %3252 = vst [vmem:[%s403 + $0x30] sm:$0xff] %v3251
      %v3253 = vld [vmem:[%s403 + $0x38] sm:$0x11]
      %v3254 = vsel %vm341, %v3183, %v3253
      %3255 = vst [vmem:[%s403 + $0x38] sm:$0x11] %v3254
      %v3256 = vld [vmem:[%s403 + $0x40] sm:$0xff]
      %v3257 = vsel %vm372, %v3190, %v3256
      %3258 = vst [vmem:[%s403 + $0x40] sm:$0xff] %v3257
      %v3259 = vld [vmem:[%s403 + $0x48] sm:$0x11]
      %v3260 = vsel %vm341, %v3191, %v3259
      %3261 = vst [vmem:[%s403 + $0x48] sm:$0x11] %v3260
      %v3262 = vld [vmem:[%s403 + $0x50] sm:$0xff]
      %v3263 = vsel %vm372, %v3198, %v3262
      %3264 = vst [vmem:[%s403 + $0x50] sm:$0xff] %v3263
      %v3265 = vld [vmem:[%s403 + $0x58] sm:$0x11]
      %v3266 = vsel %vm341, %v3199, %v3265
      %3267 = vst [vmem:[%s403 + $0x58] sm:$0x11] %v3266
      %v3268 = vld [vmem:[%s403 + $0x60] sm:$0xff]
      %v3269 = vsel %vm372, %v3206, %v3268
      %3270 = vst [vmem:[%s403 + $0x60] sm:$0xff] %v3269
      %v3271 = vld [vmem:[%s403 + $0x68] sm:$0x11]
      %v3272 = vsel %vm341, %v3207, %v3271
      %3273 = vst [vmem:[%s403 + $0x68] sm:$0x11] %v3272
      %v3274 = vld [vmem:[%s403 + $0x70] sm:$0xff]
      %v3275 = vsel %vm372, %v3214, %v3274
      %3276 = vst [vmem:[%s403 + $0x70] sm:$0xff] %v3275
      %v3277 = vld [vmem:[%s403 + $0x78] sm:$0x11]
      %v3278 = vsel %vm341, %v3215, %v3277
      %3279 = vst [vmem:[%s403 + $0x78] sm:$0x11] %v3278
      %v3280 = vld [vmem:[#allocation3] sm:$0xff]
      %v3281 = vld [vmem:[#allocation3 + $0x10] sm:$0xff]
      %v3282 = vld [vmem:[#allocation3 + $0x20] sm:$0xff]
      %v3283 = vld [vmem:[#allocation3 + $0x30] sm:$0xff]
      %v3284 = vld [vmem:[#allocation3 + $0x40] sm:$0xff]
      %v3285 = vld [vmem:[#allocation3 + $0x50] sm:$0xff]
      %v3286 = vld [vmem:[#allocation3 + $0x60] sm:$0xff]
      %v3287 = vld [vmem:[#allocation3 + $0x70] sm:$0xff]
      %v3288 = vld [vmem:[%s947] sm:$0xff]
      %v3289 = vld [vmem:[%s947 + $0x8] sm:$0xff]
      %v3290 = vld [vmem:[%s947 + $0x10] sm:$0xff]
      %v3291 = vld [vmem:[%s947 + $0x18] sm:$0xff]
      %v3292 = vld [vmem:[%s947 + $0x20] sm:$0xff]
      %v3293 = vld [vmem:[%s947 + $0x28] sm:$0xff]
      %v3294 = vld [vmem:[%s947 + $0x30] sm:$0xff]
      %v3295 = vld [vmem:[%s947 + $0x38] sm:$0xff]
      %v3296 = vld [vmem:[%s947 + $0x40] sm:$0xff]
      %v3297 = vld [vmem:[%s947 + $0x48] sm:$0xff]
      %v3298 = vld [vmem:[%s947 + $0x50] sm:$0xff]
      %v3299 = vld [vmem:[%s947 + $0x58] sm:$0xff]
      %v3300 = vld [vmem:[%s947 + $0x60] sm:$0xff]
      %v3301 = vld [vmem:[%s947 + $0x68] sm:$0xff]
      %v3302 = vld [vmem:[%s947 + $0x70] sm:$0xff]
      %v3303 = vld [vmem:[%s947 + $0x78] sm:$0xff]
      %v3304 = vld [vmem:[%s947 + $0x80] sm:$0xff]
      %v3305 = vld [vmem:[%s947 + $0x88] sm:$0xff]
      %v3306 = vld [vmem:[%s947 + $0x90] sm:$0xff]
      %v3307 = vld [vmem:[%s947 + $0x98] sm:$0xff]
      %v3308 = vld [vmem:[%s947 + $0xa0] sm:$0xff]
      %v3309 = vld [vmem:[%s947 + $0xa8] sm:$0xff]
      %v3310 = vld [vmem:[%s947 + $0xb0] sm:$0xff]
      %v3311 = vld [vmem:[%s947 + $0xb8] sm:$0xff]
      %v3312 = vld [vmem:[%s947 + $0xc0] sm:$0xff]
      %v3313 = vld [vmem:[%s947 + $0xc8] sm:$0xff]
      %v3314 = vld [vmem:[%s947 + $0xd0] sm:$0xff]
      %v3315 = vld [vmem:[%s947 + $0xd8] sm:$0xff]
      %v3316 = vld [vmem:[%s947 + $0xe0] sm:$0xff]
      %v3317 = vld [vmem:[%s947 + $0xe8] sm:$0xff]
      %v3318 = vld [vmem:[%s947 + $0xf0] sm:$0xff]
      %v3319 = vld [vmem:[%s947 + $0xf8] sm:$0xff]
      %v3320 = vld [vmem:[#allocation3] sm:$0xf]
      %v3321 = vld [vmem:[#allocation3 + $0x8] sm:$0x1]
      %v3322 = vld [vmem:[#allocation3 + $0x10] sm:$0xf]
      %v3323 = vld [vmem:[#allocation3 + $0x18] sm:$0x1]
      %v3324 = vld [vmem:[#allocation3 + $0x20] sm:$0xf]
      %v3325 = vld [vmem:[#allocation3 + $0x28] sm:$0x1]
      %v3326 = vld [vmem:[#allocation3 + $0x30] sm:$0xf]
      %v3327 = vld [vmem:[#allocation3 + $0x38] sm:$0x1]
      %v3328 = vld [vmem:[#allocation3 + $0x40] sm:$0xf]
      %v3329 = vld [vmem:[#allocation3 + $0x48] sm:$0x1]
      %v3330 = vld [vmem:[#allocation3 + $0x50] sm:$0xf]
      %v3331 = vld [vmem:[#allocation3 + $0x58] sm:$0x1]
      %v3332 = vld [vmem:[#allocation3 + $0x60] sm:$0xf]
      %v3333 = vld [vmem:[#allocation3 + $0x68] sm:$0x1]
      %v3334 = vld [vmem:[#allocation3 + $0x70] sm:$0xf]
      %v3335 = vld [vmem:[#allocation3 + $0x78] sm:$0x1]
      %v3337 = vshrl.u32 %v3320, 16
      %v3339 = vrot.slane %v3337, 4
      %v3340 = vshll.u32 %v3320, 16
      %v3342 = vrot.slane %v3340, 5
      %v3343 = vor.u32 %v3339, %v3342
      %v3344 = vrot.slane %v3343, 4
      %v3346 = vshll.u32 %v3321, 16
      %v3348 = vrot.slane %v3346, 5
      %v3349 = vsel %vm998, %v3344, %v3348
      %v3351 = vshrl.u32 %v3322, 16
      %v3353 = vrot.slane %v3351, 4
      %v3354 = vshll.u32 %v3322, 16
      %v3356 = vrot.slane %v3354, 5
      %v3357 = vor.u32 %v3353, %v3356
      %v3358 = vrot.slane %v3357, 4
      %v3360 = vshll.u32 %v3323, 16
      %v3362 = vrot.slane %v3360, 5
      %v3363 = vsel %vm998, %v3358, %v3362
      %v3365 = vshrl.u32 %v3324, 16
      %v3367 = vrot.slane %v3365, 4
      %v3368 = vshll.u32 %v3324, 16
      %v3370 = vrot.slane %v3368, 5
      %v3371 = vor.u32 %v3367, %v3370
      %v3372 = vrot.slane %v3371, 4
      %v3374 = vshll.u32 %v3325, 16
      %v3376 = vrot.slane %v3374, 5
      %v3377 = vsel %vm998, %v3372, %v3376
      %v3379 = vshrl.u32 %v3326, 16
      %v3381 = vrot.slane %v3379, 4
      %v3382 = vshll.u32 %v3326, 16
      %v3384 = vrot.slane %v3382, 5
      %v3385 = vor.u32 %v3381, %v3384
      %v3386 = vrot.slane %v3385, 4
      %v3388 = vshll.u32 %v3327, 16
      %v3390 = vrot.slane %v3388, 5
      %v3391 = vsel %vm998, %v3386, %v3390
      %v3393 = vshrl.u32 %v3328, 16
      %v3395 = vrot.slane %v3393, 4
      %v3396 = vshll.u32 %v3328, 16
      %v3398 = vrot.slane %v3396, 5
      %v3399 = vor.u32 %v3395, %v3398
      %v3400 = vrot.slane %v3399, 4
      %v3402 = vshll.u32 %v3329, 16
      %v3404 = vrot.slane %v3402, 5
      %v3405 = vsel %vm998, %v3400, %v3404
      %v3407 = vshrl.u32 %v3330, 16
      %v3409 = vrot.slane %v3407, 4
      %v3410 = vshll.u32 %v3330, 16
      %v3412 = vrot.slane %v3410, 5
      %v3413 = vor.u32 %v3409, %v3412
      %v3414 = vrot.slane %v3413, 4
      %v3416 = vshll.u32 %v3331, 16
      %v3418 = vrot.slane %v3416, 5
      %v3419 = vsel %vm998, %v3414, %v3418
      %v3421 = vshrl.u32 %v3332, 16
      %v3423 = vrot.slane %v3421, 4
      %v3424 = vshll.u32 %v3332, 16
      %v3426 = vrot.slane %v3424, 5
      %v3427 = vor.u32 %v3423, %v3426
      %v3428 = vrot.slane %v3427, 4
      %v3430 = vshll.u32 %v3333, 16
      %v3432 = vrot.slane %v3430, 5
      %v3433 = vsel %vm998, %v3428, %v3432
      %v3435 = vshrl.u32 %v3334, 16
      %v3437 = vrot.slane %v3435, 4
      %v3438 = vshll.u32 %v3334, 16
      %v3440 = vrot.slane %v3438, 5
      %v3441 = vor.u32 %v3437, %v3440
      %v3442 = vrot.slane %v3441, 4
      %v3444 = vshll.u32 %v3335, 16
      %v3446 = vrot.slane %v3444, 5
      %v3447 = vsel %vm998, %v3442, %v3446
      %v3448 = vld [vmem:[%s1111] sm:$0xff]
      %v3449 = vld [vmem:[%s1111 + $0x8] sm:$0xff]
      %v3450 = vld [vmem:[%s1111 + $0x10] sm:$0xff]
      %v3451 = vld [vmem:[%s1111 + $0x18] sm:$0xff]
      %v3452 = vld [vmem:[%s1111 + $0x20] sm:$0xff]
      %v3453 = vld [vmem:[%s1111 + $0x28] sm:$0xff]
      %v3454 = vld [vmem:[%s1111 + $0x30] sm:$0xff]
      %v3455 = vld [vmem:[%s1111 + $0x38] sm:$0xff]
      %v3456 = vld [vmem:[%s1111 + $0x40] sm:$0xff]
      %v3457 = vld [vmem:[%s1111 + $0x48] sm:$0xff]
      %v3458 = vld [vmem:[%s1111 + $0x50] sm:$0xff]
      %v3459 = vld [vmem:[%s1111 + $0x58] sm:$0xff]
      %v3460 = vld [vmem:[%s1111 + $0x60] sm:$0xff]
      %v3461 = vld [vmem:[%s1111 + $0x68] sm:$0xff]
      %v3462 = vld [vmem:[%s1111 + $0x70] sm:$0xff]
      %v3463 = vld [vmem:[%s1111 + $0x78] sm:$0xff]
      %v3464 = vunpack.c.l.b16 %v3349
      %v3465 = vunpack.c.l.b16 %v3363
      %v3466 = vunpack.c.l.b16 %v3377
      %v3467 = vunpack.c.l.b16 %v3391
      %v3468 = vunpack.c.l.b16 %v3405
      %v3469 = vunpack.c.l.b16 %v3419
      %v3470 = vunpack.c.l.b16 %v3433
      %v3471 = vunpack.c.l.b16 %v3447
      %v3472 = vpack.c.b16 %v3465, %v3464
      %v3473 = vpack.c.b16 %v3467, %v3466
      %v3474 = vpack.c.b16 %v3469, %v3468
      %v3475 = vpack.c.b16 %v3471, %v3470
      %v3496 = vunpack.c.l.b16 %v3448
      %v3497 = vunpack.c.h.b16 %v3448
      %v3498 = vunpack.c.l.b16 %v3449
      %v3499 = vunpack.c.h.b16 %v3449
      %v3500 = vunpack.c.l.b16 %v3450
      %v3501 = vunpack.c.h.b16 %v3450
      %v3502 = vunpack.c.l.b16 %v3451
      %v3503 = vunpack.c.h.b16 %v3451
      %v3504 = vunpack.c.l.b16 %v3452
      %v3505 = vunpack.c.h.b16 %v3452
      %v3506 = vunpack.c.l.b16 %v3453
      %v3507 = vunpack.c.h.b16 %v3453
      %v3508 = vunpack.c.l.b16 %v3454
      %v3509 = vunpack.c.h.b16 %v3454
      %v3510 = vunpack.c.l.b16 %v3455
      %v3511 = vunpack.c.h.b16 %v3455
      %v3512 = vunpack.c.l.b16 %v3456
      %v3513 = vunpack.c.h.b16 %v3456
      %v3514 = vunpack.c.l.b16 %v3457
      %v3515 = vunpack.c.h.b16 %v3457
      %v3516 = vunpack.c.l.b16 %v3458
      %v3517 = vunpack.c.h.b16 %v3458
      %v3518 = vunpack.c.l.b16 %v3459
      %v3519 = vunpack.c.h.b16 %v3459
      %v3520 = vunpack.c.l.b16 %v3460
      %v3521 = vunpack.c.h.b16 %v3460
      %v3522 = vunpack.c.l.b16 %v3461
      %v3523 = vunpack.c.h.b16 %v3461
      %v3524 = vunpack.c.l.b16 %v3462
      %v3525 = vunpack.c.h.b16 %v3462
      %v3526 = vunpack.c.l.b16 %v3463
      %v3527 = vunpack.c.h.b16 %v3463
      %v3528 = vpack.c.b16 %v3498, %v3496
      %v3529 = vpack.c.b16 %v3499, %v3497
      %v3530 = vpack.c.b16 %v3502, %v3500
      %v3531 = vpack.c.b16 %v3503, %v3501
      %v3532 = vpack.c.b16 %v3506, %v3504
      %v3533 = vpack.c.b16 %v3507, %v3505
      %v3534 = vpack.c.b16 %v3510, %v3508
      %v3535 = vpack.c.b16 %v3511, %v3509
      %v3536 = vpack.c.b16 %v3514, %v3512
      %v3537 = vpack.c.b16 %v3515, %v3513
      %v3538 = vpack.c.b16 %v3518, %v3516
      %v3539 = vpack.c.b16 %v3519, %v3517
      %v3540 = vpack.c.b16 %v3522, %v3520
      %v3541 = vpack.c.b16 %v3523, %v3521
      %v3542 = vpack.c.b16 %v3526, %v3524
      %v3543 = vpack.c.b16 %v3527, %v3525
      %3560 = vmatprep.subr.bf16.mxu0 %v3543
      %3561 = vmatpush1.bf16.msra.mxu0 %v3542
      %3562 = vmatprep.subr.bf16.mxu0 %v3541
      %3563 = vmatpush1.bf16.msra.mxu0 %v3540
      %3564 = vmatprep.subr.bf16.mxu0 %v3539
      %3565 = vmatpush1.bf16.msra.mxu0 %v3538
      %3566 = vmatprep.subr.bf16.mxu0 %v3537
      %3567 = vmatpush1.bf16.msra.mxu0 %v3536
      %3568 = vmatprep.subr.bf16.mxu0 %v3535
      %3569 = vmatpush1.bf16.msra.mxu0 %v3534
      %3570 = vmatprep.subr.bf16.mxu0 %v3533
      %3571 = vmatpush1.bf16.msra.mxu0 %v3532
      %3572 = vmatprep.subr.bf16.mxu0 %v3531
      %3573 = vmatpush1.bf16.msra.mxu0 %v3530
      %3574 = vmatprep.subr.bf16.mxu0 %v3529
      %3575 = vmatpush1.bf16.msra.mxu0 %v3528
      %3576 = vmatprep.subr.bf16.mxu0 0
      %3577 = vmatpush2.bf16.msra.mxu0 0
      %3578 = vmatprep.subr.bf16.mxu0 0
      %3579 = vmatpush2.bf16.msra.mxu0 0
      %3580 = vmatprep.subr.bf16.mxu0 0
      %3581 = vmatpush2.bf16.msra.mxu0 0
      %3582 = vmatprep.subr.bf16.mxu0 0
      %3583 = vmatpush2.bf16.msra.mxu0 0
      %3584 = vmatprep.subr.bf16.mxu0 0
      %3585 = vmatpush2.bf16.msra.mxu0 0
      %3586 = vmatprep.subr.bf16.mxu0 0
      %3587 = vmatpush2.bf16.msra.mxu0 0
      %3588 = vmatprep.subr.bf16.mxu0 0
      %3589 = vmatpush2.bf16.msra.mxu0 0
      %3590 = vmatprep.subr.bf16.mxu0 0
      %3591 = vmatpush2.bf16.msra.mxu0 0
      %3592 = vmatprep.mubr.bf16.mxu0 0
      %3593 = vmatmul.mubr.bf16.gmra.mxu0 %v3472
      %v3594 = vpop.f32.mrf.mxu0
      %v3595 = vadd.f32 0.0, %v3594
      %v3596 = vpop.f32.mrf.mxu0
      %v3597 = vadd.f32 0.0, %v3596
      %v3598 = vpop.f32.mrf.mxu0
      %v3599 = vadd.f32 0.0, %v3598
      %v3600 = vpop.f32.mrf.mxu0
      %v3601 = vadd.f32 0.0, %v3600
      %3602 = vmatprep.mubr.bf16.mxu0 0
      %3603 = vmatmul.mubr.bf16.gmra.mxu0 %v3473
      %v3604 = vpop.f32.mrf.mxu0
      %v3605 = vadd.f32 0.0, %v3604
      %v3606 = vpop.f32.mrf.mxu0
      %v3607 = vadd.f32 0.0, %v3606
      %v3608 = vpop.f32.mrf.mxu0
      %v3609 = vadd.f32 0.0, %v3608
      %v3610 = vpop.f32.mrf.mxu0
      %v3611 = vadd.f32 0.0, %v3610
      %3612 = vmatprep.mubr.bf16.mxu0 0
      %3613 = vmatmul.mubr.bf16.gmra.mxu0 %v3474
      %v3614 = vpop.f32.mrf.mxu0
      %v3615 = vadd.f32 0.0, %v3614
      %v3616 = vpop.f32.mrf.mxu0
      %v3617 = vadd.f32 0.0, %v3616
      %v3618 = vpop.f32.mrf.mxu0
      %v3619 = vadd.f32 0.0, %v3618
      %v3620 = vpop.f32.mrf.mxu0
      %v3621 = vadd.f32 0.0, %v3620
      %3622 = vmatprep.mubr.bf16.mxu0 0
      %3623 = vmatmul.mubr.bf16.gmra.mxu0 %v3475
      %v3624 = vpop.f32.mrf.mxu0
      %v3625 = vadd.f32 0.0, %v3624
      %v3626 = vpop.f32.mrf.mxu0
      %v3627 = vadd.f32 0.0, %v3626
      %v3628 = vpop.f32.mrf.mxu0
      %v3629 = vadd.f32 0.0, %v3628
      %v3630 = vpop.f32.mrf.mxu0
      %v3631 = vadd.f32 0.0, %v3630
      %3632 = vdwg.mxu0
      %v3641 = vunpack.c.l.b16 %v3280
      %v3642 = vunpack.c.h.b16 %v3280
      %v3643 = vunpack.c.l.b16 %v3281
      %v3644 = vunpack.c.h.b16 %v3281
      %v3645 = vunpack.c.l.b16 %v3282
      %v3646 = vunpack.c.h.b16 %v3282
      %v3647 = vunpack.c.l.b16 %v3283
      %v3648 = vunpack.c.h.b16 %v3283
      %v3649 = vunpack.c.l.b16 %v3284
      %v3650 = vunpack.c.h.b16 %v3284
      %v3651 = vunpack.c.l.b16 %v3285
      %v3652 = vunpack.c.h.b16 %v3285
      %v3653 = vunpack.c.l.b16 %v3286
      %v3654 = vunpack.c.h.b16 %v3286
      %v3655 = vunpack.c.l.b16 %v3287
      %v3656 = vunpack.c.h.b16 %v3287
      %v3657 = vpack.c.b16 %v3643, %v3641
      %v3658 = vpack.c.b16 %v3644, %v3642
      %v3659 = vpack.c.b16 %v3647, %v3645
      %v3660 = vpack.c.b16 %v3648, %v3646
      %v3661 = vpack.c.b16 %v3651, %v3649
      %v3662 = vpack.c.b16 %v3652, %v3650
      %v3663 = vpack.c.b16 %v3655, %v3653
      %v3664 = vpack.c.b16 %v3656, %v3654
      %v3705 = vunpack.c.l.b16 %v3288
      %v3706 = vunpack.c.h.b16 %v3288
      %v3707 = vunpack.c.l.b16 %v3289
      %v3708 = vunpack.c.h.b16 %v3289
      %v3709 = vunpack.c.l.b16 %v3290
      %v3710 = vunpack.c.h.b16 %v3290
      %v3711 = vunpack.c.l.b16 %v3291
      %v3712 = vunpack.c.h.b16 %v3291
      %v3713 = vunpack.c.l.b16 %v3292
      %v3714 = vunpack.c.h.b16 %v3292
      %v3715 = vunpack.c.l.b16 %v3293
      %v3716 = vunpack.c.h.b16 %v3293
      %v3717 = vunpack.c.l.b16 %v3294
      %v3718 = vunpack.c.h.b16 %v3294
      %v3719 = vunpack.c.l.b16 %v3295
      %v3720 = vunpack.c.h.b16 %v3295
      %v3721 = vunpack.c.l.b16 %v3296
      %v3722 = vunpack.c.h.b16 %v3296
      %v3723 = vunpack.c.l.b16 %v3297
      %v3724 = vunpack.c.h.b16 %v3297
      %v3725 = vunpack.c.l.b16 %v3298
      %v3726 = vunpack.c.h.b16 %v3298
      %v3727 = vunpack.c.l.b16 %v3299
      %v3728 = vunpack.c.h.b16 %v3299
      %v3729 = vunpack.c.l.b16 %v3300
      %v3730 = vunpack.c.h.b16 %v3300
      %v3731 = vunpack.c.l.b16 %v3301
      %v3732 = vunpack.c.h.b16 %v3301
      %v3733 = vunpack.c.l.b16 %v3302
      %v3734 = vunpack.c.h.b16 %v3302
      %v3735 = vunpack.c.l.b16 %v3303
      %v3736 = vunpack.c.h.b16 %v3303
      %v3737 = vunpack.c.l.b16 %v3304
      %v3738 = vunpack.c.h.b16 %v3304
      %v3739 = vunpack.c.l.b16 %v3305
      %v3740 = vunpack.c.h.b16 %v3305
      %v3741 = vunpack.c.l.b16 %v3306
      %v3742 = vunpack.c.h.b16 %v3306
      %v3743 = vunpack.c.l.b16 %v3307
      %v3744 = vunpack.c.h.b16 %v3307
      %v3745 = vunpack.c.l.b16 %v3308
      %v3746 = vunpack.c.h.b16 %v3308
      %v3747 = vunpack.c.l.b16 %v3309
      %v3748 = vunpack.c.h.b16 %v3309
      %v3749 = vunpack.c.l.b16 %v3310
      %v3750 = vunpack.c.h.b16 %v3310
      %v3751 = vunpack.c.l.b16 %v3311
      %v3752 = vunpack.c.h.b16 %v3311
      %v3753 = vunpack.c.l.b16 %v3312
      %v3754 = vunpack.c.h.b16 %v3312
      %v3755 = vunpack.c.l.b16 %v3313
      %v3756 = vunpack.c.h.b16 %v3313
      %v3757 = vunpack.c.l.b16 %v3314
      %v3758 = vunpack.c.h.b16 %v3314
      %v3759 = vunpack.c.l.b16 %v3315
      %v3760 = vunpack.c.h.b16 %v3315
      %v3761 = vunpack.c.l.b16 %v3316
      %v3762 = vunpack.c.h.b16 %v3316
      %v3763 = vunpack.c.l.b16 %v3317
      %v3764 = vunpack.c.h.b16 %v3317
      %v3765 = vunpack.c.l.b16 %v3318
      %v3766 = vunpack.c.h.b16 %v3318
      %v3767 = vunpack.c.l.b16 %v3319
      %v3768 = vunpack.c.h.b16 %v3319
      %v3769 = vpack.c.b16 %v3707, %v3705
      %v3770 = vpack.c.b16 %v3708, %v3706
      %v3771 = vpack.c.b16 %v3711, %v3709
      %v3772 = vpack.c.b16 %v3712, %v3710
      %v3773 = vpack.c.b16 %v3715, %v3713
      %v3774 = vpack.c.b16 %v3716, %v3714
      %v3775 = vpack.c.b16 %v3719, %v3717
      %v3776 = vpack.c.b16 %v3720, %v3718
      %v3777 = vpack.c.b16 %v3723, %v3721
      %v3778 = vpack.c.b16 %v3724, %v3722
      %v3779 = vpack.c.b16 %v3727, %v3725
      %v3780 = vpack.c.b16 %v3728, %v3726
      %v3781 = vpack.c.b16 %v3731, %v3729
      %v3782 = vpack.c.b16 %v3732, %v3730
      %v3783 = vpack.c.b16 %v3735, %v3733
      %v3784 = vpack.c.b16 %v3736, %v3734
      %v3785 = vpack.c.b16 %v3739, %v3737
      %v3786 = vpack.c.b16 %v3740, %v3738
      %v3787 = vpack.c.b16 %v3743, %v3741
      %v3788 = vpack.c.b16 %v3744, %v3742
      %v3789 = vpack.c.b16 %v3747, %v3745
      %v3790 = vpack.c.b16 %v3748, %v3746
      %v3791 = vpack.c.b16 %v3751, %v3749
      %v3792 = vpack.c.b16 %v3752, %v3750
      %v3793 = vpack.c.b16 %v3755, %v3753
      %v3794 = vpack.c.b16 %v3756, %v3754
      %v3795 = vpack.c.b16 %v3759, %v3757
      %v3796 = vpack.c.b16 %v3760, %v3758
      %v3797 = vpack.c.b16 %v3763, %v3761
      %v3798 = vpack.c.b16 %v3764, %v3762
      %v3799 = vpack.c.b16 %v3767, %v3765
      %v3800 = vpack.c.b16 %v3768, %v3766
      %3833 = vmatprep.subr.bf16.mxu0 %v3784
      %3834 = vmatpush1.bf16.msra.mxu0 %v3783
      %3835 = vmatprep.subr.bf16.mxu0 %v3782
      %3836 = vmatpush1.bf16.msra.mxu0 %v3781
      %3837 = vmatprep.subr.bf16.mxu0 %v3780
      %3838 = vmatpush1.bf16.msra.mxu0 %v3779
      %3839 = vmatprep.subr.bf16.mxu0 %v3778
      %3840 = vmatpush1.bf16.msra.mxu0 %v3777
      %3841 = vmatprep.subr.bf16.mxu0 %v3776
      %3842 = vmatpush1.bf16.msra.mxu0 %v3775
      %3843 = vmatprep.subr.bf16.mxu0 %v3774
      %3844 = vmatpush1.bf16.msra.mxu0 %v3773
      %3845 = vmatprep.subr.bf16.mxu0 %v3772
      %3846 = vmatpush1.bf16.msra.mxu0 %v3771
      %3847 = vmatprep.subr.bf16.mxu0 %v3770
      %3848 = vmatpush1.bf16.msra.mxu0 %v3769
      %3849 = vmatprep.subr.bf16.mxu0 %v3800
      %3850 = vmatpush2.bf16.msra.mxu0 %v3799
      %3851 = vmatprep.subr.bf16.mxu0 %v3798
      %3852 = vmatpush2.bf16.msra.mxu0 %v3797
      %3853 = vmatprep.subr.bf16.mxu0 %v3796
      %3854 = vmatpush2.bf16.msra.mxu0 %v3795
      %3855 = vmatprep.subr.bf16.mxu0 %v3794
      %3856 = vmatpush2.bf16.msra.mxu0 %v3793
      %3857 = vmatprep.subr.bf16.mxu0 %v3792
      %3858 = vmatpush2.bf16.msra.mxu0 %v3791
      %3859 = vmatprep.subr.bf16.mxu0 %v3790
      %3860 = vmatpush2.bf16.msra.mxu0 %v3789
      %3861 = vmatprep.subr.bf16.mxu0 %v3788
      %3862 = vmatpush2.bf16.msra.mxu0 %v3787
      %3863 = vmatprep.subr.bf16.mxu0 %v3786
      %3864 = vmatpush2.bf16.msra.mxu0 %v3785
      %3865 = vmatprep.mubr.bf16.mxu0 %v3658
      %3866 = vmatmul.mubr.bf16.gmra.mxu0 %v3657
      %v3867 = vpop.f32.mrf.mxu0
      %v3868 = vadd.f32 %v3595, %v3867
      %v3869 = vpop.f32.mrf.mxu0
      %v3870 = vadd.f32 %v3597, %v3869
      %v3871 = vpop.f32.mrf.mxu0
      %v3872 = vadd.f32 %v3599, %v3871
      %v3873 = vpop.f32.mrf.mxu0
      %v3874 = vadd.f32 %v3601, %v3873
      %3875 = vmatprep.mubr.bf16.mxu0 %v3660
      %3876 = vmatmul.mubr.bf16.gmra.mxu0 %v3659
      %v3877 = vpop.f32.mrf.mxu0
      %v3878 = vadd.f32 %v3605, %v3877
      %v3879 = vpop.f32.mrf.mxu0
      %v3880 = vadd.f32 %v3607, %v3879
      %v3881 = vpop.f32.mrf.mxu0
      %v3882 = vadd.f32 %v3609, %v3881
      %v3883 = vpop.f32.mrf.mxu0
      %v3884 = vadd.f32 %v3611, %v3883
      %3885 = vmatprep.mubr.bf16.mxu0 %v3662
      %3886 = vmatmul.mubr.bf16.gmra.mxu0 %v3661
      %v3887 = vpop.f32.mrf.mxu0
      %v3888 = vadd.f32 %v3615, %v3887
      %v3889 = vpop.f32.mrf.mxu0
      %v3890 = vadd.f32 %v3617, %v3889
      %v3891 = vpop.f32.mrf.mxu0
      %v3892 = vadd.f32 %v3619, %v3891
      %v3893 = vpop.f32.mrf.mxu0
      %v3894 = vadd.f32 %v3621, %v3893
      %3895 = vmatprep.mubr.bf16.mxu0 %v3664
      %3896 = vmatmul.mubr.bf16.gmra.mxu0 %v3663
      %v3897 = vpop.f32.mrf.mxu0
      %v3898 = vadd.f32 %v3625, %v3897
      %v3899 = vpop.f32.mrf.mxu0
      %v3900 = vadd.f32 %v3627, %v3899
      %v3901 = vpop.f32.mrf.mxu0
      %v3902 = vadd.f32 %v3629, %v3901
      %v3903 = vpop.f32.mrf.mxu0
      %v3904 = vadd.f32 %v3631, %v3903
      %3905 = vdwg.mxu0
      %v3906 = vld [vmem:[%s5] sm:$0x3]
      %v3908 = vlaneseq
      %v3909 = vshrl.u32 %v3908, 7
      %v3910 = vsub.s32 0, %v3909
      %v3911 = vrot.slane %v3906, %v3910
      %v3912 = vlaneseq
      %v3913 = vshrl.u32 %v3912, 7
      %v3914 = vsub.s32 1, %v3913
      %v3915 = vrot.slane %v3906, %v3914
      %v3918 = vadd.f32 %v3868, %v3911
      %v3919 = vadd.f32 %v3870, %v3915
      %v3920 = vadd.f32 %v3872, %v3911
      %v3921 = vadd.f32 %v3874, %v3915
      %v3922 = vadd.f32 %v3878, %v3911
      %v3923 = vadd.f32 %v3880, %v3915
      %v3924 = vadd.f32 %v3882, %v3911
      %v3925 = vadd.f32 %v3884, %v3915
      %v3926 = vadd.f32 %v3888, %v3911
      %v3927 = vadd.f32 %v3890, %v3915
      %v3928 = vadd.f32 %v3892, %v3911
      %v3929 = vadd.f32 %v3894, %v3915
      %v3930 = vadd.f32 %v3898, %v3911
      %v3931 = vadd.f32 %v3900, %v3915
      %v3932 = vadd.f32 %v3902, %v3911
      %v3933 = vadd.f32 %v3904, %v3915
      %v3934 = vmax.f32 %v3918, 0.0
      %v3935 = vmax.f32 %v3919, 0.0
      %v3936 = vmax.f32 %v3920, 0.0
      %v3937 = vmax.f32 %v3921, 0.0
      %v3938 = vmax.f32 %v3922, 0.0
      %v3939 = vmax.f32 %v3923, 0.0
      %v3940 = vmax.f32 %v3924, 0.0
      %v3941 = vmax.f32 %v3925, 0.0
      %v3942 = vmax.f32 %v3926, 0.0
      %v3943 = vmax.f32 %v3927, 0.0
      %v3944 = vmax.f32 %v3928, 0.0
      %v3945 = vmax.f32 %v3929, 0.0
      %v3946 = vmax.f32 %v3930, 0.0
      %v3947 = vmax.f32 %v3931, 0.0
      %v3948 = vmax.f32 %v3932, 0.0
      %v3949 = vmax.f32 %v3933, 0.0
      %v3950 = vpack.c.bf16 %v3936, %v3934
      %v3951 = vpack.c.bf16 %v3937, %v3935
      %v3952 = vpack.c.bf16 %v3940, %v3938
      %v3953 = vpack.c.bf16 %v3941, %v3939
      %v3954 = vpack.c.bf16 %v3944, %v3942
      %v3955 = vpack.c.bf16 %v3945, %v3943
      %v3956 = vpack.c.bf16 %v3948, %v3946
      %v3957 = vpack.c.bf16 %v3949, %v3947
      %v3966 = vunpack.c.l.b16 %v3950
      %v3967 = vunpack.c.l.b16 %v3951
      %v3968 = vunpack.c.h.b16 %v3950
      %v3969 = vunpack.c.h.b16 %v3951
      %v3970 = vunpack.c.l.b16 %v3952
      %v3971 = vunpack.c.l.b16 %v3953
      %v3972 = vunpack.c.h.b16 %v3952
      %v3973 = vunpack.c.h.b16 %v3953
      %v3974 = vunpack.c.l.b16 %v3954
      %v3975 = vunpack.c.l.b16 %v3955
      %v3976 = vunpack.c.h.b16 %v3954
      %v3977 = vunpack.c.h.b16 %v3955
      %v3978 = vunpack.c.l.b16 %v3956
      %v3979 = vunpack.c.l.b16 %v3957
      %v3980 = vunpack.c.h.b16 %v3956
      %v3981 = vunpack.c.h.b16 %v3957
      %v3982 = vpack.c.b16 %v3967, %v3966
      %v3983 = vpack.c.b16 %v3969, %v3968
      %v3984 = vpack.c.b16 %v3971, %v3970
      %v3985 = vpack.c.b16 %v3973, %v3972
      %v3986 = vpack.c.b16 %v3975, %v3974
      %v3987 = vpack.c.b16 %v3977, %v3976
      %v3988 = vpack.c.b16 %v3979, %v3978
      %v3989 = vpack.c.b16 %v3981, %v3980
      %v3991 = vshrl.u32 %v3982, 16
      %v3993 = vrot.slane %v3991, 7
      %v3994 = vshll.u32 %v3982, 16
      %v3996 = vor.u32 %v3993, %v3994
      %v3997 = vrot.slane %v3993, 4
      %v3999 = vshrl.u32 %v3983, 16
      %v4001 = vrot.slane %v3999, 7
      %v4002 = vshll.u32 %v3983, 16
      %v4004 = vor.u32 %v4001, %v4002
      %v4005 = vrot.slane %v4001, 4
      %v4007 = vshrl.u32 %v3984, 16
      %v4009 = vrot.slane %v4007, 7
      %v4010 = vshll.u32 %v3984, 16
      %v4012 = vor.u32 %v4009, %v4010
      %v4013 = vrot.slane %v4009, 4
      %v4015 = vshrl.u32 %v3985, 16
      %v4017 = vrot.slane %v4015, 7
      %v4018 = vshll.u32 %v3985, 16
      %v4020 = vor.u32 %v4017, %v4018
      %v4021 = vrot.slane %v4017, 4
      %v4023 = vshrl.u32 %v3986, 16
      %v4025 = vrot.slane %v4023, 7
      %v4026 = vshll.u32 %v3986, 16
      %v4028 = vor.u32 %v4025, %v4026
      %v4029 = vrot.slane %v4025, 4
      %v4031 = vshrl.u32 %v3987, 16
      %v4033 = vrot.slane %v4031, 7
      %v4034 = vshll.u32 %v3987, 16
      %v4036 = vor.u32 %v4033, %v4034
      %v4037 = vrot.slane %v4033, 4
      %v4039 = vshrl.u32 %v3988, 16
      %v4041 = vrot.slane %v4039, 7
      %v4042 = vshll.u32 %v3988, 16
      %v4044 = vor.u32 %v4041, %v4042
      %v4045 = vrot.slane %v4041, 4
      %v4047 = vshrl.u32 %v3989, 16
      %v4049 = vrot.slane %v4047, 7
      %v4050 = vshll.u32 %v3989, 16
      %v4052 = vor.u32 %v4049, %v4050
      %v4053 = vrot.slane %v4049, 4
      %v4070 = vld [vmem:[%s458] sm:$0xff]
      %v4071 = vsel %vm372, %v3996, %v4070
      %4072 = vst [vmem:[%s458] sm:$0xff] %v4071
      %v4073 = vld [vmem:[%s458 + $0x8] sm:$0x11]
      %v4074 = vsel %vm341, %v3997, %v4073
      %4075 = vst [vmem:[%s458 + $0x8] sm:$0x11] %v4074
      %v4076 = vld [vmem:[%s458 + $0x10] sm:$0xff]
      %v4077 = vsel %vm372, %v4004, %v4076
      %4078 = vst [vmem:[%s458 + $0x10] sm:$0xff] %v4077
      %v4079 = vld [vmem:[%s458 + $0x18] sm:$0x11]
      %v4080 = vsel %vm341, %v4005, %v4079
      %4081 = vst [vmem:[%s458 + $0x18] sm:$0x11] %v4080
      %v4082 = vld [vmem:[%s458 + $0x20] sm:$0xff]
      %v4083 = vsel %vm372, %v4012, %v4082
      %4084 = vst [vmem:[%s458 + $0x20] sm:$0xff] %v4083
      %v4085 = vld [vmem:[%s458 + $0x28] sm:$0x11]
      %v4086 = vsel %vm341, %v4013, %v4085
      %4087 = vst [vmem:[%s458 + $0x28] sm:$0x11] %v4086
      %v4088 = vld [vmem:[%s458 + $0x30] sm:$0xff]
      %v4089 = vsel %vm372, %v4020, %v4088
      %4090 = vst [vmem:[%s458 + $0x30] sm:$0xff] %v4089
      %v4091 = vld [vmem:[%s458 + $0x38] sm:$0x11]
      %v4092 = vsel %vm341, %v4021, %v4091
      %4093 = vst [vmem:[%s458 + $0x38] sm:$0x11] %v4092
      %v4094 = vld [vmem:[%s458 + $0x40] sm:$0xff]
      %v4095 = vsel %vm372, %v4028, %v4094
      %4096 = vst [vmem:[%s458 + $0x40] sm:$0xff] %v4095
      %v4097 = vld [vmem:[%s458 + $0x48] sm:$0x11]
      %v4098 = vsel %vm341, %v4029, %v4097
      %4099 = vst [vmem:[%s458 + $0x48] sm:$0x11] %v4098
      %v4100 = vld [vmem:[%s458 + $0x50] sm:$0xff]
      %v4101 = vsel %vm372, %v4036, %v4100
      %4102 = vst [vmem:[%s458 + $0x50] sm:$0xff] %v4101
      %v4103 = vld [vmem:[%s458 + $0x58] sm:$0x11]
      %v4104 = vsel %vm341, %v4037, %v4103
      %4105 = vst [vmem:[%s458 + $0x58] sm:$0x11] %v4104
      %v4106 = vld [vmem:[%s458 + $0x60] sm:$0xff]
      %v4107 = vsel %vm372, %v4044, %v4106
      %4108 = vst [vmem:[%s458 + $0x60] sm:$0xff] %v4107
      %v4109 = vld [vmem:[%s458 + $0x68] sm:$0x11]
      %v4110 = vsel %vm341, %v4045, %v4109
      %4111 = vst [vmem:[%s458 + $0x68] sm:$0x11] %v4110
      %v4112 = vld [vmem:[%s458 + $0x70] sm:$0xff]
      %v4113 = vsel %vm372, %v4052, %v4112
      %4114 = vst [vmem:[%s458 + $0x70] sm:$0xff] %v4113
      %v4115 = vld [vmem:[%s458 + $0x78] sm:$0x11]
      %v4116 = vsel %vm341, %v4053, %v4115
      %4117 = vst [vmem:[%s458 + $0x78] sm:$0x11] %v4116
      %v4118 = vld [vmem:[#allocation3] sm:$0xff]
      %v4119 = vld [vmem:[#allocation3 + $0x10] sm:$0xff]
      %v4120 = vld [vmem:[#allocation3 + $0x20] sm:$0xff]
      %v4121 = vld [vmem:[#allocation3 + $0x30] sm:$0xff]
      %v4122 = vld [vmem:[#allocation3 + $0x40] sm:$0xff]
      %v4123 = vld [vmem:[#allocation3 + $0x50] sm:$0xff]
      %v4124 = vld [vmem:[#allocation3 + $0x60] sm:$0xff]
      %v4125 = vld [vmem:[#allocation3 + $0x70] sm:$0xff]
      %v4126 = vld [vmem:[%s1790] sm:$0xff]
      %v4127 = vld [vmem:[%s1790 + $0x8] sm:$0xff]
      %v4128 = vld [vmem:[%s1790 + $0x10] sm:$0xff]
      %v4129 = vld [vmem:[%s1790 + $0x18] sm:$0xff]
      %v4130 = vld [vmem:[%s1790 + $0x20] sm:$0xff]
      %v4131 = vld [vmem:[%s1790 + $0x28] sm:$0xff]
      %v4132 = vld [vmem:[%s1790 + $0x30] sm:$0xff]
      %v4133 = vld [vmem:[%s1790 + $0x38] sm:$0xff]
      %v4134 = vld [vmem:[%s1790 + $0x40] sm:$0xff]
      %v4135 = vld [vmem:[%s1790 + $0x48] sm:$0xff]
      %v4136 = vld [vmem:[%s1790 + $0x50] sm:$0xff]
      %v4137 = vld [vmem:[%s1790 + $0x58] sm:$0xff]
      %v4138 = vld [vmem:[%s1790 + $0x60] sm:$0xff]
      %v4139 = vld [vmem:[%s1790 + $0x68] sm:$0xff]
      %v4140 = vld [vmem:[%s1790 + $0x70] sm:$0xff]
      %v4141 = vld [vmem:[%s1790 + $0x78] sm:$0xff]
      %v4142 = vld [vmem:[%s1790 + $0x80] sm:$0xff]
      %v4143 = vld [vmem:[%s1790 + $0x88] sm:$0xff]
      %v4144 = vld [vmem:[%s1790 + $0x90] sm:$0xff]
      %v4145 = vld [vmem:[%s1790 + $0x98] sm:$0xff]
      %v4146 = vld [vmem:[%s1790 + $0xa0] sm:$0xff]
      %v4147 = vld [vmem:[%s1790 + $0xa8] sm:$0xff]
      %v4148 = vld [vmem:[%s1790 + $0xb0] sm:$0xff]
      %v4149 = vld [vmem:[%s1790 + $0xb8] sm:$0xff]
      %v4150 = vld [vmem:[%s1790 + $0xc0] sm:$0xff]
      %v4151 = vld [vmem:[%s1790 + $0xc8] sm:$0xff]
      %v4152 = vld [vmem:[%s1790 + $0xd0] sm:$0xff]
      %v4153 = vld [vmem:[%s1790 + $0xd8] sm:$0xff]
      %v4154 = vld [vmem:[%s1790 + $0xe0] sm:$0xff]
      %v4155 = vld [vmem:[%s1790 + $0xe8] sm:$0xff]
      %v4156 = vld [vmem:[%s1790 + $0xf0] sm:$0xff]
      %v4157 = vld [vmem:[%s1790 + $0xf8] sm:$0xff]
      %v4158 = vld [vmem:[#allocation3] sm:$0xf]
      %v4159 = vld [vmem:[#allocation3 + $0x8] sm:$0x1]
      %v4160 = vld [vmem:[#allocation3 + $0x10] sm:$0xf]
      %v4161 = vld [vmem:[#allocation3 + $0x18] sm:$0x1]
      %v4162 = vld [vmem:[#allocation3 + $0x20] sm:$0xf]
      %v4163 = vld [vmem:[#allocation3 + $0x28] sm:$0x1]
      %v4164 = vld [vmem:[#allocation3 + $0x30] sm:$0xf]
      %v4165 = vld [vmem:[#allocation3 + $0x38] sm:$0x1]
      %v4166 = vld [vmem:[#allocation3 + $0x40] sm:$0xf]
      %v4167 = vld [vmem:[#allocation3 + $0x48] sm:$0x1]
      %v4168 = vld [vmem:[#allocation3 + $0x50] sm:$0xf]
      %v4169 = vld [vmem:[#allocation3 + $0x58] sm:$0x1]
      %v4170 = vld [vmem:[#allocation3 + $0x60] sm:$0xf]
      %v4171 = vld [vmem:[#allocation3 + $0x68] sm:$0x1]
      %v4172 = vld [vmem:[#allocation3 + $0x70] sm:$0xf]
      %v4173 = vld [vmem:[#allocation3 + $0x78] sm:$0x1]
      %v4175 = vshrl.u32 %v4158, 16
      %v4177 = vrot.slane %v4175, 4
      %v4178 = vshll.u32 %v4158, 16
      %v4180 = vrot.slane %v4178, 5
      %v4181 = vor.u32 %v4177, %v4180
      %v4182 = vrot.slane %v4181, 4
      %v4184 = vshll.u32 %v4159, 16
      %v4186 = vrot.slane %v4184, 5
      %v4187 = vsel %vm998, %v4182, %v4186
      %v4189 = vshrl.u32 %v4160, 16
      %v4191 = vrot.slane %v4189, 4
      %v4192 = vshll.u32 %v4160, 16
      %v4194 = vrot.slane %v4192, 5
      %v4195 = vor.u32 %v4191, %v4194
      %v4196 = vrot.slane %v4195, 4
      %v4198 = vshll.u32 %v4161, 16
      %v4200 = vrot.slane %v4198, 5
      %v4201 = vsel %vm998, %v4196, %v4200
      %v4203 = vshrl.u32 %v4162, 16
      %v4205 = vrot.slane %v4203, 4
      %v4206 = vshll.u32 %v4162, 16
      %v4208 = vrot.slane %v4206, 5
      %v4209 = vor.u32 %v4205, %v4208
      %v4210 = vrot.slane %v4209, 4
      %v4212 = vshll.u32 %v4163, 16
      %v4214 = vrot.slane %v4212, 5
      %v4215 = vsel %vm998, %v4210, %v4214
      %v4217 = vshrl.u32 %v4164, 16
      %v4219 = vrot.slane %v4217, 4
      %v4220 = vshll.u32 %v4164, 16
      %v4222 = vrot.slane %v4220, 5
      %v4223 = vor.u32 %v4219, %v4222
      %v4224 = vrot.slane %v4223, 4
      %v4226 = vshll.u32 %v4165, 16
      %v4228 = vrot.slane %v4226, 5
      %v4229 = vsel %vm998, %v4224, %v4228
      %v4231 = vshrl.u32 %v4166, 16
      %v4233 = vrot.slane %v4231, 4
      %v4234 = vshll.u32 %v4166, 16
      %v4236 = vrot.slane %v4234, 5
      %v4237 = vor.u32 %v4233, %v4236
      %v4238 = vrot.slane %v4237, 4
      %v4240 = vshll.u32 %v4167, 16
      %v4242 = vrot.slane %v4240, 5
      %v4243 = vsel %vm998, %v4238, %v4242
      %v4245 = vshrl.u32 %v4168, 16
      %v4247 = vrot.slane %v4245, 4
      %v4248 = vshll.u32 %v4168, 16
      %v4250 = vrot.slane %v4248, 5
      %v4251 = vor.u32 %v4247, %v4250
      %v4252 = vrot.slane %v4251, 4
      %v4254 = vshll.u32 %v4169, 16
      %v4256 = vrot.slane %v4254, 5
      %v4257 = vsel %vm998, %v4252, %v4256
      %v4259 = vshrl.u32 %v4170, 16
      %v4261 = vrot.slane %v4259, 4
      %v4262 = vshll.u32 %v4170, 16
      %v4264 = vrot.slane %v4262, 5
      %v4265 = vor.u32 %v4261, %v4264
      %v4266 = vrot.slane %v4265, 4
      %v4268 = vshll.u32 %v4171, 16
      %v4270 = vrot.slane %v4268, 5
      %v4271 = vsel %vm998, %v4266, %v4270
      %v4273 = vshrl.u32 %v4172, 16
      %v4275 = vrot.slane %v4273, 4
      %v4276 = vshll.u32 %v4172, 16
      %v4278 = vrot.slane %v4276, 5
      %v4279 = vor.u32 %v4275, %v4278
      %v4280 = vrot.slane %v4279, 4
      %v4282 = vshll.u32 %v4173, 16
      %v4284 = vrot.slane %v4282, 5
      %v4285 = vsel %vm998, %v4280, %v4284
      %v4286 = vld [vmem:[%s1951] sm:$0xff]
      %v4287 = vld [vmem:[%s1951 + $0x8] sm:$0xff]
      %v4288 = vld [vmem:[%s1951 + $0x10] sm:$0xff]
      %v4289 = vld [vmem:[%s1951 + $0x18] sm:$0xff]
      %v4290 = vld [vmem:[%s1951 + $0x20] sm:$0xff]
      %v4291 = vld [vmem:[%s1951 + $0x28] sm:$0xff]
      %v4292 = vld [vmem:[%s1951 + $0x30] sm:$0xff]
      %v4293 = vld [vmem:[%s1951 + $0x38] sm:$0xff]
      %v4294 = vld [vmem:[%s1951 + $0x40] sm:$0xff]
      %v4295 = vld [vmem:[%s1951 + $0x48] sm:$0xff]
      %v4296 = vld [vmem:[%s1951 + $0x50] sm:$0xff]
      %v4297 = vld [vmem:[%s1951 + $0x58] sm:$0xff]
      %v4298 = vld [vmem:[%s1951 + $0x60] sm:$0xff]
      %v4299 = vld [vmem:[%s1951 + $0x68] sm:$0xff]
      %v4300 = vld [vmem:[%s1951 + $0x70] sm:$0xff]
      %v4301 = vld [vmem:[%s1951 + $0x78] sm:$0xff]
      %v4302 = vunpack.c.l.b16 %v4187
      %v4303 = vunpack.c.l.b16 %v4201
      %v4304 = vunpack.c.l.b16 %v4215
      %v4305 = vunpack.c.l.b16 %v4229
      %v4306 = vunpack.c.l.b16 %v4243
      %v4307 = vunpack.c.l.b16 %v4257
      %v4308 = vunpack.c.l.b16 %v4271
      %v4309 = vunpack.c.l.b16 %v4285
      %v4310 = vpack.c.b16 %v4303, %v4302
      %v4311 = vpack.c.b16 %v4305, %v4304
      %v4312 = vpack.c.b16 %v4307, %v4306
      %v4313 = vpack.c.b16 %v4309, %v4308
      %v4334 = vunpack.c.l.b16 %v4286
      %v4335 = vunpack.c.h.b16 %v4286
      %v4336 = vunpack.c.l.b16 %v4287
      %v4337 = vunpack.c.h.b16 %v4287
      %v4338 = vunpack.c.l.b16 %v4288
      %v4339 = vunpack.c.h.b16 %v4288
      %v4340 = vunpack.c.l.b16 %v4289
      %v4341 = vunpack.c.h.b16 %v4289
      %v4342 = vunpack.c.l.b16 %v4290
      %v4343 = vunpack.c.h.b16 %v4290
      %v4344 = vunpack.c.l.b16 %v4291
      %v4345 = vunpack.c.h.b16 %v4291
      %v4346 = vunpack.c.l.b16 %v4292
      %v4347 = vunpack.c.h.b16 %v4292
      %v4348 = vunpack.c.l.b16 %v4293
      %v4349 = vunpack.c.h.b16 %v4293
      %v4350 = vunpack.c.l.b16 %v4294
      %v4351 = vunpack.c.h.b16 %v4294
      %v4352 = vunpack.c.l.b16 %v4295
      %v4353 = vunpack.c.h.b16 %v4295
      %v4354 = vunpack.c.l.b16 %v4296
      %v4355 = vunpack.c.h.b16 %v4296
      %v4356 = vunpack.c.l.b16 %v4297
      %v4357 = vunpack.c.h.b16 %v4297
      %v4358 = vunpack.c.l.b16 %v4298
      %v4359 = vunpack.c.h.b16 %v4298
      %v4360 = vunpack.c.l.b16 %v4299
      %v4361 = vunpack.c.h.b16 %v4299
      %v4362 = vunpack.c.l.b16 %v4300
      %v4363 = vunpack.c.h.b16 %v4300
      %v4364 = vunpack.c.l.b16 %v4301
      %v4365 = vunpack.c.h.b16 %v4301
      %v4366 = vpack.c.b16 %v4336, %v4334
      %v4367 = vpack.c.b16 %v4337, %v4335
      %v4368 = vpack.c.b16 %v4340, %v4338
      %v4369 = vpack.c.b16 %v4341, %v4339
      %v4370 = vpack.c.b16 %v4344, %v4342
      %v4371 = vpack.c.b16 %v4345, %v4343
      %v4372 = vpack.c.b16 %v4348, %v4346
      %v4373 = vpack.c.b16 %v4349, %v4347
      %v4374 = vpack.c.b16 %v4352, %v4350
      %v4375 = vpack.c.b16 %v4353, %v4351
      %v4376 = vpack.c.b16 %v4356, %v4354
      %v4377 = vpack.c.b16 %v4357, %v4355
      %v4378 = vpack.c.b16 %v4360, %v4358
      %v4379 = vpack.c.b16 %v4361, %v4359
      %v4380 = vpack.c.b16 %v4364, %v4362
      %v4381 = vpack.c.b16 %v4365, %v4363
      %4398 = vmatprep.subr.bf16.mxu0 %v4381
      %4399 = vmatpush1.bf16.msra.mxu0 %v4380
      %4400 = vmatprep.subr.bf16.mxu0 %v4379
      %4401 = vmatpush1.bf16.msra.mxu0 %v4378
      %4402 = vmatprep.subr.bf16.mxu0 %v4377
      %4403 = vmatpush1.bf16.msra.mxu0 %v4376
      %4404 = vmatprep.subr.bf16.mxu0 %v4375
      %4405 = vmatpush1.bf16.msra.mxu0 %v4374
      %4406 = vmatprep.subr.bf16.mxu0 %v4373
      %4407 = vmatpush1.bf16.msra.mxu0 %v4372
      %4408 = vmatprep.subr.bf16.mxu0 %v4371
      %4409 = vmatpush1.bf16.msra.mxu0 %v4370
      %4410 = vmatprep.subr.bf16.mxu0 %v4369
      %4411 = vmatpush1.bf16.msra.mxu0 %v4368
      %4412 = vmatprep.subr.bf16.mxu0 %v4367
      %4413 = vmatpush1.bf16.msra.mxu0 %v4366
      %4414 = vmatprep.subr.bf16.mxu0 0
      %4415 = vmatpush2.bf16.msra.mxu0 0
      %4416 = vmatprep.subr.bf16.mxu0 0
      %4417 = vmatpush2.bf16.msra.mxu0 0
      %4418 = vmatprep.subr.bf16.mxu0 0
      %4419 = vmatpush2.bf16.msra.mxu0 0
      %4420 = vmatprep.subr.bf16.mxu0 0
      %4421 = vmatpush2.bf16.msra.mxu0 0
      %4422 = vmatprep.subr.bf16.mxu0 0
      %4423 = vmatpush2.bf16.msra.mxu0 0
      %4424 = vmatprep.subr.bf16.mxu0 0
      %4425 = vmatpush2.bf16.msra.mxu0 0
      %4426 = vmatprep.subr.bf16.mxu0 0
      %4427 = vmatpush2.bf16.msra.mxu0 0
      %4428 = vmatprep.subr.bf16.mxu0 0
      %4429 = vmatpush2.bf16.msra.mxu0 0
      %4430 = vmatprep.mubr.bf16.mxu0 0
      %4431 = vmatmul.mubr.bf16.gmra.mxu0 %v4310
      %v4432 = vpop.f32.mrf.mxu0
      %v4433 = vadd.f32 0.0, %v4432
      %v4434 = vpop.f32.mrf.mxu0
      %v4435 = vadd.f32 0.0, %v4434
      %v4436 = vpop.f32.mrf.mxu0
      %v4437 = vadd.f32 0.0, %v4436
      %v4438 = vpop.f32.mrf.mxu0
      %v4439 = vadd.f32 0.0, %v4438
      %4440 = vmatprep.mubr.bf16.mxu0 0
      %4441 = vmatmul.mubr.bf16.gmra.mxu0 %v4311
      %v4442 = vpop.f32.mrf.mxu0
      %v4443 = vadd.f32 0.0, %v4442
      %v4444 = vpop.f32.mrf.mxu0
      %v4445 = vadd.f32 0.0, %v4444
      %v4446 = vpop.f32.mrf.mxu0
      %v4447 = vadd.f32 0.0, %v4446
      %v4448 = vpop.f32.mrf.mxu0
      %v4449 = vadd.f32 0.0, %v4448
      %4450 = vmatprep.mubr.bf16.mxu0 0
      %4451 = vmatmul.mubr.bf16.gmra.mxu0 %v4312
      %v4452 = vpop.f32.mrf.mxu0
      %v4453 = vadd.f32 0.0, %v4452
      %v4454 = vpop.f32.mrf.mxu0
      %v4455 = vadd.f32 0.0, %v4454
      %v4456 = vpop.f32.mrf.mxu0
      %v4457 = vadd.f32 0.0, %v4456
      %v4458 = vpop.f32.mrf.mxu0
      %v4459 = vadd.f32 0.0, %v4458
      %4460 = vmatprep.mubr.bf16.mxu0 0
      %4461 = vmatmul.mubr.bf16.gmra.mxu0 %v4313
      %v4462 = vpop.f32.mrf.mxu0
      %v4463 = vadd.f32 0.0, %v4462
      %v4464 = vpop.f32.mrf.mxu0
      %v4465 = vadd.f32 0.0, %v4464
      %v4466 = vpop.f32.mrf.mxu0
      %v4467 = vadd.f32 0.0, %v4466
      %v4468 = vpop.f32.mrf.mxu0
      %v4469 = vadd.f32 0.0, %v4468
      %4470 = vdwg.mxu0
      %v4479 = vunpack.c.l.b16 %v4118
      %v4480 = vunpack.c.h.b16 %v4118
      %v4481 = vunpack.c.l.b16 %v4119
      %v4482 = vunpack.c.h.b16 %v4119
      %v4483 = vunpack.c.l.b16 %v4120
      %v4484 = vunpack.c.h.b16 %v4120
      %v4485 = vunpack.c.l.b16 %v4121
      %v4486 = vunpack.c.h.b16 %v4121
      %v4487 = vunpack.c.l.b16 %v4122
      %v4488 = vunpack.c.h.b16 %v4122
      %v4489 = vunpack.c.l.b16 %v4123
      %v4490 = vunpack.c.h.b16 %v4123
      %v4491 = vunpack.c.l.b16 %v4124
      %v4492 = vunpack.c.h.b16 %v4124
      %v4493 = vunpack.c.l.b16 %v4125
      %v4494 = vunpack.c.h.b16 %v4125
      %v4495 = vpack.c.b16 %v4481, %v4479
      %v4496 = vpack.c.b16 %v4482, %v4480
      %v4497 = vpack.c.b16 %v4485, %v4483
      %v4498 = vpack.c.b16 %v4486, %v4484
      %v4499 = vpack.c.b16 %v4489, %v4487
      %v4500 = vpack.c.b16 %v4490, %v4488
      %v4501 = vpack.c.b16 %v4493, %v4491
      %v4502 = vpack.c.b16 %v4494, %v4492
      %v4543 = vunpack.c.l.b16 %v4126
      %v4544 = vunpack.c.h.b16 %v4126
      %v4545 = vunpack.c.l.b16 %v4127
      %v4546 = vunpack.c.h.b16 %v4127
      %v4547 = vunpack.c.l.b16 %v4128
      %v4548 = vunpack.c.h.b16 %v4128
      %v4549 = vunpack.c.l.b16 %v4129
      %v4550 = vunpack.c.h.b16 %v4129
      %v4551 = vunpack.c.l.b16 %v4130
      %v4552 = vunpack.c.h.b16 %v4130
      %v4553 = vunpack.c.l.b16 %v4131
      %v4554 = vunpack.c.h.b16 %v4131
      %v4555 = vunpack.c.l.b16 %v4132
      %v4556 = vunpack.c.h.b16 %v4132
      %v4557 = vunpack.c.l.b16 %v4133
      %v4558 = vunpack.c.h.b16 %v4133
      %v4559 = vunpack.c.l.b16 %v4134
      %v4560 = vunpack.c.h.b16 %v4134
      %v4561 = vunpack.c.l.b16 %v4135
      %v4562 = vunpack.c.h.b16 %v4135
      %v4563 = vunpack.c.l.b16 %v4136
      %v4564 = vunpack.c.h.b16 %v4136
      %v4565 = vunpack.c.l.b16 %v4137
      %v4566 = vunpack.c.h.b16 %v4137
      %v4567 = vunpack.c.l.b16 %v4138
      %v4568 = vunpack.c.h.b16 %v4138
      %v4569 = vunpack.c.l.b16 %v4139
      %v4570 = vunpack.c.h.b16 %v4139
      %v4571 = vunpack.c.l.b16 %v4140
      %v4572 = vunpack.c.h.b16 %v4140
      %v4573 = vunpack.c.l.b16 %v4141
      %v4574 = vunpack.c.h.b16 %v4141
      %v4575 = vunpack.c.l.b16 %v4142
      %v4576 = vunpack.c.h.b16 %v4142
      %v4577 = vunpack.c.l.b16 %v4143
      %v4578 = vunpack.c.h.b16 %v4143
      %v4579 = vunpack.c.l.b16 %v4144
      %v4580 = vunpack.c.h.b16 %v4144
      %v4581 = vunpack.c.l.b16 %v4145
      %v4582 = vunpack.c.h.b16 %v4145
      %v4583 = vunpack.c.l.b16 %v4146
      %v4584 = vunpack.c.h.b16 %v4146
      %v4585 = vunpack.c.l.b16 %v4147
      %v4586 = vunpack.c.h.b16 %v4147
      %v4587 = vunpack.c.l.b16 %v4148
      %v4588 = vunpack.c.h.b16 %v4148
      %v4589 = vunpack.c.l.b16 %v4149
      %v4590 = vunpack.c.h.b16 %v4149
      %v4591 = vunpack.c.l.b16 %v4150
      %v4592 = vunpack.c.h.b16 %v4150
      %v4593 = vunpack.c.l.b16 %v4151
      %v4594 = vunpack.c.h.b16 %v4151
      %v4595 = vunpack.c.l.b16 %v4152
      %v4596 = vunpack.c.h.b16 %v4152
      %v4597 = vunpack.c.l.b16 %v4153
      %v4598 = vunpack.c.h.b16 %v4153
      %v4599 = vunpack.c.l.b16 %v4154
      %v4600 = vunpack.c.h.b16 %v4154
      %v4601 = vunpack.c.l.b16 %v4155
      %v4602 = vunpack.c.h.b16 %v4155
      %v4603 = vunpack.c.l.b16 %v4156
      %v4604 = vunpack.c.h.b16 %v4156
      %v4605 = vunpack.c.l.b16 %v4157
      %v4606 = vunpack.c.h.b16 %v4157
      %v4607 = vpack.c.b16 %v4545, %v4543
      %v4608 = vpack.c.b16 %v4546, %v4544
      %v4609 = vpack.c.b16 %v4549, %v4547
      %v4610 = vpack.c.b16 %v4550, %v4548
      %v4611 = vpack.c.b16 %v4553, %v4551
      %v4612 = vpack.c.b16 %v4554, %v4552
      %v4613 = vpack.c.b16 %v4557, %v4555
      %v4614 = vpack.c.b16 %v4558, %v4556
      %v4615 = vpack.c.b16 %v4561, %v4559
      %v4616 = vpack.c.b16 %v4562, %v4560
      %v4617 = vpack.c.b16 %v4565, %v4563
      %v4618 = vpack.c.b16 %v4566, %v4564
      %v4619 = vpack.c.b16 %v4569, %v4567
      %v4620 = vpack.c.b16 %v4570, %v4568
      %v4621 = vpack.c.b16 %v4573, %v4571
      %v4622 = vpack.c.b16 %v4574, %v4572
      %v4623 = vpack.c.b16 %v4577, %v4575
      %v4624 = vpack.c.b16 %v4578, %v4576
      %v4625 = vpack.c.b16 %v4581, %v4579
      %v4626 = vpack.c.b16 %v4582, %v4580
      %v4627 = vpack.c.b16 %v4585, %v4583
      %v4628 = vpack.c.b16 %v4586, %v4584
      %v4629 = vpack.c.b16 %v4589, %v4587
      %v4630 = vpack.c.b16 %v4590, %v4588
      %v4631 = vpack.c.b16 %v4593, %v4591
      %v4632 = vpack.c.b16 %v4594, %v4592
      %v4633 = vpack.c.b16 %v4597, %v4595
      %v4634 = vpack.c.b16 %v4598, %v4596
      %v4635 = vpack.c.b16 %v4601, %v4599
      %v4636 = vpack.c.b16 %v4602, %v4600
      %v4637 = vpack.c.b16 %v4605, %v4603
      %v4638 = vpack.c.b16 %v4606, %v4604
      %4671 = vmatprep.subr.bf16.mxu0 %v4622
      %4672 = vmatpush1.bf16.msra.mxu0 %v4621
      %4673 = vmatprep.subr.bf16.mxu0 %v4620
      %4674 = vmatpush1.bf16.msra.mxu0 %v4619
      %4675 = vmatprep.subr.bf16.mxu0 %v4618
      %4676 = vmatpush1.bf16.msra.mxu0 %v4617
      %4677 = vmatprep.subr.bf16.mxu0 %v4616
      %4678 = vmatpush1.bf16.msra.mxu0 %v4615
      %4679 = vmatprep.subr.bf16.mxu0 %v4614
      %4680 = vmatpush1.bf16.msra.mxu0 %v4613
      %4681 = vmatprep.subr.bf16.mxu0 %v4612
      %4682 = vmatpush1.bf16.msra.mxu0 %v4611
      %4683 = vmatprep.subr.bf16.mxu0 %v4610
      %4684 = vmatpush1.bf16.msra.mxu0 %v4609
      %4685 = vmatprep.subr.bf16.mxu0 %v4608
      %4686 = vmatpush1.bf16.msra.mxu0 %v4607
      %4687 = vmatprep.subr.bf16.mxu0 %v4638
      %4688 = vmatpush2.bf16.msra.mxu0 %v4637
      %4689 = vmatprep.subr.bf16.mxu0 %v4636
      %4690 = vmatpush2.bf16.msra.mxu0 %v4635
      %4691 = vmatprep.subr.bf16.mxu0 %v4634
      %4692 = vmatpush2.bf16.msra.mxu0 %v4633
      %4693 = vmatprep.subr.bf16.mxu0 %v4632
      %4694 = vmatpush2.bf16.msra.mxu0 %v4631
      %4695 = vmatprep.subr.bf16.mxu0 %v4630
      %4696 = vmatpush2.bf16.msra.mxu0 %v4629
      %4697 = vmatprep.subr.bf16.mxu0 %v4628
      %4698 = vmatpush2.bf16.msra.mxu0 %v4627
      %4699 = vmatprep.subr.bf16.mxu0 %v4626
      %4700 = vmatpush2.bf16.msra.mxu0 %v4625
      %4701 = vmatprep.subr.bf16.mxu0 %v4624
      %4702 = vmatpush2.bf16.msra.mxu0 %v4623
      %4703 = vmatprep.mubr.bf16.mxu0 %v4496
      %4704 = vmatmul.mubr.bf16.gmra.mxu0 %v4495
      %v4705 = vpop.f32.mrf.mxu0
      %v4706 = vadd.f32 %v4433, %v4705
      %v4707 = vpop.f32.mrf.mxu0
      %v4708 = vadd.f32 %v4435, %v4707
      %v4709 = vpop.f32.mrf.mxu0
      %v4710 = vadd.f32 %v4437, %v4709
      %v4711 = vpop.f32.mrf.mxu0
      %v4712 = vadd.f32 %v4439, %v4711
      %4713 = vmatprep.mubr.bf16.mxu0 %v4498
      %4714 = vmatmul.mubr.bf16.gmra.mxu0 %v4497
      %v4715 = vpop.f32.mrf.mxu0
      %v4716 = vadd.f32 %v4443, %v4715
      %v4717 = vpop.f32.mrf.mxu0
      %v4718 = vadd.f32 %v4445, %v4717
      %v4719 = vpop.f32.mrf.mxu0
      %v4720 = vadd.f32 %v4447, %v4719
      %v4721 = vpop.f32.mrf.mxu0
      %v4722 = vadd.f32 %v4449, %v4721
      %4723 = vmatprep.mubr.bf16.mxu0 %v4500
      %4724 = vmatmul.mubr.bf16.gmra.mxu0 %v4499
      %v4725 = vpop.f32.mrf.mxu0
      %v4726 = vadd.f32 %v4453, %v4725
      %v4727 = vpop.f32.mrf.mxu0
      %v4728 = vadd.f32 %v4455, %v4727
      %v4729 = vpop.f32.mrf.mxu0
      %v4730 = vadd.f32 %v4457, %v4729
      %v4731 = vpop.f32.mrf.mxu0
      %v4732 = vadd.f32 %v4459, %v4731
      %4733 = vmatprep.mubr.bf16.mxu0 %v4502
      %4734 = vmatmul.mubr.bf16.gmra.mxu0 %v4501
      %v4735 = vpop.f32.mrf.mxu0
      %v4736 = vadd.f32 %v4463, %v4735
      %v4737 = vpop.f32.mrf.mxu0
      %v4738 = vadd.f32 %v4465, %v4737
      %v4739 = vpop.f32.mrf.mxu0
      %v4740 = vadd.f32 %v4467, %v4739
      %v4741 = vpop.f32.mrf.mxu0
      %v4742 = vadd.f32 %v4469, %v4741
      %4743 = vdwg.mxu0
      %s4744 = scalar_lea.vmem [#allocation2], 16
      %v4745 = vld [vmem:[%s4744] sm:$0xff]
      %v4746 = vld [vmem:[%s4744 + $0x10] sm:$0xff]
      %v4747 = vld [vmem:[%s4744 + $0x20] sm:$0xff]
      %v4748 = vld [vmem:[%s4744 + $0x30] sm:$0xff]
      %v4749 = vld [vmem:[%s4744 + $0x40] sm:$0xff]
      %v4750 = vld [vmem:[%s4744 + $0x50] sm:$0xff]
      %v4751 = vld [vmem:[%s4744 + $0x60] sm:$0xff]
      %v4752 = vld [vmem:[%s4744 + $0x70] sm:$0xff]
      %v4753 = vld [vmem:[%s3] sm:$0xff]
      %v4754 = vld [vmem:[%s3 + $0x8] sm:$0xff]
      %v4755 = vld [vmem:[%s3 + $0x10] sm:$0xff]
      %v4756 = vld [vmem:[%s3 + $0x18] sm:$0xff]
      %v4757 = vld [vmem:[%s3 + $0x20] sm:$0xff]
      %v4758 = vld [vmem:[%s3 + $0x28] sm:$0xff]
      %v4759 = vld [vmem:[%s3 + $0x30] sm:$0xff]
      %v4760 = vld [vmem:[%s3 + $0x38] sm:$0xff]
      %v4761 = vld [vmem:[%s3 + $0x40] sm:$0xff]
      %v4762 = vld [vmem:[%s3 + $0x48] sm:$0xff]
      %v4763 = vld [vmem:[%s3 + $0x50] sm:$0xff]
      %v4764 = vld [vmem:[%s3 + $0x58] sm:$0xff]
      %v4765 = vld [vmem:[%s3 + $0x60] sm:$0xff]
      %v4766 = vld [vmem:[%s3 + $0x68] sm:$0xff]
      %v4767 = vld [vmem:[%s3 + $0x70] sm:$0xff]
      %v4768 = vld [vmem:[%s3 + $0x78] sm:$0xff]
      %v4769 = vld [vmem:[%s3 + $0x80] sm:$0xff]
      %v4770 = vld [vmem:[%s3 + $0x88] sm:$0xff]
      %v4771 = vld [vmem:[%s3 + $0x90] sm:$0xff]
      %v4772 = vld [vmem:[%s3 + $0x98] sm:$0xff]
      %v4773 = vld [vmem:[%s3 + $0xa0] sm:$0xff]
      %v4774 = vld [vmem:[%s3 + $0xa8] sm:$0xff]
      %v4775 = vld [vmem:[%s3 + $0xb0] sm:$0xff]
      %v4776 = vld [vmem:[%s3 + $0xb8] sm:$0xff]
      %v4777 = vld [vmem:[%s3 + $0xc0] sm:$0xff]
      %v4778 = vld [vmem:[%s3 + $0xc8] sm:$0xff]
      %v4779 = vld [vmem:[%s3 + $0xd0] sm:$0xff]
      %v4780 = vld [vmem:[%s3 + $0xd8] sm:$0xff]
      %v4781 = vld [vmem:[%s3 + $0xe0] sm:$0xff]
      %v4782 = vld [vmem:[%s3 + $0xe8] sm:$0xff]
      %v4783 = vld [vmem:[%s3 + $0xf0] sm:$0xff]
      %v4784 = vld [vmem:[%s3 + $0xf8] sm:$0xff]
      %v4793 = vunpack.c.l.b16 %v4745
      %v4794 = vunpack.c.h.b16 %v4745
      %v4795 = vunpack.c.l.b16 %v4746
      %v4796 = vunpack.c.h.b16 %v4746
      %v4797 = vunpack.c.l.b16 %v4747
      %v4798 = vunpack.c.h.b16 %v4747
      %v4799 = vunpack.c.l.b16 %v4748
      %v4800 = vunpack.c.h.b16 %v4748
      %v4801 = vunpack.c.l.b16 %v4749
      %v4802 = vunpack.c.h.b16 %v4749
      %v4803 = vunpack.c.l.b16 %v4750
      %v4804 = vunpack.c.h.b16 %v4750
      %v4805 = vunpack.c.l.b16 %v4751
      %v4806 = vunpack.c.h.b16 %v4751
      %v4807 = vunpack.c.l.b16 %v4752
      %v4808 = vunpack.c.h.b16 %v4752
      %v4809 = vpack.c.b16 %v4795, %v4793
      %v4810 = vpack.c.b16 %v4796, %v4794
      %v4811 = vpack.c.b16 %v4799, %v4797
      %v4812 = vpack.c.b16 %v4800, %v4798
      %v4813 = vpack.c.b16 %v4803, %v4801
      %v4814 = vpack.c.b16 %v4804, %v4802
      %v4815 = vpack.c.b16 %v4807, %v4805
      %v4816 = vpack.c.b16 %v4808, %v4806
      %v4857 = vunpack.c.l.b16 %v4753
      %v4858 = vunpack.c.h.b16 %v4753
      %v4859 = vunpack.c.l.b16 %v4754
      %v4860 = vunpack.c.h.b16 %v4754
      %v4861 = vunpack.c.l.b16 %v4755
      %v4862 = vunpack.c.h.b16 %v4755
      %v4863 = vunpack.c.l.b16 %v4756
      %v4864 = vunpack.c.h.b16 %v4756
      %v4865 = vunpack.c.l.b16 %v4757
      %v4866 = vunpack.c.h.b16 %v4757
      %v4867 = vunpack.c.l.b16 %v4758
      %v4868 = vunpack.c.h.b16 %v4758
      %v4869 = vunpack.c.l.b16 %v4759
      %v4870 = vunpack.c.h.b16 %v4759
      %v4871 = vunpack.c.l.b16 %v4760
      %v4872 = vunpack.c.h.b16 %v4760
      %v4873 = vunpack.c.l.b16 %v4761
      %v4874 = vunpack.c.h.b16 %v4761
      %v4875 = vunpack.c.l.b16 %v4762
      %v4876 = vunpack.c.h.b16 %v4762
      %v4877 = vunpack.c.l.b16 %v4763
      %v4878 = vunpack.c.h.b16 %v4763
      %v4879 = vunpack.c.l.b16 %v4764
      %v4880 = vunpack.c.h.b16 %v4764
      %v4881 = vunpack.c.l.b16 %v4765
      %v4882 = vunpack.c.h.b16 %v4765
      %v4883 = vunpack.c.l.b16 %v4766
      %v4884 = vunpack.c.h.b16 %v4766
      %v4885 = vunpack.c.l.b16 %v4767
      %v4886 = vunpack.c.h.b16 %v4767
      %v4887 = vunpack.c.l.b16 %v4768
      %v4888 = vunpack.c.h.b16 %v4768
      %v4889 = vunpack.c.l.b16 %v4769
      %v4890 = vunpack.c.h.b16 %v4769
      %v4891 = vunpack.c.l.b16 %v4770
      %v4892 = vunpack.c.h.b16 %v4770
      %v4893 = vunpack.c.l.b16 %v4771
      %v4894 = vunpack.c.h.b16 %v4771
      %v4895 = vunpack.c.l.b16 %v4772
      %v4896 = vunpack.c.h.b16 %v4772
      %v4897 = vunpack.c.l.b16 %v4773
      %v4898 = vunpack.c.h.b16 %v4773
      %v4899 = vunpack.c.l.b16 %v4774
      %v4900 = vunpack.c.h.b16 %v4774
      %v4901 = vunpack.c.l.b16 %v4775
      %v4902 = vunpack.c.h.b16 %v4775
      %v4903 = vunpack.c.l.b16 %v4776
      %v4904 = vunpack.c.h.b16 %v4776
      %v4905 = vunpack.c.l.b16 %v4777
      %v4906 = vunpack.c.h.b16 %v4777
      %v4907 = vunpack.c.l.b16 %v4778
      %v4908 = vunpack.c.h.b16 %v4778
      %v4909 = vunpack.c.l.b16 %v4779
      %v4910 = vunpack.c.h.b16 %v4779
      %v4911 = vunpack.c.l.b16 %v4780
      %v4912 = vunpack.c.h.b16 %v4780
      %v4913 = vunpack.c.l.b16 %v4781
      %v4914 = vunpack.c.h.b16 %v4781
      %v4915 = vunpack.c.l.b16 %v4782
      %v4916 = vunpack.c.h.b16 %v4782
      %v4917 = vunpack.c.l.b16 %v4783
      %v4918 = vunpack.c.h.b16 %v4783
      %v4919 = vunpack.c.l.b16 %v4784
      %v4920 = vunpack.c.h.b16 %v4784
      %v4921 = vpack.c.b16 %v4859, %v4857
      %v4922 = vpack.c.b16 %v4860, %v4858
      %v4923 = vpack.c.b16 %v4863, %v4861
      %v4924 = vpack.c.b16 %v4864, %v4862
      %v4925 = vpack.c.b16 %v4867, %v4865
      %v4926 = vpack.c.b16 %v4868, %v4866
      %v4927 = vpack.c.b16 %v4871, %v4869
      %v4928 = vpack.c.b16 %v4872, %v4870
      %v4929 = vpack.c.b16 %v4875, %v4873
      %v4930 = vpack.c.b16 %v4876, %v4874
      %v4931 = vpack.c.b16 %v4879, %v4877
      %v4932 = vpack.c.b16 %v4880, %v4878
      %v4933 = vpack.c.b16 %v4883, %v4881
      %v4934 = vpack.c.b16 %v4884, %v4882
      %v4935 = vpack.c.b16 %v4887, %v4885
      %v4936 = vpack.c.b16 %v4888, %v4886
      %v4937 = vpack.c.b16 %v4891, %v4889
      %v4938 = vpack.c.b16 %v4892, %v4890
      %v4939 = vpack.c.b16 %v4895, %v4893
      %v4940 = vpack.c.b16 %v4896, %v4894
      %v4941 = vpack.c.b16 %v4899, %v4897
      %v4942 = vpack.c.b16 %v4900, %v4898
      %v4943 = vpack.c.b16 %v4903, %v4901
      %v4944 = vpack.c.b16 %v4904, %v4902
      %v4945 = vpack.c.b16 %v4907, %v4905
      %v4946 = vpack.c.b16 %v4908, %v4906
      %v4947 = vpack.c.b16 %v4911, %v4909
      %v4948 = vpack.c.b16 %v4912, %v4910
      %v4949 = vpack.c.b16 %v4915, %v4913
      %v4950 = vpack.c.b16 %v4916, %v4914
      %v4951 = vpack.c.b16 %v4919, %v4917
      %v4952 = vpack.c.b16 %v4920, %v4918
      %4985 = vmatprep.subr.bf16.mxu0 %v4936
      %4986 = vmatpush1.bf16.msra.mxu0 %v4935
      %4987 = vmatprep.subr.bf16.mxu0 %v4934
      %4988 = vmatpush1.bf16.msra.mxu0 %v4933
      %4989 = vmatprep.subr.bf16.mxu0 %v4932
      %4990 = vmatpush1.bf16.msra.mxu0 %v4931
      %4991 = vmatprep.subr.bf16.mxu0 %v4930
      %4992 = vmatpush1.bf16.msra.mxu0 %v4929
      %4993 = vmatprep.subr.bf16.mxu0 %v4928
      %4994 = vmatpush1.bf16.msra.mxu0 %v4927
      %4995 = vmatprep.subr.bf16.mxu0 %v4926
      %4996 = vmatpush1.bf16.msra.mxu0 %v4925
      %4997 = vmatprep.subr.bf16.mxu0 %v4924
      %4998 = vmatpush1.bf16.msra.mxu0 %v4923
      %4999 = vmatprep.subr.bf16.mxu0 %v4922
      %5000 = vmatpush1.bf16.msra.mxu0 %v4921
      %5001 = vmatprep.subr.bf16.mxu0 %v4952
      %5002 = vmatpush2.bf16.msra.mxu0 %v4951
      %5003 = vmatprep.subr.bf16.mxu0 %v4950
      %5004 = vmatpush2.bf16.msra.mxu0 %v4949
      %5005 = vmatprep.subr.bf16.mxu0 %v4948
      %5006 = vmatpush2.bf16.msra.mxu0 %v4947
      %5007 = vmatprep.subr.bf16.mxu0 %v4946
      %5008 = vmatpush2.bf16.msra.mxu0 %v4945
      %5009 = vmatprep.subr.bf16.mxu0 %v4944
      %5010 = vmatpush2.bf16.msra.mxu0 %v4943
      %5011 = vmatprep.subr.bf16.mxu0 %v4942
      %5012 = vmatpush2.bf16.msra.mxu0 %v4941
      %5013 = vmatprep.subr.bf16.mxu0 %v4940
      %5014 = vmatpush2.bf16.msra.mxu0 %v4939
      %5015 = vmatprep.subr.bf16.mxu0 %v4938
      %5016 = vmatpush2.bf16.msra.mxu0 %v4937
      %5017 = vmatprep.mubr.bf16.mxu0 %v4810
      %5018 = vmatmul.mubr.bf16.gmra.mxu0 %v4809
      %v5019 = vpop.f32.mrf.mxu0
      %v5020 = vadd.f32 0.0, %v5019
      %v5021 = vpop.f32.mrf.mxu0
      %v5022 = vadd.f32 0.0, %v5021
      %v5023 = vpop.f32.mrf.mxu0
      %v5024 = vadd.f32 0.0, %v5023
      %v5025 = vpop.f32.mrf.mxu0
      %v5026 = vadd.f32 0.0, %v5025
      %5027 = vmatprep.mubr.bf16.mxu0 %v4812
      %5028 = vmatmul.mubr.bf16.gmra.mxu0 %v4811
      %v5029 = vpop.f32.mrf.mxu0
      %v5030 = vadd.f32 0.0, %v5029
      %v5031 = vpop.f32.mrf.mxu0
      %v5032 = vadd.f32 0.0, %v5031
      %v5033 = vpop.f32.mrf.mxu0
      %v5034 = vadd.f32 0.0, %v5033
      %v5035 = vpop.f32.mrf.mxu0
      %v5036 = vadd.f32 0.0, %v5035
      %5037 = vmatprep.mubr.bf16.mxu0 %v4814
      %5038 = vmatmul.mubr.bf16.gmra.mxu0 %v4813
      %v5039 = vpop.f32.mrf.mxu0
      %v5040 = vadd.f32 0.0, %v5039
      %v5041 = vpop.f32.mrf.mxu0
      %v5042 = vadd.f32 0.0, %v5041
      %v5043 = vpop.f32.mrf.mxu0
      %v5044 = vadd.f32 0.0, %v5043
      %v5045 = vpop.f32.mrf.mxu0
      %v5046 = vadd.f32 0.0, %v5045
      %5047 = vmatprep.mubr.bf16.mxu0 %v4816
      %5048 = vmatmul.mubr.bf16.gmra.mxu0 %v4815
      %v5049 = vpop.f32.mrf.mxu0
      %v5050 = vadd.f32 0.0, %v5049
      %v5051 = vpop.f32.mrf.mxu0
      %v5052 = vadd.f32 0.0, %v5051
      %v5053 = vpop.f32.mrf.mxu0
      %v5054 = vadd.f32 0.0, %v5053
      %v5055 = vpop.f32.mrf.mxu0
      %v5056 = vadd.f32 0.0, %v5055
      %5057 = vdwg.mxu0
      %v5058 = vadd.f32 %v4706, %v5020
      %v5059 = vadd.f32 %v4708, %v5022
      %v5060 = vadd.f32 %v4710, %v5024
      %v5061 = vadd.f32 %v4712, %v5026
      %v5062 = vadd.f32 %v4716, %v5030
      %v5063 = vadd.f32 %v4718, %v5032
      %v5064 = vadd.f32 %v4720, %v5034
      %v5065 = vadd.f32 %v4722, %v5036
      %v5066 = vadd.f32 %v4726, %v5040
      %v5067 = vadd.f32 %v4728, %v5042
      %v5068 = vadd.f32 %v4730, %v5044
      %v5069 = vadd.f32 %v4732, %v5046
      %v5070 = vadd.f32 %v4736, %v5050
      %v5071 = vadd.f32 %v4738, %v5052
      %v5072 = vadd.f32 %v4740, %v5054
      %v5073 = vadd.f32 %v4742, %v5056
      %v5074 = vld [vmem:[%s4744] sm:$0xf]
      %v5075 = vld [vmem:[%s4744 + $0x8] sm:$0x1]
      %v5076 = vld [vmem:[%s4744 + $0x10] sm:$0xf]
      %v5077 = vld [vmem:[%s4744 + $0x18] sm:$0x1]
      %v5078 = vld [vmem:[%s4744 + $0x20] sm:$0xf]
      %v5079 = vld [vmem:[%s4744 + $0x28] sm:$0x1]
      %v5080 = vld [vmem:[%s4744 + $0x30] sm:$0xf]
      %v5081 = vld [vmem:[%s4744 + $0x38] sm:$0x1]
      %v5082 = vld [vmem:[%s4744 + $0x40] sm:$0xf]
      %v5083 = vld [vmem:[%s4744 + $0x48] sm:$0x1]
      %v5084 = vld [vmem:[%s4744 + $0x50] sm:$0xf]
      %v5085 = vld [vmem:[%s4744 + $0x58] sm:$0x1]
      %v5086 = vld [vmem:[%s4744 + $0x60] sm:$0xf]
      %v5087 = vld [vmem:[%s4744 + $0x68] sm:$0x1]
      %v5088 = vld [vmem:[%s4744 + $0x70] sm:$0xf]
      %v5089 = vld [vmem:[%s4744 + $0x78] sm:$0x1]
      %v5091 = vshrl.u32 %v5074, 16
      %v5093 = vrot.slane %v5091, 4
      %v5094 = vshll.u32 %v5074, 16
      %v5096 = vrot.slane %v5094, 5
      %v5097 = vor.u32 %v5093, %v5096
      %v5098 = vrot.slane %v5097, 4
      %v5100 = vshll.u32 %v5075, 16
      %v5102 = vrot.slane %v5100, 5
      %v5103 = vsel %vm998, %v5098, %v5102
      %v5105 = vshrl.u32 %v5076, 16
      %v5107 = vrot.slane %v5105, 4
      %v5108 = vshll.u32 %v5076, 16
      %v5110 = vrot.slane %v5108, 5
      %v5111 = vor.u32 %v5107, %v5110
      %v5112 = vrot.slane %v5111, 4
      %v5114 = vshll.u32 %v5077, 16
      %v5116 = vrot.slane %v5114, 5
      %v5117 = vsel %vm998, %v5112, %v5116
      %v5119 = vshrl.u32 %v5078, 16
      %v5121 = vrot.slane %v5119, 4
      %v5122 = vshll.u32 %v5078, 16
      %v5124 = vrot.slane %v5122, 5
      %v5125 = vor.u32 %v5121, %v5124
      %v5126 = vrot.slane %v5125, 4
      %v5128 = vshll.u32 %v5079, 16
      %v5130 = vrot.slane %v5128, 5
      %v5131 = vsel %vm998, %v5126, %v5130
      %v5133 = vshrl.u32 %v5080, 16
      %v5135 = vrot.slane %v5133, 4
      %v5136 = vshll.u32 %v5080, 16
      %v5138 = vrot.slane %v5136, 5
      %v5139 = vor.u32 %v5135, %v5138
      %v5140 = vrot.slane %v5139, 4
      %v5142 = vshll.u32 %v5081, 16
      %v5144 = vrot.slane %v5142, 5
      %v5145 = vsel %vm998, %v5140, %v5144
      %v5147 = vshrl.u32 %v5082, 16
      %v5149 = vrot.slane %v5147, 4
      %v5150 = vshll.u32 %v5082, 16
      %v5152 = vrot.slane %v5150, 5
      %v5153 = vor.u32 %v5149, %v5152
      %v5154 = vrot.slane %v5153, 4
      %v5156 = vshll.u32 %v5083, 16
      %v5158 = vrot.slane %v5156, 5
      %v5159 = vsel %vm998, %v5154, %v5158
      %v5161 = vshrl.u32 %v5084, 16
      %v5163 = vrot.slane %v5161, 4
      %v5164 = vshll.u32 %v5084, 16
      %v5166 = vrot.slane %v5164, 5
      %v5167 = vor.u32 %v5163, %v5166
      %v5168 = vrot.slane %v5167, 4
      %v5170 = vshll.u32 %v5085, 16
      %v5172 = vrot.slane %v5170, 5
      %v5173 = vsel %vm998, %v5168, %v5172
      %v5175 = vshrl.u32 %v5086, 16
      %v5177 = vrot.slane %v5175, 4
      %v5178 = vshll.u32 %v5086, 16
      %v5180 = vrot.slane %v5178, 5
      %v5181 = vor.u32 %v5177, %v5180
      %v5182 = vrot.slane %v5181, 4
      %v5184 = vshll.u32 %v5087, 16
      %v5186 = vrot.slane %v5184, 5
      %v5187 = vsel %vm998, %v5182, %v5186
      %v5189 = vshrl.u32 %v5088, 16
      %v5191 = vrot.slane %v5189, 4
      %v5192 = vshll.u32 %v5088, 16
      %v5194 = vrot.slane %v5192, 5
      %v5195 = vor.u32 %v5191, %v5194
      %v5196 = vrot.slane %v5195, 4
      %v5198 = vshll.u32 %v5089, 16
      %v5200 = vrot.slane %v5198, 5
      %v5201 = vsel %vm998, %v5196, %v5200
      %v5202 = vld [vmem:[%s4] sm:$0xff]
      %v5203 = vld [vmem:[%s4 + $0x8] sm:$0xff]
      %v5204 = vld [vmem:[%s4 + $0x10] sm:$0xff]
      %v5205 = vld [vmem:[%s4 + $0x18] sm:$0xff]
      %v5206 = vld [vmem:[%s4 + $0x20] sm:$0xff]
      %v5207 = vld [vmem:[%s4 + $0x28] sm:$0xff]
      %v5208 = vld [vmem:[%s4 + $0x30] sm:$0xff]
      %v5209 = vld [vmem:[%s4 + $0x38] sm:$0xff]
      %v5210 = vld [vmem:[%s4 + $0x40] sm:$0xff]
      %v5211 = vld [vmem:[%s4 + $0x48] sm:$0xff]
      %v5212 = vld [vmem:[%s4 + $0x50] sm:$0xff]
      %v5213 = vld [vmem:[%s4 + $0x58] sm:$0xff]
      %v5214 = vld [vmem:[%s4 + $0x60] sm:$0xff]
      %v5215 = vld [vmem:[%s4 + $0x68] sm:$0xff]
      %v5216 = vld [vmem:[%s4 + $0x70] sm:$0xff]
      %v5217 = vld [vmem:[%s4 + $0x78] sm:$0xff]
      %v5218 = vunpack.c.l.b16 %v5103
      %v5219 = vunpack.c.l.b16 %v5117
      %v5220 = vunpack.c.l.b16 %v5131
      %v5221 = vunpack.c.l.b16 %v5145
      %v5222 = vunpack.c.l.b16 %v5159
      %v5223 = vunpack.c.l.b16 %v5173
      %v5224 = vunpack.c.l.b16 %v5187
      %v5225 = vunpack.c.l.b16 %v5201
      %v5226 = vpack.c.b16 %v5219, %v5218
      %v5227 = vpack.c.b16 %v5221, %v5220
      %v5228 = vpack.c.b16 %v5223, %v5222
      %v5229 = vpack.c.b16 %v5225, %v5224
      %v5250 = vunpack.c.l.b16 %v5202
      %v5251 = vunpack.c.h.b16 %v5202
      %v5252 = vunpack.c.l.b16 %v5203
      %v5253 = vunpack.c.h.b16 %v5203
      %v5254 = vunpack.c.l.b16 %v5204
      %v5255 = vunpack.c.h.b16 %v5204
      %v5256 = vunpack.c.l.b16 %v5205
      %v5257 = vunpack.c.h.b16 %v5205
      %v5258 = vunpack.c.l.b16 %v5206
      %v5259 = vunpack.c.h.b16 %v5206
      %v5260 = vunpack.c.l.b16 %v5207
      %v5261 = vunpack.c.h.b16 %v5207
      %v5262 = vunpack.c.l.b16 %v5208
      %v5263 = vunpack.c.h.b16 %v5208
      %v5264 = vunpack.c.l.b16 %v5209
      %v5265 = vunpack.c.h.b16 %v5209
      %v5266 = vunpack.c.l.b16 %v5210
      %v5267 = vunpack.c.h.b16 %v5210
      %v5268 = vunpack.c.l.b16 %v5211
      %v5269 = vunpack.c.h.b16 %v5211
      %v5270 = vunpack.c.l.b16 %v5212
      %v5271 = vunpack.c.h.b16 %v5212
      %v5272 = vunpack.c.l.b16 %v5213
      %v5273 = vunpack.c.h.b16 %v5213
      %v5274 = vunpack.c.l.b16 %v5214
      %v5275 = vunpack.c.h.b16 %v5214
      %v5276 = vunpack.c.l.b16 %v5215
      %v5277 = vunpack.c.h.b16 %v5215
      %v5278 = vunpack.c.l.b16 %v5216
      %v5279 = vunpack.c.h.b16 %v5216
      %v5280 = vunpack.c.l.b16 %v5217
      %v5281 = vunpack.c.h.b16 %v5217
      %v5282 = vpack.c.b16 %v5252, %v5250
      %v5283 = vpack.c.b16 %v5253, %v5251
      %v5284 = vpack.c.b16 %v5256, %v5254
      %v5285 = vpack.c.b16 %v5257, %v5255
      %v5286 = vpack.c.b16 %v5260, %v5258
      %v5287 = vpack.c.b16 %v5261, %v5259
      %v5288 = vpack.c.b16 %v5264, %v5262
      %v5289 = vpack.c.b16 %v5265, %v5263
      %v5290 = vpack.c.b16 %v5268, %v5266
      %v5291 = vpack.c.b16 %v5269, %v5267
      %v5292 = vpack.c.b16 %v5272, %v5270
      %v5293 = vpack.c.b16 %v5273, %v5271
      %v5294 = vpack.c.b16 %v5276, %v5274
      %v5295 = vpack.c.b16 %v5277, %v5275
      %v5296 = vpack.c.b16 %v5280, %v5278
      %v5297 = vpack.c.b16 %v5281, %v5279
      %5314 = vmatprep.subr.bf16.mxu0 %v5297
      %5315 = vmatpush1.bf16.msra.mxu0 %v5296
      %5316 = vmatprep.subr.bf16.mxu0 %v5295
      %5317 = vmatpush1.bf16.msra.mxu0 %v5294
      %5318 = vmatprep.subr.bf16.mxu0 %v5293
      %5319 = vmatpush1.bf16.msra.mxu0 %v5292
      %5320 = vmatprep.subr.bf16.mxu0 %v5291
      %5321 = vmatpush1.bf16.msra.mxu0 %v5290
      %5322 = vmatprep.subr.bf16.mxu0 %v5289
      %5323 = vmatpush1.bf16.msra.mxu0 %v5288
      %5324 = vmatprep.subr.bf16.mxu0 %v5287
      %5325 = vmatpush1.bf16.msra.mxu0 %v5286
      %5326 = vmatprep.subr.bf16.mxu0 %v5285
      %5327 = vmatpush1.bf16.msra.mxu0 %v5284
      %5328 = vmatprep.subr.bf16.mxu0 %v5283
      %5329 = vmatpush1.bf16.msra.mxu0 %v5282
      %5330 = vmatprep.subr.bf16.mxu0 0
      %5331 = vmatpush2.bf16.msra.mxu0 0
      %5332 = vmatprep.subr.bf16.mxu0 0
      %5333 = vmatpush2.bf16.msra.mxu0 0
      %5334 = vmatprep.subr.bf16.mxu0 0
      %5335 = vmatpush2.bf16.msra.mxu0 0
      %5336 = vmatprep.subr.bf16.mxu0 0
      %5337 = vmatpush2.bf16.msra.mxu0 0
      %5338 = vmatprep.subr.bf16.mxu0 0
      %5339 = vmatpush2.bf16.msra.mxu0 0
      %5340 = vmatprep.subr.bf16.mxu0 0
      %5341 = vmatpush2.bf16.msra.mxu0 0
      %5342 = vmatprep.subr.bf16.mxu0 0
      %5343 = vmatpush2.bf16.msra.mxu0 0
      %5344 = vmatprep.subr.bf16.mxu0 0
      %5345 = vmatpush2.bf16.msra.mxu0 0
      %5346 = vmatprep.mubr.bf16.mxu0 0
      %5347 = vmatmul.mubr.bf16.gmra.mxu0 %v5226
      %v5348 = vpop.f32.mrf.mxu0
      %v5349 = vadd.f32 0.0, %v5348
      %v5350 = vpop.f32.mrf.mxu0
      %v5351 = vadd.f32 0.0, %v5350
      %v5352 = vpop.f32.mrf.mxu0
      %v5353 = vadd.f32 0.0, %v5352
      %v5354 = vpop.f32.mrf.mxu0
      %v5355 = vadd.f32 0.0, %v5354
      %5356 = vmatprep.mubr.bf16.mxu0 0
      %5357 = vmatmul.mubr.bf16.gmra.mxu0 %v5227
      %v5358 = vpop.f32.mrf.mxu0
      %v5359 = vadd.f32 0.0, %v5358
      %v5360 = vpop.f32.mrf.mxu0
      %v5361 = vadd.f32 0.0, %v5360
      %v5362 = vpop.f32.mrf.mxu0
      %v5363 = vadd.f32 0.0, %v5362
      %v5364 = vpop.f32.mrf.mxu0
      %v5365 = vadd.f32 0.0, %v5364
      %5366 = vmatprep.mubr.bf16.mxu0 0
      %5367 = vmatmul.mubr.bf16.gmra.mxu0 %v5228
      %v5368 = vpop.f32.mrf.mxu0
      %v5369 = vadd.f32 0.0, %v5368
      %v5370 = vpop.f32.mrf.mxu0
      %v5371 = vadd.f32 0.0, %v5370
      %v5372 = vpop.f32.mrf.mxu0
      %v5373 = vadd.f32 0.0, %v5372
      %v5374 = vpop.f32.mrf.mxu0
      %v5375 = vadd.f32 0.0, %v5374
      %5376 = vmatprep.mubr.bf16.mxu0 0
      %5377 = vmatmul.mubr.bf16.gmra.mxu0 %v5229
      %v5378 = vpop.f32.mrf.mxu0
      %v5379 = vadd.f32 0.0, %v5378
      %v5380 = vpop.f32.mrf.mxu0
      %v5381 = vadd.f32 0.0, %v5380
      %v5382 = vpop.f32.mrf.mxu0
      %v5383 = vadd.f32 0.0, %v5382
      %v5384 = vpop.f32.mrf.mxu0
      %v5385 = vadd.f32 0.0, %v5384
      %5386 = vdwg.mxu0
      %v5387 = vadd.f32 %v5058, %v5349
      %v5388 = vadd.f32 %v5059, %v5351
      %v5389 = vadd.f32 %v5060, %v5353
      %v5390 = vadd.f32 %v5061, %v5355
      %v5391 = vadd.f32 %v5062, %v5359
      %v5392 = vadd.f32 %v5063, %v5361
      %v5393 = vadd.f32 %v5064, %v5363
      %v5394 = vadd.f32 %v5065, %v5365
      %v5395 = vadd.f32 %v5066, %v5369
      %v5396 = vadd.f32 %v5067, %v5371
      %v5397 = vadd.f32 %v5068, %v5373
      %v5398 = vadd.f32 %v5069, %v5375
      %v5399 = vadd.f32 %v5070, %v5379
      %v5400 = vadd.f32 %v5071, %v5381
      %v5401 = vadd.f32 %v5072, %v5383
      %v5402 = vadd.f32 %v5073, %v5385
      %v5403 = vld [vmem:[%s5] sm:$0x3]
      %v5405 = vlaneseq
      %v5406 = vshrl.u32 %v5405, 7
      %v5407 = vsub.s32 0, %v5406
      %v5408 = vrot.slane %v5403, %v5407
      %v5409 = vlaneseq
      %v5410 = vshrl.u32 %v5409, 7
      %v5411 = vsub.s32 1, %v5410
      %v5412 = vrot.slane %v5403, %v5411
      %v5415 = vadd.f32 %v5387, %v5408
      %v5416 = vadd.f32 %v5388, %v5412
      %v5417 = vadd.f32 %v5389, %v5408
      %v5418 = vadd.f32 %v5390, %v5412
      %v5419 = vadd.f32 %v5391, %v5408
      %v5420 = vadd.f32 %v5392, %v5412
      %v5421 = vadd.f32 %v5393, %v5408
      %v5422 = vadd.f32 %v5394, %v5412
      %v5423 = vadd.f32 %v5395, %v5408
      %v5424 = vadd.f32 %v5396, %v5412
      %v5425 = vadd.f32 %v5397, %v5408
      %v5426 = vadd.f32 %v5398, %v5412
      %v5427 = vadd.f32 %v5399, %v5408
      %v5428 = vadd.f32 %v5400, %v5412
      %v5429 = vadd.f32 %v5401, %v5408
      %v5430 = vadd.f32 %v5402, %v5412
      %v5431 = vmax.f32 %v5415, 0.0
      %v5432 = vmax.f32 %v5416, 0.0
      %v5433 = vmax.f32 %v5417, 0.0
      %v5434 = vmax.f32 %v5418, 0.0
      %v5435 = vmax.f32 %v5419, 0.0
      %v5436 = vmax.f32 %v5420, 0.0
      %v5437 = vmax.f32 %v5421, 0.0
      %v5438 = vmax.f32 %v5422, 0.0
      %v5439 = vmax.f32 %v5423, 0.0
      %v5440 = vmax.f32 %v5424, 0.0
      %v5441 = vmax.f32 %v5425, 0.0
      %v5442 = vmax.f32 %v5426, 0.0
      %v5443 = vmax.f32 %v5427, 0.0
      %v5444 = vmax.f32 %v5428, 0.0
      %v5445 = vmax.f32 %v5429, 0.0
      %v5446 = vmax.f32 %v5430, 0.0
      %v5447 = vpack.c.bf16 %v5433, %v5431
      %v5448 = vpack.c.bf16 %v5434, %v5432
      %v5449 = vpack.c.bf16 %v5437, %v5435
      %v5450 = vpack.c.bf16 %v5438, %v5436
      %v5451 = vpack.c.bf16 %v5441, %v5439
      %v5452 = vpack.c.bf16 %v5442, %v5440
      %v5453 = vpack.c.bf16 %v5445, %v5443
      %v5454 = vpack.c.bf16 %v5446, %v5444
      %v5463 = vunpack.c.l.b16 %v5447
      %v5464 = vunpack.c.l.b16 %v5448
      %v5465 = vunpack.c.h.b16 %v5447
      %v5466 = vunpack.c.h.b16 %v5448
      %v5467 = vunpack.c.l.b16 %v5449
      %v5468 = vunpack.c.l.b16 %v5450
      %v5469 = vunpack.c.h.b16 %v5449
      %v5470 = vunpack.c.h.b16 %v5450
      %v5471 = vunpack.c.l.b16 %v5451
      %v5472 = vunpack.c.l.b16 %v5452
      %v5473 = vunpack.c.h.b16 %v5451
      %v5474 = vunpack.c.h.b16 %v5452
      %v5475 = vunpack.c.l.b16 %v5453
      %v5476 = vunpack.c.l.b16 %v5454
      %v5477 = vunpack.c.h.b16 %v5453
      %v5478 = vunpack.c.h.b16 %v5454
      %v5479 = vpack.c.b16 %v5464, %v5463
      %v5480 = vpack.c.b16 %v5466, %v5465
      %v5481 = vpack.c.b16 %v5468, %v5467
      %v5482 = vpack.c.b16 %v5470, %v5469
      %v5483 = vpack.c.b16 %v5472, %v5471
      %v5484 = vpack.c.b16 %v5474, %v5473
      %v5485 = vpack.c.b16 %v5476, %v5475
      %v5486 = vpack.c.b16 %v5478, %v5477
      %v5488 = vshrl.u32 %v5479, 16
      %v5490 = vrot.slane %v5488, 7
      %v5491 = vshll.u32 %v5479, 16
      %v5493 = vor.u32 %v5490, %v5491
      %v5494 = vrot.slane %v5490, 4
      %v5496 = vshrl.u32 %v5480, 16
      %v5498 = vrot.slane %v5496, 7
      %v5499 = vshll.u32 %v5480, 16
      %v5501 = vor.u32 %v5498, %v5499
      %v5502 = vrot.slane %v5498, 4
      %v5504 = vshrl.u32 %v5481, 16
      %v5506 = vrot.slane %v5504, 7
      %v5507 = vshll.u32 %v5481, 16
      %v5509 = vor.u32 %v5506, %v5507
      %v5510 = vrot.slane %v5506, 4
      %v5512 = vshrl.u32 %v5482, 16
      %v5514 = vrot.slane %v5512, 7
      %v5515 = vshll.u32 %v5482, 16
      %v5517 = vor.u32 %v5514, %v5515
      %v5518 = vrot.slane %v5514, 4
      %v5520 = vshrl.u32 %v5483, 16
      %v5522 = vrot.slane %v5520, 7
      %v5523 = vshll.u32 %v5483, 16
      %v5525 = vor.u32 %v5522, %v5523
      %v5526 = vrot.slane %v5522, 4
      %v5528 = vshrl.u32 %v5484, 16
      %v5530 = vrot.slane %v5528, 7
      %v5531 = vshll.u32 %v5484, 16
      %v5533 = vor.u32 %v5530, %v5531
      %v5534 = vrot.slane %v5530, 4
      %v5536 = vshrl.u32 %v5485, 16
      %v5538 = vrot.slane %v5536, 7
      %v5539 = vshll.u32 %v5485, 16
      %v5541 = vor.u32 %v5538, %v5539
      %v5542 = vrot.slane %v5538, 4
      %v5544 = vshrl.u32 %v5486, 16
      %v5546 = vrot.slane %v5544, 7
      %v5547 = vshll.u32 %v5486, 16
      %v5549 = vor.u32 %v5546, %v5547
      %v5550 = vrot.slane %v5546, 4
      %v5567 = vld [vmem:[%s513] sm:$0xff]
      %v5568 = vsel %vm372, %v5493, %v5567
      %5569 = vst [vmem:[%s513] sm:$0xff] %v5568
      %v5570 = vld [vmem:[%s513 + $0x8] sm:$0x11]
      %v5571 = vsel %vm341, %v5494, %v5570
      %5572 = vst [vmem:[%s513 + $0x8] sm:$0x11] %v5571
      %v5573 = vld [vmem:[%s513 + $0x10] sm:$0xff]
      %v5574 = vsel %vm372, %v5501, %v5573
      %5575 = vst [vmem:[%s513 + $0x10] sm:$0xff] %v5574
      %v5576 = vld [vmem:[%s513 + $0x18] sm:$0x11]
      %v5577 = vsel %vm341, %v5502, %v5576
      %5578 = vst [vmem:[%s513 + $0x18] sm:$0x11] %v5577
      %v5579 = vld [vmem:[%s513 + $0x20] sm:$0xff]
      %v5580 = vsel %vm372, %v5509, %v5579
      %5581 = vst [vmem:[%s513 + $0x20] sm:$0xff] %v5580
      %v5582 = vld [vmem:[%s513 + $0x28] sm:$0x11]
      %v5583 = vsel %vm341, %v5510, %v5582
      %5584 = vst [vmem:[%s513 + $0x28] sm:$0x11] %v5583
      %v5585 = vld [vmem:[%s513 + $0x30] sm:$0xff]
      %v5586 = vsel %vm372, %v5517, %v5585
      %5587 = vst [vmem:[%s513 + $0x30] sm:$0xff] %v5586
      %v5588 = vld [vmem:[%s513 + $0x38] sm:$0x11]
      %v5589 = vsel %vm341, %v5518, %v5588
      %5590 = vst [vmem:[%s513 + $0x38] sm:$0x11] %v5589
      %v5591 = vld [vmem:[%s513 + $0x40] sm:$0xff]
      %v5592 = vsel %vm372, %v5525, %v5591
      %5593 = vst [vmem:[%s513 + $0x40] sm:$0xff] %v5592
      %v5594 = vld [vmem:[%s513 + $0x48] sm:$0x11]
      %v5595 = vsel %vm341, %v5526, %v5594
      %5596 = vst [vmem:[%s513 + $0x48] sm:$0x11] %v5595
      %v5597 = vld [vmem:[%s513 + $0x50] sm:$0xff]
      %v5598 = vsel %vm372, %v5533, %v5597
      %5599 = vst [vmem:[%s513 + $0x50] sm:$0xff] %v5598
      %v5600 = vld [vmem:[%s513 + $0x58] sm:$0x11]
      %v5601 = vsel %vm341, %v5534, %v5600
      %5602 = vst [vmem:[%s513 + $0x58] sm:$0x11] %v5601
      %v5603 = vld [vmem:[%s513 + $0x60] sm:$0xff]
      %v5604 = vsel %vm372, %v5541, %v5603
      %5605 = vst [vmem:[%s513 + $0x60] sm:$0xff] %v5604
      %v5606 = vld [vmem:[%s513 + $0x68] sm:$0x11]
      %v5607 = vsel %vm341, %v5542, %v5606
      %5608 = vst [vmem:[%s513 + $0x68] sm:$0x11] %v5607
      %v5609 = vld [vmem:[%s513 + $0x70] sm:$0xff]
      %v5610 = vsel %vm372, %v5549, %v5609
      %5611 = vst [vmem:[%s513 + $0x70] sm:$0xff] %v5610
      %v5612 = vld [vmem:[%s513 + $0x78] sm:$0x11]
      %v5613 = vsel %vm341, %v5550, %v5612
      %5614 = vst [vmem:[%s513 + $0x78] sm:$0x11] %v5613
      %v5615 = vld [vmem:[%s507] sm:$0xff]
      %v5616 = vld [vmem:[%s507 + $0x10] sm:$0xff]
      %v5617 = vld [vmem:[%s507 + $0x20] sm:$0xff]
      %v5618 = vld [vmem:[%s507 + $0x30] sm:$0xff]
      %v5619 = vld [vmem:[%s507 + $0x40] sm:$0xff]
      %v5620 = vld [vmem:[%s507 + $0x50] sm:$0xff]
      %v5621 = vld [vmem:[%s507 + $0x60] sm:$0xff]
      %v5622 = vld [vmem:[%s507 + $0x70] sm:$0xff]
      %v5623 = vld [vmem:[%s6] sm:$0xf]
      %v5624 = vld [vmem:[%s6 + $0x4] sm:$0xf]
      %v5625 = vld [vmem:[%s6 + $0x8] sm:$0xf]
      %v5626 = vld [vmem:[%s6 + $0xc] sm:$0xf]
      %v5627 = vld [vmem:[%s6 + $0x10] sm:$0xf]
      %v5628 = vld [vmem:[%s6 + $0x14] sm:$0xf]
      %v5629 = vld [vmem:[%s6 + $0x18] sm:$0xf]
      %v5630 = vld [vmem:[%s6 + $0x1c] sm:$0xf]
      %v5631 = vld [vmem:[%s6 + $0x20] sm:$0xf]
      %v5632 = vld [vmem:[%s6 + $0x24] sm:$0xf]
      %v5633 = vld [vmem:[%s6 + $0x28] sm:$0xf]
      %v5634 = vld [vmem:[%s6 + $0x2c] sm:$0xf]
      %v5635 = vld [vmem:[%s6 + $0x30] sm:$0xf]
      %v5636 = vld [vmem:[%s6 + $0x34] sm:$0xf]
      %v5637 = vld [vmem:[%s6 + $0x38] sm:$0xf]
      %v5638 = vld [vmem:[%s6 + $0x3c] sm:$0xf]
      %v5639 = vld [vmem:[%s6 + $0x40] sm:$0xf]
      %v5640 = vld [vmem:[%s6 + $0x44] sm:$0xf]
      %v5641 = vld [vmem:[%s6 + $0x48] sm:$0xf]
      %v5642 = vld [vmem:[%s6 + $0x4c] sm:$0xf]
      %v5643 = vld [vmem:[%s6 + $0x50] sm:$0xf]
      %v5644 = vld [vmem:[%s6 + $0x54] sm:$0xf]
      %v5645 = vld [vmem:[%s6 + $0x58] sm:$0xf]
      %v5646 = vld [vmem:[%s6 + $0x5c] sm:$0xf]
      %v5647 = vld [vmem:[%s6 + $0x60] sm:$0xf]
      %v5648 = vld [vmem:[%s6 + $0x64] sm:$0xf]
      %v5649 = vld [vmem:[%s6 + $0x68] sm:$0xf]
      %v5650 = vld [vmem:[%s6 + $0x6c] sm:$0xf]
      %v5651 = vld [vmem:[%s6 + $0x70] sm:$0xf]
      %v5652 = vld [vmem:[%s6 + $0x74] sm:$0xf]
      %v5653 = vld [vmem:[%s6 + $0x78] sm:$0xf]
      %v5654 = vld [vmem:[%s6 + $0x7c] sm:$0xf]
      %v5655 = vld [vmem:[%s507 + $0x8] sm:$0x11]
      %v5656 = vld [vmem:[%s507 + $0x18] sm:$0x11]
      %v5657 = vld [vmem:[%s507 + $0x28] sm:$0x11]
      %v5658 = vld [vmem:[%s507 + $0x38] sm:$0x11]
      %v5659 = vld [vmem:[%s507 + $0x48] sm:$0x11]
      %v5660 = vld [vmem:[%s507 + $0x58] sm:$0x11]
      %v5661 = vld [vmem:[%s507 + $0x68] sm:$0x11]
      %v5662 = vld [vmem:[%s507 + $0x78] sm:$0x11]
      %v5664 = vshrl.u32 %v5615, 16
      %v5666 = vrot.slane %v5664, 4
      %v5667 = vshll.u32 %v5615, 16
      %v5669 = vrot.slane %v5667, 5
      %v5670 = vor.u32 %v5666, %v5669
      %v5671 = vrot.slane %v5670, 4
      %v5673 = vshll.u32 %v5655, 16
      %v5675 = vrot.slane %v5673, 5
      %v5676 = vsel %vm998, %v5671, %v5675
      %v5678 = vshrl.u32 %v5616, 16
      %v5680 = vrot.slane %v5678, 4
      %v5681 = vshll.u32 %v5616, 16
      %v5683 = vrot.slane %v5681, 5
      %v5684 = vor.u32 %v5680, %v5683
      %v5685 = vrot.slane %v5684, 4
      %v5687 = vshll.u32 %v5656, 16
      %v5689 = vrot.slane %v5687, 5
      %v5690 = vsel %vm998, %v5685, %v5689
      %v5692 = vshrl.u32 %v5617, 16
      %v5694 = vrot.slane %v5692, 4
      %v5695 = vshll.u32 %v5617, 16
      %v5697 = vrot.slane %v5695, 5
      %v5698 = vor.u32 %v5694, %v5697
      %v5699 = vrot.slane %v5698, 4
      %v5701 = vshll.u32 %v5657, 16
      %v5703 = vrot.slane %v5701, 5
      %v5704 = vsel %vm998, %v5699, %v5703
      %v5706 = vshrl.u32 %v5618, 16
      %v5708 = vrot.slane %v5706, 4
      %v5709 = vshll.u32 %v5618, 16
      %v5711 = vrot.slane %v5709, 5
      %v5712 = vor.u32 %v5708, %v5711
      %v5713 = vrot.slane %v5712, 4
      %v5715 = vshll.u32 %v5658, 16
      %v5717 = vrot.slane %v5715, 5
      %v5718 = vsel %vm998, %v5713, %v5717
      %v5720 = vshrl.u32 %v5619, 16
      %v5722 = vrot.slane %v5720, 4
      %v5723 = vshll.u32 %v5619, 16
      %v5725 = vrot.slane %v5723, 5
      %v5726 = vor.u32 %v5722, %v5725
      %v5727 = vrot.slane %v5726, 4
      %v5729 = vshll.u32 %v5659, 16
      %v5731 = vrot.slane %v5729, 5
      %v5732 = vsel %vm998, %v5727, %v5731
      %v5734 = vshrl.u32 %v5620, 16
      %v5736 = vrot.slane %v5734, 4
      %v5737 = vshll.u32 %v5620, 16
      %v5739 = vrot.slane %v5737, 5
      %v5740 = vor.u32 %v5736, %v5739
      %v5741 = vrot.slane %v5740, 4
      %v5743 = vshll.u32 %v5660, 16
      %v5745 = vrot.slane %v5743, 5
      %v5746 = vsel %vm998, %v5741, %v5745
      %v5748 = vshrl.u32 %v5621, 16
      %v5750 = vrot.slane %v5748, 4
      %v5751 = vshll.u32 %v5621, 16
      %v5753 = vrot.slane %v5751, 5
      %v5754 = vor.u32 %v5750, %v5753
      %v5755 = vrot.slane %v5754, 4
      %v5757 = vshll.u32 %v5661, 16
      %v5759 = vrot.slane %v5757, 5
      %v5760 = vsel %vm998, %v5755, %v5759
      %v5762 = vshrl.u32 %v5622, 16
      %v5764 = vrot.slane %v5762, 4
      %v5765 = vshll.u32 %v5622, 16
      %v5767 = vrot.slane %v5765, 5
      %v5768 = vor.u32 %v5764, %v5767
      %v5769 = vrot.slane %v5768, 4
      %v5771 = vshll.u32 %v5662, 16
      %v5773 = vrot.slane %v5771, 5
      %v5774 = vsel %vm998, %v5769, %v5773
      %s5775 = scalar_lea.vmem %s6, 128
      %v5776 = vld [vmem:[%s5775] sm:$0xf]
      %v5777 = vld [vmem:[%s5775 + $0x4] sm:$0xf]
      %v5778 = vld [vmem:[%s5775 + $0x8] sm:$0xf]
      %v5779 = vld [vmem:[%s5775 + $0xc] sm:$0xf]
      %v5780 = vld [vmem:[%s5775 + $0x10] sm:$0xf]
      %v5781 = vld [vmem:[%s5775 + $0x14] sm:$0xf]
      %v5782 = vld [vmem:[%s5775 + $0x18] sm:$0xf]
      %v5783 = vld [vmem:[%s5775 + $0x1c] sm:$0xf]
      %v5784 = vld [vmem:[%s5775 + $0x20] sm:$0xf]
      %v5785 = vld [vmem:[%s5775 + $0x24] sm:$0xf]
      %v5786 = vld [vmem:[%s5775 + $0x28] sm:$0xf]
      %v5787 = vld [vmem:[%s5775 + $0x2c] sm:$0xf]
      %v5788 = vld [vmem:[%s5775 + $0x30] sm:$0xf]
      %v5789 = vld [vmem:[%s5775 + $0x34] sm:$0xf]
      %v5790 = vld [vmem:[%s5775 + $0x38] sm:$0xf]
      %v5791 = vld [vmem:[%s5775 + $0x3c] sm:$0xf]
      %v5792 = vld [vmem:[%s5775 + $0x40] sm:$0xf]
      %v5793 = vld [vmem:[%s5775 + $0x44] sm:$0xf]
      %v5794 = vld [vmem:[%s5775 + $0x48] sm:$0xf]
      %v5795 = vld [vmem:[%s5775 + $0x4c] sm:$0xf]
      %v5796 = vld [vmem:[%s5775 + $0x50] sm:$0xf]
      %v5797 = vld [vmem:[%s5775 + $0x54] sm:$0xf]
      %v5798 = vld [vmem:[%s5775 + $0x58] sm:$0xf]
      %v5799 = vld [vmem:[%s5775 + $0x5c] sm:$0xf]
      %v5800 = vld [vmem:[%s5775 + $0x60] sm:$0xf]
      %v5801 = vld [vmem:[%s5775 + $0x64] sm:$0xf]
      %v5802 = vld [vmem:[%s5775 + $0x68] sm:$0xf]
      %v5803 = vld [vmem:[%s5775 + $0x6c] sm:$0xf]
      %v5804 = vld [vmem:[%s5775 + $0x70] sm:$0xf]
      %v5805 = vld [vmem:[%s5775 + $0x74] sm:$0xf]
      %v5806 = vld [vmem:[%s5775 + $0x78] sm:$0xf]
      %v5807 = vld [vmem:[%s5775 + $0x7c] sm:$0xf]
      %v5808 = vunpack.c.l.b16 %v5676
      %v5809 = vunpack.c.h.b16 %v5676
      %v5810 = vunpack.c.l.b16 %v5690
      %v5811 = vunpack.c.h.b16 %v5690
      %v5812 = vunpack.c.l.b16 %v5704
      %v5813 = vunpack.c.h.b16 %v5704
      %v5814 = vunpack.c.l.b16 %v5718
      %v5815 = vunpack.c.h.b16 %v5718
      %v5816 = vunpack.c.l.b16 %v5732
      %v5817 = vunpack.c.h.b16 %v5732
      %v5818 = vunpack.c.l.b16 %v5746
      %v5819 = vunpack.c.h.b16 %v5746
      %v5820 = vunpack.c.l.b16 %v5760
      %v5821 = vunpack.c.h.b16 %v5760
      %v5822 = vunpack.c.l.b16 %v5774
      %v5823 = vunpack.c.h.b16 %v5774
      %v5824 = vpack.c.b16 %v5810, %v5808
      %v5825 = vpack.c.b16 %v5811, %v5809
      %v5826 = vpack.c.b16 %v5814, %v5812
      %v5827 = vpack.c.b16 %v5815, %v5813
      %v5828 = vpack.c.b16 %v5818, %v5816
      %v5829 = vpack.c.b16 %v5819, %v5817
      %v5830 = vpack.c.b16 %v5822, %v5820
      %v5831 = vpack.c.b16 %v5823, %v5821
      %v5872 = vunpack.c.l.b16 %v5776
      %v5873 = vunpack.c.l.b16 %v5777
      %v5874 = vunpack.c.l.b16 %v5778
      %v5875 = vunpack.c.l.b16 %v5779
      %v5876 = vunpack.c.l.b16 %v5780
      %v5877 = vunpack.c.l.b16 %v5781
      %v5878 = vunpack.c.l.b16 %v5782
      %v5879 = vunpack.c.l.b16 %v5783
      %v5880 = vunpack.c.l.b16 %v5784
      %v5881 = vunpack.c.l.b16 %v5785
      %v5882 = vunpack.c.l.b16 %v5786
      %v5883 = vunpack.c.l.b16 %v5787
      %v5884 = vunpack.c.l.b16 %v5788
      %v5885 = vunpack.c.l.b16 %v5789
      %v5886 = vunpack.c.l.b16 %v5790
      %v5887 = vunpack.c.l.b16 %v5791
      %v5888 = vunpack.c.l.b16 %v5792
      %v5889 = vunpack.c.l.b16 %v5793
      %v5890 = vunpack.c.l.b16 %v5794
      %v5891 = vunpack.c.l.b16 %v5795
      %v5892 = vunpack.c.l.b16 %v5796
      %v5893 = vunpack.c.l.b16 %v5797
      %v5894 = vunpack.c.l.b16 %v5798
      %v5895 = vunpack.c.l.b16 %v5799
      %v5896 = vunpack.c.l.b16 %v5800
      %v5897 = vunpack.c.l.b16 %v5801
      %v5898 = vunpack.c.l.b16 %v5802
      %v5899 = vunpack.c.l.b16 %v5803
      %v5900 = vunpack.c.l.b16 %v5804
      %v5901 = vunpack.c.l.b16 %v5805
      %v5902 = vunpack.c.l.b16 %v5806
      %v5903 = vunpack.c.l.b16 %v5807
      %v5904 = vpack.c.b16 %v5873, %v5872
      %v5905 = vpack.c.b16 %v5875, %v5874
      %v5906 = vpack.c.b16 %v5877, %v5876
      %v5907 = vpack.c.b16 %v5879, %v5878
      %v5908 = vpack.c.b16 %v5881, %v5880
      %v5909 = vpack.c.b16 %v5883, %v5882
      %v5910 = vpack.c.b16 %v5885, %v5884
      %v5911 = vpack.c.b16 %v5887, %v5886
      %v5912 = vpack.c.b16 %v5889, %v5888
      %v5913 = vpack.c.b16 %v5891, %v5890
      %v5914 = vpack.c.b16 %v5893, %v5892
      %v5915 = vpack.c.b16 %v5895, %v5894
      %v5916 = vpack.c.b16 %v5897, %v5896
      %v5917 = vpack.c.b16 %v5899, %v5898
      %v5918 = vpack.c.b16 %v5901, %v5900
      %v5919 = vpack.c.b16 %v5903, %v5902
      %5936 = vmatprep.subr.bf16.mxu0 0
      %5937 = vmatpush1.bf16.msra.mxu0 %v5911
      %5938 = vmatprep.subr.bf16.mxu0 0
      %5939 = vmatpush1.bf16.msra.mxu0 %v5910
      %5940 = vmatprep.subr.bf16.mxu0 0
      %5941 = vmatpush1.bf16.msra.mxu0 %v5909
      %5942 = vmatprep.subr.bf16.mxu0 0
      %5943 = vmatpush1.bf16.msra.mxu0 %v5908
      %5944 = vmatprep.subr.bf16.mxu0 0
      %5945 = vmatpush1.bf16.msra.mxu0 %v5907
      %5946 = vmatprep.subr.bf16.mxu0 0
      %5947 = vmatpush1.bf16.msra.mxu0 %v5906
      %5948 = vmatprep.subr.bf16.mxu0 0
      %5949 = vmatpush1.bf16.msra.mxu0 %v5905
      %5950 = vmatprep.subr.bf16.mxu0 0
      %5951 = vmatpush1.bf16.msra.mxu0 %v5904
      %5952 = vmatprep.subr.bf16.mxu0 0
      %5953 = vmatpush2.bf16.msra.mxu0 %v5919
      %5954 = vmatprep.subr.bf16.mxu0 0
      %5955 = vmatpush2.bf16.msra.mxu0 %v5918
      %5956 = vmatprep.subr.bf16.mxu0 0
      %5957 = vmatpush2.bf16.msra.mxu0 %v5917
      %5958 = vmatprep.subr.bf16.mxu0 0
      %5959 = vmatpush2.bf16.msra.mxu0 %v5916
      %5960 = vmatprep.subr.bf16.mxu0 0
      %5961 = vmatpush2.bf16.msra.mxu0 %v5915
      %5962 = vmatprep.subr.bf16.mxu0 0
      %5963 = vmatpush2.bf16.msra.mxu0 %v5914
      %5964 = vmatprep.subr.bf16.mxu0 0
      %5965 = vmatpush2.bf16.msra.mxu0 %v5913
      %5966 = vmatprep.subr.bf16.mxu0 0
      %5967 = vmatpush2.bf16.msra.mxu0 %v5912
      %5968 = vmatprep.mubr.bf16.mxu0 %v5825
      %5969 = vmatmul.mubr.bf16.gmra.mxu0 %v5824
      %v5970 = vpop.f32.mrf.mxu0
      %v5971 = vadd.f32 0.0, %v5970
      %v5972 = vpop.f32.mrf.mxu0
      %v5973 = vpop.f32.mrf.mxu0
      %v5974 = vadd.f32 0.0, %v5973
      %v5975 = vpop.f32.mrf.mxu0
      %5976 = vmatprep.mubr.bf16.mxu0 %v5827
      %5977 = vmatmul.mubr.bf16.gmra.mxu0 %v5826
      %v5978 = vpop.f32.mrf.mxu0
      %v5979 = vadd.f32 0.0, %v5978
      %v5980 = vpop.f32.mrf.mxu0
      %v5981 = vpop.f32.mrf.mxu0
      %v5982 = vadd.f32 0.0, %v5981
      %v5983 = vpop.f32.mrf.mxu0
      %5984 = vmatprep.mubr.bf16.mxu0 %v5829
      %5985 = vmatmul.mubr.bf16.gmra.mxu0 %v5828
      %v5986 = vpop.f32.mrf.mxu0
      %v5987 = vadd.f32 0.0, %v5986
      %v5988 = vpop.f32.mrf.mxu0
      %v5989 = vpop.f32.mrf.mxu0
      %v5990 = vadd.f32 0.0, %v5989
      %v5991 = vpop.f32.mrf.mxu0
      %5992 = vmatprep.mubr.bf16.mxu0 %v5831
      %5993 = vmatmul.mubr.bf16.gmra.mxu0 %v5830
      %v5994 = vpop.f32.mrf.mxu0
      %v5995 = vadd.f32 0.0, %v5994
      %v5996 = vpop.f32.mrf.mxu0
      %v5997 = vpop.f32.mrf.mxu0
      %v5998 = vadd.f32 0.0, %v5997
      %v5999 = vpop.f32.mrf.mxu0
      %6000 = vdwg.mxu0
      %v6009 = vunpack.c.l.b16 %v5615
      %v6010 = vunpack.c.h.b16 %v5615
      %v6011 = vunpack.c.l.b16 %v5616
      %v6012 = vunpack.c.h.b16 %v5616
      %v6013 = vunpack.c.l.b16 %v5617
      %v6014 = vunpack.c.h.b16 %v5617
      %v6015 = vunpack.c.l.b16 %v5618
      %v6016 = vunpack.c.h.b16 %v5618
      %v6017 = vunpack.c.l.b16 %v5619
      %v6018 = vunpack.c.h.b16 %v5619
      %v6019 = vunpack.c.l.b16 %v5620
      %v6020 = vunpack.c.h.b16 %v5620
      %v6021 = vunpack.c.l.b16 %v5621
      %v6022 = vunpack.c.h.b16 %v5621
      %v6023 = vunpack.c.l.b16 %v5622
      %v6024 = vunpack.c.h.b16 %v5622
      %v6025 = vpack.c.b16 %v6011, %v6009
      %v6026 = vpack.c.b16 %v6012, %v6010
      %v6027 = vpack.c.b16 %v6015, %v6013
      %v6028 = vpack.c.b16 %v6016, %v6014
      %v6029 = vpack.c.b16 %v6019, %v6017
      %v6030 = vpack.c.b16 %v6020, %v6018
      %v6031 = vpack.c.b16 %v6023, %v6021
      %v6032 = vpack.c.b16 %v6024, %v6022
      %v6073 = vunpack.c.l.b16 %v5623
      %v6074 = vunpack.c.l.b16 %v5624
      %v6075 = vunpack.c.l.b16 %v5625
      %v6076 = vunpack.c.l.b16 %v5626
      %v6077 = vunpack.c.l.b16 %v5627
      %v6078 = vunpack.c.l.b16 %v5628
      %v6079 = vunpack.c.l.b16 %v5629
      %v6080 = vunpack.c.l.b16 %v5630
      %v6081 = vunpack.c.l.b16 %v5631
      %v6082 = vunpack.c.l.b16 %v5632
      %v6083 = vunpack.c.l.b16 %v5633
      %v6084 = vunpack.c.l.b16 %v5634
      %v6085 = vunpack.c.l.b16 %v5635
      %v6086 = vunpack.c.l.b16 %v5636
      %v6087 = vunpack.c.l.b16 %v5637
      %v6088 = vunpack.c.l.b16 %v5638
      %v6089 = vunpack.c.l.b16 %v5639
      %v6090 = vunpack.c.l.b16 %v5640
      %v6091 = vunpack.c.l.b16 %v5641
      %v6092 = vunpack.c.l.b16 %v5642
      %v6093 = vunpack.c.l.b16 %v5643
      %v6094 = vunpack.c.l.b16 %v5644
      %v6095 = vunpack.c.l.b16 %v5645
      %v6096 = vunpack.c.l.b16 %v5646
      %v6097 = vunpack.c.l.b16 %v5647
      %v6098 = vunpack.c.l.b16 %v5648
      %v6099 = vunpack.c.l.b16 %v5649
      %v6100 = vunpack.c.l.b16 %v5650
      %v6101 = vunpack.c.l.b16 %v5651
      %v6102 = vunpack.c.l.b16 %v5652
      %v6103 = vunpack.c.l.b16 %v5653
      %v6104 = vunpack.c.l.b16 %v5654
      %v6105 = vpack.c.b16 %v6074, %v6073
      %v6106 = vpack.c.b16 %v6076, %v6075
      %v6107 = vpack.c.b16 %v6078, %v6077
      %v6108 = vpack.c.b16 %v6080, %v6079
      %v6109 = vpack.c.b16 %v6082, %v6081
      %v6110 = vpack.c.b16 %v6084, %v6083
      %v6111 = vpack.c.b16 %v6086, %v6085
      %v6112 = vpack.c.b16 %v6088, %v6087
      %v6113 = vpack.c.b16 %v6090, %v6089
      %v6114 = vpack.c.b16 %v6092, %v6091
      %v6115 = vpack.c.b16 %v6094, %v6093
      %v6116 = vpack.c.b16 %v6096, %v6095
      %v6117 = vpack.c.b16 %v6098, %v6097
      %v6118 = vpack.c.b16 %v6100, %v6099
      %v6119 = vpack.c.b16 %v6102, %v6101
      %v6120 = vpack.c.b16 %v6104, %v6103
      %6137 = vmatprep.subr.bf16.mxu0 0
      %6138 = vmatpush1.bf16.msra.mxu0 %v6112
      %6139 = vmatprep.subr.bf16.mxu0 0
      %6140 = vmatpush1.bf16.msra.mxu0 %v6111
      %6141 = vmatprep.subr.bf16.mxu0 0
      %6142 = vmatpush1.bf16.msra.mxu0 %v6110
      %6143 = vmatprep.subr.bf16.mxu0 0
      %6144 = vmatpush1.bf16.msra.mxu0 %v6109
      %6145 = vmatprep.subr.bf16.mxu0 0
      %6146 = vmatpush1.bf16.msra.mxu0 %v6108
      %6147 = vmatprep.subr.bf16.mxu0 0
      %6148 = vmatpush1.bf16.msra.mxu0 %v6107
      %6149 = vmatprep.subr.bf16.mxu0 0
      %6150 = vmatpush1.bf16.msra.mxu0 %v6106
      %6151 = vmatprep.subr.bf16.mxu0 0
      %6152 = vmatpush1.bf16.msra.mxu0 %v6105
      %6153 = vmatprep.subr.bf16.mxu0 0
      %6154 = vmatpush2.bf16.msra.mxu0 %v6120
      %6155 = vmatprep.subr.bf16.mxu0 0
      %6156 = vmatpush2.bf16.msra.mxu0 %v6119
      %6157 = vmatprep.subr.bf16.mxu0 0
      %6158 = vmatpush2.bf16.msra.mxu0 %v6118
      %6159 = vmatprep.subr.bf16.mxu0 0
      %6160 = vmatpush2.bf16.msra.mxu0 %v6117
      %6161 = vmatprep.subr.bf16.mxu0 0
      %6162 = vmatpush2.bf16.msra.mxu0 %v6116
      %6163 = vmatprep.subr.bf16.mxu0 0
      %6164 = vmatpush2.bf16.msra.mxu0 %v6115
      %6165 = vmatprep.subr.bf16.mxu0 0
      %6166 = vmatpush2.bf16.msra.mxu0 %v6114
      %6167 = vmatprep.subr.bf16.mxu0 0
      %6168 = vmatpush2.bf16.msra.mxu0 %v6113
      %6169 = vmatprep.mubr.bf16.mxu0 %v6026
      %6170 = vmatmul.mubr.bf16.gmra.mxu0 %v6025
      %v6171 = vpop.f32.mrf.mxu0
      %v6172 = vadd.f32 %v5971, %v6171
      %v6173 = vpop.f32.mrf.mxu0
      %v6174 = vpop.f32.mrf.mxu0
      %v6175 = vadd.f32 %v5974, %v6174
      %v6176 = vpop.f32.mrf.mxu0
      %6177 = vmatprep.mubr.bf16.mxu0 %v6028
      %6178 = vmatmul.mubr.bf16.gmra.mxu0 %v6027
      %v6179 = vpop.f32.mrf.mxu0
      %v6180 = vadd.f32 %v5979, %v6179
      %v6181 = vpop.f32.mrf.mxu0
      %v6182 = vpop.f32.mrf.mxu0
      %v6183 = vadd.f32 %v5982, %v6182
      %v6184 = vpop.f32.mrf.mxu0
      %6185 = vmatprep.mubr.bf16.mxu0 %v6030
      %6186 = vmatmul.mubr.bf16.gmra.mxu0 %v6029
      %v6187 = vpop.f32.mrf.mxu0
      %v6188 = vadd.f32 %v5987, %v6187
      %v6189 = vpop.f32.mrf.mxu0
      %v6190 = vpop.f32.mrf.mxu0
      %v6191 = vadd.f32 %v5990, %v6190
      %v6192 = vpop.f32.mrf.mxu0
      %6193 = vmatprep.mubr.bf16.mxu0 %v6032
      %6194 = vmatmul.mubr.bf16.gmra.mxu0 %v6031
      %v6195 = vpop.f32.mrf.mxu0
      %v6196 = vadd.f32 %v5995, %v6195
      %v6197 = vpop.f32.mrf.mxu0
      %v6198 = vpop.f32.mrf.mxu0
      %v6199 = vadd.f32 %v5998, %v6198
      %v6200 = vpop.f32.mrf.mxu0
      %6201 = vdwg.mxu0
      %v6202 = vld [vmem:[%s507] sm:$0xee]
      %v6203 = vld [vmem:[%s507 + $0x10] sm:$0xee]
      %v6204 = vld [vmem:[%s507 + $0x20] sm:$0xee]
      %v6205 = vld [vmem:[%s507 + $0x30] sm:$0xee]
      %v6206 = vld [vmem:[%s507 + $0x40] sm:$0xee]
      %v6207 = vld [vmem:[%s507 + $0x50] sm:$0xee]
      %v6208 = vld [vmem:[%s507 + $0x60] sm:$0xee]
      %v6209 = vld [vmem:[%s507 + $0x70] sm:$0xee]
      %vm6226 = vcmask 1042432
      %vm6227 = vcmask 1046532
      %vm6228 = vmor %vm6226, %vm6227
      %v6229 = vrot.slane %v6202, 5
      %v6230 = vrot.slane %v6229, 4
      %v6231 = vrot.slane %v5655, 5
      %v6232 = vsel %vm6228, %v6230, %v6231
      %v6233 = vrot.slane %v6203, 5
      %v6234 = vrot.slane %v6233, 4
      %v6235 = vrot.slane %v5656, 5
      %v6236 = vsel %vm6228, %v6234, %v6235
      %v6237 = vrot.slane %v6204, 5
      %v6238 = vrot.slane %v6237, 4
      %v6239 = vrot.slane %v5657, 5
      %v6240 = vsel %vm6228, %v6238, %v6239
      %v6241 = vrot.slane %v6205, 5
      %v6242 = vrot.slane %v6241, 4
      %v6243 = vrot.slane %v5658, 5
      %v6244 = vsel %vm6228, %v6242, %v6243
      %v6245 = vrot.slane %v6206, 5
      %v6246 = vrot.slane %v6245, 4
      %v6247 = vrot.slane %v5659, 5
      %v6248 = vsel %vm6228, %v6246, %v6247
      %v6249 = vrot.slane %v6207, 5
      %v6250 = vrot.slane %v6249, 4
      %v6251 = vrot.slane %v5660, 5
      %v6252 = vsel %vm6228, %v6250, %v6251
      %v6253 = vrot.slane %v6208, 5
      %v6254 = vrot.slane %v6253, 4
      %v6255 = vrot.slane %v5661, 5
      %v6256 = vsel %vm6228, %v6254, %v6255
      %v6257 = vrot.slane %v6209, 5
      %v6258 = vrot.slane %v6257, 4
      %v6259 = vrot.slane %v5662, 5
      %v6260 = vsel %vm6228, %v6258, %v6259
      %s6261 = scalar_lea.vmem %s6, 256
      %v6262 = vld [vmem:[%s6261] sm:$0xf]
      %v6263 = vld [vmem:[%s6261 + $0x4] sm:$0xf]
      %v6264 = vld [vmem:[%s6261 + $0x8] sm:$0xf]
      %v6265 = vld [vmem:[%s6261 + $0xc] sm:$0xf]
      %v6266 = vld [vmem:[%s6261 + $0x10] sm:$0xf]
      %v6267 = vld [vmem:[%s6261 + $0x14] sm:$0xf]
      %v6268 = vld [vmem:[%s6261 + $0x18] sm:$0xf]
      %v6269 = vld [vmem:[%s6261 + $0x1c] sm:$0xf]
      %v6270 = vld [vmem:[%s6261 + $0x20] sm:$0xf]
      %v6271 = vld [vmem:[%s6261 + $0x24] sm:$0xf]
      %v6272 = vld [vmem:[%s6261 + $0x28] sm:$0xf]
      %v6273 = vld [vmem:[%s6261 + $0x2c] sm:$0xf]
      %v6274 = vld [vmem:[%s6261 + $0x30] sm:$0xf]
      %v6275 = vld [vmem:[%s6261 + $0x34] sm:$0xf]
      %v6276 = vld [vmem:[%s6261 + $0x38] sm:$0xf]
      %v6277 = vld [vmem:[%s6261 + $0x3c] sm:$0xf]
      %v6278 = vld [vmem:[%s6261 + $0x40] sm:$0xf]
      %v6279 = vld [vmem:[%s6261 + $0x44] sm:$0xf]
      %v6280 = vld [vmem:[%s6261 + $0x48] sm:$0xf]
      %v6281 = vld [vmem:[%s6261 + $0x4c] sm:$0xf]
      %v6282 = vld [vmem:[%s6261 + $0x50] sm:$0xf]
      %v6283 = vld [vmem:[%s6261 + $0x54] sm:$0xf]
      %v6284 = vld [vmem:[%s6261 + $0x58] sm:$0xf]
      %v6285 = vld [vmem:[%s6261 + $0x5c] sm:$0xf]
      %v6286 = vld [vmem:[%s6261 + $0x60] sm:$0xf]
      %v6287 = vld [vmem:[%s6261 + $0x64] sm:$0xf]
      %v6288 = vld [vmem:[%s6261 + $0x68] sm:$0xf]
      %v6289 = vld [vmem:[%s6261 + $0x6c] sm:$0xf]
      %v6290 = vld [vmem:[%s6261 + $0x70] sm:$0xf]
      %v6291 = vld [vmem:[%s6261 + $0x74] sm:$0xf]
      %v6292 = vld [vmem:[%s6261 + $0x78] sm:$0xf]
      %v6293 = vld [vmem:[%s6261 + $0x7c] sm:$0xf]
      %v6294 = vunpack.c.l.b16 %v6232
      %v6295 = vunpack.c.h.b16 %v6232
      %v6296 = vunpack.c.l.b16 %v6236
      %v6297 = vunpack.c.h.b16 %v6236
      %v6298 = vunpack.c.l.b16 %v6240
      %v6299 = vunpack.c.h.b16 %v6240
      %v6300 = vunpack.c.l.b16 %v6244
      %v6301 = vunpack.c.h.b16 %v6244
      %v6302 = vunpack.c.l.b16 %v6248
      %v6303 = vunpack.c.h.b16 %v6248
      %v6304 = vunpack.c.l.b16 %v6252
      %v6305 = vunpack.c.h.b16 %v6252
      %v6306 = vunpack.c.l.b16 %v6256
      %v6307 = vunpack.c.h.b16 %v6256
      %v6308 = vunpack.c.l.b16 %v6260
      %v6309 = vunpack.c.h.b16 %v6260
      %v6310 = vpack.c.b16 %v6296, %v6294
      %v6311 = vpack.c.b16 %v6297, %v6295
      %v6312 = vpack.c.b16 %v6300, %v6298
      %v6313 = vpack.c.b16 %v6301, %v6299
      %v6314 = vpack.c.b16 %v6304, %v6302
      %v6315 = vpack.c.b16 %v6305, %v6303
      %v6316 = vpack.c.b16 %v6308, %v6306
      %v6317 = vpack.c.b16 %v6309, %v6307
      %v6358 = vunpack.c.l.b16 %v6262
      %v6359 = vunpack.c.l.b16 %v6263
      %v6360 = vunpack.c.l.b16 %v6264
      %v6361 = vunpack.c.l.b16 %v6265
      %v6362 = vunpack.c.l.b16 %v6266
      %v6363 = vunpack.c.l.b16 %v6267
      %v6364 = vunpack.c.l.b16 %v6268
      %v6365 = vunpack.c.l.b16 %v6269
      %v6366 = vunpack.c.l.b16 %v6270
      %v6367 = vunpack.c.l.b16 %v6271
      %v6368 = vunpack.c.l.b16 %v6272
      %v6369 = vunpack.c.l.b16 %v6273
      %v6370 = vunpack.c.l.b16 %v6274
      %v6371 = vunpack.c.l.b16 %v6275
      %v6372 = vunpack.c.l.b16 %v6276
      %v6373 = vunpack.c.l.b16 %v6277
      %v6374 = vunpack.c.l.b16 %v6278
      %v6375 = vunpack.c.l.b16 %v6279
      %v6376 = vunpack.c.l.b16 %v6280
      %v6377 = vunpack.c.l.b16 %v6281
      %v6378 = vunpack.c.l.b16 %v6282
      %v6379 = vunpack.c.l.b16 %v6283
      %v6380 = vunpack.c.l.b16 %v6284
      %v6381 = vunpack.c.l.b16 %v6285
      %v6382 = vunpack.c.l.b16 %v6286
      %v6383 = vunpack.c.l.b16 %v6287
      %v6384 = vunpack.c.l.b16 %v6288
      %v6385 = vunpack.c.l.b16 %v6289
      %v6386 = vunpack.c.l.b16 %v6290
      %v6387 = vunpack.c.l.b16 %v6291
      %v6388 = vunpack.c.l.b16 %v6292
      %v6389 = vunpack.c.l.b16 %v6293
      %v6390 = vpack.c.b16 %v6359, %v6358
      %v6391 = vpack.c.b16 %v6361, %v6360
      %v6392 = vpack.c.b16 %v6363, %v6362
      %v6393 = vpack.c.b16 %v6365, %v6364
      %v6394 = vpack.c.b16 %v6367, %v6366
      %v6395 = vpack.c.b16 %v6369, %v6368
      %v6396 = vpack.c.b16 %v6371, %v6370
      %v6397 = vpack.c.b16 %v6373, %v6372
      %v6398 = vpack.c.b16 %v6375, %v6374
      %v6399 = vpack.c.b16 %v6377, %v6376
      %v6400 = vpack.c.b16 %v6379, %v6378
      %v6401 = vpack.c.b16 %v6381, %v6380
      %v6402 = vpack.c.b16 %v6383, %v6382
      %v6403 = vpack.c.b16 %v6385, %v6384
      %v6404 = vpack.c.b16 %v6387, %v6386
      %v6405 = vpack.c.b16 %v6389, %v6388
      %6422 = vmatprep.subr.bf16.mxu0 0
      %6423 = vmatpush1.bf16.msra.mxu0 %v6397
      %6424 = vmatprep.subr.bf16.mxu0 0
      %6425 = vmatpush1.bf16.msra.mxu0 %v6396
      %6426 = vmatprep.subr.bf16.mxu0 0
      %6427 = vmatpush1.bf16.msra.mxu0 %v6395
      %6428 = vmatprep.subr.bf16.mxu0 0
      %6429 = vmatpush1.bf16.msra.mxu0 %v6394
      %6430 = vmatprep.subr.bf16.mxu0 0
      %6431 = vmatpush1.bf16.msra.mxu0 %v6393
      %6432 = vmatprep.subr.bf16.mxu0 0
      %6433 = vmatpush1.bf16.msra.mxu0 %v6392
      %6434 = vmatprep.subr.bf16.mxu0 0
      %6435 = vmatpush1.bf16.msra.mxu0 %v6391
      %6436 = vmatprep.subr.bf16.mxu0 0
      %6437 = vmatpush1.bf16.msra.mxu0 %v6390
      %6438 = vmatprep.subr.bf16.mxu0 0
      %6439 = vmatpush2.bf16.msra.mxu0 %v6405
      %6440 = vmatprep.subr.bf16.mxu0 0
      %6441 = vmatpush2.bf16.msra.mxu0 %v6404
      %6442 = vmatprep.subr.bf16.mxu0 0
      %6443 = vmatpush2.bf16.msra.mxu0 %v6403
      %6444 = vmatprep.subr.bf16.mxu0 0
      %6445 = vmatpush2.bf16.msra.mxu0 %v6402
      %6446 = vmatprep.subr.bf16.mxu0 0
      %6447 = vmatpush2.bf16.msra.mxu0 %v6401
      %6448 = vmatprep.subr.bf16.mxu0 0
      %6449 = vmatpush2.bf16.msra.mxu0 %v6400
      %6450 = vmatprep.subr.bf16.mxu0 0
      %6451 = vmatpush2.bf16.msra.mxu0 %v6399
      %6452 = vmatprep.subr.bf16.mxu0 0
      %6453 = vmatpush2.bf16.msra.mxu0 %v6398
      %6454 = vmatprep.mubr.bf16.mxu0 %v6311
      %6455 = vmatmul.mubr.bf16.gmra.mxu0 %v6310
      %v6456 = vpop.f32.mrf.mxu0
      %v6457 = vadd.f32 0.0, %v6456
      %v6458 = vpop.f32.mrf.mxu0
      %v6459 = vpop.f32.mrf.mxu0
      %v6460 = vadd.f32 0.0, %v6459
      %v6461 = vpop.f32.mrf.mxu0
      %6462 = vmatprep.mubr.bf16.mxu0 %v6313
      %6463 = vmatmul.mubr.bf16.gmra.mxu0 %v6312
      %v6464 = vpop.f32.mrf.mxu0
      %v6465 = vadd.f32 0.0, %v6464
      %v6466 = vpop.f32.mrf.mxu0
      %v6467 = vpop.f32.mrf.mxu0
      %v6468 = vadd.f32 0.0, %v6467
      %v6469 = vpop.f32.mrf.mxu0
      %6470 = vmatprep.mubr.bf16.mxu0 %v6315
      %6471 = vmatmul.mubr.bf16.gmra.mxu0 %v6314
      %v6472 = vpop.f32.mrf.mxu0
      %v6473 = vadd.f32 0.0, %v6472
      %v6474 = vpop.f32.mrf.mxu0
      %v6475 = vpop.f32.mrf.mxu0
      %v6476 = vadd.f32 0.0, %v6475
      %v6477 = vpop.f32.mrf.mxu0
      %6478 = vmatprep.mubr.bf16.mxu0 %v6317
      %6479 = vmatmul.mubr.bf16.gmra.mxu0 %v6316
      %v6480 = vpop.f32.mrf.mxu0
      %v6481 = vadd.f32 0.0, %v6480
      %v6482 = vpop.f32.mrf.mxu0
      %v6483 = vpop.f32.mrf.mxu0
      %v6484 = vadd.f32 0.0, %v6483
      %v6485 = vpop.f32.mrf.mxu0
      %6486 = vdwg.mxu0
      %v6487 = vadd.f32 %v6172, %v6457
      %v6488 = vadd.f32 %v6175, %v6460
      %v6489 = vadd.f32 %v6180, %v6465
      %v6490 = vadd.f32 %v6183, %v6468
      %v6491 = vadd.f32 %v6188, %v6473
      %v6492 = vadd.f32 %v6191, %v6476
      %v6493 = vadd.f32 %v6196, %v6481
      %v6494 = vadd.f32 %v6199, %v6484
      %v6495 = vld [vmem:[%s334] sm:$0xff]
      %v6496 = vld [vmem:[%s334 + $0x10] sm:$0xff]
      %v6497 = vld [vmem:[%s334 + $0x20] sm:$0xff]
      %v6498 = vld [vmem:[%s334 + $0x30] sm:$0xff]
      %v6499 = vld [vmem:[%s334 + $0x40] sm:$0xff]
      %v6500 = vld [vmem:[%s334 + $0x50] sm:$0xff]
      %v6501 = vld [vmem:[%s334 + $0x60] sm:$0xff]
      %v6502 = vld [vmem:[%s334 + $0x70] sm:$0xff]
      %s6503 = scalar_lea.vmem %s6, 384
      %v6504 = vld [vmem:[%s6503] sm:$0xf]
      %v6505 = vld [vmem:[%s6503 + $0x4] sm:$0xf]
      %v6506 = vld [vmem:[%s6503 + $0x8] sm:$0xf]
      %v6507 = vld [vmem:[%s6503 + $0xc] sm:$0xf]
      %v6508 = vld [vmem:[%s6503 + $0x10] sm:$0xf]
      %v6509 = vld [vmem:[%s6503 + $0x14] sm:$0xf]
      %v6510 = vld [vmem:[%s6503 + $0x18] sm:$0xf]
      %v6511 = vld [vmem:[%s6503 + $0x1c] sm:$0xf]
      %v6512 = vld [vmem:[%s6503 + $0x20] sm:$0xf]
      %v6513 = vld [vmem:[%s6503 + $0x24] sm:$0xf]
      %v6514 = vld [vmem:[%s6503 + $0x28] sm:$0xf]
      %v6515 = vld [vmem:[%s6503 + $0x2c] sm:$0xf]
      %v6516 = vld [vmem:[%s6503 + $0x30] sm:$0xf]
      %v6517 = vld [vmem:[%s6503 + $0x34] sm:$0xf]
      %v6518 = vld [vmem:[%s6503 + $0x38] sm:$0xf]
      %v6519 = vld [vmem:[%s6503 + $0x3c] sm:$0xf]
      %v6520 = vld [vmem:[%s6503 + $0x40] sm:$0xf]
      %v6521 = vld [vmem:[%s6503 + $0x44] sm:$0xf]
      %v6522 = vld [vmem:[%s6503 + $0x48] sm:$0xf]
      %v6523 = vld [vmem:[%s6503 + $0x4c] sm:$0xf]
      %v6524 = vld [vmem:[%s6503 + $0x50] sm:$0xf]
      %v6525 = vld [vmem:[%s6503 + $0x54] sm:$0xf]
      %v6526 = vld [vmem:[%s6503 + $0x58] sm:$0xf]
      %v6527 = vld [vmem:[%s6503 + $0x5c] sm:$0xf]
      %v6528 = vld [vmem:[%s6503 + $0x60] sm:$0xf]
      %v6529 = vld [vmem:[%s6503 + $0x64] sm:$0xf]
      %v6530 = vld [vmem:[%s6503 + $0x68] sm:$0xf]
      %v6531 = vld [vmem:[%s6503 + $0x6c] sm:$0xf]
      %v6532 = vld [vmem:[%s6503 + $0x70] sm:$0xf]
      %v6533 = vld [vmem:[%s6503 + $0x74] sm:$0xf]
      %v6534 = vld [vmem:[%s6503 + $0x78] sm:$0xf]
      %v6535 = vld [vmem:[%s6503 + $0x7c] sm:$0xf]
      %v6544 = vunpack.c.l.b16 %v6495
      %v6545 = vunpack.c.h.b16 %v6495
      %v6546 = vunpack.c.l.b16 %v6496
      %v6547 = vunpack.c.h.b16 %v6496
      %v6548 = vunpack.c.l.b16 %v6497
      %v6549 = vunpack.c.h.b16 %v6497
      %v6550 = vunpack.c.l.b16 %v6498
      %v6551 = vunpack.c.h.b16 %v6498
      %v6552 = vunpack.c.l.b16 %v6499
      %v6553 = vunpack.c.h.b16 %v6499
      %v6554 = vunpack.c.l.b16 %v6500
      %v6555 = vunpack.c.h.b16 %v6500
      %v6556 = vunpack.c.l.b16 %v6501
      %v6557 = vunpack.c.h.b16 %v6501
      %v6558 = vunpack.c.l.b16 %v6502
      %v6559 = vunpack.c.h.b16 %v6502
      %v6560 = vpack.c.b16 %v6546, %v6544
      %v6561 = vpack.c.b16 %v6547, %v6545
      %v6562 = vpack.c.b16 %v6550, %v6548
      %v6563 = vpack.c.b16 %v6551, %v6549
      %v6564 = vpack.c.b16 %v6554, %v6552
      %v6565 = vpack.c.b16 %v6555, %v6553
      %v6566 = vpack.c.b16 %v6558, %v6556
      %v6567 = vpack.c.b16 %v6559, %v6557
      %v6608 = vunpack.c.l.b16 %v6504
      %v6609 = vunpack.c.l.b16 %v6505
      %v6610 = vunpack.c.l.b16 %v6506
      %v6611 = vunpack.c.l.b16 %v6507
      %v6612 = vunpack.c.l.b16 %v6508
      %v6613 = vunpack.c.l.b16 %v6509
      %v6614 = vunpack.c.l.b16 %v6510
      %v6615 = vunpack.c.l.b16 %v6511
      %v6616 = vunpack.c.l.b16 %v6512
      %v6617 = vunpack.c.l.b16 %v6513
      %v6618 = vunpack.c.l.b16 %v6514
      %v6619 = vunpack.c.l.b16 %v6515
      %v6620 = vunpack.c.l.b16 %v6516
      %v6621 = vunpack.c.l.b16 %v6517
      %v6622 = vunpack.c.l.b16 %v6518
      %v6623 = vunpack.c.l.b16 %v6519
      %v6624 = vunpack.c.l.b16 %v6520
      %v6625 = vunpack.c.l.b16 %v6521
      %v6626 = vunpack.c.l.b16 %v6522
      %v6627 = vunpack.c.l.b16 %v6523
      %v6628 = vunpack.c.l.b16 %v6524
      %v6629 = vunpack.c.l.b16 %v6525
      %v6630 = vunpack.c.l.b16 %v6526
      %v6631 = vunpack.c.l.b16 %v6527
      %v6632 = vunpack.c.l.b16 %v6528
      %v6633 = vunpack.c.l.b16 %v6529
      %v6634 = vunpack.c.l.b16 %v6530
      %v6635 = vunpack.c.l.b16 %v6531
      %v6636 = vunpack.c.l.b16 %v6532
      %v6637 = vunpack.c.l.b16 %v6533
      %v6638 = vunpack.c.l.b16 %v6534
      %v6639 = vunpack.c.l.b16 %v6535
      %v6640 = vpack.c.b16 %v6609, %v6608
      %v6641 = vpack.c.b16 %v6611, %v6610
      %v6642 = vpack.c.b16 %v6613, %v6612
      %v6643 = vpack.c.b16 %v6615, %v6614
      %v6644 = vpack.c.b16 %v6617, %v6616
      %v6645 = vpack.c.b16 %v6619, %v6618
      %v6646 = vpack.c.b16 %v6621, %v6620
      %v6647 = vpack.c.b16 %v6623, %v6622
      %v6648 = vpack.c.b16 %v6625, %v6624
      %v6649 = vpack.c.b16 %v6627, %v6626
      %v6650 = vpack.c.b16 %v6629, %v6628
      %v6651 = vpack.c.b16 %v6631, %v6630
      %v6652 = vpack.c.b16 %v6633, %v6632
      %v6653 = vpack.c.b16 %v6635, %v6634
      %v6654 = vpack.c.b16 %v6637, %v6636
      %v6655 = vpack.c.b16 %v6639, %v6638
      %6672 = vmatprep.subr.bf16.mxu0 0
      %6673 = vmatpush1.bf16.msra.mxu0 %v6647
      %6674 = vmatprep.subr.bf16.mxu0 0
      %6675 = vmatpush1.bf16.msra.mxu0 %v6646
      %6676 = vmatprep.subr.bf16.mxu0 0
      %6677 = vmatpush1.bf16.msra.mxu0 %v6645
      %6678 = vmatprep.subr.bf16.mxu0 0
      %6679 = vmatpush1.bf16.msra.mxu0 %v6644
      %6680 = vmatprep.subr.bf16.mxu0 0
      %6681 = vmatpush1.bf16.msra.mxu0 %v6643
      %6682 = vmatprep.subr.bf16.mxu0 0
      %6683 = vmatpush1.bf16.msra.mxu0 %v6642
      %6684 = vmatprep.subr.bf16.mxu0 0
      %6685 = vmatpush1.bf16.msra.mxu0 %v6641
      %6686 = vmatprep.subr.bf16.mxu0 0
      %6687 = vmatpush1.bf16.msra.mxu0 %v6640
      %6688 = vmatprep.subr.bf16.mxu0 0
      %6689 = vmatpush2.bf16.msra.mxu0 %v6655
      %6690 = vmatprep.subr.bf16.mxu0 0
      %6691 = vmatpush2.bf16.msra.mxu0 %v6654
      %6692 = vmatprep.subr.bf16.mxu0 0
      %6693 = vmatpush2.bf16.msra.mxu0 %v6653
      %6694 = vmatprep.subr.bf16.mxu0 0
      %6695 = vmatpush2.bf16.msra.mxu0 %v6652
      %6696 = vmatprep.subr.bf16.mxu0 0
      %6697 = vmatpush2.bf16.msra.mxu0 %v6651
      %6698 = vmatprep.subr.bf16.mxu0 0
      %6699 = vmatpush2.bf16.msra.mxu0 %v6650
      %6700 = vmatprep.subr.bf16.mxu0 0
      %6701 = vmatpush2.bf16.msra.mxu0 %v6649
      %6702 = vmatprep.subr.bf16.mxu0 0
      %6703 = vmatpush2.bf16.msra.mxu0 %v6648
      %6704 = vmatprep.mubr.bf16.mxu0 %v6561
      %6705 = vmatmul.mubr.bf16.gmra.mxu0 %v6560
      %v6706 = vpop.f32.mrf.mxu0
      %v6707 = vadd.f32 0.0, %v6706
      %v6708 = vpop.f32.mrf.mxu0
      %v6709 = vpop.f32.mrf.mxu0
      %v6710 = vadd.f32 0.0, %v6709
      %v6711 = vpop.f32.mrf.mxu0
      %6712 = vmatprep.mubr.bf16.mxu0 %v6563
      %6713 = vmatmul.mubr.bf16.gmra.mxu0 %v6562
      %v6714 = vpop.f32.mrf.mxu0
      %v6715 = vadd.f32 0.0, %v6714
      %v6716 = vpop.f32.mrf.mxu0
      %v6717 = vpop.f32.mrf.mxu0
      %v6718 = vadd.f32 0.0, %v6717
      %v6719 = vpop.f32.mrf.mxu0
      %6720 = vmatprep.mubr.bf16.mxu0 %v6565
      %6721 = vmatmul.mubr.bf16.gmra.mxu0 %v6564
      %v6722 = vpop.f32.mrf.mxu0
      %v6723 = vadd.f32 0.0, %v6722
      %v6724 = vpop.f32.mrf.mxu0
      %v6725 = vpop.f32.mrf.mxu0
      %v6726 = vadd.f32 0.0, %v6725
      %v6727 = vpop.f32.mrf.mxu0
      %6728 = vmatprep.mubr.bf16.mxu0 %v6567
      %6729 = vmatmul.mubr.bf16.gmra.mxu0 %v6566
      %v6730 = vpop.f32.mrf.mxu0
      %v6731 = vadd.f32 0.0, %v6730
      %v6732 = vpop.f32.mrf.mxu0
      %v6733 = vpop.f32.mrf.mxu0
      %v6734 = vadd.f32 0.0, %v6733
      %v6735 = vpop.f32.mrf.mxu0
      %6736 = vdwg.mxu0
      %v6737 = vadd.f32 %v6487, %v6707
      %v6738 = vadd.f32 %v6488, %v6710
      %v6739 = vadd.f32 %v6489, %v6715
      %v6740 = vadd.f32 %v6490, %v6718
      %v6741 = vadd.f32 %v6491, %v6723
      %v6742 = vadd.f32 %v6492, %v6726
      %v6743 = vadd.f32 %v6493, %v6731
      %v6744 = vadd.f32 %v6494, %v6734
      %v6745 = vld [vmem:[%s334] sm:$0xff]
      %v6746 = vld [vmem:[%s334 + $0x8] sm:$0x11]
      %v6747 = vld [vmem:[%s334 + $0x10] sm:$0xff]
      %v6748 = vld [vmem:[%s334 + $0x18] sm:$0x11]
      %v6749 = vld [vmem:[%s334 + $0x20] sm:$0xff]
      %v6750 = vld [vmem:[%s334 + $0x28] sm:$0x11]
      %v6751 = vld [vmem:[%s334 + $0x30] sm:$0xff]
      %v6752 = vld [vmem:[%s334 + $0x38] sm:$0x11]
      %v6753 = vld [vmem:[%s334 + $0x40] sm:$0xff]
      %v6754 = vld [vmem:[%s334 + $0x48] sm:$0x11]
      %v6755 = vld [vmem:[%s334 + $0x50] sm:$0xff]
      %v6756 = vld [vmem:[%s334 + $0x58] sm:$0x11]
      %v6757 = vld [vmem:[%s334 + $0x60] sm:$0xff]
      %v6758 = vld [vmem:[%s334 + $0x68] sm:$0x11]
      %v6759 = vld [vmem:[%s334 + $0x70] sm:$0xff]
      %v6760 = vld [vmem:[%s334 + $0x78] sm:$0x11]
      %v6762 = vshrl.u32 %v6745, 16
      %v6764 = vrot.slane %v6762, 4
      %v6765 = vshll.u32 %v6745, 16
      %v6767 = vrot.slane %v6765, 5
      %v6768 = vor.u32 %v6764, %v6767
      %v6769 = vrot.slane %v6768, 4
      %v6771 = vshll.u32 %v6746, 16
      %v6773 = vrot.slane %v6771, 5
      %v6774 = vsel %vm998, %v6769, %v6773
      %v6776 = vshrl.u32 %v6747, 16
      %v6778 = vrot.slane %v6776, 4
      %v6779 = vshll.u32 %v6747, 16
      %v6781 = vrot.slane %v6779, 5
      %v6782 = vor.u32 %v6778, %v6781
      %v6783 = vrot.slane %v6782, 4
      %v6785 = vshll.u32 %v6748, 16
      %v6787 = vrot.slane %v6785, 5
      %v6788 = vsel %vm998, %v6783, %v6787
      %v6790 = vshrl.u32 %v6749, 16
      %v6792 = vrot.slane %v6790, 4
      %v6793 = vshll.u32 %v6749, 16
      %v6795 = vrot.slane %v6793, 5
      %v6796 = vor.u32 %v6792, %v6795
      %v6797 = vrot.slane %v6796, 4
      %v6799 = vshll.u32 %v6750, 16
      %v6801 = vrot.slane %v6799, 5
      %v6802 = vsel %vm998, %v6797, %v6801
      %v6804 = vshrl.u32 %v6751, 16
      %v6806 = vrot.slane %v6804, 4
      %v6807 = vshll.u32 %v6751, 16
      %v6809 = vrot.slane %v6807, 5
      %v6810 = vor.u32 %v6806, %v6809
      %v6811 = vrot.slane %v6810, 4
      %v6813 = vshll.u32 %v6752, 16
      %v6815 = vrot.slane %v6813, 5
      %v6816 = vsel %vm998, %v6811, %v6815
      %v6818 = vshrl.u32 %v6753, 16
      %v6820 = vrot.slane %v6818, 4
      %v6821 = vshll.u32 %v6753, 16
      %v6823 = vrot.slane %v6821, 5
      %v6824 = vor.u32 %v6820, %v6823
      %v6825 = vrot.slane %v6824, 4
      %v6827 = vshll.u32 %v6754, 16
      %v6829 = vrot.slane %v6827, 5
      %v6830 = vsel %vm998, %v6825, %v6829
      %v6832 = vshrl.u32 %v6755, 16
      %v6834 = vrot.slane %v6832, 4
      %v6835 = vshll.u32 %v6755, 16
      %v6837 = vrot.slane %v6835, 5
      %v6838 = vor.u32 %v6834, %v6837
      %v6839 = vrot.slane %v6838, 4
      %v6841 = vshll.u32 %v6756, 16
      %v6843 = vrot.slane %v6841, 5
      %v6844 = vsel %vm998, %v6839, %v6843
      %v6846 = vshrl.u32 %v6757, 16
      %v6848 = vrot.slane %v6846, 4
      %v6849 = vshll.u32 %v6757, 16
      %v6851 = vrot.slane %v6849, 5
      %v6852 = vor.u32 %v6848, %v6851
      %v6853 = vrot.slane %v6852, 4
      %v6855 = vshll.u32 %v6758, 16
      %v6857 = vrot.slane %v6855, 5
      %v6858 = vsel %vm998, %v6853, %v6857
      %v6860 = vshrl.u32 %v6759, 16
      %v6862 = vrot.slane %v6860, 4
      %v6863 = vshll.u32 %v6759, 16
      %v6865 = vrot.slane %v6863, 5
      %v6866 = vor.u32 %v6862, %v6865
      %v6867 = vrot.slane %v6866, 4
      %v6869 = vshll.u32 %v6760, 16
      %v6871 = vrot.slane %v6869, 5
      %v6872 = vsel %vm998, %v6867, %v6871
      %s6873 = scalar_lea.vmem %s6, 512
      %v6874 = vld [vmem:[%s6873] sm:$0xf]
      %v6875 = vld [vmem:[%s6873 + $0x4] sm:$0xf]
      %v6876 = vld [vmem:[%s6873 + $0x8] sm:$0xf]
      %v6877 = vld [vmem:[%s6873 + $0xc] sm:$0xf]
      %v6878 = vld [vmem:[%s6873 + $0x10] sm:$0xf]
      %v6879 = vld [vmem:[%s6873 + $0x14] sm:$0xf]
      %v6880 = vld [vmem:[%s6873 + $0x18] sm:$0xf]
      %v6881 = vld [vmem:[%s6873 + $0x1c] sm:$0xf]
      %v6882 = vld [vmem:[%s6873 + $0x20] sm:$0xf]
      %v6883 = vld [vmem:[%s6873 + $0x24] sm:$0xf]
      %v6884 = vld [vmem:[%s6873 + $0x28] sm:$0xf]
      %v6885 = vld [vmem:[%s6873 + $0x2c] sm:$0xf]
      %v6886 = vld [vmem:[%s6873 + $0x30] sm:$0xf]
      %v6887 = vld [vmem:[%s6873 + $0x34] sm:$0xf]
      %v6888 = vld [vmem:[%s6873 + $0x38] sm:$0xf]
      %v6889 = vld [vmem:[%s6873 + $0x3c] sm:$0xf]
      %v6890 = vld [vmem:[%s6873 + $0x40] sm:$0xf]
      %v6891 = vld [vmem:[%s6873 + $0x44] sm:$0xf]
      %v6892 = vld [vmem:[%s6873 + $0x48] sm:$0xf]
      %v6893 = vld [vmem:[%s6873 + $0x4c] sm:$0xf]
      %v6894 = vld [vmem:[%s6873 + $0x50] sm:$0xf]
      %v6895 = vld [vmem:[%s6873 + $0x54] sm:$0xf]
      %v6896 = vld [vmem:[%s6873 + $0x58] sm:$0xf]
      %v6897 = vld [vmem:[%s6873 + $0x5c] sm:$0xf]
      %v6898 = vld [vmem:[%s6873 + $0x60] sm:$0xf]
      %v6899 = vld [vmem:[%s6873 + $0x64] sm:$0xf]
      %v6900 = vld [vmem:[%s6873 + $0x68] sm:$0xf]
      %v6901 = vld [vmem:[%s6873 + $0x6c] sm:$0xf]
      %v6902 = vld [vmem:[%s6873 + $0x70] sm:$0xf]
      %v6903 = vld [vmem:[%s6873 + $0x74] sm:$0xf]
      %v6904 = vld [vmem:[%s6873 + $0x78] sm:$0xf]
      %v6905 = vld [vmem:[%s6873 + $0x7c] sm:$0xf]
      %v6906 = vunpack.c.l.b16 %v6774
      %v6907 = vunpack.c.h.b16 %v6774
      %v6908 = vunpack.c.l.b16 %v6788
      %v6909 = vunpack.c.h.b16 %v6788
      %v6910 = vunpack.c.l.b16 %v6802
      %v6911 = vunpack.c.h.b16 %v6802
      %v6912 = vunpack.c.l.b16 %v6816
      %v6913 = vunpack.c.h.b16 %v6816
      %v6914 = vunpack.c.l.b16 %v6830
      %v6915 = vunpack.c.h.b16 %v6830
      %v6916 = vunpack.c.l.b16 %v6844
      %v6917 = vunpack.c.h.b16 %v6844
      %v6918 = vunpack.c.l.b16 %v6858
      %v6919 = vunpack.c.h.b16 %v6858
      %v6920 = vunpack.c.l.b16 %v6872
      %v6921 = vunpack.c.h.b16 %v6872
      %v6922 = vpack.c.b16 %v6908, %v6906
      %v6923 = vpack.c.b16 %v6909, %v6907
      %v6924 = vpack.c.b16 %v6912, %v6910
      %v6925 = vpack.c.b16 %v6913, %v6911
      %v6926 = vpack.c.b16 %v6916, %v6914
      %v6927 = vpack.c.b16 %v6917, %v6915
      %v6928 = vpack.c.b16 %v6920, %v6918
      %v6929 = vpack.c.b16 %v6921, %v6919
      %v6970 = vunpack.c.l.b16 %v6874
      %v6971 = vunpack.c.l.b16 %v6875
      %v6972 = vunpack.c.l.b16 %v6876
      %v6973 = vunpack.c.l.b16 %v6877
      %v6974 = vunpack.c.l.b16 %v6878
      %v6975 = vunpack.c.l.b16 %v6879
      %v6976 = vunpack.c.l.b16 %v6880
      %v6977 = vunpack.c.l.b16 %v6881
      %v6978 = vunpack.c.l.b16 %v6882
      %v6979 = vunpack.c.l.b16 %v6883
      %v6980 = vunpack.c.l.b16 %v6884
      %v6981 = vunpack.c.l.b16 %v6885
      %v6982 = vunpack.c.l.b16 %v6886
      %v6983 = vunpack.c.l.b16 %v6887
      %v6984 = vunpack.c.l.b16 %v6888
      %v6985 = vunpack.c.l.b16 %v6889
      %v6986 = vunpack.c.l.b16 %v6890
      %v6987 = vunpack.c.l.b16 %v6891
      %v6988 = vunpack.c.l.b16 %v6892
      %v6989 = vunpack.c.l.b16 %v6893
      %v6990 = vunpack.c.l.b16 %v6894
      %v6991 = vunpack.c.l.b16 %v6895
      %v6992 = vunpack.c.l.b16 %v6896
      %v6993 = vunpack.c.l.b16 %v6897
      %v6994 = vunpack.c.l.b16 %v6898
      %v6995 = vunpack.c.l.b16 %v6899
      %v6996 = vunpack.c.l.b16 %v6900
      %v6997 = vunpack.c.l.b16 %v6901
      %v6998 = vunpack.c.l.b16 %v6902
      %v6999 = vunpack.c.l.b16 %v6903
      %v7000 = vunpack.c.l.b16 %v6904
      %v7001 = vunpack.c.l.b16 %v6905
      %v7002 = vpack.c.b16 %v6971, %v6970
      %v7003 = vpack.c.b16 %v6973, %v6972
      %v7004 = vpack.c.b16 %v6975, %v6974
      %v7005 = vpack.c.b16 %v6977, %v6976
      %v7006 = vpack.c.b16 %v6979, %v6978
      %v7007 = vpack.c.b16 %v6981, %v6980
      %v7008 = vpack.c.b16 %v6983, %v6982
      %v7009 = vpack.c.b16 %v6985, %v6984
      %v7010 = vpack.c.b16 %v6987, %v6986
      %v7011 = vpack.c.b16 %v6989, %v6988
      %v7012 = vpack.c.b16 %v6991, %v6990
      %v7013 = vpack.c.b16 %v6993, %v6992
      %v7014 = vpack.c.b16 %v6995, %v6994
      %v7015 = vpack.c.b16 %v6997, %v6996
      %v7016 = vpack.c.b16 %v6999, %v6998
      %v7017 = vpack.c.b16 %v7001, %v7000
      %7034 = vmatprep.subr.bf16.mxu0 0
      %7035 = vmatpush1.bf16.msra.mxu0 %v7009
      %7036 = vmatprep.subr.bf16.mxu0 0
      %7037 = vmatpush1.bf16.msra.mxu0 %v7008
      %7038 = vmatprep.subr.bf16.mxu0 0
      %7039 = vmatpush1.bf16.msra.mxu0 %v7007
      %7040 = vmatprep.subr.bf16.mxu0 0
      %7041 = vmatpush1.bf16.msra.mxu0 %v7006
      %7042 = vmatprep.subr.bf16.mxu0 0
      %7043 = vmatpush1.bf16.msra.mxu0 %v7005
      %7044 = vmatprep.subr.bf16.mxu0 0
      %7045 = vmatpush1.bf16.msra.mxu0 %v7004
      %7046 = vmatprep.subr.bf16.mxu0 0
      %7047 = vmatpush1.bf16.msra.mxu0 %v7003
      %7048 = vmatprep.subr.bf16.mxu0 0
      %7049 = vmatpush1.bf16.msra.mxu0 %v7002
      %7050 = vmatprep.subr.bf16.mxu0 0
      %7051 = vmatpush2.bf16.msra.mxu0 %v7017
      %7052 = vmatprep.subr.bf16.mxu0 0
      %7053 = vmatpush2.bf16.msra.mxu0 %v7016
      %7054 = vmatprep.subr.bf16.mxu0 0
      %7055 = vmatpush2.bf16.msra.mxu0 %v7015
      %7056 = vmatprep.subr.bf16.mxu0 0
      %7057 = vmatpush2.bf16.msra.mxu0 %v7014
      %7058 = vmatprep.subr.bf16.mxu0 0
      %7059 = vmatpush2.bf16.msra.mxu0 %v7013
      %7060 = vmatprep.subr.bf16.mxu0 0
      %7061 = vmatpush2.bf16.msra.mxu0 %v7012
      %7062 = vmatprep.subr.bf16.mxu0 0
      %7063 = vmatpush2.bf16.msra.mxu0 %v7011
      %7064 = vmatprep.subr.bf16.mxu0 0
      %7065 = vmatpush2.bf16.msra.mxu0 %v7010
      %7066 = vmatprep.mubr.bf16.mxu0 %v6923
      %7067 = vmatmul.mubr.bf16.gmra.mxu0 %v6922
      %v7068 = vpop.f32.mrf.mxu0
      %v7069 = vadd.f32 0.0, %v7068
      %v7070 = vpop.f32.mrf.mxu0
      %v7071 = vpop.f32.mrf.mxu0
      %v7072 = vadd.f32 0.0, %v7071
      %v7073 = vpop.f32.mrf.mxu0
      %7074 = vmatprep.mubr.bf16.mxu0 %v6925
      %7075 = vmatmul.mubr.bf16.gmra.mxu0 %v6924
      %v7076 = vpop.f32.mrf.mxu0
      %v7077 = vadd.f32 0.0, %v7076
      %v7078 = vpop.f32.mrf.mxu0
      %v7079 = vpop.f32.mrf.mxu0
      %v7080 = vadd.f32 0.0, %v7079
      %v7081 = vpop.f32.mrf.mxu0
      %7082 = vmatprep.mubr.bf16.mxu0 %v6927
      %7083 = vmatmul.mubr.bf16.gmra.mxu0 %v6926
      %v7084 = vpop.f32.mrf.mxu0
      %v7085 = vadd.f32 0.0, %v7084
      %v7086 = vpop.f32.mrf.mxu0
      %v7087 = vpop.f32.mrf.mxu0
      %v7088 = vadd.f32 0.0, %v7087
      %v7089 = vpop.f32.mrf.mxu0
      %7090 = vmatprep.mubr.bf16.mxu0 %v6929
      %7091 = vmatmul.mubr.bf16.gmra.mxu0 %v6928
      %v7092 = vpop.f32.mrf.mxu0
      %v7093 = vadd.f32 0.0, %v7092
      %v7094 = vpop.f32.mrf.mxu0
      %v7095 = vpop.f32.mrf.mxu0
      %v7096 = vadd.f32 0.0, %v7095
      %v7097 = vpop.f32.mrf.mxu0
      %7098 = vdwg.mxu0
      %v7099 = vadd.f32 %v6737, %v7069
      %v7100 = vadd.f32 %v6738, %v7072
      %v7101 = vadd.f32 %v6739, %v7077
      %v7102 = vadd.f32 %v6740, %v7080
      %v7103 = vadd.f32 %v6741, %v7085
      %v7104 = vadd.f32 %v6742, %v7088
      %v7105 = vadd.f32 %v6743, %v7093
      %v7106 = vadd.f32 %v6744, %v7096
      %v7107 = vld [vmem:[%s334] sm:$0xee]
      %v7108 = vld [vmem:[%s334 + $0x10] sm:$0xee]
      %v7109 = vld [vmem:[%s334 + $0x20] sm:$0xee]
      %v7110 = vld [vmem:[%s334 + $0x30] sm:$0xee]
      %v7111 = vld [vmem:[%s334 + $0x40] sm:$0xee]
      %v7112 = vld [vmem:[%s334 + $0x50] sm:$0xee]
      %v7113 = vld [vmem:[%s334 + $0x60] sm:$0xee]
      %v7114 = vld [vmem:[%s334 + $0x70] sm:$0xee]
      %v7131 = vrot.slane %v7107, 5
      %v7132 = vrot.slane %v7131, 4
      %v7133 = vrot.slane %v6746, 5
      %v7134 = vsel %vm6228, %v7132, %v7133
      %v7135 = vrot.slane %v7108, 5
      %v7136 = vrot.slane %v7135, 4
      %v7137 = vrot.slane %v6748, 5
      %v7138 = vsel %vm6228, %v7136, %v7137
      %v7139 = vrot.slane %v7109, 5
      %v7140 = vrot.slane %v7139, 4
      %v7141 = vrot.slane %v6750, 5
      %v7142 = vsel %vm6228, %v7140, %v7141
      %v7143 = vrot.slane %v7110, 5
      %v7144 = vrot.slane %v7143, 4
      %v7145 = vrot.slane %v6752, 5
      %v7146 = vsel %vm6228, %v7144, %v7145
      %v7147 = vrot.slane %v7111, 5
      %v7148 = vrot.slane %v7147, 4
      %v7149 = vrot.slane %v6754, 5
      %v7150 = vsel %vm6228, %v7148, %v7149
      %v7151 = vrot.slane %v7112, 5
      %v7152 = vrot.slane %v7151, 4
      %v7153 = vrot.slane %v6756, 5
      %v7154 = vsel %vm6228, %v7152, %v7153
      %v7155 = vrot.slane %v7113, 5
      %v7156 = vrot.slane %v7155, 4
      %v7157 = vrot.slane %v6758, 5
      %v7158 = vsel %vm6228, %v7156, %v7157
      %v7159 = vrot.slane %v7114, 5
      %v7160 = vrot.slane %v7159, 4
      %v7161 = vrot.slane %v6760, 5
      %v7162 = vsel %vm6228, %v7160, %v7161
      %s7163 = scalar_lea.vmem %s6, 640
      %v7164 = vld [vmem:[%s7163] sm:$0xf]
      %v7165 = vld [vmem:[%s7163 + $0x4] sm:$0xf]
      %v7166 = vld [vmem:[%s7163 + $0x8] sm:$0xf]
      %v7167 = vld [vmem:[%s7163 + $0xc] sm:$0xf]
      %v7168 = vld [vmem:[%s7163 + $0x10] sm:$0xf]
      %v7169 = vld [vmem:[%s7163 + $0x14] sm:$0xf]
      %v7170 = vld [vmem:[%s7163 + $0x18] sm:$0xf]
      %v7171 = vld [vmem:[%s7163 + $0x1c] sm:$0xf]
      %v7172 = vld [vmem:[%s7163 + $0x20] sm:$0xf]
      %v7173 = vld [vmem:[%s7163 + $0x24] sm:$0xf]
      %v7174 = vld [vmem:[%s7163 + $0x28] sm:$0xf]
      %v7175 = vld [vmem:[%s7163 + $0x2c] sm:$0xf]
      %v7176 = vld [vmem:[%s7163 + $0x30] sm:$0xf]
      %v7177 = vld [vmem:[%s7163 + $0x34] sm:$0xf]
      %v7178 = vld [vmem:[%s7163 + $0x38] sm:$0xf]
      %v7179 = vld [vmem:[%s7163 + $0x3c] sm:$0xf]
      %v7180 = vld [vmem:[%s7163 + $0x40] sm:$0xf]
      %v7181 = vld [vmem:[%s7163 + $0x44] sm:$0xf]
      %v7182 = vld [vmem:[%s7163 + $0x48] sm:$0xf]
      %v7183 = vld [vmem:[%s7163 + $0x4c] sm:$0xf]
      %v7184 = vld [vmem:[%s7163 + $0x50] sm:$0xf]
      %v7185 = vld [vmem:[%s7163 + $0x54] sm:$0xf]
      %v7186 = vld [vmem:[%s7163 + $0x58] sm:$0xf]
      %v7187 = vld [vmem:[%s7163 + $0x5c] sm:$0xf]
      %v7188 = vld [vmem:[%s7163 + $0x60] sm:$0xf]
      %v7189 = vld [vmem:[%s7163 + $0x64] sm:$0xf]
      %v7190 = vld [vmem:[%s7163 + $0x68] sm:$0xf]
      %v7191 = vld [vmem:[%s7163 + $0x6c] sm:$0xf]
      %v7192 = vld [vmem:[%s7163 + $0x70] sm:$0xf]
      %v7193 = vld [vmem:[%s7163 + $0x74] sm:$0xf]
      %v7194 = vld [vmem:[%s7163 + $0x78] sm:$0xf]
      %v7195 = vld [vmem:[%s7163 + $0x7c] sm:$0xf]
      %v7196 = vunpack.c.l.b16 %v7134
      %v7197 = vunpack.c.h.b16 %v7134
      %v7198 = vunpack.c.l.b16 %v7138
      %v7199 = vunpack.c.h.b16 %v7138
      %v7200 = vunpack.c.l.b16 %v7142
      %v7201 = vunpack.c.h.b16 %v7142
      %v7202 = vunpack.c.l.b16 %v7146
      %v7203 = vunpack.c.h.b16 %v7146
      %v7204 = vunpack.c.l.b16 %v7150
      %v7205 = vunpack.c.h.b16 %v7150
      %v7206 = vunpack.c.l.b16 %v7154
      %v7207 = vunpack.c.h.b16 %v7154
      %v7208 = vunpack.c.l.b16 %v7158
      %v7209 = vunpack.c.h.b16 %v7158
      %v7210 = vunpack.c.l.b16 %v7162
      %v7211 = vunpack.c.h.b16 %v7162
      %v7212 = vpack.c.b16 %v7198, %v7196
      %v7213 = vpack.c.b16 %v7199, %v7197
      %v7214 = vpack.c.b16 %v7202, %v7200
      %v7215 = vpack.c.b16 %v7203, %v7201
      %v7216 = vpack.c.b16 %v7206, %v7204
      %v7217 = vpack.c.b16 %v7207, %v7205
      %v7218 = vpack.c.b16 %v7210, %v7208
      %v7219 = vpack.c.b16 %v7211, %v7209
      %v7260 = vunpack.c.l.b16 %v7164
      %v7261 = vunpack.c.l.b16 %v7165
      %v7262 = vunpack.c.l.b16 %v7166
      %v7263 = vunpack.c.l.b16 %v7167
      %v7264 = vunpack.c.l.b16 %v7168
      %v7265 = vunpack.c.l.b16 %v7169
      %v7266 = vunpack.c.l.b16 %v7170
      %v7267 = vunpack.c.l.b16 %v7171
      %v7268 = vunpack.c.l.b16 %v7172
      %v7269 = vunpack.c.l.b16 %v7173
      %v7270 = vunpack.c.l.b16 %v7174
      %v7271 = vunpack.c.l.b16 %v7175
      %v7272 = vunpack.c.l.b16 %v7176
      %v7273 = vunpack.c.l.b16 %v7177
      %v7274 = vunpack.c.l.b16 %v7178
      %v7275 = vunpack.c.l.b16 %v7179
      %v7276 = vunpack.c.l.b16 %v7180
      %v7277 = vunpack.c.l.b16 %v7181
      %v7278 = vunpack.c.l.b16 %v7182
      %v7279 = vunpack.c.l.b16 %v7183
      %v7280 = vunpack.c.l.b16 %v7184
      %v7281 = vunpack.c.l.b16 %v7185
      %v7282 = vunpack.c.l.b16 %v7186
      %v7283 = vunpack.c.l.b16 %v7187
      %v7284 = vunpack.c.l.b16 %v7188
      %v7285 = vunpack.c.l.b16 %v7189
      %v7286 = vunpack.c.l.b16 %v7190
      %v7287 = vunpack.c.l.b16 %v7191
      %v7288 = vunpack.c.l.b16 %v7192
      %v7289 = vunpack.c.l.b16 %v7193
      %v7290 = vunpack.c.l.b16 %v7194
      %v7291 = vunpack.c.l.b16 %v7195
      %v7292 = vpack.c.b16 %v7261, %v7260
      %v7293 = vpack.c.b16 %v7263, %v7262
      %v7294 = vpack.c.b16 %v7265, %v7264
      %v7295 = vpack.c.b16 %v7267, %v7266
      %v7296 = vpack.c.b16 %v7269, %v7268
      %v7297 = vpack.c.b16 %v7271, %v7270
      %v7298 = vpack.c.b16 %v7273, %v7272
      %v7299 = vpack.c.b16 %v7275, %v7274
      %v7300 = vpack.c.b16 %v7277, %v7276
      %v7301 = vpack.c.b16 %v7279, %v7278
      %v7302 = vpack.c.b16 %v7281, %v7280
      %v7303 = vpack.c.b16 %v7283, %v7282
      %v7304 = vpack.c.b16 %v7285, %v7284
      %v7305 = vpack.c.b16 %v7287, %v7286
      %v7306 = vpack.c.b16 %v7289, %v7288
      %v7307 = vpack.c.b16 %v7291, %v7290
      %7324 = vmatprep.subr.bf16.mxu0 0
      %7325 = vmatpush1.bf16.msra.mxu0 %v7299
      %7326 = vmatprep.subr.bf16.mxu0 0
      %7327 = vmatpush1.bf16.msra.mxu0 %v7298
      %7328 = vmatprep.subr.bf16.mxu0 0
      %7329 = vmatpush1.bf16.msra.mxu0 %v7297
      %7330 = vmatprep.subr.bf16.mxu0 0
      %7331 = vmatpush1.bf16.msra.mxu0 %v7296
      %7332 = vmatprep.subr.bf16.mxu0 0
      %7333 = vmatpush1.bf16.msra.mxu0 %v7295
      %7334 = vmatprep.subr.bf16.mxu0 0
      %7335 = vmatpush1.bf16.msra.mxu0 %v7294
      %7336 = vmatprep.subr.bf16.mxu0 0
      %7337 = vmatpush1.bf16.msra.mxu0 %v7293
      %7338 = vmatprep.subr.bf16.mxu0 0
      %7339 = vmatpush1.bf16.msra.mxu0 %v7292
      %7340 = vmatprep.subr.bf16.mxu0 0
      %7341 = vmatpush2.bf16.msra.mxu0 %v7307
      %7342 = vmatprep.subr.bf16.mxu0 0
      %7343 = vmatpush2.bf16.msra.mxu0 %v7306
      %7344 = vmatprep.subr.bf16.mxu0 0
      %7345 = vmatpush2.bf16.msra.mxu0 %v7305
      %7346 = vmatprep.subr.bf16.mxu0 0
      %7347 = vmatpush2.bf16.msra.mxu0 %v7304
      %7348 = vmatprep.subr.bf16.mxu0 0
      %7349 = vmatpush2.bf16.msra.mxu0 %v7303
      %7350 = vmatprep.subr.bf16.mxu0 0
      %7351 = vmatpush2.bf16.msra.mxu0 %v7302
      %7352 = vmatprep.subr.bf16.mxu0 0
      %7353 = vmatpush2.bf16.msra.mxu0 %v7301
      %7354 = vmatprep.subr.bf16.mxu0 0
      %7355 = vmatpush2.bf16.msra.mxu0 %v7300
      %7356 = vmatprep.mubr.bf16.mxu0 %v7213
      %7357 = vmatmul.mubr.bf16.gmra.mxu0 %v7212
      %v7358 = vpop.f32.mrf.mxu0
      %v7359 = vadd.f32 0.0, %v7358
      %v7360 = vpop.f32.mrf.mxu0
      %v7361 = vpop.f32.mrf.mxu0
      %v7362 = vadd.f32 0.0, %v7361
      %v7363 = vpop.f32.mrf.mxu0
      %7364 = vmatprep.mubr.bf16.mxu0 %v7215
      %7365 = vmatmul.mubr.bf16.gmra.mxu0 %v7214
      %v7366 = vpop.f32.mrf.mxu0
      %v7367 = vadd.f32 0.0, %v7366
      %v7368 = vpop.f32.mrf.mxu0
      %v7369 = vpop.f32.mrf.mxu0
      %v7370 = vadd.f32 0.0, %v7369
      %v7371 = vpop.f32.mrf.mxu0
      %7372 = vmatprep.mubr.bf16.mxu0 %v7217
      %7373 = vmatmul.mubr.bf16.gmra.mxu0 %v7216
      %v7374 = vpop.f32.mrf.mxu0
      %v7375 = vadd.f32 0.0, %v7374
      %v7376 = vpop.f32.mrf.mxu0
      %v7377 = vpop.f32.mrf.mxu0
      %v7378 = vadd.f32 0.0, %v7377
      %v7379 = vpop.f32.mrf.mxu0
      %7380 = vmatprep.mubr.bf16.mxu0 %v7219
      %7381 = vmatmul.mubr.bf16.gmra.mxu0 %v7218
      %v7382 = vpop.f32.mrf.mxu0
      %v7383 = vadd.f32 0.0, %v7382
      %v7384 = vpop.f32.mrf.mxu0
      %v7385 = vpop.f32.mrf.mxu0
      %v7386 = vadd.f32 0.0, %v7385
      %v7387 = vpop.f32.mrf.mxu0
      %7388 = vdwg.mxu0
      %v7389 = vadd.f32 %v7099, %v7359
      %v7390 = vadd.f32 %v7100, %v7362
      %v7391 = vadd.f32 %v7101, %v7367
      %v7392 = vadd.f32 %v7102, %v7370
      %v7393 = vadd.f32 %v7103, %v7375
      %v7394 = vadd.f32 %v7104, %v7378
      %v7395 = vadd.f32 %v7105, %v7383
      %v7396 = vadd.f32 %v7106, %v7386
      %v7397 = vld [vmem:[%s403] sm:$0xff]
      %v7398 = vld [vmem:[%s403 + $0x10] sm:$0xff]
      %v7399 = vld [vmem:[%s403 + $0x20] sm:$0xff]
      %v7400 = vld [vmem:[%s403 + $0x30] sm:$0xff]
      %v7401 = vld [vmem:[%s403 + $0x40] sm:$0xff]
      %v7402 = vld [vmem:[%s403 + $0x50] sm:$0xff]
      %v7403 = vld [vmem:[%s403 + $0x60] sm:$0xff]
      %v7404 = vld [vmem:[%s403 + $0x70] sm:$0xff]
      %s7405 = scalar_lea.vmem %s6, 768
      %v7406 = vld [vmem:[%s7405] sm:$0xf]
      %v7407 = vld [vmem:[%s7405 + $0x4] sm:$0xf]
      %v7408 = vld [vmem:[%s7405 + $0x8] sm:$0xf]
      %v7409 = vld [vmem:[%s7405 + $0xc] sm:$0xf]
      %v7410 = vld [vmem:[%s7405 + $0x10] sm:$0xf]
      %v7411 = vld [vmem:[%s7405 + $0x14] sm:$0xf]
      %v7412 = vld [vmem:[%s7405 + $0x18] sm:$0xf]
      %v7413 = vld [vmem:[%s7405 + $0x1c] sm:$0xf]
      %v7414 = vld [vmem:[%s7405 + $0x20] sm:$0xf]
      %v7415 = vld [vmem:[%s7405 + $0x24] sm:$0xf]
      %v7416 = vld [vmem:[%s7405 + $0x28] sm:$0xf]
      %v7417 = vld [vmem:[%s7405 + $0x2c] sm:$0xf]
      %v7418 = vld [vmem:[%s7405 + $0x30] sm:$0xf]
      %v7419 = vld [vmem:[%s7405 + $0x34] sm:$0xf]
      %v7420 = vld [vmem:[%s7405 + $0x38] sm:$0xf]
      %v7421 = vld [vmem:[%s7405 + $0x3c] sm:$0xf]
      %v7422 = vld [vmem:[%s7405 + $0x40] sm:$0xf]
      %v7423 = vld [vmem:[%s7405 + $0x44] sm:$0xf]
      %v7424 = vld [vmem:[%s7405 + $0x48] sm:$0xf]
      %v7425 = vld [vmem:[%s7405 + $0x4c] sm:$0xf]
      %v7426 = vld [vmem:[%s7405 + $0x50] sm:$0xf]
      %v7427 = vld [vmem:[%s7405 + $0x54] sm:$0xf]
      %v7428 = vld [vmem:[%s7405 + $0x58] sm:$0xf]
      %v7429 = vld [vmem:[%s7405 + $0x5c] sm:$0xf]
      %v7430 = vld [vmem:[%s7405 + $0x60] sm:$0xf]
      %v7431 = vld [vmem:[%s7405 + $0x64] sm:$0xf]
      %v7432 = vld [vmem:[%s7405 + $0x68] sm:$0xf]
      %v7433 = vld [vmem:[%s7405 + $0x6c] sm:$0xf]
      %v7434 = vld [vmem:[%s7405 + $0x70] sm:$0xf]
      %v7435 = vld [vmem:[%s7405 + $0x74] sm:$0xf]
      %v7436 = vld [vmem:[%s7405 + $0x78] sm:$0xf]
      %v7437 = vld [vmem:[%s7405 + $0x7c] sm:$0xf]
      %v7446 = vunpack.c.l.b16 %v7397
      %v7447 = vunpack.c.h.b16 %v7397
      %v7448 = vunpack.c.l.b16 %v7398
      %v7449 = vunpack.c.h.b16 %v7398
      %v7450 = vunpack.c.l.b16 %v7399
      %v7451 = vunpack.c.h.b16 %v7399
      %v7452 = vunpack.c.l.b16 %v7400
      %v7453 = vunpack.c.h.b16 %v7400
      %v7454 = vunpack.c.l.b16 %v7401
      %v7455 = vunpack.c.h.b16 %v7401
      %v7456 = vunpack.c.l.b16 %v7402
      %v7457 = vunpack.c.h.b16 %v7402
      %v7458 = vunpack.c.l.b16 %v7403
      %v7459 = vunpack.c.h.b16 %v7403
      %v7460 = vunpack.c.l.b16 %v7404
      %v7461 = vunpack.c.h.b16 %v7404
      %v7462 = vpack.c.b16 %v7448, %v7446
      %v7463 = vpack.c.b16 %v7449, %v7447
      %v7464 = vpack.c.b16 %v7452, %v7450
      %v7465 = vpack.c.b16 %v7453, %v7451
      %v7466 = vpack.c.b16 %v7456, %v7454
      %v7467 = vpack.c.b16 %v7457, %v7455
      %v7468 = vpack.c.b16 %v7460, %v7458
      %v7469 = vpack.c.b16 %v7461, %v7459
      %v7510 = vunpack.c.l.b16 %v7406
      %v7511 = vunpack.c.l.b16 %v7407
      %v7512 = vunpack.c.l.b16 %v7408
      %v7513 = vunpack.c.l.b16 %v7409
      %v7514 = vunpack.c.l.b16 %v7410
      %v7515 = vunpack.c.l.b16 %v7411
      %v7516 = vunpack.c.l.b16 %v7412
      %v7517 = vunpack.c.l.b16 %v7413
      %v7518 = vunpack.c.l.b16 %v7414
      %v7519 = vunpack.c.l.b16 %v7415
      %v7520 = vunpack.c.l.b16 %v7416
      %v7521 = vunpack.c.l.b16 %v7417
      %v7522 = vunpack.c.l.b16 %v7418
      %v7523 = vunpack.c.l.b16 %v7419
      %v7524 = vunpack.c.l.b16 %v7420
      %v7525 = vunpack.c.l.b16 %v7421
      %v7526 = vunpack.c.l.b16 %v7422
      %v7527 = vunpack.c.l.b16 %v7423
      %v7528 = vunpack.c.l.b16 %v7424
      %v7529 = vunpack.c.l.b16 %v7425
      %v7530 = vunpack.c.l.b16 %v7426
      %v7531 = vunpack.c.l.b16 %v7427
      %v7532 = vunpack.c.l.b16 %v7428
      %v7533 = vunpack.c.l.b16 %v7429
      %v7534 = vunpack.c.l.b16 %v7430
      %v7535 = vunpack.c.l.b16 %v7431
      %v7536 = vunpack.c.l.b16 %v7432
      %v7537 = vunpack.c.l.b16 %v7433
      %v7538 = vunpack.c.l.b16 %v7434
      %v7539 = vunpack.c.l.b16 %v7435
      %v7540 = vunpack.c.l.b16 %v7436
      %v7541 = vunpack.c.l.b16 %v7437
      %v7542 = vpack.c.b16 %v7511, %v7510
      %v7543 = vpack.c.b16 %v7513, %v7512
      %v7544 = vpack.c.b16 %v7515, %v7514
      %v7545 = vpack.c.b16 %v7517, %v7516
      %v7546 = vpack.c.b16 %v7519, %v7518
      %v7547 = vpack.c.b16 %v7521, %v7520
      %v7548 = vpack.c.b16 %v7523, %v7522
      %v7549 = vpack.c.b16 %v7525, %v7524
      %v7550 = vpack.c.b16 %v7527, %v7526
      %v7551 = vpack.c.b16 %v7529, %v7528
      %v7552 = vpack.c.b16 %v7531, %v7530
      %v7553 = vpack.c.b16 %v7533, %v7532
      %v7554 = vpack.c.b16 %v7535, %v7534
      %v7555 = vpack.c.b16 %v7537, %v7536
      %v7556 = vpack.c.b16 %v7539, %v7538
      %v7557 = vpack.c.b16 %v7541, %v7540
      %7574 = vmatprep.subr.bf16.mxu0 0
      %7575 = vmatpush1.bf16.msra.mxu0 %v7549
      %7576 = vmatprep.subr.bf16.mxu0 0
      %7577 = vmatpush1.bf16.msra.mxu0 %v7548
      %7578 = vmatprep.subr.bf16.mxu0 0
      %7579 = vmatpush1.bf16.msra.mxu0 %v7547
      %7580 = vmatprep.subr.bf16.mxu0 0
      %7581 = vmatpush1.bf16.msra.mxu0 %v7546
      %7582 = vmatprep.subr.bf16.mxu0 0
      %7583 = vmatpush1.bf16.msra.mxu0 %v7545
      %7584 = vmatprep.subr.bf16.mxu0 0
      %7585 = vmatpush1.bf16.msra.mxu0 %v7544
      %7586 = vmatprep.subr.bf16.mxu0 0
      %7587 = vmatpush1.bf16.msra.mxu0 %v7543
      %7588 = vmatprep.subr.bf16.mxu0 0
      %7589 = vmatpush1.bf16.msra.mxu0 %v7542
      %7590 = vmatprep.subr.bf16.mxu0 0
      %7591 = vmatpush2.bf16.msra.mxu0 %v7557
      %7592 = vmatprep.subr.bf16.mxu0 0
      %7593 = vmatpush2.bf16.msra.mxu0 %v7556
      %7594 = vmatprep.subr.bf16.mxu0 0
      %7595 = vmatpush2.bf16.msra.mxu0 %v7555
      %7596 = vmatprep.subr.bf16.mxu0 0
      %7597 = vmatpush2.bf16.msra.mxu0 %v7554
      %7598 = vmatprep.subr.bf16.mxu0 0
      %7599 = vmatpush2.bf16.msra.mxu0 %v7553
      %7600 = vmatprep.subr.bf16.mxu0 0
      %7601 = vmatpush2.bf16.msra.mxu0 %v7552
      %7602 = vmatprep.subr.bf16.mxu0 0
      %7603 = vmatpush2.bf16.msra.mxu0 %v7551
      %7604 = vmatprep.subr.bf16.mxu0 0
      %7605 = vmatpush2.bf16.msra.mxu0 %v7550
      %7606 = vmatprep.mubr.bf16.mxu0 %v7463
      %7607 = vmatmul.mubr.bf16.gmra.mxu0 %v7462
      %v7608 = vpop.f32.mrf.mxu0
      %v7609 = vadd.f32 0.0, %v7608
      %v7610 = vpop.f32.mrf.mxu0
      %v7611 = vpop.f32.mrf.mxu0
      %v7612 = vadd.f32 0.0, %v7611
      %v7613 = vpop.f32.mrf.mxu0
      %7614 = vmatprep.mubr.bf16.mxu0 %v7465
      %7615 = vmatmul.mubr.bf16.gmra.mxu0 %v7464
      %v7616 = vpop.f32.mrf.mxu0
      %v7617 = vadd.f32 0.0, %v7616
      %v7618 = vpop.f32.mrf.mxu0
      %v7619 = vpop.f32.mrf.mxu0
      %v7620 = vadd.f32 0.0, %v7619
      %v7621 = vpop.f32.mrf.mxu0
      %7622 = vmatprep.mubr.bf16.mxu0 %v7467
      %7623 = vmatmul.mubr.bf16.gmra.mxu0 %v7466
      %v7624 = vpop.f32.mrf.mxu0
      %v7625 = vadd.f32 0.0, %v7624
      %v7626 = vpop.f32.mrf.mxu0
      %v7627 = vpop.f32.mrf.mxu0
      %v7628 = vadd.f32 0.0, %v7627
      %v7629 = vpop.f32.mrf.mxu0
      %7630 = vmatprep.mubr.bf16.mxu0 %v7469
      %7631 = vmatmul.mubr.bf16.gmra.mxu0 %v7468
      %v7632 = vpop.f32.mrf.mxu0
      %v7633 = vadd.f32 0.0, %v7632
      %v7634 = vpop.f32.mrf.mxu0
      %v7635 = vpop.f32.mrf.mxu0
      %v7636 = vadd.f32 0.0, %v7635
      %v7637 = vpop.f32.mrf.mxu0
      %7638 = vdwg.mxu0
      %v7639 = vadd.f32 %v7389, %v7609
      %v7640 = vadd.f32 %v7390, %v7612
      %v7641 = vadd.f32 %v7391, %v7617
      %v7642 = vadd.f32 %v7392, %v7620
      %v7643 = vadd.f32 %v7393, %v7625
      %v7644 = vadd.f32 %v7394, %v7628
      %v7645 = vadd.f32 %v7395, %v7633
      %v7646 = vadd.f32 %v7396, %v7636
      %v7647 = vld [vmem:[%s403] sm:$0xff]
      %v7648 = vld [vmem:[%s403 + $0x8] sm:$0x11]
      %v7649 = vld [vmem:[%s403 + $0x10] sm:$0xff]
      %v7650 = vld [vmem:[%s403 + $0x18] sm:$0x11]
      %v7651 = vld [vmem:[%s403 + $0x20] sm:$0xff]
      %v7652 = vld [vmem:[%s403 + $0x28] sm:$0x11]
      %v7653 = vld [vmem:[%s403 + $0x30] sm:$0xff]
      %v7654 = vld [vmem:[%s403 + $0x38] sm:$0x11]
      %v7655 = vld [vmem:[%s403 + $0x40] sm:$0xff]
      %v7656 = vld [vmem:[%s403 + $0x48] sm:$0x11]
      %v7657 = vld [vmem:[%s403 + $0x50] sm:$0xff]
      %v7658 = vld [vmem:[%s403 + $0x58] sm:$0x11]
      %v7659 = vld [vmem:[%s403 + $0x60] sm:$0xff]
      %v7660 = vld [vmem:[%s403 + $0x68] sm:$0x11]
      %v7661 = vld [vmem:[%s403 + $0x70] sm:$0xff]
      %v7662 = vld [vmem:[%s403 + $0x78] sm:$0x11]
      %v7664 = vshrl.u32 %v7647, 16
      %v7666 = vrot.slane %v7664, 4
      %v7667 = vshll.u32 %v7647, 16
      %v7669 = vrot.slane %v7667, 5
      %v7670 = vor.u32 %v7666, %v7669
      %v7671 = vrot.slane %v7670, 4
      %v7673 = vshll.u32 %v7648, 16
      %v7675 = vrot.slane %v7673, 5
      %v7676 = vsel %vm998, %v7671, %v7675
      %v7678 = vshrl.u32 %v7649, 16
      %v7680 = vrot.slane %v7678, 4
      %v7681 = vshll.u32 %v7649, 16
      %v7683 = vrot.slane %v7681, 5
      %v7684 = vor.u32 %v7680, %v7683
      %v7685 = vrot.slane %v7684, 4
      %v7687 = vshll.u32 %v7650, 16
      %v7689 = vrot.slane %v7687, 5
      %v7690 = vsel %vm998, %v7685, %v7689
      %v7692 = vshrl.u32 %v7651, 16
      %v7694 = vrot.slane %v7692, 4
      %v7695 = vshll.u32 %v7651, 16
      %v7697 = vrot.slane %v7695, 5
      %v7698 = vor.u32 %v7694, %v7697
      %v7699 = vrot.slane %v7698, 4
      %v7701 = vshll.u32 %v7652, 16
      %v7703 = vrot.slane %v7701, 5
      %v7704 = vsel %vm998, %v7699, %v7703
      %v7706 = vshrl.u32 %v7653, 16
      %v7708 = vrot.slane %v7706, 4
      %v7709 = vshll.u32 %v7653, 16
      %v7711 = vrot.slane %v7709, 5
      %v7712 = vor.u32 %v7708, %v7711
      %v7713 = vrot.slane %v7712, 4
      %v7715 = vshll.u32 %v7654, 16
      %v7717 = vrot.slane %v7715, 5
      %v7718 = vsel %vm998, %v7713, %v7717
      %v7720 = vshrl.u32 %v7655, 16
      %v7722 = vrot.slane %v7720, 4
      %v7723 = vshll.u32 %v7655, 16
      %v7725 = vrot.slane %v7723, 5
      %v7726 = vor.u32 %v7722, %v7725
      %v7727 = vrot.slane %v7726, 4
      %v7729 = vshll.u32 %v7656, 16
      %v7731 = vrot.slane %v7729, 5
      %v7732 = vsel %vm998, %v7727, %v7731
      %v7734 = vshrl.u32 %v7657, 16
      %v7736 = vrot.slane %v7734, 4
      %v7737 = vshll.u32 %v7657, 16
      %v7739 = vrot.slane %v7737, 5
      %v7740 = vor.u32 %v7736, %v7739
      %v7741 = vrot.slane %v7740, 4
      %v7743 = vshll.u32 %v7658, 16
      %v7745 = vrot.slane %v7743, 5
      %v7746 = vsel %vm998, %v7741, %v7745
      %v7748 = vshrl.u32 %v7659, 16
      %v7750 = vrot.slane %v7748, 4
      %v7751 = vshll.u32 %v7659, 16
      %v7753 = vrot.slane %v7751, 5
      %v7754 = vor.u32 %v7750, %v7753
      %v7755 = vrot.slane %v7754, 4
      %v7757 = vshll.u32 %v7660, 16
      %v7759 = vrot.slane %v7757, 5
      %v7760 = vsel %vm998, %v7755, %v7759
      %v7762 = vshrl.u32 %v7661, 16
      %v7764 = vrot.slane %v7762, 4
      %v7765 = vshll.u32 %v7661, 16
      %v7767 = vrot.slane %v7765, 5
      %v7768 = vor.u32 %v7764, %v7767
      %v7769 = vrot.slane %v7768, 4
      %v7771 = vshll.u32 %v7662, 16
      %v7773 = vrot.slane %v7771, 5
      %v7774 = vsel %vm998, %v7769, %v7773
      %s7775 = scalar_lea.vmem %s6, 896
      %v7776 = vld [vmem:[%s7775] sm:$0xf]
      %v7777 = vld [vmem:[%s7775 + $0x4] sm:$0xf]
      %v7778 = vld [vmem:[%s7775 + $0x8] sm:$0xf]
      %v7779 = vld [vmem:[%s7775 + $0xc] sm:$0xf]
      %v7780 = vld [vmem:[%s7775 + $0x10] sm:$0xf]
      %v7781 = vld [vmem:[%s7775 + $0x14] sm:$0xf]
      %v7782 = vld [vmem:[%s7775 + $0x18] sm:$0xf]
      %v7783 = vld [vmem:[%s7775 + $0x1c] sm:$0xf]
      %v7784 = vld [vmem:[%s7775 + $0x20] sm:$0xf]
      %v7785 = vld [vmem:[%s7775 + $0x24] sm:$0xf]
      %v7786 = vld [vmem:[%s7775 + $0x28] sm:$0xf]
      %v7787 = vld [vmem:[%s7775 + $0x2c] sm:$0xf]
      %v7788 = vld [vmem:[%s7775 + $0x30] sm:$0xf]
      %v7789 = vld [vmem:[%s7775 + $0x34] sm:$0xf]
      %v7790 = vld [vmem:[%s7775 + $0x38] sm:$0xf]
      %v7791 = vld [vmem:[%s7775 + $0x3c] sm:$0xf]
      %v7792 = vld [vmem:[%s7775 + $0x40] sm:$0xf]
      %v7793 = vld [vmem:[%s7775 + $0x44] sm:$0xf]
      %v7794 = vld [vmem:[%s7775 + $0x48] sm:$0xf]
      %v7795 = vld [vmem:[%s7775 + $0x4c] sm:$0xf]
      %v7796 = vld [vmem:[%s7775 + $0x50] sm:$0xf]
      %v7797 = vld [vmem:[%s7775 + $0x54] sm:$0xf]
      %v7798 = vld [vmem:[%s7775 + $0x58] sm:$0xf]
      %v7799 = vld [vmem:[%s7775 + $0x5c] sm:$0xf]
      %v7800 = vld [vmem:[%s7775 + $0x60] sm:$0xf]
      %v7801 = vld [vmem:[%s7775 + $0x64] sm:$0xf]
      %v7802 = vld [vmem:[%s7775 + $0x68] sm:$0xf]
      %v7803 = vld [vmem:[%s7775 + $0x6c] sm:$0xf]
      %v7804 = vld [vmem:[%s7775 + $0x70] sm:$0xf]
      %v7805 = vld [vmem:[%s7775 + $0x74] sm:$0xf]
      %v7806 = vld [vmem:[%s7775 + $0x78] sm:$0xf]
      %v7807 = vld [vmem:[%s7775 + $0x7c] sm:$0xf]
      %v7808 = vunpack.c.l.b16 %v7676
      %v7809 = vunpack.c.h.b16 %v7676
      %v7810 = vunpack.c.l.b16 %v7690
      %v7811 = vunpack.c.h.b16 %v7690
      %v7812 = vunpack.c.l.b16 %v7704
      %v7813 = vunpack.c.h.b16 %v7704
      %v7814 = vunpack.c.l.b16 %v7718
      %v7815 = vunpack.c.h.b16 %v7718
      %v7816 = vunpack.c.l.b16 %v7732
      %v7817 = vunpack.c.h.b16 %v7732
      %v7818 = vunpack.c.l.b16 %v7746
      %v7819 = vunpack.c.h.b16 %v7746
      %v7820 = vunpack.c.l.b16 %v7760
      %v7821 = vunpack.c.h.b16 %v7760
      %v7822 = vunpack.c.l.b16 %v7774
      %v7823 = vunpack.c.h.b16 %v7774
      %v7824 = vpack.c.b16 %v7810, %v7808
      %v7825 = vpack.c.b16 %v7811, %v7809
      %v7826 = vpack.c.b16 %v7814, %v7812
      %v7827 = vpack.c.b16 %v7815, %v7813
      %v7828 = vpack.c.b16 %v7818, %v7816
      %v7829 = vpack.c.b16 %v7819, %v7817
      %v7830 = vpack.c.b16 %v7822, %v7820
      %v7831 = vpack.c.b16 %v7823, %v7821
      %v7872 = vunpack.c.l.b16 %v7776
      %v7873 = vunpack.c.l.b16 %v7777
      %v7874 = vunpack.c.l.b16 %v7778
      %v7875 = vunpack.c.l.b16 %v7779
      %v7876 = vunpack.c.l.b16 %v7780
      %v7877 = vunpack.c.l.b16 %v7781
      %v7878 = vunpack.c.l.b16 %v7782
      %v7879 = vunpack.c.l.b16 %v7783
      %v7880 = vunpack.c.l.b16 %v7784
      %v7881 = vunpack.c.l.b16 %v7785
      %v7882 = vunpack.c.l.b16 %v7786
      %v7883 = vunpack.c.l.b16 %v7787
      %v7884 = vunpack.c.l.b16 %v7788
      %v7885 = vunpack.c.l.b16 %v7789
      %v7886 = vunpack.c.l.b16 %v7790
      %v7887 = vunpack.c.l.b16 %v7791
      %v7888 = vunpack.c.l.b16 %v7792
      %v7889 = vunpack.c.l.b16 %v7793
      %v7890 = vunpack.c.l.b16 %v7794
      %v7891 = vunpack.c.l.b16 %v7795
      %v7892 = vunpack.c.l.b16 %v7796
      %v7893 = vunpack.c.l.b16 %v7797
      %v7894 = vunpack.c.l.b16 %v7798
      %v7895 = vunpack.c.l.b16 %v7799
      %v7896 = vunpack.c.l.b16 %v7800
      %v7897 = vunpack.c.l.b16 %v7801
      %v7898 = vunpack.c.l.b16 %v7802
      %v7899 = vunpack.c.l.b16 %v7803
      %v7900 = vunpack.c.l.b16 %v7804
      %v7901 = vunpack.c.l.b16 %v7805
      %v7902 = vunpack.c.l.b16 %v7806
      %v7903 = vunpack.c.l.b16 %v7807
      %v7904 = vpack.c.b16 %v7873, %v7872
      %v7905 = vpack.c.b16 %v7875, %v7874
      %v7906 = vpack.c.b16 %v7877, %v7876
      %v7907 = vpack.c.b16 %v7879, %v7878
      %v7908 = vpack.c.b16 %v7881, %v7880
      %v7909 = vpack.c.b16 %v7883, %v7882
      %v7910 = vpack.c.b16 %v7885, %v7884
      %v7911 = vpack.c.b16 %v7887, %v7886
      %v7912 = vpack.c.b16 %v7889, %v7888
      %v7913 = vpack.c.b16 %v7891, %v7890
      %v7914 = vpack.c.b16 %v7893, %v7892
      %v7915 = vpack.c.b16 %v7895, %v7894
      %v7916 = vpack.c.b16 %v7897, %v7896
      %v7917 = vpack.c.b16 %v7899, %v7898
      %v7918 = vpack.c.b16 %v7901, %v7900
      %v7919 = vpack.c.b16 %v7903, %v7902
      %7936 = vmatprep.subr.bf16.mxu0 0
      %7937 = vmatpush1.bf16.msra.mxu0 %v7911
      %7938 = vmatprep.subr.bf16.mxu0 0
      %7939 = vmatpush1.bf16.msra.mxu0 %v7910
      %7940 = vmatprep.subr.bf16.mxu0 0
      %7941 = vmatpush1.bf16.msra.mxu0 %v7909
      %7942 = vmatprep.subr.bf16.mxu0 0
      %7943 = vmatpush1.bf16.msra.mxu0 %v7908
      %7944 = vmatprep.subr.bf16.mxu0 0
      %7945 = vmatpush1.bf16.msra.mxu0 %v7907
      %7946 = vmatprep.subr.bf16.mxu0 0
      %7947 = vmatpush1.bf16.msra.mxu0 %v7906
      %7948 = vmatprep.subr.bf16.mxu0 0
      %7949 = vmatpush1.bf16.msra.mxu0 %v7905
      %7950 = vmatprep.subr.bf16.mxu0 0
      %7951 = vmatpush1.bf16.msra.mxu0 %v7904
      %7952 = vmatprep.subr.bf16.mxu0 0
      %7953 = vmatpush2.bf16.msra.mxu0 %v7919
      %7954 = vmatprep.subr.bf16.mxu0 0
      %7955 = vmatpush2.bf16.msra.mxu0 %v7918
      %7956 = vmatprep.subr.bf16.mxu0 0
      %7957 = vmatpush2.bf16.msra.mxu0 %v7917
      %7958 = vmatprep.subr.bf16.mxu0 0
      %7959 = vmatpush2.bf16.msra.mxu0 %v7916
      %7960 = vmatprep.subr.bf16.mxu0 0
      %7961 = vmatpush2.bf16.msra.mxu0 %v7915
      %7962 = vmatprep.subr.bf16.mxu0 0
      %7963 = vmatpush2.bf16.msra.mxu0 %v7914
      %7964 = vmatprep.subr.bf16.mxu0 0
      %7965 = vmatpush2.bf16.msra.mxu0 %v7913
      %7966 = vmatprep.subr.bf16.mxu0 0
      %7967 = vmatpush2.bf16.msra.mxu0 %v7912
      %7968 = vmatprep.mubr.bf16.mxu0 %v7825
      %7969 = vmatmul.mubr.bf16.gmra.mxu0 %v7824
      %v7970 = vpop.f32.mrf.mxu0
      %v7971 = vadd.f32 0.0, %v7970
      %v7972 = vpop.f32.mrf.mxu0
      %v7973 = vpop.f32.mrf.mxu0
      %v7974 = vadd.f32 0.0, %v7973
      %v7975 = vpop.f32.mrf.mxu0
      %7976 = vmatprep.mubr.bf16.mxu0 %v7827
      %7977 = vmatmul.mubr.bf16.gmra.mxu0 %v7826
      %v7978 = vpop.f32.mrf.mxu0
      %v7979 = vadd.f32 0.0, %v7978
      %v7980 = vpop.f32.mrf.mxu0
      %v7981 = vpop.f32.mrf.mxu0
      %v7982 = vadd.f32 0.0, %v7981
      %v7983 = vpop.f32.mrf.mxu0
      %7984 = vmatprep.mubr.bf16.mxu0 %v7829
      %7985 = vmatmul.mubr.bf16.gmra.mxu0 %v7828
      %v7986 = vpop.f32.mrf.mxu0
      %v7987 = vadd.f32 0.0, %v7986
      %v7988 = vpop.f32.mrf.mxu0
      %v7989 = vpop.f32.mrf.mxu0
      %v7990 = vadd.f32 0.0, %v7989
      %v7991 = vpop.f32.mrf.mxu0
      %7992 = vmatprep.mubr.bf16.mxu0 %v7831
      %7993 = vmatmul.mubr.bf16.gmra.mxu0 %v7830
      %v7994 = vpop.f32.mrf.mxu0
      %v7995 = vadd.f32 0.0, %v7994
      %v7996 = vpop.f32.mrf.mxu0
      %v7997 = vpop.f32.mrf.mxu0
      %v7998 = vadd.f32 0.0, %v7997
      %v7999 = vpop.f32.mrf.mxu0
      %8000 = vdwg.mxu0
      %v8001 = vadd.f32 %v7639, %v7971
      %v8002 = vadd.f32 %v7640, %v7974
      %v8003 = vadd.f32 %v7641, %v7979
      %v8004 = vadd.f32 %v7642, %v7982
      %v8005 = vadd.f32 %v7643, %v7987
      %v8006 = vadd.f32 %v7644, %v7990
      %v8007 = vadd.f32 %v7645, %v7995
      %v8008 = vadd.f32 %v7646, %v7998
      %v8009 = vld [vmem:[%s403] sm:$0xee]
      %v8010 = vld [vmem:[%s403 + $0x10] sm:$0xee]
      %v8011 = vld [vmem:[%s403 + $0x20] sm:$0xee]
      %v8012 = vld [vmem:[%s403 + $0x30] sm:$0xee]
      %v8013 = vld [vmem:[%s403 + $0x40] sm:$0xee]
      %v8014 = vld [vmem:[%s403 + $0x50] sm:$0xee]
      %v8015 = vld [vmem:[%s403 + $0x60] sm:$0xee]
      %v8016 = vld [vmem:[%s403 + $0x70] sm:$0xee]
      %v8033 = vrot.slane %v8009, 5
      %v8034 = vrot.slane %v8033, 4
      %v8035 = vrot.slane %v7648, 5
      %v8036 = vsel %vm6228, %v8034, %v8035
      %v8037 = vrot.slane %v8010, 5
      %v8038 = vrot.slane %v8037, 4
      %v8039 = vrot.slane %v7650, 5
      %v8040 = vsel %vm6228, %v8038, %v8039
      %v8041 = vrot.slane %v8011, 5
      %v8042 = vrot.slane %v8041, 4
      %v8043 = vrot.slane %v7652, 5
      %v8044 = vsel %vm6228, %v8042, %v8043
      %v8045 = vrot.slane %v8012, 5
      %v8046 = vrot.slane %v8045, 4
      %v8047 = vrot.slane %v7654, 5
      %v8048 = vsel %vm6228, %v8046, %v8047
      %v8049 = vrot.slane %v8013, 5
      %v8050 = vrot.slane %v8049, 4
      %v8051 = vrot.slane %v7656, 5
      %v8052 = vsel %vm6228, %v8050, %v8051
      %v8053 = vrot.slane %v8014, 5
      %v8054 = vrot.slane %v8053, 4
      %v8055 = vrot.slane %v7658, 5
      %v8056 = vsel %vm6228, %v8054, %v8055
      %v8057 = vrot.slane %v8015, 5
      %v8058 = vrot.slane %v8057, 4
      %v8059 = vrot.slane %v7660, 5
      %v8060 = vsel %vm6228, %v8058, %v8059
      %v8061 = vrot.slane %v8016, 5
      %v8062 = vrot.slane %v8061, 4
      %v8063 = vrot.slane %v7662, 5
      %v8064 = vsel %vm6228, %v8062, %v8063
      %s8065 = scalar_lea.vmem %s6, 1024
      %v8066 = vld [vmem:[%s8065] sm:$0xf]
      %v8067 = vld [vmem:[%s8065 + $0x4] sm:$0xf]
      %v8068 = vld [vmem:[%s8065 + $0x8] sm:$0xf]
      %v8069 = vld [vmem:[%s8065 + $0xc] sm:$0xf]
      %v8070 = vld [vmem:[%s8065 + $0x10] sm:$0xf]
      %v8071 = vld [vmem:[%s8065 + $0x14] sm:$0xf]
      %v8072 = vld [vmem:[%s8065 + $0x18] sm:$0xf]
      %v8073 = vld [vmem:[%s8065 + $0x1c] sm:$0xf]
      %v8074 = vld [vmem:[%s8065 + $0x20] sm:$0xf]
      %v8075 = vld [vmem:[%s8065 + $0x24] sm:$0xf]
      %v8076 = vld [vmem:[%s8065 + $0x28] sm:$0xf]
      %v8077 = vld [vmem:[%s8065 + $0x2c] sm:$0xf]
      %v8078 = vld [vmem:[%s8065 + $0x30] sm:$0xf]
      %v8079 = vld [vmem:[%s8065 + $0x34] sm:$0xf]
      %v8080 = vld [vmem:[%s8065 + $0x38] sm:$0xf]
      %v8081 = vld [vmem:[%s8065 + $0x3c] sm:$0xf]
      %v8082 = vld [vmem:[%s8065 + $0x40] sm:$0xf]
      %v8083 = vld [vmem:[%s8065 + $0x44] sm:$0xf]
      %v8084 = vld [vmem:[%s8065 + $0x48] sm:$0xf]
      %v8085 = vld [vmem:[%s8065 + $0x4c] sm:$0xf]
      %v8086 = vld [vmem:[%s8065 + $0x50] sm:$0xf]
      %v8087 = vld [vmem:[%s8065 + $0x54] sm:$0xf]
      %v8088 = vld [vmem:[%s8065 + $0x58] sm:$0xf]
      %v8089 = vld [vmem:[%s8065 + $0x5c] sm:$0xf]
      %v8090 = vld [vmem:[%s8065 + $0x60] sm:$0xf]
      %v8091 = vld [vmem:[%s8065 + $0x64] sm:$0xf]
      %v8092 = vld [vmem:[%s8065 + $0x68] sm:$0xf]
      %v8093 = vld [vmem:[%s8065 + $0x6c] sm:$0xf]
      %v8094 = vld [vmem:[%s8065 + $0x70] sm:$0xf]
      %v8095 = vld [vmem:[%s8065 + $0x74] sm:$0xf]
      %v8096 = vld [vmem:[%s8065 + $0x78] sm:$0xf]
      %v8097 = vld [vmem:[%s8065 + $0x7c] sm:$0xf]
      %v8098 = vunpack.c.l.b16 %v8036
      %v8099 = vunpack.c.h.b16 %v8036
      %v8100 = vunpack.c.l.b16 %v8040
      %v8101 = vunpack.c.h.b16 %v8040
      %v8102 = vunpack.c.l.b16 %v8044
      %v8103 = vunpack.c.h.b16 %v8044
      %v8104 = vunpack.c.l.b16 %v8048
      %v8105 = vunpack.c.h.b16 %v8048
      %v8106 = vunpack.c.l.b16 %v8052
      %v8107 = vunpack.c.h.b16 %v8052
      %v8108 = vunpack.c.l.b16 %v8056
      %v8109 = vunpack.c.h.b16 %v8056
      %v8110 = vunpack.c.l.b16 %v8060
      %v8111 = vunpack.c.h.b16 %v8060
      %v8112 = vunpack.c.l.b16 %v8064
      %v8113 = vunpack.c.h.b16 %v8064
      %v8114 = vpack.c.b16 %v8100, %v8098
      %v8115 = vpack.c.b16 %v8101, %v8099
      %v8116 = vpack.c.b16 %v8104, %v8102
      %v8117 = vpack.c.b16 %v8105, %v8103
      %v8118 = vpack.c.b16 %v8108, %v8106
      %v8119 = vpack.c.b16 %v8109, %v8107
      %v8120 = vpack.c.b16 %v8112, %v8110
      %v8121 = vpack.c.b16 %v8113, %v8111
      %v8162 = vunpack.c.l.b16 %v8066
      %v8163 = vunpack.c.l.b16 %v8067
      %v8164 = vunpack.c.l.b16 %v8068
      %v8165 = vunpack.c.l.b16 %v8069
      %v8166 = vunpack.c.l.b16 %v8070
      %v8167 = vunpack.c.l.b16 %v8071
      %v8168 = vunpack.c.l.b16 %v8072
      %v8169 = vunpack.c.l.b16 %v8073
      %v8170 = vunpack.c.l.b16 %v8074
      %v8171 = vunpack.c.l.b16 %v8075
      %v8172 = vunpack.c.l.b16 %v8076
      %v8173 = vunpack.c.l.b16 %v8077
      %v8174 = vunpack.c.l.b16 %v8078
      %v8175 = vunpack.c.l.b16 %v8079
      %v8176 = vunpack.c.l.b16 %v8080
      %v8177 = vunpack.c.l.b16 %v8081
      %v8178 = vunpack.c.l.b16 %v8082
      %v8179 = vunpack.c.l.b16 %v8083
      %v8180 = vunpack.c.l.b16 %v8084
      %v8181 = vunpack.c.l.b16 %v8085
      %v8182 = vunpack.c.l.b16 %v8086
      %v8183 = vunpack.c.l.b16 %v8087
      %v8184 = vunpack.c.l.b16 %v8088
      %v8185 = vunpack.c.l.b16 %v8089
      %v8186 = vunpack.c.l.b16 %v8090
      %v8187 = vunpack.c.l.b16 %v8091
      %v8188 = vunpack.c.l.b16 %v8092
      %v8189 = vunpack.c.l.b16 %v8093
      %v8190 = vunpack.c.l.b16 %v8094
      %v8191 = vunpack.c.l.b16 %v8095
      %v8192 = vunpack.c.l.b16 %v8096
      %v8193 = vunpack.c.l.b16 %v8097
      %v8194 = vpack.c.b16 %v8163, %v8162
      %v8195 = vpack.c.b16 %v8165, %v8164
      %v8196 = vpack.c.b16 %v8167, %v8166
      %v8197 = vpack.c.b16 %v8169, %v8168
      %v8198 = vpack.c.b16 %v8171, %v8170
      %v8199 = vpack.c.b16 %v8173, %v8172
      %v8200 = vpack.c.b16 %v8175, %v8174
      %v8201 = vpack.c.b16 %v8177, %v8176
      %v8202 = vpack.c.b16 %v8179, %v8178
      %v8203 = vpack.c.b16 %v8181, %v8180
      %v8204 = vpack.c.b16 %v8183, %v8182
      %v8205 = vpack.c.b16 %v8185, %v8184
      %v8206 = vpack.c.b16 %v8187, %v8186
      %v8207 = vpack.c.b16 %v8189, %v8188
      %v8208 = vpack.c.b16 %v8191, %v8190
      %v8209 = vpack.c.b16 %v8193, %v8192
      %8226 = vmatprep.subr.bf16.mxu0 0
      %8227 = vmatpush1.bf16.msra.mxu0 %v8201
      %8228 = vmatprep.subr.bf16.mxu0 0
      %8229 = vmatpush1.bf16.msra.mxu0 %v8200
      %8230 = vmatprep.subr.bf16.mxu0 0
      %8231 = vmatpush1.bf16.msra.mxu0 %v8199
      %8232 = vmatprep.subr.bf16.mxu0 0
      %8233 = vmatpush1.bf16.msra.mxu0 %v8198
      %8234 = vmatprep.subr.bf16.mxu0 0
      %8235 = vmatpush1.bf16.msra.mxu0 %v8197
      %8236 = vmatprep.subr.bf16.mxu0 0
      %8237 = vmatpush1.bf16.msra.mxu0 %v8196
      %8238 = vmatprep.subr.bf16.mxu0 0
      %8239 = vmatpush1.bf16.msra.mxu0 %v8195
      %8240 = vmatprep.subr.bf16.mxu0 0
      %8241 = vmatpush1.bf16.msra.mxu0 %v8194
      %8242 = vmatprep.subr.bf16.mxu0 0
      %8243 = vmatpush2.bf16.msra.mxu0 %v8209
      %8244 = vmatprep.subr.bf16.mxu0 0
      %8245 = vmatpush2.bf16.msra.mxu0 %v8208
      %8246 = vmatprep.subr.bf16.mxu0 0
      %8247 = vmatpush2.bf16.msra.mxu0 %v8207
      %8248 = vmatprep.subr.bf16.mxu0 0
      %8249 = vmatpush2.bf16.msra.mxu0 %v8206
      %8250 = vmatprep.subr.bf16.mxu0 0
      %8251 = vmatpush2.bf16.msra.mxu0 %v8205
      %8252 = vmatprep.subr.bf16.mxu0 0
      %8253 = vmatpush2.bf16.msra.mxu0 %v8204
      %8254 = vmatprep.subr.bf16.mxu0 0
      %8255 = vmatpush2.bf16.msra.mxu0 %v8203
      %8256 = vmatprep.subr.bf16.mxu0 0
      %8257 = vmatpush2.bf16.msra.mxu0 %v8202
      %8258 = vmatprep.mubr.bf16.mxu0 %v8115
      %8259 = vmatmul.mubr.bf16.gmra.mxu0 %v8114
      %v8260 = vpop.f32.mrf.mxu0
      %v8261 = vadd.f32 0.0, %v8260
      %v8262 = vpop.f32.mrf.mxu0
      %v8263 = vpop.f32.mrf.mxu0
      %v8264 = vadd.f32 0.0, %v8263
      %v8265 = vpop.f32.mrf.mxu0
      %8266 = vmatprep.mubr.bf16.mxu0 %v8117
      %8267 = vmatmul.mubr.bf16.gmra.mxu0 %v8116
      %v8268 = vpop.f32.mrf.mxu0
      %v8269 = vadd.f32 0.0, %v8268
      %v8270 = vpop.f32.mrf.mxu0
      %v8271 = vpop.f32.mrf.mxu0
      %v8272 = vadd.f32 0.0, %v8271
      %v8273 = vpop.f32.mrf.mxu0
      %8274 = vmatprep.mubr.bf16.mxu0 %v8119
      %8275 = vmatmul.mubr.bf16.gmra.mxu0 %v8118
      %v8276 = vpop.f32.mrf.mxu0
      %v8277 = vadd.f32 0.0, %v8276
      %v8278 = vpop.f32.mrf.mxu0
      %v8279 = vpop.f32.mrf.mxu0
      %v8280 = vadd.f32 0.0, %v8279
      %v8281 = vpop.f32.mrf.mxu0
      %8282 = vmatprep.mubr.bf16.mxu0 %v8121
      %8283 = vmatmul.mubr.bf16.gmra.mxu0 %v8120
      %v8284 = vpop.f32.mrf.mxu0
      %v8285 = vadd.f32 0.0, %v8284
      %v8286 = vpop.f32.mrf.mxu0
      %v8287 = vpop.f32.mrf.mxu0
      %v8288 = vadd.f32 0.0, %v8287
      %v8289 = vpop.f32.mrf.mxu0
      %8290 = vdwg.mxu0
      %v8291 = vadd.f32 %v8001, %v8261
      %v8292 = vadd.f32 %v8002, %v8264
      %v8293 = vadd.f32 %v8003, %v8269
      %v8294 = vadd.f32 %v8004, %v8272
      %v8295 = vadd.f32 %v8005, %v8277
      %v8296 = vadd.f32 %v8006, %v8280
      %v8297 = vadd.f32 %v8007, %v8285
      %v8298 = vadd.f32 %v8008, %v8288
      %v8299 = vld [vmem:[%s458] sm:$0xff]
      %v8300 = vld [vmem:[%s458 + $0x10] sm:$0xff]
      %v8301 = vld [vmem:[%s458 + $0x20] sm:$0xff]
      %v8302 = vld [vmem:[%s458 + $0x30] sm:$0xff]
      %v8303 = vld [vmem:[%s458 + $0x40] sm:$0xff]
      %v8304 = vld [vmem:[%s458 + $0x50] sm:$0xff]
      %v8305 = vld [vmem:[%s458 + $0x60] sm:$0xff]
      %v8306 = vld [vmem:[%s458 + $0x70] sm:$0xff]
      %s8307 = scalar_lea.vmem %s6, 1152
      %v8308 = vld [vmem:[%s8307] sm:$0xf]
      %v8309 = vld [vmem:[%s8307 + $0x4] sm:$0xf]
      %v8310 = vld [vmem:[%s8307 + $0x8] sm:$0xf]
      %v8311 = vld [vmem:[%s8307 + $0xc] sm:$0xf]
      %v8312 = vld [vmem:[%s8307 + $0x10] sm:$0xf]
      %v8313 = vld [vmem:[%s8307 + $0x14] sm:$0xf]
      %v8314 = vld [vmem:[%s8307 + $0x18] sm:$0xf]
      %v8315 = vld [vmem:[%s8307 + $0x1c] sm:$0xf]
      %v8316 = vld [vmem:[%s8307 + $0x20] sm:$0xf]
      %v8317 = vld [vmem:[%s8307 + $0x24] sm:$0xf]
      %v8318 = vld [vmem:[%s8307 + $0x28] sm:$0xf]
      %v8319 = vld [vmem:[%s8307 + $0x2c] sm:$0xf]
      %v8320 = vld [vmem:[%s8307 + $0x30] sm:$0xf]
      %v8321 = vld [vmem:[%s8307 + $0x34] sm:$0xf]
      %v8322 = vld [vmem:[%s8307 + $0x38] sm:$0xf]
      %v8323 = vld [vmem:[%s8307 + $0x3c] sm:$0xf]
      %v8324 = vld [vmem:[%s8307 + $0x40] sm:$0xf]
      %v8325 = vld [vmem:[%s8307 + $0x44] sm:$0xf]
      %v8326 = vld [vmem:[%s8307 + $0x48] sm:$0xf]
      %v8327 = vld [vmem:[%s8307 + $0x4c] sm:$0xf]
      %v8328 = vld [vmem:[%s8307 + $0x50] sm:$0xf]
      %v8329 = vld [vmem:[%s8307 + $0x54] sm:$0xf]
      %v8330 = vld [vmem:[%s8307 + $0x58] sm:$0xf]
      %v8331 = vld [vmem:[%s8307 + $0x5c] sm:$0xf]
      %v8332 = vld [vmem:[%s8307 + $0x60] sm:$0xf]
      %v8333 = vld [vmem:[%s8307 + $0x64] sm:$0xf]
      %v8334 = vld [vmem:[%s8307 + $0x68] sm:$0xf]
      %v8335 = vld [vmem:[%s8307 + $0x6c] sm:$0xf]
      %v8336 = vld [vmem:[%s8307 + $0x70] sm:$0xf]
      %v8337 = vld [vmem:[%s8307 + $0x74] sm:$0xf]
      %v8338 = vld [vmem:[%s8307 + $0x78] sm:$0xf]
      %v8339 = vld [vmem:[%s8307 + $0x7c] sm:$0xf]
      %v8348 = vunpack.c.l.b16 %v8299
      %v8349 = vunpack.c.h.b16 %v8299
      %v8350 = vunpack.c.l.b16 %v8300
      %v8351 = vunpack.c.h.b16 %v8300
      %v8352 = vunpack.c.l.b16 %v8301
      %v8353 = vunpack.c.h.b16 %v8301
      %v8354 = vunpack.c.l.b16 %v8302
      %v8355 = vunpack.c.h.b16 %v8302
      %v8356 = vunpack.c.l.b16 %v8303
      %v8357 = vunpack.c.h.b16 %v8303
      %v8358 = vunpack.c.l.b16 %v8304
      %v8359 = vunpack.c.h.b16 %v8304
      %v8360 = vunpack.c.l.b16 %v8305
      %v8361 = vunpack.c.h.b16 %v8305
      %v8362 = vunpack.c.l.b16 %v8306
      %v8363 = vunpack.c.h.b16 %v8306
      %v8364 = vpack.c.b16 %v8350, %v8348
      %v8365 = vpack.c.b16 %v8351, %v8349
      %v8366 = vpack.c.b16 %v8354, %v8352
      %v8367 = vpack.c.b16 %v8355, %v8353
      %v8368 = vpack.c.b16 %v8358, %v8356
      %v8369 = vpack.c.b16 %v8359, %v8357
      %v8370 = vpack.c.b16 %v8362, %v8360
      %v8371 = vpack.c.b16 %v8363, %v8361
      %v8412 = vunpack.c.l.b16 %v8308
      %v8413 = vunpack.c.l.b16 %v8309
      %v8414 = vunpack.c.l.b16 %v8310
      %v8415 = vunpack.c.l.b16 %v8311
      %v8416 = vunpack.c.l.b16 %v8312
      %v8417 = vunpack.c.l.b16 %v8313
      %v8418 = vunpack.c.l.b16 %v8314
      %v8419 = vunpack.c.l.b16 %v8315
      %v8420 = vunpack.c.l.b16 %v8316
      %v8421 = vunpack.c.l.b16 %v8317
      %v8422 = vunpack.c.l.b16 %v8318
      %v8423 = vunpack.c.l.b16 %v8319
      %v8424 = vunpack.c.l.b16 %v8320
      %v8425 = vunpack.c.l.b16 %v8321
      %v8426 = vunpack.c.l.b16 %v8322
      %v8427 = vunpack.c.l.b16 %v8323
      %v8428 = vunpack.c.l.b16 %v8324
      %v8429 = vunpack.c.l.b16 %v8325
      %v8430 = vunpack.c.l.b16 %v8326
      %v8431 = vunpack.c.l.b16 %v8327
      %v8432 = vunpack.c.l.b16 %v8328
      %v8433 = vunpack.c.l.b16 %v8329
      %v8434 = vunpack.c.l.b16 %v8330
      %v8435 = vunpack.c.l.b16 %v8331
      %v8436 = vunpack.c.l.b16 %v8332
      %v8437 = vunpack.c.l.b16 %v8333
      %v8438 = vunpack.c.l.b16 %v8334
      %v8439 = vunpack.c.l.b16 %v8335
      %v8440 = vunpack.c.l.b16 %v8336
      %v8441 = vunpack.c.l.b16 %v8337
      %v8442 = vunpack.c.l.b16 %v8338
      %v8443 = vunpack.c.l.b16 %v8339
      %v8444 = vpack.c.b16 %v8413, %v8412
      %v8445 = vpack.c.b16 %v8415, %v8414
      %v8446 = vpack.c.b16 %v8417, %v8416
      %v8447 = vpack.c.b16 %v8419, %v8418
      %v8448 = vpack.c.b16 %v8421, %v8420
      %v8449 = vpack.c.b16 %v8423, %v8422
      %v8450 = vpack.c.b16 %v8425, %v8424
      %v8451 = vpack.c.b16 %v8427, %v8426
      %v8452 = vpack.c.b16 %v8429, %v8428
      %v8453 = vpack.c.b16 %v8431, %v8430
      %v8454 = vpack.c.b16 %v8433, %v8432
      %v8455 = vpack.c.b16 %v8435, %v8434
      %v8456 = vpack.c.b16 %v8437, %v8436
      %v8457 = vpack.c.b16 %v8439, %v8438
      %v8458 = vpack.c.b16 %v8441, %v8440
      %v8459 = vpack.c.b16 %v8443, %v8442
      %8476 = vmatprep.subr.bf16.mxu0 0
      %8477 = vmatpush1.bf16.msra.mxu0 %v8451
      %8478 = vmatprep.subr.bf16.mxu0 0
      %8479 = vmatpush1.bf16.msra.mxu0 %v8450
      %8480 = vmatprep.subr.bf16.mxu0 0
      %8481 = vmatpush1.bf16.msra.mxu0 %v8449
      %8482 = vmatprep.subr.bf16.mxu0 0
      %8483 = vmatpush1.bf16.msra.mxu0 %v8448
      %8484 = vmatprep.subr.bf16.mxu0 0
      %8485 = vmatpush1.bf16.msra.mxu0 %v8447
      %8486 = vmatprep.subr.bf16.mxu0 0
      %8487 = vmatpush1.bf16.msra.mxu0 %v8446
      %8488 = vmatprep.subr.bf16.mxu0 0
      %8489 = vmatpush1.bf16.msra.mxu0 %v8445
      %8490 = vmatprep.subr.bf16.mxu0 0
      %8491 = vmatpush1.bf16.msra.mxu0 %v8444
      %8492 = vmatprep.subr.bf16.mxu0 0
      %8493 = vmatpush2.bf16.msra.mxu0 %v8459
      %8494 = vmatprep.subr.bf16.mxu0 0
      %8495 = vmatpush2.bf16.msra.mxu0 %v8458
      %8496 = vmatprep.subr.bf16.mxu0 0
      %8497 = vmatpush2.bf16.msra.mxu0 %v8457
      %8498 = vmatprep.subr.bf16.mxu0 0
      %8499 = vmatpush2.bf16.msra.mxu0 %v8456
      %8500 = vmatprep.subr.bf16.mxu0 0
      %8501 = vmatpush2.bf16.msra.mxu0 %v8455
      %8502 = vmatprep.subr.bf16.mxu0 0
      %8503 = vmatpush2.bf16.msra.mxu0 %v8454
      %8504 = vmatprep.subr.bf16.mxu0 0
      %8505 = vmatpush2.bf16.msra.mxu0 %v8453
      %8506 = vmatprep.subr.bf16.mxu0 0
      %8507 = vmatpush2.bf16.msra.mxu0 %v8452
      %8508 = vmatprep.mubr.bf16.mxu0 %v8365
      %8509 = vmatmul.mubr.bf16.gmra.mxu0 %v8364
      %v8510 = vpop.f32.mrf.mxu0
      %v8511 = vadd.f32 0.0, %v8510
      %v8512 = vpop.f32.mrf.mxu0
      %v8513 = vpop.f32.mrf.mxu0
      %v8514 = vadd.f32 0.0, %v8513
      %v8515 = vpop.f32.mrf.mxu0
      %8516 = vmatprep.mubr.bf16.mxu0 %v8367
      %8517 = vmatmul.mubr.bf16.gmra.mxu0 %v8366
      %v8518 = vpop.f32.mrf.mxu0
      %v8519 = vadd.f32 0.0, %v8518
      %v8520 = vpop.f32.mrf.mxu0
      %v8521 = vpop.f32.mrf.mxu0
      %v8522 = vadd.f32 0.0, %v8521
      %v8523 = vpop.f32.mrf.mxu0
      %8524 = vmatprep.mubr.bf16.mxu0 %v8369
      %8525 = vmatmul.mubr.bf16.gmra.mxu0 %v8368
      %v8526 = vpop.f32.mrf.mxu0
      %v8527 = vadd.f32 0.0, %v8526
      %v8528 = vpop.f32.mrf.mxu0
      %v8529 = vpop.f32.mrf.mxu0
      %v8530 = vadd.f32 0.0, %v8529
      %v8531 = vpop.f32.mrf.mxu0
      %8532 = vmatprep.mubr.bf16.mxu0 %v8371
      %8533 = vmatmul.mubr.bf16.gmra.mxu0 %v8370
      %v8534 = vpop.f32.mrf.mxu0
      %v8535 = vadd.f32 0.0, %v8534
      %v8536 = vpop.f32.mrf.mxu0
      %v8537 = vpop.f32.mrf.mxu0
      %v8538 = vadd.f32 0.0, %v8537
      %v8539 = vpop.f32.mrf.mxu0
      %8540 = vdwg.mxu0
      %v8541 = vadd.f32 %v8291, %v8511
      %v8542 = vadd.f32 %v8292, %v8514
      %v8543 = vadd.f32 %v8293, %v8519
      %v8544 = vadd.f32 %v8294, %v8522
      %v8545 = vadd.f32 %v8295, %v8527
      %v8546 = vadd.f32 %v8296, %v8530
      %v8547 = vadd.f32 %v8297, %v8535
      %v8548 = vadd.f32 %v8298, %v8538
      %v8549 = vld [vmem:[%s458] sm:$0xff]
      %v8550 = vld [vmem:[%s458 + $0x8] sm:$0x11]
      %v8551 = vld [vmem:[%s458 + $0x10] sm:$0xff]
      %v8552 = vld [vmem:[%s458 + $0x18] sm:$0x11]
      %v8553 = vld [vmem:[%s458 + $0x20] sm:$0xff]
      %v8554 = vld [vmem:[%s458 + $0x28] sm:$0x11]
      %v8555 = vld [vmem:[%s458 + $0x30] sm:$0xff]
      %v8556 = vld [vmem:[%s458 + $0x38] sm:$0x11]
      %v8557 = vld [vmem:[%s458 + $0x40] sm:$0xff]
      %v8558 = vld [vmem:[%s458 + $0x48] sm:$0x11]
      %v8559 = vld [vmem:[%s458 + $0x50] sm:$0xff]
      %v8560 = vld [vmem:[%s458 + $0x58] sm:$0x11]
      %v8561 = vld [vmem:[%s458 + $0x60] sm:$0xff]
      %v8562 = vld [vmem:[%s458 + $0x68] sm:$0x11]
      %v8563 = vld [vmem:[%s458 + $0x70] sm:$0xff]
      %v8564 = vld [vmem:[%s458 + $0x78] sm:$0x11]
      %v8566 = vshrl.u32 %v8549, 16
      %v8568 = vrot.slane %v8566, 4
      %v8569 = vshll.u32 %v8549, 16
      %v8571 = vrot.slane %v8569, 5
      %v8572 = vor.u32 %v8568, %v8571
      %v8573 = vrot.slane %v8572, 4
      %v8575 = vshll.u32 %v8550, 16
      %v8577 = vrot.slane %v8575, 5
      %v8578 = vsel %vm998, %v8573, %v8577
      %v8580 = vshrl.u32 %v8551, 16
      %v8582 = vrot.slane %v8580, 4
      %v8583 = vshll.u32 %v8551, 16
      %v8585 = vrot.slane %v8583, 5
      %v8586 = vor.u32 %v8582, %v8585
      %v8587 = vrot.slane %v8586, 4
      %v8589 = vshll.u32 %v8552, 16
      %v8591 = vrot.slane %v8589, 5
      %v8592 = vsel %vm998, %v8587, %v8591
      %v8594 = vshrl.u32 %v8553, 16
      %v8596 = vrot.slane %v8594, 4
      %v8597 = vshll.u32 %v8553, 16
      %v8599 = vrot.slane %v8597, 5
      %v8600 = vor.u32 %v8596, %v8599
      %v8601 = vrot.slane %v8600, 4
      %v8603 = vshll.u32 %v8554, 16
      %v8605 = vrot.slane %v8603, 5
      %v8606 = vsel %vm998, %v8601, %v8605
      %v8608 = vshrl.u32 %v8555, 16
      %v8610 = vrot.slane %v8608, 4
      %v8611 = vshll.u32 %v8555, 16
      %v8613 = vrot.slane %v8611, 5
      %v8614 = vor.u32 %v8610, %v8613
      %v8615 = vrot.slane %v8614, 4
      %v8617 = vshll.u32 %v8556, 16
      %v8619 = vrot.slane %v8617, 5
      %v8620 = vsel %vm998, %v8615, %v8619
      %v8622 = vshrl.u32 %v8557, 16
      %v8624 = vrot.slane %v8622, 4
      %v8625 = vshll.u32 %v8557, 16
      %v8627 = vrot.slane %v8625, 5
      %v8628 = vor.u32 %v8624, %v8627
      %v8629 = vrot.slane %v8628, 4
      %v8631 = vshll.u32 %v8558, 16
      %v8633 = vrot.slane %v8631, 5
      %v8634 = vsel %vm998, %v8629, %v8633
      %v8636 = vshrl.u32 %v8559, 16
      %v8638 = vrot.slane %v8636, 4
      %v8639 = vshll.u32 %v8559, 16
      %v8641 = vrot.slane %v8639, 5
      %v8642 = vor.u32 %v8638, %v8641
      %v8643 = vrot.slane %v8642, 4
      %v8645 = vshll.u32 %v8560, 16
      %v8647 = vrot.slane %v8645, 5
      %v8648 = vsel %vm998, %v8643, %v8647
      %v8650 = vshrl.u32 %v8561, 16
      %v8652 = vrot.slane %v8650, 4
      %v8653 = vshll.u32 %v8561, 16
      %v8655 = vrot.slane %v8653, 5
      %v8656 = vor.u32 %v8652, %v8655
      %v8657 = vrot.slane %v8656, 4
      %v8659 = vshll.u32 %v8562, 16
      %v8661 = vrot.slane %v8659, 5
      %v8662 = vsel %vm998, %v8657, %v8661
      %v8664 = vshrl.u32 %v8563, 16
      %v8666 = vrot.slane %v8664, 4
      %v8667 = vshll.u32 %v8563, 16
      %v8669 = vrot.slane %v8667, 5
      %v8670 = vor.u32 %v8666, %v8669
      %v8671 = vrot.slane %v8670, 4
      %v8673 = vshll.u32 %v8564, 16
      %v8675 = vrot.slane %v8673, 5
      %v8676 = vsel %vm998, %v8671, %v8675
      %s8677 = scalar_lea.vmem %s6, 1280
      %v8678 = vld [vmem:[%s8677] sm:$0xf]
      %v8679 = vld [vmem:[%s8677 + $0x4] sm:$0xf]
      %v8680 = vld [vmem:[%s8677 + $0x8] sm:$0xf]
      %v8681 = vld [vmem:[%s8677 + $0xc] sm:$0xf]
      %v8682 = vld [vmem:[%s8677 + $0x10] sm:$0xf]
      %v8683 = vld [vmem:[%s8677 + $0x14] sm:$0xf]
      %v8684 = vld [vmem:[%s8677 + $0x18] sm:$0xf]
      %v8685 = vld [vmem:[%s8677 + $0x1c] sm:$0xf]
      %v8686 = vld [vmem:[%s8677 + $0x20] sm:$0xf]
      %v8687 = vld [vmem:[%s8677 + $0x24] sm:$0xf]
      %v8688 = vld [vmem:[%s8677 + $0x28] sm:$0xf]
      %v8689 = vld [vmem:[%s8677 + $0x2c] sm:$0xf]
      %v8690 = vld [vmem:[%s8677 + $0x30] sm:$0xf]
      %v8691 = vld [vmem:[%s8677 + $0x34] sm:$0xf]
      %v8692 = vld [vmem:[%s8677 + $0x38] sm:$0xf]
      %v8693 = vld [vmem:[%s8677 + $0x3c] sm:$0xf]
      %v8694 = vld [vmem:[%s8677 + $0x40] sm:$0xf]
      %v8695 = vld [vmem:[%s8677 + $0x44] sm:$0xf]
      %v8696 = vld [vmem:[%s8677 + $0x48] sm:$0xf]
      %v8697 = vld [vmem:[%s8677 + $0x4c] sm:$0xf]
      %v8698 = vld [vmem:[%s8677 + $0x50] sm:$0xf]
      %v8699 = vld [vmem:[%s8677 + $0x54] sm:$0xf]
      %v8700 = vld [vmem:[%s8677 + $0x58] sm:$0xf]
      %v8701 = vld [vmem:[%s8677 + $0x5c] sm:$0xf]
      %v8702 = vld [vmem:[%s8677 + $0x60] sm:$0xf]
      %v8703 = vld [vmem:[%s8677 + $0x64] sm:$0xf]
      %v8704 = vld [vmem:[%s8677 + $0x68] sm:$0xf]
      %v8705 = vld [vmem:[%s8677 + $0x6c] sm:$0xf]
      %v8706 = vld [vmem:[%s8677 + $0x70] sm:$0xf]
      %v8707 = vld [vmem:[%s8677 + $0x74] sm:$0xf]
      %v8708 = vld [vmem:[%s8677 + $0x78] sm:$0xf]
      %v8709 = vld [vmem:[%s8677 + $0x7c] sm:$0xf]
      %v8710 = vunpack.c.l.b16 %v8578
      %v8711 = vunpack.c.h.b16 %v8578
      %v8712 = vunpack.c.l.b16 %v8592
      %v8713 = vunpack.c.h.b16 %v8592
      %v8714 = vunpack.c.l.b16 %v8606
      %v8715 = vunpack.c.h.b16 %v8606
      %v8716 = vunpack.c.l.b16 %v8620
      %v8717 = vunpack.c.h.b16 %v8620
      %v8718 = vunpack.c.l.b16 %v8634
      %v8719 = vunpack.c.h.b16 %v8634
      %v8720 = vunpack.c.l.b16 %v8648
      %v8721 = vunpack.c.h.b16 %v8648
      %v8722 = vunpack.c.l.b16 %v8662
      %v8723 = vunpack.c.h.b16 %v8662
      %v8724 = vunpack.c.l.b16 %v8676
      %v8725 = vunpack.c.h.b16 %v8676
      %v8726 = vpack.c.b16 %v8712, %v8710
      %v8727 = vpack.c.b16 %v8713, %v8711
      %v8728 = vpack.c.b16 %v8716, %v8714
      %v8729 = vpack.c.b16 %v8717, %v8715
      %v8730 = vpack.c.b16 %v8720, %v8718
      %v8731 = vpack.c.b16 %v8721, %v8719
      %v8732 = vpack.c.b16 %v8724, %v8722
      %v8733 = vpack.c.b16 %v8725, %v8723
      %v8774 = vunpack.c.l.b16 %v8678
      %v8775 = vunpack.c.l.b16 %v8679
      %v8776 = vunpack.c.l.b16 %v8680
      %v8777 = vunpack.c.l.b16 %v8681
      %v8778 = vunpack.c.l.b16 %v8682
      %v8779 = vunpack.c.l.b16 %v8683
      %v8780 = vunpack.c.l.b16 %v8684
      %v8781 = vunpack.c.l.b16 %v8685
      %v8782 = vunpack.c.l.b16 %v8686
      %v8783 = vunpack.c.l.b16 %v8687
      %v8784 = vunpack.c.l.b16 %v8688
      %v8785 = vunpack.c.l.b16 %v8689
      %v8786 = vunpack.c.l.b16 %v8690
      %v8787 = vunpack.c.l.b16 %v8691
      %v8788 = vunpack.c.l.b16 %v8692
      %v8789 = vunpack.c.l.b16 %v8693
      %v8790 = vunpack.c.l.b16 %v8694
      %v8791 = vunpack.c.l.b16 %v8695
      %v8792 = vunpack.c.l.b16 %v8696
      %v8793 = vunpack.c.l.b16 %v8697
      %v8794 = vunpack.c.l.b16 %v8698
      %v8795 = vunpack.c.l.b16 %v8699
      %v8796 = vunpack.c.l.b16 %v8700
      %v8797 = vunpack.c.l.b16 %v8701
      %v8798 = vunpack.c.l.b16 %v8702
      %v8799 = vunpack.c.l.b16 %v8703
      %v8800 = vunpack.c.l.b16 %v8704
      %v8801 = vunpack.c.l.b16 %v8705
      %v8802 = vunpack.c.l.b16 %v8706
      %v8803 = vunpack.c.l.b16 %v8707
      %v8804 = vunpack.c.l.b16 %v8708
      %v8805 = vunpack.c.l.b16 %v8709
      %v8806 = vpack.c.b16 %v8775, %v8774
      %v8807 = vpack.c.b16 %v8777, %v8776
      %v8808 = vpack.c.b16 %v8779, %v8778
      %v8809 = vpack.c.b16 %v8781, %v8780
      %v8810 = vpack.c.b16 %v8783, %v8782
      %v8811 = vpack.c.b16 %v8785, %v8784
      %v8812 = vpack.c.b16 %v8787, %v8786
      %v8813 = vpack.c.b16 %v8789, %v8788
      %v8814 = vpack.c.b16 %v8791, %v8790
      %v8815 = vpack.c.b16 %v8793, %v8792
      %v8816 = vpack.c.b16 %v8795, %v8794
      %v8817 = vpack.c.b16 %v8797, %v8796
      %v8818 = vpack.c.b16 %v8799, %v8798
      %v8819 = vpack.c.b16 %v8801, %v8800
      %v8820 = vpack.c.b16 %v8803, %v8802
      %v8821 = vpack.c.b16 %v8805, %v8804
      %8838 = vmatprep.subr.bf16.mxu0 0
      %8839 = vmatpush1.bf16.msra.mxu0 %v8813
      %8840 = vmatprep.subr.bf16.mxu0 0
      %8841 = vmatpush1.bf16.msra.mxu0 %v8812
      %8842 = vmatprep.subr.bf16.mxu0 0
      %8843 = vmatpush1.bf16.msra.mxu0 %v8811
      %8844 = vmatprep.subr.bf16.mxu0 0
      %8845 = vmatpush1.bf16.msra.mxu0 %v8810
      %8846 = vmatprep.subr.bf16.mxu0 0
      %8847 = vmatpush1.bf16.msra.mxu0 %v8809
      %8848 = vmatprep.subr.bf16.mxu0 0
      %8849 = vmatpush1.bf16.msra.mxu0 %v8808
      %8850 = vmatprep.subr.bf16.mxu0 0
      %8851 = vmatpush1.bf16.msra.mxu0 %v8807
      %8852 = vmatprep.subr.bf16.mxu0 0
      %8853 = vmatpush1.bf16.msra.mxu0 %v8806
      %8854 = vmatprep.subr.bf16.mxu0 0
      %8855 = vmatpush2.bf16.msra.mxu0 %v8821
      %8856 = vmatprep.subr.bf16.mxu0 0
      %8857 = vmatpush2.bf16.msra.mxu0 %v8820
      %8858 = vmatprep.subr.bf16.mxu0 0
      %8859 = vmatpush2.bf16.msra.mxu0 %v8819
      %8860 = vmatprep.subr.bf16.mxu0 0
      %8861 = vmatpush2.bf16.msra.mxu0 %v8818
      %8862 = vmatprep.subr.bf16.mxu0 0
      %8863 = vmatpush2.bf16.msra.mxu0 %v8817
      %8864 = vmatprep.subr.bf16.mxu0 0
      %8865 = vmatpush2.bf16.msra.mxu0 %v8816
      %8866 = vmatprep.subr.bf16.mxu0 0
      %8867 = vmatpush2.bf16.msra.mxu0 %v8815
      %8868 = vmatprep.subr.bf16.mxu0 0
      %8869 = vmatpush2.bf16.msra.mxu0 %v8814
      %8870 = vmatprep.mubr.bf16.mxu0 %v8727
      %8871 = vmatmul.mubr.bf16.gmra.mxu0 %v8726
      %v8872 = vpop.f32.mrf.mxu0
      %v8873 = vadd.f32 0.0, %v8872
      %v8874 = vpop.f32.mrf.mxu0
      %v8875 = vpop.f32.mrf.mxu0
      %v8876 = vadd.f32 0.0, %v8875
      %v8877 = vpop.f32.mrf.mxu0
      %8878 = vmatprep.mubr.bf16.mxu0 %v8729
      %8879 = vmatmul.mubr.bf16.gmra.mxu0 %v8728
      %v8880 = vpop.f32.mrf.mxu0
      %v8881 = vadd.f32 0.0, %v8880
      %v8882 = vpop.f32.mrf.mxu0
      %v8883 = vpop.f32.mrf.mxu0
      %v8884 = vadd.f32 0.0, %v8883
      %v8885 = vpop.f32.mrf.mxu0
      %8886 = vmatprep.mubr.bf16.mxu0 %v8731
      %8887 = vmatmul.mubr.bf16.gmra.mxu0 %v8730
      %v8888 = vpop.f32.mrf.mxu0
      %v8889 = vadd.f32 0.0, %v8888
      %v8890 = vpop.f32.mrf.mxu0
      %v8891 = vpop.f32.mrf.mxu0
      %v8892 = vadd.f32 0.0, %v8891
      %v8893 = vpop.f32.mrf.mxu0
      %8894 = vmatprep.mubr.bf16.mxu0 %v8733
      %8895 = vmatmul.mubr.bf16.gmra.mxu0 %v8732
      %v8896 = vpop.f32.mrf.mxu0
      %v8897 = vadd.f32 0.0, %v8896
      %v8898 = vpop.f32.mrf.mxu0
      %v8899 = vpop.f32.mrf.mxu0
      %v8900 = vadd.f32 0.0, %v8899
      %v8901 = vpop.f32.mrf.mxu0
      %8902 = vdwg.mxu0
      %v8903 = vadd.f32 %v8541, %v8873
      %v8904 = vadd.f32 %v8542, %v8876
      %v8905 = vadd.f32 %v8543, %v8881
      %v8906 = vadd.f32 %v8544, %v8884
      %v8907 = vadd.f32 %v8545, %v8889
      %v8908 = vadd.f32 %v8546, %v8892
      %v8909 = vadd.f32 %v8547, %v8897
      %v8910 = vadd.f32 %v8548, %v8900
      %v8911 = vld [vmem:[%s458] sm:$0xee]
      %v8912 = vld [vmem:[%s458 + $0x10] sm:$0xee]
      %v8913 = vld [vmem:[%s458 + $0x20] sm:$0xee]
      %v8914 = vld [vmem:[%s458 + $0x30] sm:$0xee]
      %v8915 = vld [vmem:[%s458 + $0x40] sm:$0xee]
      %v8916 = vld [vmem:[%s458 + $0x50] sm:$0xee]
      %v8917 = vld [vmem:[%s458 + $0x60] sm:$0xee]
      %v8918 = vld [vmem:[%s458 + $0x70] sm:$0xee]
      %v8935 = vrot.slane %v8911, 5
      %v8936 = vrot.slane %v8935, 4
      %v8937 = vrot.slane %v8550, 5
      %v8938 = vsel %vm6228, %v8936, %v8937
      %v8939 = vrot.slane %v8912, 5
      %v8940 = vrot.slane %v8939, 4
      %v8941 = vrot.slane %v8552, 5
      %v8942 = vsel %vm6228, %v8940, %v8941
      %v8943 = vrot.slane %v8913, 5
      %v8944 = vrot.slane %v8943, 4
      %v8945 = vrot.slane %v8554, 5
      %v8946 = vsel %vm6228, %v8944, %v8945
      %v8947 = vrot.slane %v8914, 5
      %v8948 = vrot.slane %v8947, 4
      %v8949 = vrot.slane %v8556, 5
      %v8950 = vsel %vm6228, %v8948, %v8949
      %v8951 = vrot.slane %v8915, 5
      %v8952 = vrot.slane %v8951, 4
      %v8953 = vrot.slane %v8558, 5
      %v8954 = vsel %vm6228, %v8952, %v8953
      %v8955 = vrot.slane %v8916, 5
      %v8956 = vrot.slane %v8955, 4
      %v8957 = vrot.slane %v8560, 5
      %v8958 = vsel %vm6228, %v8956, %v8957
      %v8959 = vrot.slane %v8917, 5
      %v8960 = vrot.slane %v8959, 4
      %v8961 = vrot.slane %v8562, 5
      %v8962 = vsel %vm6228, %v8960, %v8961
      %v8963 = vrot.slane %v8918, 5
      %v8964 = vrot.slane %v8963, 4
      %v8965 = vrot.slane %v8564, 5
      %v8966 = vsel %vm6228, %v8964, %v8965
      %s8967 = scalar_lea.vmem %s6, 1408
      %v8968 = vld [vmem:[%s8967] sm:$0xf]
      %v8969 = vld [vmem:[%s8967 + $0x4] sm:$0xf]
      %v8970 = vld [vmem:[%s8967 + $0x8] sm:$0xf]
      %v8971 = vld [vmem:[%s8967 + $0xc] sm:$0xf]
      %v8972 = vld [vmem:[%s8967 + $0x10] sm:$0xf]
      %v8973 = vld [vmem:[%s8967 + $0x14] sm:$0xf]
      %v8974 = vld [vmem:[%s8967 + $0x18] sm:$0xf]
      %v8975 = vld [vmem:[%s8967 + $0x1c] sm:$0xf]
      %v8976 = vld [vmem:[%s8967 + $0x20] sm:$0xf]
      %v8977 = vld [vmem:[%s8967 + $0x24] sm:$0xf]
      %v8978 = vld [vmem:[%s8967 + $0x28] sm:$0xf]
      %v8979 = vld [vmem:[%s8967 + $0x2c] sm:$0xf]
      %v8980 = vld [vmem:[%s8967 + $0x30] sm:$0xf]
      %v8981 = vld [vmem:[%s8967 + $0x34] sm:$0xf]
      %v8982 = vld [vmem:[%s8967 + $0x38] sm:$0xf]
      %v8983 = vld [vmem:[%s8967 + $0x3c] sm:$0xf]
      %v8984 = vld [vmem:[%s8967 + $0x40] sm:$0xf]
      %v8985 = vld [vmem:[%s8967 + $0x44] sm:$0xf]
      %v8986 = vld [vmem:[%s8967 + $0x48] sm:$0xf]
      %v8987 = vld [vmem:[%s8967 + $0x4c] sm:$0xf]
      %v8988 = vld [vmem:[%s8967 + $0x50] sm:$0xf]
      %v8989 = vld [vmem:[%s8967 + $0x54] sm:$0xf]
      %v8990 = vld [vmem:[%s8967 + $0x58] sm:$0xf]
      %v8991 = vld [vmem:[%s8967 + $0x5c] sm:$0xf]
      %v8992 = vld [vmem:[%s8967 + $0x60] sm:$0xf]
      %v8993 = vld [vmem:[%s8967 + $0x64] sm:$0xf]
      %v8994 = vld [vmem:[%s8967 + $0x68] sm:$0xf]
      %v8995 = vld [vmem:[%s8967 + $0x6c] sm:$0xf]
      %v8996 = vld [vmem:[%s8967 + $0x70] sm:$0xf]
      %v8997 = vld [vmem:[%s8967 + $0x74] sm:$0xf]
      %v8998 = vld [vmem:[%s8967 + $0x78] sm:$0xf]
      %v8999 = vld [vmem:[%s8967 + $0x7c] sm:$0xf]
      %v9000 = vunpack.c.l.b16 %v8938
      %v9001 = vunpack.c.h.b16 %v8938
      %v9002 = vunpack.c.l.b16 %v8942
      %v9003 = vunpack.c.h.b16 %v8942
      %v9004 = vunpack.c.l.b16 %v8946
      %v9005 = vunpack.c.h.b16 %v8946
      %v9006 = vunpack.c.l.b16 %v8950
      %v9007 = vunpack.c.h.b16 %v8950
      %v9008 = vunpack.c.l.b16 %v8954
      %v9009 = vunpack.c.h.b16 %v8954
      %v9010 = vunpack.c.l.b16 %v8958
      %v9011 = vunpack.c.h.b16 %v8958
      %v9012 = vunpack.c.l.b16 %v8962
      %v9013 = vunpack.c.h.b16 %v8962
      %v9014 = vunpack.c.l.b16 %v8966
      %v9015 = vunpack.c.h.b16 %v8966
      %v9016 = vpack.c.b16 %v9002, %v9000
      %v9017 = vpack.c.b16 %v9003, %v9001
      %v9018 = vpack.c.b16 %v9006, %v9004
      %v9019 = vpack.c.b16 %v9007, %v9005
      %v9020 = vpack.c.b16 %v9010, %v9008
      %v9021 = vpack.c.b16 %v9011, %v9009
      %v9022 = vpack.c.b16 %v9014, %v9012
      %v9023 = vpack.c.b16 %v9015, %v9013
      %v9064 = vunpack.c.l.b16 %v8968
      %v9065 = vunpack.c.l.b16 %v8969
      %v9066 = vunpack.c.l.b16 %v8970
      %v9067 = vunpack.c.l.b16 %v8971
      %v9068 = vunpack.c.l.b16 %v8972
      %v9069 = vunpack.c.l.b16 %v8973
      %v9070 = vunpack.c.l.b16 %v8974
      %v9071 = vunpack.c.l.b16 %v8975
      %v9072 = vunpack.c.l.b16 %v8976
      %v9073 = vunpack.c.l.b16 %v8977
      %v9074 = vunpack.c.l.b16 %v8978
      %v9075 = vunpack.c.l.b16 %v8979
      %v9076 = vunpack.c.l.b16 %v8980
      %v9077 = vunpack.c.l.b16 %v8981
      %v9078 = vunpack.c.l.b16 %v8982
      %v9079 = vunpack.c.l.b16 %v8983
      %v9080 = vunpack.c.l.b16 %v8984
      %v9081 = vunpack.c.l.b16 %v8985
      %v9082 = vunpack.c.l.b16 %v8986
      %v9083 = vunpack.c.l.b16 %v8987
      %v9084 = vunpack.c.l.b16 %v8988
      %v9085 = vunpack.c.l.b16 %v8989
      %v9086 = vunpack.c.l.b16 %v8990
      %v9087 = vunpack.c.l.b16 %v8991
      %v9088 = vunpack.c.l.b16 %v8992
      %v9089 = vunpack.c.l.b16 %v8993
      %v9090 = vunpack.c.l.b16 %v8994
      %v9091 = vunpack.c.l.b16 %v8995
      %v9092 = vunpack.c.l.b16 %v8996
      %v9093 = vunpack.c.l.b16 %v8997
      %v9094 = vunpack.c.l.b16 %v8998
      %v9095 = vunpack.c.l.b16 %v8999
      %v9096 = vpack.c.b16 %v9065, %v9064
      %v9097 = vpack.c.b16 %v9067, %v9066
      %v9098 = vpack.c.b16 %v9069, %v9068
      %v9099 = vpack.c.b16 %v9071, %v9070
      %v9100 = vpack.c.b16 %v9073, %v9072
      %v9101 = vpack.c.b16 %v9075, %v9074
      %v9102 = vpack.c.b16 %v9077, %v9076
      %v9103 = vpack.c.b16 %v9079, %v9078
      %v9104 = vpack.c.b16 %v9081, %v9080
      %v9105 = vpack.c.b16 %v9083, %v9082
      %v9106 = vpack.c.b16 %v9085, %v9084
      %v9107 = vpack.c.b16 %v9087, %v9086
      %v9108 = vpack.c.b16 %v9089, %v9088
      %v9109 = vpack.c.b16 %v9091, %v9090
      %v9110 = vpack.c.b16 %v9093, %v9092
      %v9111 = vpack.c.b16 %v9095, %v9094
      %9128 = vmatprep.subr.bf16.mxu0 0
      %9129 = vmatpush1.bf16.msra.mxu0 %v9103
      %9130 = vmatprep.subr.bf16.mxu0 0
      %9131 = vmatpush1.bf16.msra.mxu0 %v9102
      %9132 = vmatprep.subr.bf16.mxu0 0
      %9133 = vmatpush1.bf16.msra.mxu0 %v9101
      %9134 = vmatprep.subr.bf16.mxu0 0
      %9135 = vmatpush1.bf16.msra.mxu0 %v9100
      %9136 = vmatprep.subr.bf16.mxu0 0
      %9137 = vmatpush1.bf16.msra.mxu0 %v9099
      %9138 = vmatprep.subr.bf16.mxu0 0
      %9139 = vmatpush1.bf16.msra.mxu0 %v9098
      %9140 = vmatprep.subr.bf16.mxu0 0
      %9141 = vmatpush1.bf16.msra.mxu0 %v9097
      %9142 = vmatprep.subr.bf16.mxu0 0
      %9143 = vmatpush1.bf16.msra.mxu0 %v9096
      %9144 = vmatprep.subr.bf16.mxu0 0
      %9145 = vmatpush2.bf16.msra.mxu0 %v9111
      %9146 = vmatprep.subr.bf16.mxu0 0
      %9147 = vmatpush2.bf16.msra.mxu0 %v9110
      %9148 = vmatprep.subr.bf16.mxu0 0
      %9149 = vmatpush2.bf16.msra.mxu0 %v9109
      %9150 = vmatprep.subr.bf16.mxu0 0
      %9151 = vmatpush2.bf16.msra.mxu0 %v9108
      %9152 = vmatprep.subr.bf16.mxu0 0
      %9153 = vmatpush2.bf16.msra.mxu0 %v9107
      %9154 = vmatprep.subr.bf16.mxu0 0
      %9155 = vmatpush2.bf16.msra.mxu0 %v9106
      %9156 = vmatprep.subr.bf16.mxu0 0
      %9157 = vmatpush2.bf16.msra.mxu0 %v9105
      %9158 = vmatprep.subr.bf16.mxu0 0
      %9159 = vmatpush2.bf16.msra.mxu0 %v9104
      %9160 = vmatprep.mubr.bf16.mxu0 %v9017
      %9161 = vmatmul.mubr.bf16.gmra.mxu0 %v9016
      %v9162 = vpop.f32.mrf.mxu0
      %v9163 = vadd.f32 0.0, %v9162
      %v9164 = vpop.f32.mrf.mxu0
      %v9165 = vpop.f32.mrf.mxu0
      %v9166 = vadd.f32 0.0, %v9165
      %v9167 = vpop.f32.mrf.mxu0
      %9168 = vmatprep.mubr.bf16.mxu0 %v9019
      %9169 = vmatmul.mubr.bf16.gmra.mxu0 %v9018
      %v9170 = vpop.f32.mrf.mxu0
      %v9171 = vadd.f32 0.0, %v9170
      %v9172 = vpop.f32.mrf.mxu0
      %v9173 = vpop.f32.mrf.mxu0
      %v9174 = vadd.f32 0.0, %v9173
      %v9175 = vpop.f32.mrf.mxu0
      %9176 = vmatprep.mubr.bf16.mxu0 %v9021
      %9177 = vmatmul.mubr.bf16.gmra.mxu0 %v9020
      %v9178 = vpop.f32.mrf.mxu0
      %v9179 = vadd.f32 0.0, %v9178
      %v9180 = vpop.f32.mrf.mxu0
      %v9181 = vpop.f32.mrf.mxu0
      %v9182 = vadd.f32 0.0, %v9181
      %v9183 = vpop.f32.mrf.mxu0
      %9184 = vmatprep.mubr.bf16.mxu0 %v9023
      %9185 = vmatmul.mubr.bf16.gmra.mxu0 %v9022
      %v9186 = vpop.f32.mrf.mxu0
      %v9187 = vadd.f32 0.0, %v9186
      %v9188 = vpop.f32.mrf.mxu0
      %v9189 = vpop.f32.mrf.mxu0
      %v9190 = vadd.f32 0.0, %v9189
      %v9191 = vpop.f32.mrf.mxu0
      %9192 = vdwg.mxu0
      %v9193 = vadd.f32 %v8903, %v9163
      %v9194 = vadd.f32 %v8904, %v9166
      %v9195 = vadd.f32 %v8905, %v9171
      %v9196 = vadd.f32 %v8906, %v9174
      %v9197 = vadd.f32 %v8907, %v9179
      %v9198 = vadd.f32 %v8908, %v9182
      %v9199 = vadd.f32 %v8909, %v9187
      %v9200 = vadd.f32 %v8910, %v9190
      %v9201 = vld [vmem:[%s513] sm:$0xff]
      %v9202 = vld [vmem:[%s513 + $0x10] sm:$0xff]
      %v9203 = vld [vmem:[%s513 + $0x20] sm:$0xff]
      %v9204 = vld [vmem:[%s513 + $0x30] sm:$0xff]
      %v9205 = vld [vmem:[%s513 + $0x40] sm:$0xff]
      %v9206 = vld [vmem:[%s513 + $0x50] sm:$0xff]
      %v9207 = vld [vmem:[%s513 + $0x60] sm:$0xff]
      %v9208 = vld [vmem:[%s513 + $0x70] sm:$0xff]
      %s9209 = scalar_lea.vmem %s6, 1536
      %v9210 = vld [vmem:[%s9209] sm:$0xf]
      %v9211 = vld [vmem:[%s9209 + $0x4] sm:$0xf]
      %v9212 = vld [vmem:[%s9209 + $0x8] sm:$0xf]
      %v9213 = vld [vmem:[%s9209 + $0xc] sm:$0xf]
      %v9214 = vld [vmem:[%s9209 + $0x10] sm:$0xf]
      %v9215 = vld [vmem:[%s9209 + $0x14] sm:$0xf]
      %v9216 = vld [vmem:[%s9209 + $0x18] sm:$0xf]
      %v9217 = vld [vmem:[%s9209 + $0x1c] sm:$0xf]
      %v9218 = vld [vmem:[%s9209 + $0x20] sm:$0xf]
      %v9219 = vld [vmem:[%s9209 + $0x24] sm:$0xf]
      %v9220 = vld [vmem:[%s9209 + $0x28] sm:$0xf]
      %v9221 = vld [vmem:[%s9209 + $0x2c] sm:$0xf]
      %v9222 = vld [vmem:[%s9209 + $0x30] sm:$0xf]
      %v9223 = vld [vmem:[%s9209 + $0x34] sm:$0xf]
      %v9224 = vld [vmem:[%s9209 + $0x38] sm:$0xf]
      %v9225 = vld [vmem:[%s9209 + $0x3c] sm:$0xf]
      %v9226 = vld [vmem:[%s9209 + $0x40] sm:$0xf]
      %v9227 = vld [vmem:[%s9209 + $0x44] sm:$0xf]
      %v9228 = vld [vmem:[%s9209 + $0x48] sm:$0xf]
      %v9229 = vld [vmem:[%s9209 + $0x4c] sm:$0xf]
      %v9230 = vld [vmem:[%s9209 + $0x50] sm:$0xf]
      %v9231 = vld [vmem:[%s9209 + $0x54] sm:$0xf]
      %v9232 = vld [vmem:[%s9209 + $0x58] sm:$0xf]
      %v9233 = vld [vmem:[%s9209 + $0x5c] sm:$0xf]
      %v9234 = vld [vmem:[%s9209 + $0x60] sm:$0xf]
      %v9235 = vld [vmem:[%s9209 + $0x64] sm:$0xf]
      %v9236 = vld [vmem:[%s9209 + $0x68] sm:$0xf]
      %v9237 = vld [vmem:[%s9209 + $0x6c] sm:$0xf]
      %v9238 = vld [vmem:[%s9209 + $0x70] sm:$0xf]
      %v9239 = vld [vmem:[%s9209 + $0x74] sm:$0xf]
      %v9240 = vld [vmem:[%s9209 + $0x78] sm:$0xf]
      %v9241 = vld [vmem:[%s9209 + $0x7c] sm:$0xf]
      %v9250 = vunpack.c.l.b16 %v9201
      %v9251 = vunpack.c.h.b16 %v9201
      %v9252 = vunpack.c.l.b16 %v9202
      %v9253 = vunpack.c.h.b16 %v9202
      %v9254 = vunpack.c.l.b16 %v9203
      %v9255 = vunpack.c.h.b16 %v9203
      %v9256 = vunpack.c.l.b16 %v9204
      %v9257 = vunpack.c.h.b16 %v9204
      %v9258 = vunpack.c.l.b16 %v9205
      %v9259 = vunpack.c.h.b16 %v9205
      %v9260 = vunpack.c.l.b16 %v9206
      %v9261 = vunpack.c.h.b16 %v9206
      %v9262 = vunpack.c.l.b16 %v9207
      %v9263 = vunpack.c.h.b16 %v9207
      %v9264 = vunpack.c.l.b16 %v9208
      %v9265 = vunpack.c.h.b16 %v9208
      %v9266 = vpack.c.b16 %v9252, %v9250
      %v9267 = vpack.c.b16 %v9253, %v9251
      %v9268 = vpack.c.b16 %v9256, %v9254
      %v9269 = vpack.c.b16 %v9257, %v9255
      %v9270 = vpack.c.b16 %v9260, %v9258
      %v9271 = vpack.c.b16 %v9261, %v9259
      %v9272 = vpack.c.b16 %v9264, %v9262
      %v9273 = vpack.c.b16 %v9265, %v9263
      %v9314 = vunpack.c.l.b16 %v9210
      %v9315 = vunpack.c.l.b16 %v9211
      %v9316 = vunpack.c.l.b16 %v9212
      %v9317 = vunpack.c.l.b16 %v9213
      %v9318 = vunpack.c.l.b16 %v9214
      %v9319 = vunpack.c.l.b16 %v9215
      %v9320 = vunpack.c.l.b16 %v9216
      %v9321 = vunpack.c.l.b16 %v9217
      %v9322 = vunpack.c.l.b16 %v9218
      %v9323 = vunpack.c.l.b16 %v9219
      %v9324 = vunpack.c.l.b16 %v9220
      %v9325 = vunpack.c.l.b16 %v9221
      %v9326 = vunpack.c.l.b16 %v9222
      %v9327 = vunpack.c.l.b16 %v9223
      %v9328 = vunpack.c.l.b16 %v9224
      %v9329 = vunpack.c.l.b16 %v9225
      %v9330 = vunpack.c.l.b16 %v9226
      %v9331 = vunpack.c.l.b16 %v9227
      %v9332 = vunpack.c.l.b16 %v9228
      %v9333 = vunpack.c.l.b16 %v9229
      %v9334 = vunpack.c.l.b16 %v9230
      %v9335 = vunpack.c.l.b16 %v9231
      %v9336 = vunpack.c.l.b16 %v9232
      %v9337 = vunpack.c.l.b16 %v9233
      %v9338 = vunpack.c.l.b16 %v9234
      %v9339 = vunpack.c.l.b16 %v9235
      %v9340 = vunpack.c.l.b16 %v9236
      %v9341 = vunpack.c.l.b16 %v9237
      %v9342 = vunpack.c.l.b16 %v9238
      %v9343 = vunpack.c.l.b16 %v9239
      %v9344 = vunpack.c.l.b16 %v9240
      %v9345 = vunpack.c.l.b16 %v9241
      %v9346 = vpack.c.b16 %v9315, %v9314
      %v9347 = vpack.c.b16 %v9317, %v9316
      %v9348 = vpack.c.b16 %v9319, %v9318
      %v9349 = vpack.c.b16 %v9321, %v9320
      %v9350 = vpack.c.b16 %v9323, %v9322
      %v9351 = vpack.c.b16 %v9325, %v9324
      %v9352 = vpack.c.b16 %v9327, %v9326
      %v9353 = vpack.c.b16 %v9329, %v9328
      %v9354 = vpack.c.b16 %v9331, %v9330
      %v9355 = vpack.c.b16 %v9333, %v9332
      %v9356 = vpack.c.b16 %v9335, %v9334
      %v9357 = vpack.c.b16 %v9337, %v9336
      %v9358 = vpack.c.b16 %v9339, %v9338
      %v9359 = vpack.c.b16 %v9341, %v9340
      %v9360 = vpack.c.b16 %v9343, %v9342
      %v9361 = vpack.c.b16 %v9345, %v9344
      %9378 = vmatprep.subr.bf16.mxu0 0
      %9379 = vmatpush1.bf16.msra.mxu0 %v9353
      %9380 = vmatprep.subr.bf16.mxu0 0
      %9381 = vmatpush1.bf16.msra.mxu0 %v9352
      %9382 = vmatprep.subr.bf16.mxu0 0
      %9383 = vmatpush1.bf16.msra.mxu0 %v9351
      %9384 = vmatprep.subr.bf16.mxu0 0
      %9385 = vmatpush1.bf16.msra.mxu0 %v9350
      %9386 = vmatprep.subr.bf16.mxu0 0
      %9387 = vmatpush1.bf16.msra.mxu0 %v9349
      %9388 = vmatprep.subr.bf16.mxu0 0
      %9389 = vmatpush1.bf16.msra.mxu0 %v9348
      %9390 = vmatprep.subr.bf16.mxu0 0
      %9391 = vmatpush1.bf16.msra.mxu0 %v9347
      %9392 = vmatprep.subr.bf16.mxu0 0
      %9393 = vmatpush1.bf16.msra.mxu0 %v9346
      %9394 = vmatprep.subr.bf16.mxu0 0
      %9395 = vmatpush2.bf16.msra.mxu0 %v9361
      %9396 = vmatprep.subr.bf16.mxu0 0
      %9397 = vmatpush2.bf16.msra.mxu0 %v9360
      %9398 = vmatprep.subr.bf16.mxu0 0
      %9399 = vmatpush2.bf16.msra.mxu0 %v9359
      %9400 = vmatprep.subr.bf16.mxu0 0
      %9401 = vmatpush2.bf16.msra.mxu0 %v9358
      %9402 = vmatprep.subr.bf16.mxu0 0
      %9403 = vmatpush2.bf16.msra.mxu0 %v9357
      %9404 = vmatprep.subr.bf16.mxu0 0
      %9405 = vmatpush2.bf16.msra.mxu0 %v9356
      %9406 = vmatprep.subr.bf16.mxu0 0
      %9407 = vmatpush2.bf16.msra.mxu0 %v9355
      %9408 = vmatprep.subr.bf16.mxu0 0
      %9409 = vmatpush2.bf16.msra.mxu0 %v9354
      %9410 = vmatprep.mubr.bf16.mxu0 %v9267
      %9411 = vmatmul.mubr.bf16.gmra.mxu0 %v9266
      %v9412 = vpop.f32.mrf.mxu0
      %v9413 = vadd.f32 0.0, %v9412
      %v9414 = vpop.f32.mrf.mxu0
      %v9415 = vpop.f32.mrf.mxu0
      %v9416 = vadd.f32 0.0, %v9415
      %v9417 = vpop.f32.mrf.mxu0
      %9418 = vmatprep.mubr.bf16.mxu0 %v9269
      %9419 = vmatmul.mubr.bf16.gmra.mxu0 %v9268
      %v9420 = vpop.f32.mrf.mxu0
      %v9421 = vadd.f32 0.0, %v9420
      %v9422 = vpop.f32.mrf.mxu0
      %v9423 = vpop.f32.mrf.mxu0
      %v9424 = vadd.f32 0.0, %v9423
      %v9425 = vpop.f32.mrf.mxu0
      %9426 = vmatprep.mubr.bf16.mxu0 %v9271
      %9427 = vmatmul.mubr.bf16.gmra.mxu0 %v9270
      %v9428 = vpop.f32.mrf.mxu0
      %v9429 = vadd.f32 0.0, %v9428
      %v9430 = vpop.f32.mrf.mxu0
      %v9431 = vpop.f32.mrf.mxu0
      %v9432 = vadd.f32 0.0, %v9431
      %v9433 = vpop.f32.mrf.mxu0
      %9434 = vmatprep.mubr.bf16.mxu0 %v9273
      %9435 = vmatmul.mubr.bf16.gmra.mxu0 %v9272
      %v9436 = vpop.f32.mrf.mxu0
      %v9437 = vadd.f32 0.0, %v9436
      %v9438 = vpop.f32.mrf.mxu0
      %v9439 = vpop.f32.mrf.mxu0
      %v9440 = vadd.f32 0.0, %v9439
      %v9441 = vpop.f32.mrf.mxu0
      %9442 = vdwg.mxu0
      %v9443 = vadd.f32 %v9193, %v9413
      %v9444 = vadd.f32 %v9194, %v9416
      %v9445 = vadd.f32 %v9195, %v9421
      %v9446 = vadd.f32 %v9196, %v9424
      %v9447 = vadd.f32 %v9197, %v9429
      %v9448 = vadd.f32 %v9198, %v9432
      %v9449 = vadd.f32 %v9199, %v9437
      %v9450 = vadd.f32 %v9200, %v9440
      %v9451 = vld [vmem:[%s513] sm:$0xff]
      %v9452 = vld [vmem:[%s513 + $0x8] sm:$0x11]
      %v9453 = vld [vmem:[%s513 + $0x10] sm:$0xff]
      %v9454 = vld [vmem:[%s513 + $0x18] sm:$0x11]
      %v9455 = vld [vmem:[%s513 + $0x20] sm:$0xff]
      %v9456 = vld [vmem:[%s513 + $0x28] sm:$0x11]
      %v9457 = vld [vmem:[%s513 + $0x30] sm:$0xff]
      %v9458 = vld [vmem:[%s513 + $0x38] sm:$0x11]
      %v9459 = vld [vmem:[%s513 + $0x40] sm:$0xff]
      %v9460 = vld [vmem:[%s513 + $0x48] sm:$0x11]
      %v9461 = vld [vmem:[%s513 + $0x50] sm:$0xff]
      %v9462 = vld [vmem:[%s513 + $0x58] sm:$0x11]
      %v9463 = vld [vmem:[%s513 + $0x60] sm:$0xff]
      %v9464 = vld [vmem:[%s513 + $0x68] sm:$0x11]
      %v9465 = vld [vmem:[%s513 + $0x70] sm:$0xff]
      %v9466 = vld [vmem:[%s513 + $0x78] sm:$0x11]
      %v9468 = vshrl.u32 %v9451, 16
      %v9470 = vrot.slane %v9468, 4
      %v9471 = vshll.u32 %v9451, 16
      %v9473 = vrot.slane %v9471, 5
      %v9474 = vor.u32 %v9470, %v9473
      %v9475 = vrot.slane %v9474, 4
      %v9477 = vshll.u32 %v9452, 16
      %v9479 = vrot.slane %v9477, 5
      %v9480 = vsel %vm998, %v9475, %v9479
      %v9482 = vshrl.u32 %v9453, 16
      %v9484 = vrot.slane %v9482, 4
      %v9485 = vshll.u32 %v9453, 16
      %v9487 = vrot.slane %v9485, 5
      %v9488 = vor.u32 %v9484, %v9487
      %v9489 = vrot.slane %v9488, 4
      %v9491 = vshll.u32 %v9454, 16
      %v9493 = vrot.slane %v9491, 5
      %v9494 = vsel %vm998, %v9489, %v9493
      %v9496 = vshrl.u32 %v9455, 16
      %v9498 = vrot.slane %v9496, 4
      %v9499 = vshll.u32 %v9455, 16
      %v9501 = vrot.slane %v9499, 5
      %v9502 = vor.u32 %v9498, %v9501
      %v9503 = vrot.slane %v9502, 4
      %v9505 = vshll.u32 %v9456, 16
      %v9507 = vrot.slane %v9505, 5
      %v9508 = vsel %vm998, %v9503, %v9507
      %v9510 = vshrl.u32 %v9457, 16
      %v9512 = vrot.slane %v9510, 4
      %v9513 = vshll.u32 %v9457, 16
      %v9515 = vrot.slane %v9513, 5
      %v9516 = vor.u32 %v9512, %v9515
      %v9517 = vrot.slane %v9516, 4
      %v9519 = vshll.u32 %v9458, 16
      %v9521 = vrot.slane %v9519, 5
      %v9522 = vsel %vm998, %v9517, %v9521
      %v9524 = vshrl.u32 %v9459, 16
      %v9526 = vrot.slane %v9524, 4
      %v9527 = vshll.u32 %v9459, 16
      %v9529 = vrot.slane %v9527, 5
      %v9530 = vor.u32 %v9526, %v9529
      %v9531 = vrot.slane %v9530, 4
      %v9533 = vshll.u32 %v9460, 16
      %v9535 = vrot.slane %v9533, 5
      %v9536 = vsel %vm998, %v9531, %v9535
      %v9538 = vshrl.u32 %v9461, 16
      %v9540 = vrot.slane %v9538, 4
      %v9541 = vshll.u32 %v9461, 16
      %v9543 = vrot.slane %v9541, 5
      %v9544 = vor.u32 %v9540, %v9543
      %v9545 = vrot.slane %v9544, 4
      %v9547 = vshll.u32 %v9462, 16
      %v9549 = vrot.slane %v9547, 5
      %v9550 = vsel %vm998, %v9545, %v9549
      %v9552 = vshrl.u32 %v9463, 16
      %v9554 = vrot.slane %v9552, 4
      %v9555 = vshll.u32 %v9463, 16
      %v9557 = vrot.slane %v9555, 5
      %v9558 = vor.u32 %v9554, %v9557
      %v9559 = vrot.slane %v9558, 4
      %v9561 = vshll.u32 %v9464, 16
      %v9563 = vrot.slane %v9561, 5
      %v9564 = vsel %vm998, %v9559, %v9563
      %v9566 = vshrl.u32 %v9465, 16
      %v9568 = vrot.slane %v9566, 4
      %v9569 = vshll.u32 %v9465, 16
      %v9571 = vrot.slane %v9569, 5
      %v9572 = vor.u32 %v9568, %v9571
      %v9573 = vrot.slane %v9572, 4
      %v9575 = vshll.u32 %v9466, 16
      %v9577 = vrot.slane %v9575, 5
      %v9578 = vsel %vm998, %v9573, %v9577
      %s9579 = scalar_lea.vmem %s6, 1664
      %v9580 = vld [vmem:[%s9579] sm:$0xf]
      %v9581 = vld [vmem:[%s9579 + $0x4] sm:$0xf]
      %v9582 = vld [vmem:[%s9579 + $0x8] sm:$0xf]
      %v9583 = vld [vmem:[%s9579 + $0xc] sm:$0xf]
      %v9584 = vld [vmem:[%s9579 + $0x10] sm:$0xf]
      %v9585 = vld [vmem:[%s9579 + $0x14] sm:$0xf]
      %v9586 = vld [vmem:[%s9579 + $0x18] sm:$0xf]
      %v9587 = vld [vmem:[%s9579 + $0x1c] sm:$0xf]
      %v9588 = vld [vmem:[%s9579 + $0x20] sm:$0xf]
      %v9589 = vld [vmem:[%s9579 + $0x24] sm:$0xf]
      %v9590 = vld [vmem:[%s9579 + $0x28] sm:$0xf]
      %v9591 = vld [vmem:[%s9579 + $0x2c] sm:$0xf]
      %v9592 = vld [vmem:[%s9579 + $0x30] sm:$0xf]
      %v9593 = vld [vmem:[%s9579 + $0x34] sm:$0xf]
      %v9594 = vld [vmem:[%s9579 + $0x38] sm:$0xf]
      %v9595 = vld [vmem:[%s9579 + $0x3c] sm:$0xf]
      %v9596 = vld [vmem:[%s9579 + $0x40] sm:$0xf]
      %v9597 = vld [vmem:[%s9579 + $0x44] sm:$0xf]
      %v9598 = vld [vmem:[%s9579 + $0x48] sm:$0xf]
      %v9599 = vld [vmem:[%s9579 + $0x4c] sm:$0xf]
      %v9600 = vld [vmem:[%s9579 + $0x50] sm:$0xf]
      %v9601 = vld [vmem:[%s9579 + $0x54] sm:$0xf]
      %v9602 = vld [vmem:[%s9579 + $0x58] sm:$0xf]
      %v9603 = vld [vmem:[%s9579 + $0x5c] sm:$0xf]
      %v9604 = vld [vmem:[%s9579 + $0x60] sm:$0xf]
      %v9605 = vld [vmem:[%s9579 + $0x64] sm:$0xf]
      %v9606 = vld [vmem:[%s9579 + $0x68] sm:$0xf]
      %v9607 = vld [vmem:[%s9579 + $0x6c] sm:$0xf]
      %v9608 = vld [vmem:[%s9579 + $0x70] sm:$0xf]
      %v9609 = vld [vmem:[%s9579 + $0x74] sm:$0xf]
      %v9610 = vld [vmem:[%s9579 + $0x78] sm:$0xf]
      %v9611 = vld [vmem:[%s9579 + $0x7c] sm:$0xf]
      %v9612 = vunpack.c.l.b16 %v9480
      %v9613 = vunpack.c.h.b16 %v9480
      %v9614 = vunpack.c.l.b16 %v9494
      %v9615 = vunpack.c.h.b16 %v9494
      %v9616 = vunpack.c.l.b16 %v9508
      %v9617 = vunpack.c.h.b16 %v9508
      %v9618 = vunpack.c.l.b16 %v9522
      %v9619 = vunpack.c.h.b16 %v9522
      %v9620 = vunpack.c.l.b16 %v9536
      %v9621 = vunpack.c.h.b16 %v9536
      %v9622 = vunpack.c.l.b16 %v9550
      %v9623 = vunpack.c.h.b16 %v9550
      %v9624 = vunpack.c.l.b16 %v9564
      %v9625 = vunpack.c.h.b16 %v9564
      %v9626 = vunpack.c.l.b16 %v9578
      %v9627 = vunpack.c.h.b16 %v9578
      %v9628 = vpack.c.b16 %v9614, %v9612
      %v9629 = vpack.c.b16 %v9615, %v9613
      %v9630 = vpack.c.b16 %v9618, %v9616
      %v9631 = vpack.c.b16 %v9619, %v9617
      %v9632 = vpack.c.b16 %v9622, %v9620
      %v9633 = vpack.c.b16 %v9623, %v9621
      %v9634 = vpack.c.b16 %v9626, %v9624
      %v9635 = vpack.c.b16 %v9627, %v9625
      %v9676 = vunpack.c.l.b16 %v9580
      %v9677 = vunpack.c.l.b16 %v9581
      %v9678 = vunpack.c.l.b16 %v9582
      %v9679 = vunpack.c.l.b16 %v9583
      %v9680 = vunpack.c.l.b16 %v9584
      %v9681 = vunpack.c.l.b16 %v9585
      %v9682 = vunpack.c.l.b16 %v9586
      %v9683 = vunpack.c.l.b16 %v9587
      %v9684 = vunpack.c.l.b16 %v9588
      %v9685 = vunpack.c.l.b16 %v9589
      %v9686 = vunpack.c.l.b16 %v9590
      %v9687 = vunpack.c.l.b16 %v9591
      %v9688 = vunpack.c.l.b16 %v9592
      %v9689 = vunpack.c.l.b16 %v9593
      %v9690 = vunpack.c.l.b16 %v9594
      %v9691 = vunpack.c.l.b16 %v9595
      %v9692 = vunpack.c.l.b16 %v9596
      %v9693 = vunpack.c.l.b16 %v9597
      %v9694 = vunpack.c.l.b16 %v9598
      %v9695 = vunpack.c.l.b16 %v9599
      %v9696 = vunpack.c.l.b16 %v9600
      %v9697 = vunpack.c.l.b16 %v9601
      %v9698 = vunpack.c.l.b16 %v9602
      %v9699 = vunpack.c.l.b16 %v9603
      %v9700 = vunpack.c.l.b16 %v9604
      %v9701 = vunpack.c.l.b16 %v9605
      %v9702 = vunpack.c.l.b16 %v9606
      %v9703 = vunpack.c.l.b16 %v9607
      %v9704 = vunpack.c.l.b16 %v9608
      %v9705 = vunpack.c.l.b16 %v9609
      %v9706 = vunpack.c.l.b16 %v9610
      %v9707 = vunpack.c.l.b16 %v9611
      %v9708 = vpack.c.b16 %v9677, %v9676
      %v9709 = vpack.c.b16 %v9679, %v9678
      %v9710 = vpack.c.b16 %v9681, %v9680
      %v9711 = vpack.c.b16 %v9683, %v9682
      %v9712 = vpack.c.b16 %v9685, %v9684
      %v9713 = vpack.c.b16 %v9687, %v9686
      %v9714 = vpack.c.b16 %v9689, %v9688
      %v9715 = vpack.c.b16 %v9691, %v9690
      %v9716 = vpack.c.b16 %v9693, %v9692
      %v9717 = vpack.c.b16 %v9695, %v9694
      %v9718 = vpack.c.b16 %v9697, %v9696
      %v9719 = vpack.c.b16 %v9699, %v9698
      %v9720 = vpack.c.b16 %v9701, %v9700
      %v9721 = vpack.c.b16 %v9703, %v9702
      %v9722 = vpack.c.b16 %v9705, %v9704
      %v9723 = vpack.c.b16 %v9707, %v9706
      %9740 = vmatprep.subr.bf16.mxu0 0
      %9741 = vmatpush1.bf16.msra.mxu0 %v9715
      %9742 = vmatprep.subr.bf16.mxu0 0
      %9743 = vmatpush1.bf16.msra.mxu0 %v9714
      %9744 = vmatprep.subr.bf16.mxu0 0
      %9745 = vmatpush1.bf16.msra.mxu0 %v9713
      %9746 = vmatprep.subr.bf16.mxu0 0
      %9747 = vmatpush1.bf16.msra.mxu0 %v9712
      %9748 = vmatprep.subr.bf16.mxu0 0
      %9749 = vmatpush1.bf16.msra.mxu0 %v9711
      %9750 = vmatprep.subr.bf16.mxu0 0
      %9751 = vmatpush1.bf16.msra.mxu0 %v9710
      %9752 = vmatprep.subr.bf16.mxu0 0
      %9753 = vmatpush1.bf16.msra.mxu0 %v9709
      %9754 = vmatprep.subr.bf16.mxu0 0
      %9755 = vmatpush1.bf16.msra.mxu0 %v9708
      %9756 = vmatprep.subr.bf16.mxu0 0
      %9757 = vmatpush2.bf16.msra.mxu0 %v9723
      %9758 = vmatprep.subr.bf16.mxu0 0
      %9759 = vmatpush2.bf16.msra.mxu0 %v9722
      %9760 = vmatprep.subr.bf16.mxu0 0
      %9761 = vmatpush2.bf16.msra.mxu0 %v9721
      %9762 = vmatprep.subr.bf16.mxu0 0
      %9763 = vmatpush2.bf16.msra.mxu0 %v9720
      %9764 = vmatprep.subr.bf16.mxu0 0
      %9765 = vmatpush2.bf16.msra.mxu0 %v9719
      %9766 = vmatprep.subr.bf16.mxu0 0
      %9767 = vmatpush2.bf16.msra.mxu0 %v9718
      %9768 = vmatprep.subr.bf16.mxu0 0
      %9769 = vmatpush2.bf16.msra.mxu0 %v9717
      %9770 = vmatprep.subr.bf16.mxu0 0
      %9771 = vmatpush2.bf16.msra.mxu0 %v9716
      %9772 = vmatprep.mubr.bf16.mxu0 %v9629
      %9773 = vmatmul.mubr.bf16.gmra.mxu0 %v9628
      %v9774 = vpop.f32.mrf.mxu0
      %v9775 = vadd.f32 0.0, %v9774
      %v9776 = vpop.f32.mrf.mxu0
      %v9777 = vpop.f32.mrf.mxu0
      %v9778 = vadd.f32 0.0, %v9777
      %v9779 = vpop.f32.mrf.mxu0
      %9780 = vmatprep.mubr.bf16.mxu0 %v9631
      %9781 = vmatmul.mubr.bf16.gmra.mxu0 %v9630
      %v9782 = vpop.f32.mrf.mxu0
      %v9783 = vadd.f32 0.0, %v9782
      %v9784 = vpop.f32.mrf.mxu0
      %v9785 = vpop.f32.mrf.mxu0
      %v9786 = vadd.f32 0.0, %v9785
      %v9787 = vpop.f32.mrf.mxu0
      %9788 = vmatprep.mubr.bf16.mxu0 %v9633
      %9789 = vmatmul.mubr.bf16.gmra.mxu0 %v9632
      %v9790 = vpop.f32.mrf.mxu0
      %v9791 = vadd.f32 0.0, %v9790
      %v9792 = vpop.f32.mrf.mxu0
      %v9793 = vpop.f32.mrf.mxu0
      %v9794 = vadd.f32 0.0, %v9793
      %v9795 = vpop.f32.mrf.mxu0
      %9796 = vmatprep.mubr.bf16.mxu0 %v9635
      %9797 = vmatmul.mubr.bf16.gmra.mxu0 %v9634
      %v9798 = vpop.f32.mrf.mxu0
      %v9799 = vadd.f32 0.0, %v9798
      %v9800 = vpop.f32.mrf.mxu0
      %v9801 = vpop.f32.mrf.mxu0
      %v9802 = vadd.f32 0.0, %v9801
      %v9803 = vpop.f32.mrf.mxu0
      %9804 = vdwg.mxu0
      %v9805 = vadd.f32 %v9443, %v9775
      %v9806 = vadd.f32 %v9444, %v9778
      %v9807 = vadd.f32 %v9445, %v9783
      %v9808 = vadd.f32 %v9446, %v9786
      %v9809 = vadd.f32 %v9447, %v9791
      %v9810 = vadd.f32 %v9448, %v9794
      %v9811 = vadd.f32 %v9449, %v9799
      %v9812 = vadd.f32 %v9450, %v9802
      %v9813 = vld [vmem:[%s513] sm:$0xee]
      %v9814 = vld [vmem:[%s513 + $0x10] sm:$0xee]
      %v9815 = vld [vmem:[%s513 + $0x20] sm:$0xee]
      %v9816 = vld [vmem:[%s513 + $0x30] sm:$0xee]
      %v9817 = vld [vmem:[%s513 + $0x40] sm:$0xee]
      %v9818 = vld [vmem:[%s513 + $0x50] sm:$0xee]
      %v9819 = vld [vmem:[%s513 + $0x60] sm:$0xee]
      %v9820 = vld [vmem:[%s513 + $0x70] sm:$0xee]
      %v9837 = vrot.slane %v9813, 5
      %v9838 = vrot.slane %v9837, 4
      %v9839 = vrot.slane %v9452, 5
      %v9840 = vsel %vm6228, %v9838, %v9839
      %v9841 = vrot.slane %v9814, 5
      %v9842 = vrot.slane %v9841, 4
      %v9843 = vrot.slane %v9454, 5
      %v9844 = vsel %vm6228, %v9842, %v9843
      %v9845 = vrot.slane %v9815, 5
      %v9846 = vrot.slane %v9845, 4
      %v9847 = vrot.slane %v9456, 5
      %v9848 = vsel %vm6228, %v9846, %v9847
      %v9849 = vrot.slane %v9816, 5
      %v9850 = vrot.slane %v9849, 4
      %v9851 = vrot.slane %v9458, 5
      %v9852 = vsel %vm6228, %v9850, %v9851
      %v9853 = vrot.slane %v9817, 5
      %v9854 = vrot.slane %v9853, 4
      %v9855 = vrot.slane %v9460, 5
      %v9856 = vsel %vm6228, %v9854, %v9855
      %v9857 = vrot.slane %v9818, 5
      %v9858 = vrot.slane %v9857, 4
      %v9859 = vrot.slane %v9462, 5
      %v9860 = vsel %vm6228, %v9858, %v9859
      %v9861 = vrot.slane %v9819, 5
      %v9862 = vrot.slane %v9861, 4
      %v9863 = vrot.slane %v9464, 5
      %v9864 = vsel %vm6228, %v9862, %v9863
      %v9865 = vrot.slane %v9820, 5
      %v9866 = vrot.slane %v9865, 4
      %v9867 = vrot.slane %v9466, 5
      %v9868 = vsel %vm6228, %v9866, %v9867
      %s9869 = scalar_lea.vmem %s6, 1792
      %v9870 = vld [vmem:[%s9869] sm:$0xf]
      %v9871 = vld [vmem:[%s9869 + $0x4] sm:$0xf]
      %v9872 = vld [vmem:[%s9869 + $0x8] sm:$0xf]
      %v9873 = vld [vmem:[%s9869 + $0xc] sm:$0xf]
      %v9874 = vld [vmem:[%s9869 + $0x10] sm:$0xf]
      %v9875 = vld [vmem:[%s9869 + $0x14] sm:$0xf]
      %v9876 = vld [vmem:[%s9869 + $0x18] sm:$0xf]
      %v9877 = vld [vmem:[%s9869 + $0x1c] sm:$0xf]
      %v9878 = vld [vmem:[%s9869 + $0x20] sm:$0xf]
      %v9879 = vld [vmem:[%s9869 + $0x24] sm:$0xf]
      %v9880 = vld [vmem:[%s9869 + $0x28] sm:$0xf]
      %v9881 = vld [vmem:[%s9869 + $0x2c] sm:$0xf]
      %v9882 = vld [vmem:[%s9869 + $0x30] sm:$0xf]
      %v9883 = vld [vmem:[%s9869 + $0x34] sm:$0xf]
      %v9884 = vld [vmem:[%s9869 + $0x38] sm:$0xf]
      %v9885 = vld [vmem:[%s9869 + $0x3c] sm:$0xf]
      %v9886 = vld [vmem:[%s9869 + $0x40] sm:$0xf]
      %v9887 = vld [vmem:[%s9869 + $0x44] sm:$0xf]
      %v9888 = vld [vmem:[%s9869 + $0x48] sm:$0xf]
      %v9889 = vld [vmem:[%s9869 + $0x4c] sm:$0xf]
      %v9890 = vld [vmem:[%s9869 + $0x50] sm:$0xf]
      %v9891 = vld [vmem:[%s9869 + $0x54] sm:$0xf]
      %v9892 = vld [vmem:[%s9869 + $0x58] sm:$0xf]
      %v9893 = vld [vmem:[%s9869 + $0x5c] sm:$0xf]
      %v9894 = vld [vmem:[%s9869 + $0x60] sm:$0xf]
      %v9895 = vld [vmem:[%s9869 + $0x64] sm:$0xf]
      %v9896 = vld [vmem:[%s9869 + $0x68] sm:$0xf]
      %v9897 = vld [vmem:[%s9869 + $0x6c] sm:$0xf]
      %v9898 = vld [vmem:[%s9869 + $0x70] sm:$0xf]
      %v9899 = vld [vmem:[%s9869 + $0x74] sm:$0xf]
      %v9900 = vld [vmem:[%s9869 + $0x78] sm:$0xf]
      %v9901 = vld [vmem:[%s9869 + $0x7c] sm:$0xf]
      %v9902 = vunpack.c.l.b16 %v9840
      %v9903 = vunpack.c.h.b16 %v9840
      %v9904 = vunpack.c.l.b16 %v9844
      %v9905 = vunpack.c.h.b16 %v9844
      %v9906 = vunpack.c.l.b16 %v9848
      %v9907 = vunpack.c.h.b16 %v9848
      %v9908 = vunpack.c.l.b16 %v9852
      %v9909 = vunpack.c.h.b16 %v9852
      %v9910 = vunpack.c.l.b16 %v9856
      %v9911 = vunpack.c.h.b16 %v9856
      %v9912 = vunpack.c.l.b16 %v9860
      %v9913 = vunpack.c.h.b16 %v9860
      %v9914 = vunpack.c.l.b16 %v9864
      %v9915 = vunpack.c.h.b16 %v9864
      %v9916 = vunpack.c.l.b16 %v9868
      %v9917 = vunpack.c.h.b16 %v9868
      %v9918 = vpack.c.b16 %v9904, %v9902
      %v9919 = vpack.c.b16 %v9905, %v9903
      %v9920 = vpack.c.b16 %v9908, %v9906
      %v9921 = vpack.c.b16 %v9909, %v9907
      %v9922 = vpack.c.b16 %v9912, %v9910
      %v9923 = vpack.c.b16 %v9913, %v9911
      %v9924 = vpack.c.b16 %v9916, %v9914
      %v9925 = vpack.c.b16 %v9917, %v9915
      %v9966 = vunpack.c.l.b16 %v9870
      %v9967 = vunpack.c.l.b16 %v9871
      %v9968 = vunpack.c.l.b16 %v9872
      %v9969 = vunpack.c.l.b16 %v9873
      %v9970 = vunpack.c.l.b16 %v9874
      %v9971 = vunpack.c.l.b16 %v9875
      %v9972 = vunpack.c.l.b16 %v9876
      %v9973 = vunpack.c.l.b16 %v9877
      %v9974 = vunpack.c.l.b16 %v9878
      %v9975 = vunpack.c.l.b16 %v9879
      %v9976 = vunpack.c.l.b16 %v9880
      %v9977 = vunpack.c.l.b16 %v9881
      %v9978 = vunpack.c.l.b16 %v9882
      %v9979 = vunpack.c.l.b16 %v9883
      %v9980 = vunpack.c.l.b16 %v9884
      %v9981 = vunpack.c.l.b16 %v9885
      %v9982 = vunpack.c.l.b16 %v9886
      %v9983 = vunpack.c.l.b16 %v9887
      %v9984 = vunpack.c.l.b16 %v9888
      %v9985 = vunpack.c.l.b16 %v9889
      %v9986 = vunpack.c.l.b16 %v9890
      %v9987 = vunpack.c.l.b16 %v9891
      %v9988 = vunpack.c.l.b16 %v9892
      %v9989 = vunpack.c.l.b16 %v9893
      %v9990 = vunpack.c.l.b16 %v9894
      %v9991 = vunpack.c.l.b16 %v9895
      %v9992 = vunpack.c.l.b16 %v9896
      %v9993 = vunpack.c.l.b16 %v9897
      %v9994 = vunpack.c.l.b16 %v9898
      %v9995 = vunpack.c.l.b16 %v9899
      %v9996 = vunpack.c.l.b16 %v9900
      %v9997 = vunpack.c.l.b16 %v9901
      %v9998 = vpack.c.b16 %v9967, %v9966
      %v9999 = vpack.c.b16 %v9969, %v9968
      %v10000 = vpack.c.b16 %v9971, %v9970
      %v10001 = vpack.c.b16 %v9973, %v9972
      %v10002 = vpack.c.b16 %v9975, %v9974
      %v10003 = vpack.c.b16 %v9977, %v9976
      %v10004 = vpack.c.b16 %v9979, %v9978
      %v10005 = vpack.c.b16 %v9981, %v9980
      %v10006 = vpack.c.b16 %v9983, %v9982
      %v10007 = vpack.c.b16 %v9985, %v9984
      %v10008 = vpack.c.b16 %v9987, %v9986
      %v10009 = vpack.c.b16 %v9989, %v9988
      %v10010 = vpack.c.b16 %v9991, %v9990
      %v10011 = vpack.c.b16 %v9993, %v9992
      %v10012 = vpack.c.b16 %v9995, %v9994
      %v10013 = vpack.c.b16 %v9997, %v9996
      %10030 = vmatprep.subr.bf16.mxu0 0
      %10031 = vmatpush1.bf16.msra.mxu0 %v10005
      %10032 = vmatprep.subr.bf16.mxu0 0
      %10033 = vmatpush1.bf16.msra.mxu0 %v10004
      %10034 = vmatprep.subr.bf16.mxu0 0
      %10035 = vmatpush1.bf16.msra.mxu0 %v10003
      %10036 = vmatprep.subr.bf16.mxu0 0
      %10037 = vmatpush1.bf16.msra.mxu0 %v10002
      %10038 = vmatprep.subr.bf16.mxu0 0
      %10039 = vmatpush1.bf16.msra.mxu0 %v10001
      %10040 = vmatprep.subr.bf16.mxu0 0
      %10041 = vmatpush1.bf16.msra.mxu0 %v10000
      %10042 = vmatprep.subr.bf16.mxu0 0
      %10043 = vmatpush1.bf16.msra.mxu0 %v9999
      %10044 = vmatprep.subr.bf16.mxu0 0
      %10045 = vmatpush1.bf16.msra.mxu0 %v9998
      %10046 = vmatprep.subr.bf16.mxu0 0
      %10047 = vmatpush2.bf16.msra.mxu0 %v10013
      %10048 = vmatprep.subr.bf16.mxu0 0
      %10049 = vmatpush2.bf16.msra.mxu0 %v10012
      %10050 = vmatprep.subr.bf16.mxu0 0
      %10051 = vmatpush2.bf16.msra.mxu0 %v10011
      %10052 = vmatprep.subr.bf16.mxu0 0
      %10053 = vmatpush2.bf16.msra.mxu0 %v10010
      %10054 = vmatprep.subr.bf16.mxu0 0
      %10055 = vmatpush2.bf16.msra.mxu0 %v10009
      %10056 = vmatprep.subr.bf16.mxu0 0
      %10057 = vmatpush2.bf16.msra.mxu0 %v10008
      %10058 = vmatprep.subr.bf16.mxu0 0
      %10059 = vmatpush2.bf16.msra.mxu0 %v10007
      %10060 = vmatprep.subr.bf16.mxu0 0
      %10061 = vmatpush2.bf16.msra.mxu0 %v10006
      %10062 = vmatprep.mubr.bf16.mxu0 %v9919
      %10063 = vmatmul.mubr.bf16.gmra.mxu0 %v9918
      %v10064 = vpop.f32.mrf.mxu0
      %v10065 = vadd.f32 0.0, %v10064
      %v10066 = vpop.f32.mrf.mxu0
      %v10067 = vpop.f32.mrf.mxu0
      %v10068 = vadd.f32 0.0, %v10067
      %v10069 = vpop.f32.mrf.mxu0
      %10070 = vmatprep.mubr.bf16.mxu0 %v9921
      %10071 = vmatmul.mubr.bf16.gmra.mxu0 %v9920
      %v10072 = vpop.f32.mrf.mxu0
      %v10073 = vadd.f32 0.0, %v10072
      %v10074 = vpop.f32.mrf.mxu0
      %v10075 = vpop.f32.mrf.mxu0
      %v10076 = vadd.f32 0.0, %v10075
      %v10077 = vpop.f32.mrf.mxu0
      %10078 = vmatprep.mubr.bf16.mxu0 %v9923
      %10079 = vmatmul.mubr.bf16.gmra.mxu0 %v9922
      %v10080 = vpop.f32.mrf.mxu0
      %v10081 = vadd.f32 0.0, %v10080
      %v10082 = vpop.f32.mrf.mxu0
      %v10083 = vpop.f32.mrf.mxu0
      %v10084 = vadd.f32 0.0, %v10083
      %v10085 = vpop.f32.mrf.mxu0
      %10086 = vmatprep.mubr.bf16.mxu0 %v9925
      %10087 = vmatmul.mubr.bf16.gmra.mxu0 %v9924
      %v10088 = vpop.f32.mrf.mxu0
      %v10089 = vadd.f32 0.0, %v10088
      %v10090 = vpop.f32.mrf.mxu0
      %v10091 = vpop.f32.mrf.mxu0
      %v10092 = vadd.f32 0.0, %v10091
      %v10093 = vpop.f32.mrf.mxu0
      %10094 = vdwg.mxu0
      %v10095 = vadd.f32 %v9805, %v10065
      %v10096 = vadd.f32 %v9806, %v10068
      %v10097 = vadd.f32 %v9807, %v10073
      %v10098 = vadd.f32 %v9808, %v10076
      %v10099 = vadd.f32 %v9809, %v10081
      %v10100 = vadd.f32 %v9810, %v10084
      %v10101 = vadd.f32 %v9811, %v10089
      %v10102 = vadd.f32 %v9812, %v10092
      %s10103 = scalar_lea.vmem [#allocation4], 32
      %v10104 = vld [vmem:[%s10103] sm:$0xff]
      %v10105 = vld [vmem:[%s10103 + $0x10] sm:$0xff]
      %v10106 = vld [vmem:[%s10103 + $0x20] sm:$0xff]
      %v10107 = vld [vmem:[%s10103 + $0x30] sm:$0xff]
      %v10108 = vld [vmem:[%s10103 + $0x40] sm:$0xff]
      %v10109 = vld [vmem:[%s10103 + $0x50] sm:$0xff]
      %v10110 = vld [vmem:[%s10103 + $0x60] sm:$0xff]
      %v10111 = vld [vmem:[%s10103 + $0x70] sm:$0xff]
      %s10112 = scalar_lea.vmem %s6, 1920
      %v10113 = vld [vmem:[%s10112] sm:$0xf]
      %v10114 = vld [vmem:[%s10112 + $0x4] sm:$0xf]
      %v10115 = vld [vmem:[%s10112 + $0x8] sm:$0xf]
      %v10116 = vld [vmem:[%s10112 + $0xc] sm:$0xf]
      %v10117 = vld [vmem:[%s10112 + $0x10] sm:$0xf]
      %v10118 = vld [vmem:[%s10112 + $0x14] sm:$0xf]
      %v10119 = vld [vmem:[%s10112 + $0x18] sm:$0xf]
      %v10120 = vld [vmem:[%s10112 + $0x1c] sm:$0xf]
      %v10121 = vld [vmem:[%s10112 + $0x20] sm:$0xf]
      %v10122 = vld [vmem:[%s10112 + $0x24] sm:$0xf]
      %v10123 = vld [vmem:[%s10112 + $0x28] sm:$0xf]
      %v10124 = vld [vmem:[%s10112 + $0x2c] sm:$0xf]
      %v10125 = vld [vmem:[%s10112 + $0x30] sm:$0xf]
      %v10126 = vld [vmem:[%s10112 + $0x34] sm:$0xf]
      %v10127 = vld [vmem:[%s10112 + $0x38] sm:$0xf]
      %v10128 = vld [vmem:[%s10112 + $0x3c] sm:$0xf]
      %v10129 = vld [vmem:[%s10112 + $0x40] sm:$0xf]
      %v10130 = vld [vmem:[%s10112 + $0x44] sm:$0xf]
      %v10131 = vld [vmem:[%s10112 + $0x48] sm:$0xf]
      %v10132 = vld [vmem:[%s10112 + $0x4c] sm:$0xf]
      %v10133 = vld [vmem:[%s10112 + $0x50] sm:$0xf]
      %v10134 = vld [vmem:[%s10112 + $0x54] sm:$0xf]
      %v10135 = vld [vmem:[%s10112 + $0x58] sm:$0xf]
      %v10136 = vld [vmem:[%s10112 + $0x5c] sm:$0xf]
      %v10137 = vld [vmem:[%s10112 + $0x60] sm:$0xf]
      %v10138 = vld [vmem:[%s10112 + $0x64] sm:$0xf]
      %v10139 = vld [vmem:[%s10112 + $0x68] sm:$0xf]
      %v10140 = vld [vmem:[%s10112 + $0x6c] sm:$0xf]
      %v10141 = vld [vmem:[%s10112 + $0x70] sm:$0xf]
      %v10142 = vld [vmem:[%s10112 + $0x74] sm:$0xf]
      %v10143 = vld [vmem:[%s10112 + $0x78] sm:$0xf]
      %v10144 = vld [vmem:[%s10112 + $0x7c] sm:$0xf]
      %v10153 = vunpack.c.l.b16 %v10104
      %v10154 = vunpack.c.h.b16 %v10104
      %v10155 = vunpack.c.l.b16 %v10105
      %v10156 = vunpack.c.h.b16 %v10105
      %v10157 = vunpack.c.l.b16 %v10106
      %v10158 = vunpack.c.h.b16 %v10106
      %v10159 = vunpack.c.l.b16 %v10107
      %v10160 = vunpack.c.h.b16 %v10107
      %v10161 = vunpack.c.l.b16 %v10108
      %v10162 = vunpack.c.h.b16 %v10108
      %v10163 = vunpack.c.l.b16 %v10109
      %v10164 = vunpack.c.h.b16 %v10109
      %v10165 = vunpack.c.l.b16 %v10110
      %v10166 = vunpack.c.h.b16 %v10110
      %v10167 = vunpack.c.l.b16 %v10111
      %v10168 = vunpack.c.h.b16 %v10111
      %v10169 = vpack.c.b16 %v10155, %v10153
      %v10170 = vpack.c.b16 %v10156, %v10154
      %v10171 = vpack.c.b16 %v10159, %v10157
      %v10172 = vpack.c.b16 %v10160, %v10158
      %v10173 = vpack.c.b16 %v10163, %v10161
      %v10174 = vpack.c.b16 %v10164, %v10162
      %v10175 = vpack.c.b16 %v10167, %v10165
      %v10176 = vpack.c.b16 %v10168, %v10166
      %v10217 = vunpack.c.l.b16 %v10113
      %v10218 = vunpack.c.l.b16 %v10114
      %v10219 = vunpack.c.l.b16 %v10115
      %v10220 = vunpack.c.l.b16 %v10116
      %v10221 = vunpack.c.l.b16 %v10117
      %v10222 = vunpack.c.l.b16 %v10118
      %v10223 = vunpack.c.l.b16 %v10119
      %v10224 = vunpack.c.l.b16 %v10120
      %v10225 = vunpack.c.l.b16 %v10121
      %v10226 = vunpack.c.l.b16 %v10122
      %v10227 = vunpack.c.l.b16 %v10123
      %v10228 = vunpack.c.l.b16 %v10124
      %v10229 = vunpack.c.l.b16 %v10125
      %v10230 = vunpack.c.l.b16 %v10126
      %v10231 = vunpack.c.l.b16 %v10127
      %v10232 = vunpack.c.l.b16 %v10128
      %v10233 = vunpack.c.l.b16 %v10129
      %v10234 = vunpack.c.l.b16 %v10130
      %v10235 = vunpack.c.l.b16 %v10131
      %v10236 = vunpack.c.l.b16 %v10132
      %v10237 = vunpack.c.l.b16 %v10133
      %v10238 = vunpack.c.l.b16 %v10134
      %v10239 = vunpack.c.l.b16 %v10135
      %v10240 = vunpack.c.l.b16 %v10136
      %v10241 = vunpack.c.l.b16 %v10137
      %v10242 = vunpack.c.l.b16 %v10138
      %v10243 = vunpack.c.l.b16 %v10139
      %v10244 = vunpack.c.l.b16 %v10140
      %v10245 = vunpack.c.l.b16 %v10141
      %v10246 = vunpack.c.l.b16 %v10142
      %v10247 = vunpack.c.l.b16 %v10143
      %v10248 = vunpack.c.l.b16 %v10144
      %v10249 = vpack.c.b16 %v10218, %v10217
      %v10250 = vpack.c.b16 %v10220, %v10219
      %v10251 = vpack.c.b16 %v10222, %v10221
      %v10252 = vpack.c.b16 %v10224, %v10223
      %v10253 = vpack.c.b16 %v10226, %v10225
      %v10254 = vpack.c.b16 %v10228, %v10227
      %v10255 = vpack.c.b16 %v10230, %v10229
      %v10256 = vpack.c.b16 %v10232, %v10231
      %v10257 = vpack.c.b16 %v10234, %v10233
      %v10258 = vpack.c.b16 %v10236, %v10235
      %v10259 = vpack.c.b16 %v10238, %v10237
      %v10260 = vpack.c.b16 %v10240, %v10239
      %v10261 = vpack.c.b16 %v10242, %v10241
      %v10262 = vpack.c.b16 %v10244, %v10243
      %v10263 = vpack.c.b16 %v10246, %v10245
      %v10264 = vpack.c.b16 %v10248, %v10247
      %10281 = vmatprep.subr.bf16.mxu0 0
      %10282 = vmatpush1.bf16.msra.mxu0 %v10256
      %10283 = vmatprep.subr.bf16.mxu0 0
      %10284 = vmatpush1.bf16.msra.mxu0 %v10255
      %10285 = vmatprep.subr.bf16.mxu0 0
      %10286 = vmatpush1.bf16.msra.mxu0 %v10254
      %10287 = vmatprep.subr.bf16.mxu0 0
      %10288 = vmatpush1.bf16.msra.mxu0 %v10253
      %10289 = vmatprep.subr.bf16.mxu0 0
      %10290 = vmatpush1.bf16.msra.mxu0 %v10252
      %10291 = vmatprep.subr.bf16.mxu0 0
      %10292 = vmatpush1.bf16.msra.mxu0 %v10251
      %10293 = vmatprep.subr.bf16.mxu0 0
      %10294 = vmatpush1.bf16.msra.mxu0 %v10250
      %10295 = vmatprep.subr.bf16.mxu0 0
      %10296 = vmatpush1.bf16.msra.mxu0 %v10249
      %10297 = vmatprep.subr.bf16.mxu0 0
      %10298 = vmatpush2.bf16.msra.mxu0 %v10264
      %10299 = vmatprep.subr.bf16.mxu0 0
      %10300 = vmatpush2.bf16.msra.mxu0 %v10263
      %10301 = vmatprep.subr.bf16.mxu0 0
      %10302 = vmatpush2.bf16.msra.mxu0 %v10262
      %10303 = vmatprep.subr.bf16.mxu0 0
      %10304 = vmatpush2.bf16.msra.mxu0 %v10261
      %10305 = vmatprep.subr.bf16.mxu0 0
      %10306 = vmatpush2.bf16.msra.mxu0 %v10260
      %10307 = vmatprep.subr.bf16.mxu0 0
      %10308 = vmatpush2.bf16.msra.mxu0 %v10259
      %10309 = vmatprep.subr.bf16.mxu0 0
      %10310 = vmatpush2.bf16.msra.mxu0 %v10258
      %10311 = vmatprep.subr.bf16.mxu0 0
      %10312 = vmatpush2.bf16.msra.mxu0 %v10257
      %10313 = vmatprep.mubr.bf16.mxu0 %v10170
      %10314 = vmatmul.mubr.bf16.gmra.mxu0 %v10169
      %v10315 = vpop.f32.mrf.mxu0
      %v10316 = vadd.f32 0.0, %v10315
      %v10317 = vpop.f32.mrf.mxu0
      %v10318 = vpop.f32.mrf.mxu0
      %v10319 = vadd.f32 0.0, %v10318
      %v10320 = vpop.f32.mrf.mxu0
      %10321 = vmatprep.mubr.bf16.mxu0 %v10172
      %10322 = vmatmul.mubr.bf16.gmra.mxu0 %v10171
      %v10323 = vpop.f32.mrf.mxu0
      %v10324 = vadd.f32 0.0, %v10323
      %v10325 = vpop.f32.mrf.mxu0
      %v10326 = vpop.f32.mrf.mxu0
      %v10327 = vadd.f32 0.0, %v10326
      %v10328 = vpop.f32.mrf.mxu0
      %10329 = vmatprep.mubr.bf16.mxu0 %v10174
      %10330 = vmatmul.mubr.bf16.gmra.mxu0 %v10173
      %v10331 = vpop.f32.mrf.mxu0
      %v10332 = vadd.f32 0.0, %v10331
      %v10333 = vpop.f32.mrf.mxu0
      %v10334 = vpop.f32.mrf.mxu0
      %v10335 = vadd.f32 0.0, %v10334
      %v10336 = vpop.f32.mrf.mxu0
      %10337 = vmatprep.mubr.bf16.mxu0 %v10176
      %10338 = vmatmul.mubr.bf16.gmra.mxu0 %v10175
      %v10339 = vpop.f32.mrf.mxu0
      %v10340 = vadd.f32 0.0, %v10339
      %v10341 = vpop.f32.mrf.mxu0
      %v10342 = vpop.f32.mrf.mxu0
      %v10343 = vadd.f32 0.0, %v10342
      %v10344 = vpop.f32.mrf.mxu0
      %10345 = vdwg.mxu0
      %v10346 = vadd.f32 %v10095, %v10316
      %v10347 = vadd.f32 %v10096, %v10319
      %v10348 = vadd.f32 %v10097, %v10324
      %v10349 = vadd.f32 %v10098, %v10327
      %v10350 = vadd.f32 %v10099, %v10332
      %v10351 = vadd.f32 %v10100, %v10335
      %v10352 = vadd.f32 %v10101, %v10340
      %v10353 = vadd.f32 %v10102, %v10343
      %v10354 = vld [vmem:[%s10103] sm:$0xff]
      %v10355 = vld [vmem:[%s10103 + $0x8] sm:$0x11]
      %v10356 = vld [vmem:[%s10103 + $0x10] sm:$0xff]
      %v10357 = vld [vmem:[%s10103 + $0x18] sm:$0x11]
      %v10358 = vld [vmem:[%s10103 + $0x20] sm:$0xff]
      %v10359 = vld [vmem:[%s10103 + $0x28] sm:$0x11]
      %v10360 = vld [vmem:[%s10103 + $0x30] sm:$0xff]
      %v10361 = vld [vmem:[%s10103 + $0x38] sm:$0x11]
      %v10362 = vld [vmem:[%s10103 + $0x40] sm:$0xff]
      %v10363 = vld [vmem:[%s10103 + $0x48] sm:$0x11]
      %v10364 = vld [vmem:[%s10103 + $0x50] sm:$0xff]
      %v10365 = vld [vmem:[%s10103 + $0x58] sm:$0x11]
      %v10366 = vld [vmem:[%s10103 + $0x60] sm:$0xff]
      %v10367 = vld [vmem:[%s10103 + $0x68] sm:$0x11]
      %v10368 = vld [vmem:[%s10103 + $0x70] sm:$0xff]
      %v10369 = vld [vmem:[%s10103 + $0x78] sm:$0x11]
      %v10371 = vshrl.u32 %v10354, 16
      %v10373 = vrot.slane %v10371, 4
      %v10374 = vshll.u32 %v10354, 16
      %v10376 = vrot.slane %v10374, 5
      %v10377 = vor.u32 %v10373, %v10376
      %v10378 = vrot.slane %v10377, 4
      %v10380 = vshll.u32 %v10355, 16
      %v10382 = vrot.slane %v10380, 5
      %v10383 = vsel %vm998, %v10378, %v10382
      %v10385 = vshrl.u32 %v10356, 16
      %v10387 = vrot.slane %v10385, 4
      %v10388 = vshll.u32 %v10356, 16
      %v10390 = vrot.slane %v10388, 5
      %v10391 = vor.u32 %v10387, %v10390
      %v10392 = vrot.slane %v10391, 4
      %v10394 = vshll.u32 %v10357, 16
      %v10396 = vrot.slane %v10394, 5
      %v10397 = vsel %vm998, %v10392, %v10396
      %v10399 = vshrl.u32 %v10358, 16
      %v10401 = vrot.slane %v10399, 4
      %v10402 = vshll.u32 %v10358, 16
      %v10404 = vrot.slane %v10402, 5
      %v10405 = vor.u32 %v10401, %v10404
      %v10406 = vrot.slane %v10405, 4
      %v10408 = vshll.u32 %v10359, 16
      %v10410 = vrot.slane %v10408, 5
      %v10411 = vsel %vm998, %v10406, %v10410
      %v10413 = vshrl.u32 %v10360, 16
      %v10415 = vrot.slane %v10413, 4
      %v10416 = vshll.u32 %v10360, 16
      %v10418 = vrot.slane %v10416, 5
      %v10419 = vor.u32 %v10415, %v10418
      %v10420 = vrot.slane %v10419, 4
      %v10422 = vshll.u32 %v10361, 16
      %v10424 = vrot.slane %v10422, 5
      %v10425 = vsel %vm998, %v10420, %v10424
      %v10427 = vshrl.u32 %v10362, 16
      %v10429 = vrot.slane %v10427, 4
      %v10430 = vshll.u32 %v10362, 16
      %v10432 = vrot.slane %v10430, 5
      %v10433 = vor.u32 %v10429, %v10432
      %v10434 = vrot.slane %v10433, 4
      %v10436 = vshll.u32 %v10363, 16
      %v10438 = vrot.slane %v10436, 5
      %v10439 = vsel %vm998, %v10434, %v10438
      %v10441 = vshrl.u32 %v10364, 16
      %v10443 = vrot.slane %v10441, 4
      %v10444 = vshll.u32 %v10364, 16
      %v10446 = vrot.slane %v10444, 5
      %v10447 = vor.u32 %v10443, %v10446
      %v10448 = vrot.slane %v10447, 4
      %v10450 = vshll.u32 %v10365, 16
      %v10452 = vrot.slane %v10450, 5
      %v10453 = vsel %vm998, %v10448, %v10452
      %v10455 = vshrl.u32 %v10366, 16
      %v10457 = vrot.slane %v10455, 4
      %v10458 = vshll.u32 %v10366, 16
      %v10460 = vrot.slane %v10458, 5
      %v10461 = vor.u32 %v10457, %v10460
      %v10462 = vrot.slane %v10461, 4
      %v10464 = vshll.u32 %v10367, 16
      %v10466 = vrot.slane %v10464, 5
      %v10467 = vsel %vm998, %v10462, %v10466
      %v10469 = vshrl.u32 %v10368, 16
      %v10471 = vrot.slane %v10469, 4
      %v10472 = vshll.u32 %v10368, 16
      %v10474 = vrot.slane %v10472, 5
      %v10475 = vor.u32 %v10471, %v10474
      %v10476 = vrot.slane %v10475, 4
      %v10478 = vshll.u32 %v10369, 16
      %v10480 = vrot.slane %v10478, 5
      %v10481 = vsel %vm998, %v10476, %v10480
      %s10482 = scalar_lea.vmem %s6, 2048
      %v10483 = vld [vmem:[%s10482] sm:$0xf]
      %v10484 = vld [vmem:[%s10482 + $0x4] sm:$0xf]
      %v10485 = vld [vmem:[%s10482 + $0x8] sm:$0xf]
      %v10486 = vld [vmem:[%s10482 + $0xc] sm:$0xf]
      %v10487 = vld [vmem:[%s10482 + $0x10] sm:$0xf]
      %v10488 = vld [vmem:[%s10482 + $0x14] sm:$0xf]
      %v10489 = vld [vmem:[%s10482 + $0x18] sm:$0xf]
      %v10490 = vld [vmem:[%s10482 + $0x1c] sm:$0xf]
      %v10491 = vld [vmem:[%s10482 + $0x20] sm:$0xf]
      %v10492 = vld [vmem:[%s10482 + $0x24] sm:$0xf]
      %v10493 = vld [vmem:[%s10482 + $0x28] sm:$0xf]
      %v10494 = vld [vmem:[%s10482 + $0x2c] sm:$0xf]
      %v10495 = vld [vmem:[%s10482 + $0x30] sm:$0xf]
      %v10496 = vld [vmem:[%s10482 + $0x34] sm:$0xf]
      %v10497 = vld [vmem:[%s10482 + $0x38] sm:$0xf]
      %v10498 = vld [vmem:[%s10482 + $0x3c] sm:$0xf]
      %v10499 = vld [vmem:[%s10482 + $0x40] sm:$0xf]
      %v10500 = vld [vmem:[%s10482 + $0x44] sm:$0xf]
      %v10501 = vld [vmem:[%s10482 + $0x48] sm:$0xf]
      %v10502 = vld [vmem:[%s10482 + $0x4c] sm:$0xf]
      %v10503 = vld [vmem:[%s10482 + $0x50] sm:$0xf]
      %v10504 = vld [vmem:[%s10482 + $0x54] sm:$0xf]
      %v10505 = vld [vmem:[%s10482 + $0x58] sm:$0xf]
      %v10506 = vld [vmem:[%s10482 + $0x5c] sm:$0xf]
      %v10507 = vld [vmem:[%s10482 + $0x60] sm:$0xf]
      %v10508 = vld [vmem:[%s10482 + $0x64] sm:$0xf]
      %v10509 = vld [vmem:[%s10482 + $0x68] sm:$0xf]
      %v10510 = vld [vmem:[%s10482 + $0x6c] sm:$0xf]
      %v10511 = vld [vmem:[%s10482 + $0x70] sm:$0xf]
      %v10512 = vld [vmem:[%s10482 + $0x74] sm:$0xf]
      %v10513 = vld [vmem:[%s10482 + $0x78] sm:$0xf]
      %v10514 = vld [vmem:[%s10482 + $0x7c] sm:$0xf]
      %v10515 = vunpack.c.l.b16 %v10383
      %v10516 = vunpack.c.h.b16 %v10383
      %v10517 = vunpack.c.l.b16 %v10397
      %v10518 = vunpack.c.h.b16 %v10397
      %v10519 = vunpack.c.l.b16 %v10411
      %v10520 = vunpack.c.h.b16 %v10411
      %v10521 = vunpack.c.l.b16 %v10425
      %v10522 = vunpack.c.h.b16 %v10425
      %v10523 = vunpack.c.l.b16 %v10439
      %v10524 = vunpack.c.h.b16 %v10439
      %v10525 = vunpack.c.l.b16 %v10453
      %v10526 = vunpack.c.h.b16 %v10453
      %v10527 = vunpack.c.l.b16 %v10467
      %v10528 = vunpack.c.h.b16 %v10467
      %v10529 = vunpack.c.l.b16 %v10481
      %v10530 = vunpack.c.h.b16 %v10481
      %v10531 = vpack.c.b16 %v10517, %v10515
      %v10532 = vpack.c.b16 %v10518, %v10516
      %v10533 = vpack.c.b16 %v10521, %v10519
      %v10534 = vpack.c.b16 %v10522, %v10520
      %v10535 = vpack.c.b16 %v10525, %v10523
      %v10536 = vpack.c.b16 %v10526, %v10524
      %v10537 = vpack.c.b16 %v10529, %v10527
      %v10538 = vpack.c.b16 %v10530, %v10528
      %v10579 = vunpack.c.l.b16 %v10483
      %v10580 = vunpack.c.l.b16 %v10484
      %v10581 = vunpack.c.l.b16 %v10485
      %v10582 = vunpack.c.l.b16 %v10486
      %v10583 = vunpack.c.l.b16 %v10487
      %v10584 = vunpack.c.l.b16 %v10488
      %v10585 = vunpack.c.l.b16 %v10489
      %v10586 = vunpack.c.l.b16 %v10490
      %v10587 = vunpack.c.l.b16 %v10491
      %v10588 = vunpack.c.l.b16 %v10492
      %v10589 = vunpack.c.l.b16 %v10493
      %v10590 = vunpack.c.l.b16 %v10494
      %v10591 = vunpack.c.l.b16 %v10495
      %v10592 = vunpack.c.l.b16 %v10496
      %v10593 = vunpack.c.l.b16 %v10497
      %v10594 = vunpack.c.l.b16 %v10498
      %v10595 = vunpack.c.l.b16 %v10499
      %v10596 = vunpack.c.l.b16 %v10500
      %v10597 = vunpack.c.l.b16 %v10501
      %v10598 = vunpack.c.l.b16 %v10502
      %v10599 = vunpack.c.l.b16 %v10503
      %v10600 = vunpack.c.l.b16 %v10504
      %v10601 = vunpack.c.l.b16 %v10505
      %v10602 = vunpack.c.l.b16 %v10506
      %v10603 = vunpack.c.l.b16 %v10507
      %v10604 = vunpack.c.l.b16 %v10508
      %v10605 = vunpack.c.l.b16 %v10509
      %v10606 = vunpack.c.l.b16 %v10510
      %v10607 = vunpack.c.l.b16 %v10511
      %v10608 = vunpack.c.l.b16 %v10512
      %v10609 = vunpack.c.l.b16 %v10513
      %v10610 = vunpack.c.l.b16 %v10514
      %v10611 = vpack.c.b16 %v10580, %v10579
      %v10612 = vpack.c.b16 %v10582, %v10581
      %v10613 = vpack.c.b16 %v10584, %v10583
      %v10614 = vpack.c.b16 %v10586, %v10585
      %v10615 = vpack.c.b16 %v10588, %v10587
      %v10616 = vpack.c.b16 %v10590, %v10589
      %v10617 = vpack.c.b16 %v10592, %v10591
      %v10618 = vpack.c.b16 %v10594, %v10593
      %v10619 = vpack.c.b16 %v10596, %v10595
      %v10620 = vpack.c.b16 %v10598, %v10597
      %v10621 = vpack.c.b16 %v10600, %v10599
      %v10622 = vpack.c.b16 %v10602, %v10601
      %v10623 = vpack.c.b16 %v10604, %v10603
      %v10624 = vpack.c.b16 %v10606, %v10605
      %v10625 = vpack.c.b16 %v10608, %v10607
      %v10626 = vpack.c.b16 %v10610, %v10609
      %10643 = vmatprep.subr.bf16.mxu0 0
      %10644 = vmatpush1.bf16.msra.mxu0 %v10618
      %10645 = vmatprep.subr.bf16.mxu0 0
      %10646 = vmatpush1.bf16.msra.mxu0 %v10617
      %10647 = vmatprep.subr.bf16.mxu0 0
      %10648 = vmatpush1.bf16.msra.mxu0 %v10616
      %10649 = vmatprep.subr.bf16.mxu0 0
      %10650 = vmatpush1.bf16.msra.mxu0 %v10615
      %10651 = vmatprep.subr.bf16.mxu0 0
      %10652 = vmatpush1.bf16.msra.mxu0 %v10614
      %10653 = vmatprep.subr.bf16.mxu0 0
      %10654 = vmatpush1.bf16.msra.mxu0 %v10613
      %10655 = vmatprep.subr.bf16.mxu0 0
      %10656 = vmatpush1.bf16.msra.mxu0 %v10612
      %10657 = vmatprep.subr.bf16.mxu0 0
      %10658 = vmatpush1.bf16.msra.mxu0 %v10611
      %10659 = vmatprep.subr.bf16.mxu0 0
      %10660 = vmatpush2.bf16.msra.mxu0 %v10626
      %10661 = vmatprep.subr.bf16.mxu0 0
      %10662 = vmatpush2.bf16.msra.mxu0 %v10625
      %10663 = vmatprep.subr.bf16.mxu0 0
      %10664 = vmatpush2.bf16.msra.mxu0 %v10624
      %10665 = vmatprep.subr.bf16.mxu0 0
      %10666 = vmatpush2.bf16.msra.mxu0 %v10623
      %10667 = vmatprep.subr.bf16.mxu0 0
      %10668 = vmatpush2.bf16.msra.mxu0 %v10622
      %10669 = vmatprep.subr.bf16.mxu0 0
      %10670 = vmatpush2.bf16.msra.mxu0 %v10621
      %10671 = vmatprep.subr.bf16.mxu0 0
      %10672 = vmatpush2.bf16.msra.mxu0 %v10620
      %10673 = vmatprep.subr.bf16.mxu0 0
      %10674 = vmatpush2.bf16.msra.mxu0 %v10619
      %10675 = vmatprep.mubr.bf16.mxu0 %v10532
      %10676 = vmatmul.mubr.bf16.gmra.mxu0 %v10531
      %v10677 = vpop.f32.mrf.mxu0
      %v10678 = vadd.f32 0.0, %v10677
      %v10679 = vpop.f32.mrf.mxu0
      %v10680 = vpop.f32.mrf.mxu0
      %v10681 = vadd.f32 0.0, %v10680
      %v10682 = vpop.f32.mrf.mxu0
      %10683 = vmatprep.mubr.bf16.mxu0 %v10534
      %10684 = vmatmul.mubr.bf16.gmra.mxu0 %v10533
      %v10685 = vpop.f32.mrf.mxu0
      %v10686 = vadd.f32 0.0, %v10685
      %v10687 = vpop.f32.mrf.mxu0
      %v10688 = vpop.f32.mrf.mxu0
      %v10689 = vadd.f32 0.0, %v10688
      %v10690 = vpop.f32.mrf.mxu0
      %10691 = vmatprep.mubr.bf16.mxu0 %v10536
      %10692 = vmatmul.mubr.bf16.gmra.mxu0 %v10535
      %v10693 = vpop.f32.mrf.mxu0
      %v10694 = vadd.f32 0.0, %v10693
      %v10695 = vpop.f32.mrf.mxu0
      %v10696 = vpop.f32.mrf.mxu0
      %v10697 = vadd.f32 0.0, %v10696
      %v10698 = vpop.f32.mrf.mxu0
      %10699 = vmatprep.mubr.bf16.mxu0 %v10538
      %10700 = vmatmul.mubr.bf16.gmra.mxu0 %v10537
      %v10701 = vpop.f32.mrf.mxu0
      %v10702 = vadd.f32 0.0, %v10701
      %v10703 = vpop.f32.mrf.mxu0
      %v10704 = vpop.f32.mrf.mxu0
      %v10705 = vadd.f32 0.0, %v10704
      %v10706 = vpop.f32.mrf.mxu0
      %10707 = vdwg.mxu0
      %v10708 = vadd.f32 %v10346, %v10678
      %v10709 = vadd.f32 %v10347, %v10681
      %v10710 = vadd.f32 %v10348, %v10686
      %v10711 = vadd.f32 %v10349, %v10689
      %v10712 = vadd.f32 %v10350, %v10694
      %v10713 = vadd.f32 %v10351, %v10697
      %v10714 = vadd.f32 %v10352, %v10702
      %v10715 = vadd.f32 %v10353, %v10705
      %v10716 = vld [vmem:[%s10103] sm:$0xee]
      %v10717 = vld [vmem:[%s10103 + $0x10] sm:$0xee]
      %v10718 = vld [vmem:[%s10103 + $0x20] sm:$0xee]
      %v10719 = vld [vmem:[%s10103 + $0x30] sm:$0xee]
      %v10720 = vld [vmem:[%s10103 + $0x40] sm:$0xee]
      %v10721 = vld [vmem:[%s10103 + $0x50] sm:$0xee]
      %v10722 = vld [vmem:[%s10103 + $0x60] sm:$0xee]
      %v10723 = vld [vmem:[%s10103 + $0x70] sm:$0xee]
      %v10740 = vrot.slane %v10716, 5
      %v10741 = vrot.slane %v10740, 4
      %v10742 = vrot.slane %v10355, 5
      %v10743 = vsel %vm6228, %v10741, %v10742
      %v10744 = vrot.slane %v10717, 5
      %v10745 = vrot.slane %v10744, 4
      %v10746 = vrot.slane %v10357, 5
      %v10747 = vsel %vm6228, %v10745, %v10746
      %v10748 = vrot.slane %v10718, 5
      %v10749 = vrot.slane %v10748, 4
      %v10750 = vrot.slane %v10359, 5
      %v10751 = vsel %vm6228, %v10749, %v10750
      %v10752 = vrot.slane %v10719, 5
      %v10753 = vrot.slane %v10752, 4
      %v10754 = vrot.slane %v10361, 5
      %v10755 = vsel %vm6228, %v10753, %v10754
      %v10756 = vrot.slane %v10720, 5
      %v10757 = vrot.slane %v10756, 4
      %v10758 = vrot.slane %v10363, 5
      %v10759 = vsel %vm6228, %v10757, %v10758
      %v10760 = vrot.slane %v10721, 5
      %v10761 = vrot.slane %v10760, 4
      %v10762 = vrot.slane %v10365, 5
      %v10763 = vsel %vm6228, %v10761, %v10762
      %v10764 = vrot.slane %v10722, 5
      %v10765 = vrot.slane %v10764, 4
      %v10766 = vrot.slane %v10367, 5
      %v10767 = vsel %vm6228, %v10765, %v10766
      %v10768 = vrot.slane %v10723, 5
      %v10769 = vrot.slane %v10768, 4
      %v10770 = vrot.slane %v10369, 5
      %v10771 = vsel %vm6228, %v10769, %v10770
      %s10772 = scalar_lea.vmem %s6, 2176
      %v10773 = vld [vmem:[%s10772] sm:$0xf]
      %v10774 = vld [vmem:[%s10772 + $0x4] sm:$0xf]
      %v10775 = vld [vmem:[%s10772 + $0x8] sm:$0xf]
      %v10776 = vld [vmem:[%s10772 + $0xc] sm:$0xf]
      %v10777 = vld [vmem:[%s10772 + $0x10] sm:$0xf]
      %v10778 = vld [vmem:[%s10772 + $0x14] sm:$0xf]
      %v10779 = vld [vmem:[%s10772 + $0x18] sm:$0xf]
      %v10780 = vld [vmem:[%s10772 + $0x1c] sm:$0xf]
      %v10781 = vld [vmem:[%s10772 + $0x20] sm:$0xf]
      %v10782 = vld [vmem:[%s10772 + $0x24] sm:$0xf]
      %v10783 = vld [vmem:[%s10772 + $0x28] sm:$0xf]
      %v10784 = vld [vmem:[%s10772 + $0x2c] sm:$0xf]
      %v10785 = vld [vmem:[%s10772 + $0x30] sm:$0xf]
      %v10786 = vld [vmem:[%s10772 + $0x34] sm:$0xf]
      %v10787 = vld [vmem:[%s10772 + $0x38] sm:$0xf]
      %v10788 = vld [vmem:[%s10772 + $0x3c] sm:$0xf]
      %v10789 = vld [vmem:[%s10772 + $0x40] sm:$0xf]
      %v10790 = vld [vmem:[%s10772 + $0x44] sm:$0xf]
      %v10791 = vld [vmem:[%s10772 + $0x48] sm:$0xf]
      %v10792 = vld [vmem:[%s10772 + $0x4c] sm:$0xf]
      %v10793 = vld [vmem:[%s10772 + $0x50] sm:$0xf]
      %v10794 = vld [vmem:[%s10772 + $0x54] sm:$0xf]
      %v10795 = vld [vmem:[%s10772 + $0x58] sm:$0xf]
      %v10796 = vld [vmem:[%s10772 + $0x5c] sm:$0xf]
      %v10797 = vld [vmem:[%s10772 + $0x60] sm:$0xf]
      %v10798 = vld [vmem:[%s10772 + $0x64] sm:$0xf]
      %v10799 = vld [vmem:[%s10772 + $0x68] sm:$0xf]
      %v10800 = vld [vmem:[%s10772 + $0x6c] sm:$0xf]
      %v10801 = vld [vmem:[%s10772 + $0x70] sm:$0xf]
      %v10802 = vld [vmem:[%s10772 + $0x74] sm:$0xf]
      %v10803 = vld [vmem:[%s10772 + $0x78] sm:$0xf]
      %v10804 = vld [vmem:[%s10772 + $0x7c] sm:$0xf]
      %v10805 = vunpack.c.l.b16 %v10743
      %v10806 = vunpack.c.h.b16 %v10743
      %v10807 = vunpack.c.l.b16 %v10747
      %v10808 = vunpack.c.h.b16 %v10747
      %v10809 = vunpack.c.l.b16 %v10751
      %v10810 = vunpack.c.h.b16 %v10751
      %v10811 = vunpack.c.l.b16 %v10755
      %v10812 = vunpack.c.h.b16 %v10755
      %v10813 = vunpack.c.l.b16 %v10759
      %v10814 = vunpack.c.h.b16 %v10759
      %v10815 = vunpack.c.l.b16 %v10763
      %v10816 = vunpack.c.h.b16 %v10763
      %v10817 = vunpack.c.l.b16 %v10767
      %v10818 = vunpack.c.h.b16 %v10767
      %v10819 = vunpack.c.l.b16 %v10771
      %v10820 = vunpack.c.h.b16 %v10771
      %v10821 = vpack.c.b16 %v10807, %v10805
      %v10822 = vpack.c.b16 %v10808, %v10806
      %v10823 = vpack.c.b16 %v10811, %v10809
      %v10824 = vpack.c.b16 %v10812, %v10810
      %v10825 = vpack.c.b16 %v10815, %v10813
      %v10826 = vpack.c.b16 %v10816, %v10814
      %v10827 = vpack.c.b16 %v10819, %v10817
      %v10828 = vpack.c.b16 %v10820, %v10818
      %v10869 = vunpack.c.l.b16 %v10773
      %v10870 = vunpack.c.l.b16 %v10774
      %v10871 = vunpack.c.l.b16 %v10775
      %v10872 = vunpack.c.l.b16 %v10776
      %v10873 = vunpack.c.l.b16 %v10777
      %v10874 = vunpack.c.l.b16 %v10778
      %v10875 = vunpack.c.l.b16 %v10779
      %v10876 = vunpack.c.l.b16 %v10780
      %v10877 = vunpack.c.l.b16 %v10781
      %v10878 = vunpack.c.l.b16 %v10782
      %v10879 = vunpack.c.l.b16 %v10783
      %v10880 = vunpack.c.l.b16 %v10784
      %v10881 = vunpack.c.l.b16 %v10785
      %v10882 = vunpack.c.l.b16 %v10786
      %v10883 = vunpack.c.l.b16 %v10787
      %v10884 = vunpack.c.l.b16 %v10788
      %v10885 = vunpack.c.l.b16 %v10789
      %v10886 = vunpack.c.l.b16 %v10790
      %v10887 = vunpack.c.l.b16 %v10791
      %v10888 = vunpack.c.l.b16 %v10792
      %v10889 = vunpack.c.l.b16 %v10793
      %v10890 = vunpack.c.l.b16 %v10794
      %v10891 = vunpack.c.l.b16 %v10795
      %v10892 = vunpack.c.l.b16 %v10796
      %v10893 = vunpack.c.l.b16 %v10797
      %v10894 = vunpack.c.l.b16 %v10798
      %v10895 = vunpack.c.l.b16 %v10799
      %v10896 = vunpack.c.l.b16 %v10800
      %v10897 = vunpack.c.l.b16 %v10801
      %v10898 = vunpack.c.l.b16 %v10802
      %v10899 = vunpack.c.l.b16 %v10803
      %v10900 = vunpack.c.l.b16 %v10804
      %v10901 = vpack.c.b16 %v10870, %v10869
      %v10902 = vpack.c.b16 %v10872, %v10871
      %v10903 = vpack.c.b16 %v10874, %v10873
      %v10904 = vpack.c.b16 %v10876, %v10875
      %v10905 = vpack.c.b16 %v10878, %v10877
      %v10906 = vpack.c.b16 %v10880, %v10879
      %v10907 = vpack.c.b16 %v10882, %v10881
      %v10908 = vpack.c.b16 %v10884, %v10883
      %v10909 = vpack.c.b16 %v10886, %v10885
      %v10910 = vpack.c.b16 %v10888, %v10887
      %v10911 = vpack.c.b16 %v10890, %v10889
      %v10912 = vpack.c.b16 %v10892, %v10891
      %v10913 = vpack.c.b16 %v10894, %v10893
      %v10914 = vpack.c.b16 %v10896, %v10895
      %v10915 = vpack.c.b16 %v10898, %v10897
      %v10916 = vpack.c.b16 %v10900, %v10899
      %10933 = vmatprep.subr.bf16.mxu0 0
      %10934 = vmatpush1.bf16.msra.mxu0 %v10908
      %10935 = vmatprep.subr.bf16.mxu0 0
      %10936 = vmatpush1.bf16.msra.mxu0 %v10907
      %10937 = vmatprep.subr.bf16.mxu0 0
      %10938 = vmatpush1.bf16.msra.mxu0 %v10906
      %10939 = vmatprep.subr.bf16.mxu0 0
      %10940 = vmatpush1.bf16.msra.mxu0 %v10905
      %10941 = vmatprep.subr.bf16.mxu0 0
      %10942 = vmatpush1.bf16.msra.mxu0 %v10904
      %10943 = vmatprep.subr.bf16.mxu0 0
      %10944 = vmatpush1.bf16.msra.mxu0 %v10903
      %10945 = vmatprep.subr.bf16.mxu0 0
      %10946 = vmatpush1.bf16.msra.mxu0 %v10902
      %10947 = vmatprep.subr.bf16.mxu0 0
      %10948 = vmatpush1.bf16.msra.mxu0 %v10901
      %10949 = vmatprep.subr.bf16.mxu0 0
      %10950 = vmatpush2.bf16.msra.mxu0 %v10916
      %10951 = vmatprep.subr.bf16.mxu0 0
      %10952 = vmatpush2.bf16.msra.mxu0 %v10915
      %10953 = vmatprep.subr.bf16.mxu0 0
      %10954 = vmatpush2.bf16.msra.mxu0 %v10914
      %10955 = vmatprep.subr.bf16.mxu0 0
      %10956 = vmatpush2.bf16.msra.mxu0 %v10913
      %10957 = vmatprep.subr.bf16.mxu0 0
      %10958 = vmatpush2.bf16.msra.mxu0 %v10912
      %10959 = vmatprep.subr.bf16.mxu0 0
      %10960 = vmatpush2.bf16.msra.mxu0 %v10911
      %10961 = vmatprep.subr.bf16.mxu0 0
      %10962 = vmatpush2.bf16.msra.mxu0 %v10910
      %10963 = vmatprep.subr.bf16.mxu0 0
      %10964 = vmatpush2.bf16.msra.mxu0 %v10909
      %10965 = vmatprep.mubr.bf16.mxu0 %v10822
      %10966 = vmatmul.mubr.bf16.gmra.mxu0 %v10821
      %v10967 = vpop.f32.mrf.mxu0
      %v10968 = vadd.f32 0.0, %v10967
      %v10969 = vpop.f32.mrf.mxu0
      %v10970 = vpop.f32.mrf.mxu0
      %v10971 = vadd.f32 0.0, %v10970
      %v10972 = vpop.f32.mrf.mxu0
      %10973 = vmatprep.mubr.bf16.mxu0 %v10824
      %10974 = vmatmul.mubr.bf16.gmra.mxu0 %v10823
      %v10975 = vpop.f32.mrf.mxu0
      %v10976 = vadd.f32 0.0, %v10975
      %v10977 = vpop.f32.mrf.mxu0
      %v10978 = vpop.f32.mrf.mxu0
      %v10979 = vadd.f32 0.0, %v10978
      %v10980 = vpop.f32.mrf.mxu0
      %10981 = vmatprep.mubr.bf16.mxu0 %v10826
      %10982 = vmatmul.mubr.bf16.gmra.mxu0 %v10825
      %v10983 = vpop.f32.mrf.mxu0
      %v10984 = vadd.f32 0.0, %v10983
      %v10985 = vpop.f32.mrf.mxu0
      %v10986 = vpop.f32.mrf.mxu0
      %v10987 = vadd.f32 0.0, %v10986
      %v10988 = vpop.f32.mrf.mxu0
      %10989 = vmatprep.mubr.bf16.mxu0 %v10828
      %10990 = vmatmul.mubr.bf16.gmra.mxu0 %v10827
      %v10991 = vpop.f32.mrf.mxu0
      %v10992 = vadd.f32 0.0, %v10991
      %v10993 = vpop.f32.mrf.mxu0
      %v10994 = vpop.f32.mrf.mxu0
      %v10995 = vadd.f32 0.0, %v10994
      %v10996 = vpop.f32.mrf.mxu0
      %10997 = vdwg.mxu0
      %v10998 = vadd.f32 %v10708, %v10968
      %v10999 = vadd.f32 %v10709, %v10971
      %v11000 = vadd.f32 %v10710, %v10976
      %v11001 = vadd.f32 %v10711, %v10979
      %v11002 = vadd.f32 %v10712, %v10984
      %v11003 = vadd.f32 %v10713, %v10987
      %v11004 = vadd.f32 %v10714, %v10992
      %v11005 = vadd.f32 %v10715, %v10995
      %v11006 = vld [vmem:[%s7] sm:$0x1]
      %v11008 = vlaneseq
      %v11009 = vshrl.u32 %v11008, 7
      %v11010 = vsub.s32 0, %v11009
      %v11011 = vrot.slane %v11006, %v11010
      %v11013 = vadd.f32 %v10998, %v11011
      %v11014 = vadd.f32 %v10999, %v11011
      %v11015 = vadd.f32 %v11000, %v11011
      %v11016 = vadd.f32 %v11001, %v11011
      %v11017 = vadd.f32 %v11002, %v11011
      %v11018 = vadd.f32 %v11003, %v11011
      %v11019 = vadd.f32 %v11004, %v11011
      %v11020 = vadd.f32 %v11005, %v11011
      %v11021 = vsub.f32 0.0, %v11013
      %v11022 = vsub.f32 0.0, %v11014
      %v11023 = vsub.f32 0.0, %v11015
      %v11024 = vsub.f32 0.0, %v11016
      %v11025 = vsub.f32 0.0, %v11017
      %v11026 = vsub.f32 0.0, %v11018
      %v11027 = vsub.f32 0.0, %v11019
      %v11028 = vsub.f32 0.0, %v11020
      %v11029 = vmul.f32 %v11021, 1.442695
      %v11030 = vpow.pop %v11029
      %v11031 = vmul.f32 %v11022, 1.442695
      %v11032 = vpow.pop %v11031
      %v11033 = vmul.f32 %v11023, 1.442695
      %v11034 = vpow.pop %v11033
      %v11035 = vmul.f32 %v11024, 1.442695
      %v11036 = vpow.pop %v11035
      %v11037 = vmul.f32 %v11025, 1.442695
      %v11038 = vpow.pop %v11037
      %v11039 = vmul.f32 %v11026, 1.442695
      %v11040 = vpow.pop %v11039
      %v11041 = vmul.f32 %v11027, 1.442695
      %v11042 = vpow.pop %v11041
      %v11043 = vmul.f32 %v11028, 1.442695
      %v11044 = vpow.pop %v11043
      %v11045 = vadd.f32 %v11030, 1.0
      %v11046 = vadd.f32 %v11032, 1.0
      %v11047 = vadd.f32 %v11034, 1.0
      %v11048 = vadd.f32 %v11036, 1.0
      %v11049 = vadd.f32 %v11038, 1.0
      %v11050 = vadd.f32 %v11040, 1.0
      %v11051 = vadd.f32 %v11042, 1.0
      %v11052 = vadd.f32 %v11044, 1.0
      %v11053 = vrcp.pop %v11045
      %v11054 = vmul.f32 1.0, %v11053
      %v11055 = vrcp.pop %v11046
      %v11056 = vmul.f32 1.0, %v11055
      %v11057 = vrcp.pop %v11047
      %v11058 = vmul.f32 1.0, %v11057
      %v11059 = vrcp.pop %v11048
      %v11060 = vmul.f32 1.0, %v11059
      %v11061 = vrcp.pop %v11049
      %v11062 = vmul.f32 1.0, %v11061
      %v11063 = vrcp.pop %v11050
      %v11064 = vmul.f32 1.0, %v11063
      %v11065 = vrcp.pop %v11051
      %v11066 = vmul.f32 1.0, %v11065
      %v11067 = vrcp.pop %v11052
      %v11068 = vmul.f32 1.0, %v11067
      %11069 = vst.msk [vmem:[%s305] sm:$0xff] %vm636, %v11054
      %11070 = vst.msk [vmem:[%s305 + $0x8] sm:$0xff] %vm636, %v11056
      %11071 = vst.msk [vmem:[%s305 + $0x10] sm:$0xff] %vm636, %v11058
      %11072 = vst.msk [vmem:[%s305 + $0x18] sm:$0xff] %vm636, %v11060
      %11073 = vst.msk [vmem:[%s305 + $0x20] sm:$0xff] %vm636, %v11062
      %11074 = vst.msk [vmem:[%s305 + $0x28] sm:$0xff] %vm636, %v11064
      %11075 = vst.msk [vmem:[%s305 + $0x30] sm:$0xff] %vm636, %v11066
      %11076 = vst.msk [vmem:[%s305 + $0x38] sm:$0xff] %vm636, %v11068
      %p11077 = scmp.lt.s32.totalorder %s19, 1
      %s11078 = scalar_select %p11077, %s19, 1
      %s11079 = smul.addr %s11078, 8
      %s11080 = smul.addr %s11079, 8
      %s11081 = scalar_lea.vmem %s8, %s11080
      // Predicated region
      $region53: #{fc_decoder_forward.1} parent=51 // pred_check
        %p11082 = pneg %p210
      $region54: #{fc_decoder_forward.1} parent=51 // pred_check_branch
        %11084 = sbr.rel (%p11082) target = $region56
      $region55: #{fc_decoder_forward.1} parent=51 // pred_region
        _
      $region56: #{fc_decoder_forward.1} parent=51 // pred_fallthru
        _
    $region52: #{fc_decoder_forward.1} parent=5 // pred_fallthru
      _
    %p11085 = scmp.le.s32.totalorder 2, %s14
    // Predicated region
    $region57: #{fc_decoder_forward.1} parent=5 // pred_check
      %p11086 = pneg %p11085
    $region58: #{fc_decoder_forward.1} parent=5 // pred_check_branch
      %11088 = sbr.rel (%p11086) target = $region60
    $region59: #{fc_decoder_forward.1} parent=5 // pred_region
      %s11089 = ssub.s32 %s14, 2
      // Predicated region
      $region61: #{fc_decoder_forward.1} parent=59 // pred_check
        %p11090 = pneg %p216
      $region62: #{fc_decoder_forward.1} parent=59 // pred_check_branch
        %11092 = sbr.rel (%p11090) target = $region64
      $region63: #{fc_decoder_forward.1} parent=59 // pred_region
        %p11093 = scmp.lt.s32.totalorder %s20, 1
        %s11094 = scalar_select %p11093, %s20, 1
        %s11095 = smul.addr %s11094, 8
        %s11096 = smul.addr %s11095, 8
        %s11097 = scalar_lea.vmem %s8, %s11096
      $region64: #{fc_decoder_forward.1} parent=59 // pred_fallthru
        _
    $region60: #{fc_decoder_forward.1} parent=5 // pred_fallthru
      _
  $region6: #{fc_decoder_forward.1} parent=0 // loop_footer
    %s18 = sadd.s32 1, %s14
  $region7: #{fc_decoder_forward.1} parent=0 // loop_footer_branch
    %13 = sbr.rel target = $region3
  $region8: #{fc_decoder_forward.1} parent=0 // loop_exit
    _

</llo_original>
